<compile_context>
chip_gen: v5e
topology: v5e:2x2
jax: 0.10.0
libtpu: 0.0.40
codegen_flags: <defaults>
</compile_context>

<pallas_src>
import math
import numpy as np
import jax
import jax.numpy as jnp
from jax.experimental import pallas as pl
from jax.experimental.pallas import tpu as pltpu


def _full_spec(shape):
    """BlockSpec covering the whole array, constant across the batch grid."""
    zeros = (0,) * len(shape)
    return pl.BlockSpec(tuple(shape), lambda b: zeros)


def _rows_per_grid_step(batch_size):
    """Batch rows handled per grid step.

    Single-TensorCore chips (v5e/v6e): fold the whole batch into one grid step
    (otherwise the grid is a serial loop with ~0.35us/step fixed overhead).
    Multi-TensorCore devices (v4/v5p/v7x): one row per step so
    dimension_semantics=("parallel",) spreads batch rows across cores.
    """
    try:
        kind = jax.devices()[0].device_kind.lower()
    except Exception:
        return batch_size
    if any(tag in kind for tag in ("v7", "v4", "v5p")):
        return 1
    return batch_size


# ----------------------------- fused forward kernel -----------------------------

def forward(params, audio_feats, text_feats, speaker_ids, cfg, rows_per_step=None):
    """Mirrors CrossAttentiveTransformerXL.forward (audio+text branch,
    lengths=None, dropout=0). Returns (output, x) like the PyTorch module."""
    D = cfg['d_model']
    H = cfg['n_heads']
    L = cfg['n_layers']
    Dff = cfg['d_ff']
    J = cfg['num_joints']
    hd = D // H
    scale = 1.0 / math.sqrt(hd)
    eps = 1e-5
    bf16 = jnp.bfloat16

    B, Sa, Fa = audio_feats.shape
    St, Ft = text_feats.shape[1], text_feats.shape[2]
    Dout = 7 * J
    Dout_pad = ((Dout + 127) // 128) * 128           # lane-dense output head
    D_pad = ((D + 127) // 128) * 128                 # lane-dense x_enc export

    Bb = rows_per_step if rows_per_step is not None else _rows_per_grid_step(B)
    if Bb < 1 or B % Bb != 0:
        Bb = 1

    # ---- pack weights into kernel-friendly layouts (trace-time, free) ----
    def pack_attn(p):
        wq = p['wq'].astype(bf16)                                            # (D, D)
        wkv = jnp.concatenate([p['wk'], p['wv']], axis=1).astype(bf16)       # (D, 2D)
        wqkv = jnp.concatenate([p['wq'], p['wk'], p['wv']], axis=1).astype(bf16)  # (D, 3D)
        bq = p['bq'].reshape(1, D)
        bkv = jnp.concatenate([p['bk'], p['bv']]).reshape(1, 2 * D)
        bqkv = jnp.concatenate([p['bq'], p['bk'], p['bv']]).reshape(1, 3 * D)
        wo = p['wo'].astype(bf16)                                            # (D, D)
        bo = p['bo'].reshape(1, D)
        return wq, bq, wkv, bkv, wqkv, bqkv, wo, bo

    c_wq, c_bq, c_wkv, c_bkv, _, _, c_wo, c_bo = pack_attn(params['cross'])

    l_wqkv, l_bqkv, l_wo, l_bo = [], [], [], []
    l_lng, l_lnb, l_w1, l_b1, l_w2, l_b2 = [], [], [], [], [], []
    for layer in params['layers']:
        _, _, _, _, wqkv, bqkv, wo, bo = pack_attn(layer['attn'])
        l_wqkv.append(wqkv); l_bqkv.append(bqkv); l_wo.append(wo); l_bo.append(bo)
        l_lng.append(jnp.stack([layer['ln1_g'], layer['ln2_g']], 0))   # (2, D)
        l_lnb.append(jnp.stack([layer['ln1_b'], layer['ln2_b']], 0))
        l_w1.append(layer['w1'].astype(bf16))
        l_b1.append(layer['b1'].reshape(1, Dff))
        l_w2.append(layer['w2'].astype(bf16))
        l_b2.append(layer['b2'].reshape(1, D))
    l_wqkv = jnp.stack(l_wqkv); l_bqkv = jnp.stack(l_bqkv)
    l_wo = jnp.stack(l_wo);     l_bo = jnp.stack(l_bo)
    l_lng = jnp.stack(l_lng);   l_lnb = jnp.stack(l_lnb)
    l_w1 = jnp.stack(l_w1);     l_b1 = jnp.stack(l_b1)
    l_w2 = jnp.stack(l_w2);     l_b2 = jnp.stack(l_b2)

    # input projections, split so no (B,S,F+8) concat is ever materialized
    aw_main = params['audio_w'][:Fa].astype(bf16)    # (256, D)
    aw_spk = params['audio_w'][Fa:].astype(bf16)     # (8, D)
    ab = params['audio_b'].reshape(1, D)
    tw_main = params['text_w'][:Ft].astype(bf16)     # (4096, D)
    tw_spk = params['text_w'][Ft:].astype(bf16)      # (8, D)
    tb = params['text_b'].reshape(1, D)

    # output head, zero-padded to lane-dense 128 columns
    ow = jnp.pad(params['out_w'], ((0, 0), (0, Dout_pad - Dout))).astype(bf16)
    ob = jnp.pad(params['out_b'], (0, Dout_pad - Dout)).reshape(1, Dout_pad)

    # activations / per-batch extras
    audio_bf = audio_feats.astype(bf16)                                  # (B,Sa,256)
    text_bf = text_feats.astype(bf16)                                    # (B,St,4096)
    spk = params['spk_emb'][speaker_ids].reshape(B, 1, 8).astype(bf16)   # gather in JAX
    pos = params['pos_enc'][:, :Sa, :]                                   # (1,Sa,D) f32

    # ---- kernel body (Bb batch rows per grid step) ----
    def kernel(audio_ref, text_ref, spk_ref, pos_ref,
               awm_ref, aws_ref, ab_ref, twm_ref, tws_ref, tb_ref,
               cwq_ref, cbq_ref, cwkv_ref, cbkv_ref, cwo_ref, cbo_ref,
               lwqkv_ref, lbqkv_ref, lwo_ref, lbo_ref,
               lng_ref, lnb_ref, lw1_ref, lb1_ref, lw2_ref, lb2_ref,
               ow_ref, ob_ref,
               x_out_ref, out_ref):
        f32 = jnp.float32

        def attention(q2, k2, v2, wo_bf, bo):
            """q2:(Sq,D), k2/v2:(Skv,D) bf16 -> (Sq,D) f32."""
            # head split via static lane slices of the fused projection output
            qh = jnp.stack([q2[:, h * hd:(h + 1) * hd] for h in range(H)], 0)
            kh = jnp.stack([k2[:, h * hd:(h + 1) * hd] for h in range(H)], 0)
            vh = jnp.stack([v2[:, h * hd:(h + 1) * hd] for h in range(H)], 0)
            s = jnp.einsum('hqd,hkd->hqk', qh, kh,
                           preferred_element_type=f32) * scale
            s = s - jnp.max(s, axis=-1, keepdims=True)
            e = jnp.exp(s)
            p = (e * pl.reciprocal(jnp.sum(e, axis=-1, keepdims=True),
                                   approx=True)).astype(bf16)
            ctx = jnp.einsum('hqk,hkd->hqd', p, vh,
                             preferred_element_type=f32)           # (H,Sq,hd)
            # heads back onto lanes -> ONE (Sq,D)@(D,D) output projection
            ctx2 = jnp.concatenate([ctx[h] for h in range(H)], axis=-1)
            return jnp.dot(ctx2.astype(bf16), wo_bf,
                           preferred_element_type=f32) + bo

        def layer_norm(v, g, b):
            mu = jnp.mean(v, axis=-1, keepdims=True)
            var = jnp.mean(jnp.square(v - mu), axis=-1, keepdims=True)
            return (v - mu) * jax.lax.rsqrt(var + eps) * g + b

        pos_sa = pos_ref[0]                                        # (Sa, D) f32
        x_zpad = jnp.zeros((Sa, D_pad - D), f32)

        for r in range(Bb):                                        # static row loop
            spk_row = spk_ref[r]                                   # (1, 8) bf16

            # fused input projections: feats @ W[:F] + spk @ W[F:] + b
            audio_x = (jnp.dot(audio_ref[r], awm_ref[...], preferred_element_type=f32)
                       + jnp.dot(spk_row, aws_ref[...], preferred_element_type=f32)
                       + ab_ref[...])                              # (Sa, D) f32
            text_x = (jnp.dot(text_ref[r], twm_ref[...], preferred_element_type=f32)
                      + jnp.dot(spk_row, tws_ref[...], preferred_element_type=f32)
                      + tb_ref[...])                               # (St, D) f32

            # cross attention: fused Q and fused KV projections (2 matmuls)
            q2 = (jnp.dot(audio_x.astype(bf16), cwq_ref[...],
                          preferred_element_type=f32) + cbq_ref[...]).astype(bf16)
            kv2 = (jnp.dot(text_x.astype(bf16), cwkv_ref[...],
                           preferred_element_type=f32) + cbkv_ref[...]).astype(bf16)
            x = attention(q2, kv2[:, :D], kv2[:, D:],
                          cwo_ref[...], cbo_ref[...]) + pos_sa     # (Sa, D) f32

            # lane-dense export of x (D padded to 128, sliced off in wrapper)
            x_out_ref[r] = jnp.concatenate([x, x_zpad], axis=-1)

            # post-norm TransformerEncoder stack (static unrolled layer loop)
            h = x
            for l in range(L):
                # fused QKV: ONE (Sa,D)@(D,3D) matmul, single bf16 repack
                qkv = (jnp.dot(h.astype(bf16), lwqkv_ref[l],
                               preferred_element_type=f32)
                       + lbqkv_ref[l]).astype(bf16)                # (Sa, 3D)
                sa_out = attention(qkv[:, :D], qkv[:, D:2 * D], qkv[:, 2 * D:],
                                   lwo_ref[l], lbo_ref[l])
                lg = lng_ref[l]                                    # (2, D)
                lb = lnb_ref[l]
                h = layer_norm(h + sa_out, lg[0:1], lb[0:1])
                ff = jnp.dot(h.astype(bf16), lw1_ref[l],
                             preferred_element_type=f32) + lb1_ref[l]
                ff = jnp.maximum(ff, 0.0)
                ff = jnp.dot(ff.astype(bf16), lw2_ref[l],
                             preferred_element_type=f32) + lb2_ref[l]
                h = layer_norm(h + ff, lg[1:2], lb[1:2])

            # lane-dense (128-wide) output head
            out_ref[r] = (jnp.dot(h.astype(bf16), ow_ref[...],
                                  preferred_element_type=f32) + ob_ref[...])

    inputs = [audio_bf, text_bf, spk, pos,
              aw_main, aw_spk, ab, tw_main, tw_spk, tb,
              c_wq, c_bq, c_wkv, c_bkv, c_wo, c_bo,
              l_wqkv, l_bqkv, l_wo, l_bo,
              l_lng, l_lnb, l_w1, l_b1, l_w2, l_b2,
              ow, ob]

    in_specs = [
        pl.BlockSpec((Bb, Sa, Fa), lambda b: (b, 0, 0)),   # audio feats block
        pl.BlockSpec((Bb, St, Ft), lambda b: (b, 0, 0)),   # text feats block
        pl.BlockSpec((Bb, 1, 8), lambda b: (b, 0, 0)),     # speaker embedding rows
    ] + [_full_spec(a.shape) for a in inputs[3:]]           # weights: resident

    out_specs = [
        pl.BlockSpec((Bb, Sa, D_pad), lambda b: (b, 0, 0)),      # padded x (cross+pos)
        pl.BlockSpec((Bb, Sa, Dout_pad), lambda b: (b, 0, 0)),   # padded output
    ]
    out_shape = [
        jax.ShapeDtypeStruct((B, Sa, D_pad), jnp.float32),
        jax.ShapeDtypeStruct((B, Sa, Dout_pad), jnp.float32),
    ]

    x_pad, out_pad = pl.pallas_call(
        kernel,
        grid=(B // Bb,),
        in_specs=in_specs,
        out_specs=out_specs,
        out_shape=out_shape,
        compiler_params=pltpu.CompilerParams(
            dimension_semantics=("parallel",),
            vmem_limit_bytes=32 * 1024 * 1024),
    )(*inputs)

    return out_pad[:, :, :Dout], x_pad[:, :, :D]


# ----------------------------- parameter init -----------------------------

def init_params(key, cfg):
    d_model = cfg['d_model']
    d_ff = cfg['d_ff']
    n_layers = cfg['n_layers']
    num_joints = cfg['num_joints']

    keys = jax.random.split(key, 16 + 16 * n_layers + 8)
    it = iter(keys)

    def w(shape, scale=0.02):
        return (scale * jax.random.normal(next(it), shape)).astype(jnp.float32)

    def attn_params():
        return dict(
            wq=w((d_model, d_model)), wk=w((d_model, d_model)), wv=w((d_model, d_model)),
            bq=w((d_model,)), bk=w((d_model,)), bv=w((d_model,)),
            wo=w((d_model, d_model)), bo=w((d_model,)),
        )

    params = dict(
        spk_emb=w((100, 8), 1.0),                       # nn.Embedding(100, 8)
        audio_w=w((256 + 8, d_model)), audio_b=w((d_model,)),
        text_w=w((4096 + 8, d_model)), text_b=w((d_model,)),
        pos_enc=w((1, 5000, d_model), 1.0),             # nn.Parameter(randn(1,5000,d))
        cross=attn_params(),
        out_w=w((d_model, 7 * num_joints)), out_b=w((7 * num_joints,)),
        layers=[],
    )
    for _ in range(n_layers):
        params['layers'].append(dict(
            attn=attn_params(),
            ln1_g=jnp.ones((d_model,), jnp.float32), ln1_b=jnp.zeros((d_model,), jnp.float32),
            w1=w((d_model, d_ff)), b1=w((d_ff,)),
            w2=w((d_ff, d_model)), b2=w((d_model,)),
            ln2_g=jnp.ones((d_model,), jnp.float32), ln2_b=jnp.zeros((d_model,), jnp.float32),
        ))
    return params


# ----------------------------- pure-JAX reference -----------------------------

_HI = jax.lax.Precision.HIGHEST


def _ref_mha(q_in, kv_in, p, n_heads):
    B, Sq, D = q_in.shape
    Skv = kv_in.shape[1]
    hd = D // n_heads
    q = jnp.einsum('bsd,de->bse', q_in, p['wq'], precision=_HI) + p['bq']
    k = jnp.einsum('bsd,de->bse', kv_in, p['wk'], precision=_HI) + p['bk']
    v = jnp.einsum('bsd,de->bse', kv_in, p['wv'], precision=_HI) + p['bv']
    q = q.reshape(B, Sq, n_heads, hd)
    k = k.reshape(B, Skv, n_heads, hd)
    v = v.reshape(B, Skv, n_heads, hd)
    s = jnp.einsum('bqhd,bkhd->bhqk', q, k, precision=_HI) / math.sqrt(hd)
    a = jax.nn.softmax(s, axis=-1)
    o = jnp.einsum('bhqk,bkhd->bqhd', a, v, precision=_HI).reshape(B, Sq, D)
    return jnp.einsum('bsd,de->bse', o, p['wo'], precision=_HI) + p['bo']


def _ref_ln(h, g, b, eps=1e-5):
    mu = jnp.mean(h, axis=-1, keepdims=True)
    var = jnp.mean(jnp.square(h - mu), axis=-1, keepdims=True)
    return (h - mu) * jax.lax.rsqrt(var + eps) * g + b


def reference_forward(params, audio_feats, text_feats, speaker_ids, cfg):
    n_heads = cfg['n_heads']
    B, Sa, _ = audio_feats.shape
    St = text_feats.shape[1]
    spk = params['spk_emb'][speaker_ids]
    spk_a = jnp.broadcast_to(spk[:, None, :], (B, Sa, 8))
    spk_t = jnp.broadcast_to(spk[:, None, :], (B, St, 8))
    audio_x = jnp.einsum('bsd,de->bse', jnp.concatenate([audio_feats, spk_a], -1),
                         params['audio_w'], precision=_HI) + params['audio_b']
    text_x = jnp.einsum('bsd,de->bse', jnp.concatenate([text_feats, spk_t], -1),
                        params['text_w'], precision=_HI) + params['text_b']
    x = _ref_mha(audio_x, text_x, params['cross'], n_heads)
    x = x + params['pos_enc'][:, :Sa, :]
    h = x
    for layer in params['layers']:
        sa = _ref_mha(h, h, layer['attn'], n_heads)
        h = _ref_ln(h + sa, layer['ln1_g'], layer['ln1_b'])
        ff = jnp.einsum('bsd,df->bsf', h, layer['w1'], precision=_HI) + layer['b1']
        ff = jnp.maximum(ff, 0.0)
        ff = jnp.einsum('bsf,fd->bsd', ff, layer['w2'], precision=_HI) + layer['b2']
        h = _ref_ln(h + ff, layer['ln2_g'], layer['ln2_b'])
    out = jnp.einsum('bsd,do->bso', h, params['out_w'], precision=_HI) + params['out_b']
    return out, x


# ----------------------------- main -----------------------------

if __name__ == "__main__":
    cfg = dict(d_model=32, n_heads=4, d_ff=64, n_layers=2, num_joints=4)

    key = jax.random.PRNGKey(0)
    kp, ka, kt, ks = jax.random.split(key, 4)
    params = init_params(kp, cfg)

    B, Sa, St = 2, 8, 6
    audio_feats = jax.random.normal(ka, (B, Sa, 256), jnp.float32)
    text_feats = jax.random.normal(kt, (B, St, 4096), jnp.float32)
    speaker_ids = jax.random.randint(ks, (B,), 0, 100)

    rows = _rows_per_grid_step(B)   # chosen once, outside jit
    fwd = jax.jit(lambda p, a, t, s: forward(p, a, t, s, cfg, rows_per_step=rows))
    out, x_enc = fwd(params, audio_feats, text_feats, speaker_ids)
    (out, x_enc) = jax.block_until_ready((out, x_enc))

    assert out.shape == (B, Sa, 7 * cfg['num_joints'])
    assert x_enc.shape == (B, Sa, cfg['d_model'])

    ref_out, ref_x = reference_forward(params, audio_feats, text_feats, speaker_ids, cfg)
    # bf16 MXU operands + approx reciprocal in softmax -> slightly looser tolerance
    np.testing.assert_allclose(np.asarray(x_enc), np.asarray(ref_x), atol=2e-2, rtol=2e-2)
    np.testing.assert_allclose(np.asarray(out), np.asarray(ref_out), atol=2e-2, rtol=2e-2)

    print("KERNEL_OK")
</pallas_src>

<mosaic_0001>
module attributes {stable_mosaic.version = 11 : i64} {
  func.func @kernel(%arg0: i32, %arg1: memref<2x8x256xbf16, #tpu.memory_space<vmem>>, %arg2: memref<2x6x4096xbf16, #tpu.memory_space<vmem>>, %arg3: memref<2x1x8xbf16, #tpu.memory_space<vmem>>, %arg4: memref<1x8x32xf32, #tpu.memory_space<vmem>>, %arg5: memref<256x32xbf16, #tpu.memory_space<vmem>>, %arg6: memref<8x32xbf16, #tpu.memory_space<vmem>>, %arg7: memref<1x32xf32, #tpu.memory_space<vmem>>, %arg8: memref<4096x32xbf16, #tpu.memory_space<vmem>>, %arg9: memref<8x32xbf16, #tpu.memory_space<vmem>>, %arg10: memref<1x32xf32, #tpu.memory_space<vmem>>, %arg11: memref<32x32xbf16, #tpu.memory_space<vmem>>, %arg12: memref<1x32xf32, #tpu.memory_space<vmem>>, %arg13: memref<32x64xbf16, #tpu.memory_space<vmem>>, %arg14: memref<1x64xf32, #tpu.memory_space<vmem>>, %arg15: memref<32x32xbf16, #tpu.memory_space<vmem>>, %arg16: memref<1x32xf32, #tpu.memory_space<vmem>>, %arg17: memref<2x32x96xbf16, #tpu.memory_space<vmem>>, %arg18: memref<2x1x96xf32, #tpu.memory_space<vmem>>, %arg19: memref<2x32x32xbf16, #tpu.memory_space<vmem>>, %arg20: memref<2x1x32xf32, #tpu.memory_space<vmem>>, %arg21: memref<2x2x32xf32, #tpu.memory_space<vmem>>, %arg22: memref<2x2x32xf32, #tpu.memory_space<vmem>>, %arg23: memref<2x32x64xbf16, #tpu.memory_space<vmem>>, %arg24: memref<2x1x64xf32, #tpu.memory_space<vmem>>, %arg25: memref<2x64x32xbf16, #tpu.memory_space<vmem>>, %arg26: memref<2x1x32xf32, #tpu.memory_space<vmem>>, %arg27: memref<32x128xbf16, #tpu.memory_space<vmem>>, %arg28: memref<1x128xf32, #tpu.memory_space<vmem>>, %arg29: memref<2x8x128xf32, #tpu.memory_space<vmem>>, %arg30: memref<2x8x128xf32, #tpu.memory_space<vmem>>) attributes {dimension_semantics = [#tpu.dimension_semantics<parallel>], iteration_bounds = array<i64: 1>, scalar_prefetch = 0 : i64, scratch_operands = 0 : i64, tpu.core_type = #tpu.core_type<tc>, window_params = [{transform_indices = @transform_0, window_bounds = array<i64: 2, 8, 256>}, {transform_indices = @transform_1, window_bounds = array<i64: 2, 6, 4096>}, {transform_indices = @transform_2, window_bounds = array<i64: 2, 1, 8>}, {pipeline_mode = #tpu.pipeline_mode<synchronous>, transform_indices = @transform_3, window_bounds = array<i64: 1, 8, 32>}, {pipeline_mode = #tpu.pipeline_mode<synchronous>, transform_indices = @transform_4, window_bounds = array<i64: 256, 32>}, {pipeline_mode = #tpu.pipeline_mode<synchronous>, transform_indices = @transform_5, window_bounds = array<i64: 8, 32>}, {pipeline_mode = #tpu.pipeline_mode<synchronous>, transform_indices = @transform_6, window_bounds = array<i64: 1, 32>}, {pipeline_mode = #tpu.pipeline_mode<synchronous>, transform_indices = @transform_7, window_bounds = array<i64: 4096, 32>}, {pipeline_mode = #tpu.pipeline_mode<synchronous>, transform_indices = @transform_8, window_bounds = array<i64: 8, 32>}, {pipeline_mode = #tpu.pipeline_mode<synchronous>, transform_indices = @transform_9, window_bounds = array<i64: 1, 32>}, {pipeline_mode = #tpu.pipeline_mode<synchronous>, transform_indices = @transform_10, window_bounds = array<i64: 32, 32>}, {pipeline_mode = #tpu.pipeline_mode<synchronous>, transform_indices = @transform_11, window_bounds = array<i64: 1, 32>}, {pipeline_mode = #tpu.pipeline_mode<synchronous>, transform_indices = @transform_12, window_bounds = array<i64: 32, 64>}, {pipeline_mode = #tpu.pipeline_mode<synchronous>, transform_indices = @transform_13, window_bounds = array<i64: 1, 64>}, {pipeline_mode = #tpu.pipeline_mode<synchronous>, transform_indices = @transform_14, window_bounds = array<i64: 32, 32>}, {pipeline_mode = #tpu.pipeline_mode<synchronous>, transform_indices = @transform_15, window_bounds = array<i64: 1, 32>}, {pipeline_mode = #tpu.pipeline_mode<synchronous>, transform_indices = @transform_16, window_bounds = array<i64: 2, 32, 96>}, {pipeline_mode = #tpu.pipeline_mode<synchronous>, transform_indices = @transform_17, window_bounds = array<i64: 2, 1, 96>}, {pipeline_mode = #tpu.pipeline_mode<synchronous>, transform_indices = @transform_18, window_bounds = array<i64: 2, 32, 32>}, {pipeline_mode = #tpu.pipeline_mode<synchronous>, transform_indices = @transform_19, window_bounds = array<i64: 2, 1, 32>}, {pipeline_mode = #tpu.pipeline_mode<synchronous>, transform_indices = @transform_20, window_bounds = array<i64: 2, 2, 32>}, {pipeline_mode = #tpu.pipeline_mode<synchronous>, transform_indices = @transform_21, window_bounds = array<i64: 2, 2, 32>}, {pipeline_mode = #tpu.pipeline_mode<synchronous>, transform_indices = @transform_22, window_bounds = array<i64: 2, 32, 64>}, {pipeline_mode = #tpu.pipeline_mode<synchronous>, transform_indices = @transform_23, window_bounds = array<i64: 2, 1, 64>}, {pipeline_mode = #tpu.pipeline_mode<synchronous>, transform_indices = @transform_24, window_bounds = array<i64: 2, 64, 32>}, {pipeline_mode = #tpu.pipeline_mode<synchronous>, transform_indices = @transform_25, window_bounds = array<i64: 2, 1, 32>}, {pipeline_mode = #tpu.pipeline_mode<synchronous>, transform_indices = @transform_26, window_bounds = array<i64: 32, 128>}, {pipeline_mode = #tpu.pipeline_mode<synchronous>, transform_indices = @transform_27, window_bounds = array<i64: 1, 128>}, {transform_indices = @transform_28, window_bounds = array<i64: 2, 8, 128>}, {transform_indices = @transform_29, window_bounds = array<i64: 2, 8, 128>}]} {
    %c0 = arith.constant 0 : index
    %c0_0 = arith.constant 0 : index
    %c0_1 = arith.constant 0 : index
    %0 = vector.load %arg4[%c0, %c0_0, %c0_1] : memref<1x8x32xf32, #tpu.memory_space<vmem>>, vector<1x8x32xf32>
    %1 = vector.shape_cast %0 : vector<1x8x32xf32> to vector<8x32xf32>
    %cst = arith.constant 0.000000e+00 : f32
    %2 = vector.broadcast %cst : f32 to vector<8x96xf32>
    %c0_2 = arith.constant 0 : index
    %c0_3 = arith.constant 0 : index
    %c0_4 = arith.constant 0 : index
    %3 = vector.load %arg3[%c0_2, %c0_3, %c0_4] : memref<2x1x8xbf16, #tpu.memory_space<vmem>>, vector<1x1x8xbf16>
    %4 = vector.shape_cast %3 : vector<1x1x8xbf16> to vector<1x8xbf16>
    %c0_5 = arith.constant 0 : index
    %c0_6 = arith.constant 0 : index
    %c0_7 = arith.constant 0 : index
    %5 = vector.load %arg1[%c0_5, %c0_6, %c0_7] : memref<2x8x256xbf16, #tpu.memory_space<vmem>>, vector<1x8x256xbf16>
    %6 = vector.shape_cast %5 : vector<1x8x256xbf16> to vector<8x256xbf16>
    %c0_8 = arith.constant 0 : index
    %c0_9 = arith.constant 0 : index
    %7 = vector.load %arg5[%c0_8, %c0_9] : memref<256x32xbf16, #tpu.memory_space<vmem>>, vector<256x32xbf16>
    %cst_10 = arith.constant dense<0.000000e+00> : vector<8x32xf32>
    %8 = tpu.matmul %6, %7, %cst_10 {dimension_numbers = #tpu.dot_dimension_numbers<[1], [0], [0], [1], [0, 0, 1, 1], [], []>} : vector<8x256xbf16>, vector<256x32xbf16>, vector<8x32xf32> -> vector<8x32xf32>
    %c0_11 = arith.constant 0 : index
    %c0_12 = arith.constant 0 : index
    %9 = vector.load %arg6[%c0_11, %c0_12] : memref<8x32xbf16, #tpu.memory_space<vmem>>, vector<8x32xbf16>
    %cst_13 = arith.constant dense<0.000000e+00> : vector<1x32xf32>
    %10 = tpu.matmul %4, %9, %cst_13 {dimension_numbers = #tpu.dot_dimension_numbers<[1], [0], [0], [1], [0, 0, 1, 1], [], []>} : vector<1x8xbf16>, vector<8x32xbf16>, vector<1x32xf32> -> vector<1x32xf32>
    %11 = vector.broadcast %10 : vector<1x32xf32> to vector<8x32xf32>
    %12 = arith.addf %8, %11 : vector<8x32xf32>
    %c0_14 = arith.constant 0 : index
    %c0_15 = arith.constant 0 : index
    %13 = vector.load %arg7[%c0_14, %c0_15] : memref<1x32xf32, #tpu.memory_space<vmem>>, vector<1x32xf32>
    %14 = vector.broadcast %13 : vector<1x32xf32> to vector<8x32xf32>
    %15 = arith.addf %12, %14 : vector<8x32xf32>
    %c0_16 = arith.constant 0 : index
    %c0_17 = arith.constant 0 : index
    %c0_18 = arith.constant 0 : index
    %16 = vector.load %arg2[%c0_16, %c0_17, %c0_18] : memref<2x6x4096xbf16, #tpu.memory_space<vmem>>, vector<1x6x4096xbf16>
    %17 = vector.shape_cast %16 : vector<1x6x4096xbf16> to vector<6x4096xbf16>
    %c0_19 = arith.constant 0 : index
    %c0_20 = arith.constant 0 : index
    %18 = vector.load %arg8[%c0_19, %c0_20] : memref<4096x32xbf16, #tpu.memory_space<vmem>>, vector<4096x32xbf16>
    %cst_21 = arith.constant dense<0.000000e+00> : vector<6x32xf32>
    %19 = tpu.matmul %17, %18, %cst_21 {dimension_numbers = #tpu.dot_dimension_numbers<[1], [0], [0], [1], [0, 0, 1, 1], [], []>} : vector<6x4096xbf16>, vector<4096x32xbf16>, vector<6x32xf32> -> vector<6x32xf32>
    %c0_22 = arith.constant 0 : index
    %c0_23 = arith.constant 0 : index
    %20 = vector.load %arg9[%c0_22, %c0_23] : memref<8x32xbf16, #tpu.memory_space<vmem>>, vector<8x32xbf16>
    %cst_24 = arith.constant dense<0.000000e+00> : vector<1x32xf32>
    %21 = tpu.matmul %4, %20, %cst_24 {dimension_numbers = #tpu.dot_dimension_numbers<[1], [0], [0], [1], [0, 0, 1, 1], [], []>} : vector<1x8xbf16>, vector<8x32xbf16>, vector<1x32xf32> -> vector<1x32xf32>
    %22 = vector.broadcast %21 : vector<1x32xf32> to vector<6x32xf32>
    %23 = arith.addf %19, %22 : vector<6x32xf32>
    %c0_25 = arith.constant 0 : index
    %c0_26 = arith.constant 0 : index
    %24 = vector.load %arg10[%c0_25, %c0_26] : memref<1x32xf32, #tpu.memory_space<vmem>>, vector<1x32xf32>
    %25 = vector.broadcast %24 : vector<1x32xf32> to vector<6x32xf32>
    %26 = arith.addf %23, %25 : vector<6x32xf32>
    %27 = arith.truncf %15 : vector<8x32xf32> to vector<8x32xbf16>
    %c0_27 = arith.constant 0 : index
    %c0_28 = arith.constant 0 : index
    %28 = vector.load %arg11[%c0_27, %c0_28] : memref<32x32xbf16, #tpu.memory_space<vmem>>, vector<32x32xbf16>
    %cst_29 = arith.constant dense<0.000000e+00> : vector<8x32xf32>
    %29 = tpu.matmul %27, %28, %cst_29 {dimension_numbers = #tpu.dot_dimension_numbers<[1], [0], [0], [1], [0, 0, 1, 1], [], []>} : vector<8x32xbf16>, vector<32x32xbf16>, vector<8x32xf32> -> vector<8x32xf32>
    %c0_30 = arith.constant 0 : index
    %c0_31 = arith.constant 0 : index
    %30 = vector.load %arg12[%c0_30, %c0_31] : memref<1x32xf32, #tpu.memory_space<vmem>>, vector<1x32xf32>
    %31 = vector.broadcast %30 : vector<1x32xf32> to vector<8x32xf32>
    %32 = arith.addf %29, %31 : vector<8x32xf32>
    %33 = arith.truncf %32 : vector<8x32xf32> to vector<8x32xbf16>
    %34 = arith.truncf %26 : vector<6x32xf32> to vector<6x32xbf16>
    %c0_32 = arith.constant 0 : index
    %c0_33 = arith.constant 0 : index
    %35 = vector.load %arg13[%c0_32, %c0_33] : memref<32x64xbf16, #tpu.memory_space<vmem>>, vector<32x64xbf16>
    %cst_34 = arith.constant dense<0.000000e+00> : vector<6x64xf32>
    %36 = tpu.matmul %34, %35, %cst_34 {dimension_numbers = #tpu.dot_dimension_numbers<[1], [0], [0], [1], [0, 0, 1, 1], [], []>} : vector<6x32xbf16>, vector<32x64xbf16>, vector<6x64xf32> -> vector<6x64xf32>
    %c0_35 = arith.constant 0 : index
    %c0_36 = arith.constant 0 : index
    %37 = vector.load %arg14[%c0_35, %c0_36] : memref<1x64xf32, #tpu.memory_space<vmem>>, vector<1x64xf32>
    %38 = vector.broadcast %37 : vector<1x64xf32> to vector<6x64xf32>
    %39 = arith.addf %36, %38 : vector<6x64xf32>
    %40 = arith.truncf %39 : vector<6x64xf32> to vector<6x64xbf16>
    %41 = vector.extract_strided_slice %40 {offsets = [0, 0], sizes = [6, 32], strides = [1, 1]} : vector<6x64xbf16> to vector<6x32xbf16>
    %42 = vector.extract_strided_slice %40 {offsets = [0, 32], sizes = [6, 32], strides = [1, 1]} : vector<6x64xbf16> to vector<6x32xbf16>
    %c0_37 = arith.constant 0 : index
    %c0_38 = arith.constant 0 : index
    %43 = vector.load %arg15[%c0_37, %c0_38] : memref<32x32xbf16, #tpu.memory_space<vmem>>, vector<32x32xbf16>
    %c0_39 = arith.constant 0 : index
    %c0_40 = arith.constant 0 : index
    %44 = vector.load %arg16[%c0_39, %c0_40] : memref<1x32xf32, #tpu.memory_space<vmem>>, vector<1x32xf32>
    %45 = vector.extract_strided_slice %33 {offsets = [0, 0], sizes = [8, 8], strides = [1, 1]} : vector<8x32xbf16> to vector<8x8xbf16>
    %46 = vector.extract_strided_slice %33 {offsets = [0, 8], sizes = [8, 8], strides = [1, 1]} : vector<8x32xbf16> to vector<8x8xbf16>
    %47 = vector.extract_strided_slice %33 {offsets = [0, 16], sizes = [8, 8], strides = [1, 1]} : vector<8x32xbf16> to vector<8x8xbf16>
    %48 = vector.extract_strided_slice %33 {offsets = [0, 24], sizes = [8, 8], strides = [1, 1]} : vector<8x32xbf16> to vector<8x8xbf16>
    %49 = vector.shape_cast %45 : vector<8x8xbf16> to vector<1x8x8xbf16>
    %50 = vector.shape_cast %46 : vector<8x8xbf16> to vector<1x8x8xbf16>
    %51 = vector.shape_cast %47 : vector<8x8xbf16> to vector<1x8x8xbf16>
    %52 = vector.shape_cast %48 : vector<8x8xbf16> to vector<1x8x8xbf16>
    %53 = tpu.concatenate %49, %50, %51, %52 in 0 : vector<1x8x8xbf16>, vector<1x8x8xbf16>, vector<1x8x8xbf16>, vector<1x8x8xbf16> -> vector<4x8x8xbf16>
    %54 = vector.extract_strided_slice %41 {offsets = [0, 0], sizes = [6, 8], strides = [1, 1]} : vector<6x32xbf16> to vector<6x8xbf16>
    %55 = vector.extract_strided_slice %41 {offsets = [0, 8], sizes = [6, 8], strides = [1, 1]} : vector<6x32xbf16> to vector<6x8xbf16>
    %56 = vector.extract_strided_slice %41 {offsets = [0, 16], sizes = [6, 8], strides = [1, 1]} : vector<6x32xbf16> to vector<6x8xbf16>
    %57 = vector.extract_strided_slice %41 {offsets = [0, 24], sizes = [6, 8], strides = [1, 1]} : vector<6x32xbf16> to vector<6x8xbf16>
    %58 = vector.shape_cast %54 : vector<6x8xbf16> to vector<1x6x8xbf16>
    %59 = vector.shape_cast %55 : vector<6x8xbf16> to vector<1x6x8xbf16>
    %60 = vector.shape_cast %56 : vector<6x8xbf16> to vector<1x6x8xbf16>
    %61 = vector.shape_cast %57 : vector<6x8xbf16> to vector<1x6x8xbf16>
    %62 = tpu.concatenate %58, %59, %60, %61 in 0 : vector<1x6x8xbf16>, vector<1x6x8xbf16>, vector<1x6x8xbf16>, vector<1x6x8xbf16> -> vector<4x6x8xbf16>
    %63 = vector.extract_strided_slice %42 {offsets = [0, 0], sizes = [6, 8], strides = [1, 1]} : vector<6x32xbf16> to vector<6x8xbf16>
    %64 = vector.extract_strided_slice %42 {offsets = [0, 8], sizes = [6, 8], strides = [1, 1]} : vector<6x32xbf16> to vector<6x8xbf16>
    %65 = vector.extract_strided_slice %42 {offsets = [0, 16], sizes = [6, 8], strides = [1, 1]} : vector<6x32xbf16> to vector<6x8xbf16>
    %66 = vector.extract_strided_slice %42 {offsets = [0, 24], sizes = [6, 8], strides = [1, 1]} : vector<6x32xbf16> to vector<6x8xbf16>
    %67 = vector.shape_cast %63 : vector<6x8xbf16> to vector<1x6x8xbf16>
    %68 = vector.shape_cast %64 : vector<6x8xbf16> to vector<1x6x8xbf16>
    %69 = vector.shape_cast %65 : vector<6x8xbf16> to vector<1x6x8xbf16>
    %70 = vector.shape_cast %66 : vector<6x8xbf16> to vector<1x6x8xbf16>
    %71 = tpu.concatenate %67, %68, %69, %70 in 0 : vector<1x6x8xbf16>, vector<1x6x8xbf16>, vector<1x6x8xbf16>, vector<1x6x8xbf16> -> vector<4x6x8xbf16>
    "tpu.trace_start"() <{level = 10 : i32, message = "hqd,hkd->hqk"}> : () -> ()
    %cst_41 = arith.constant dense<0.000000e+00> : vector<4x8x6xf32>
    %72 = tpu.matmul %53, %62, %cst_41 {dimension_numbers = #tpu.dot_dimension_numbers<[2], [2], [1], [1], [0, 0, 0, 1, 1, 1], [0], [0]>} : vector<4x8x8xbf16>, vector<4x6x8xbf16>, vector<4x8x6xf32> -> vector<4x8x6xf32>
    "tpu.trace_stop"() : () -> ()
    %cst_42 = arith.constant 0.353553385 : f32
    %73 = vector.broadcast %cst_42 : f32 to vector<4x8x6xf32>
    %74 = arith.mulf %72, %73 : vector<4x8x6xf32>
    %cst_43 = arith.constant dense<0xFF800000> : vector<4x8xf32>
    %75 = vector.multi_reduction <maximumf>, %74, %cst_43 [2] : vector<4x8x6xf32> to vector<4x8xf32>
    %76 = vector.shape_cast %75 : vector<4x8xf32> to vector<4x8x1xf32>
    %77 = vector.broadcast %76 : vector<4x8x1xf32> to vector<4x8x6xf32>
    %78 = arith.subf %74, %77 : vector<4x8x6xf32>
    %79 = math.exp %78 : vector<4x8x6xf32>
    %cst_44 = arith.constant dense<0.000000e+00> : vector<4x8xf32>
    %80 = vector.multi_reduction <add>, %79, %cst_44 [2] : vector<4x8x6xf32> to vector<4x8xf32>
    %81 = vector.shape_cast %80 : vector<4x8xf32> to vector<4x8x1xf32>
    %82 = tpu.reciprocal %81 {approx = true} : vector<4x8x1xf32> -> vector<4x8x1xf32>
    %83 = vector.broadcast %82 : vector<4x8x1xf32> to vector<4x8x6xf32>
    %84 = arith.mulf %79, %83 : vector<4x8x6xf32>
    %85 = arith.truncf %84 : vector<4x8x6xf32> to vector<4x8x6xbf16>
    "tpu.trace_start"() <{level = 10 : i32, message = "hqk,hkd->hqd"}> : () -> ()
    %cst_45 = arith.constant dense<0.000000e+00> : vector<4x8x8xf32>
    %86 = tpu.matmul %85, %71, %cst_45 {dimension_numbers = #tpu.dot_dimension_numbers<[2], [1], [1], [2], [0, 0, 0, 1, 1, 2], [0], [0]>} : vector<4x8x6xbf16>, vector<4x6x8xbf16>, vector<4x8x8xf32> -> vector<4x8x8xf32>
    "tpu.trace_stop"() : () -> ()
    %87 = vector.extract_strided_slice %86 {offsets = [0, 0, 0], sizes = [1, 8, 8], strides = [1, 1, 1]} : vector<4x8x8xf32> to vector<1x8x8xf32>
    %88 = vector.shape_cast %87 : vector<1x8x8xf32> to vector<8x8xf32>
    %89 = vector.extract_strided_slice %86 {offsets = [1, 0, 0], sizes = [1, 8, 8], strides = [1, 1, 1]} : vector<4x8x8xf32> to vector<1x8x8xf32>
    %90 = vector.shape_cast %89 : vector<1x8x8xf32> to vector<8x8xf32>
    %91 = vector.extract_strided_slice %86 {offsets = [2, 0, 0], sizes = [1, 8, 8], strides = [1, 1, 1]} : vector<4x8x8xf32> to vector<1x8x8xf32>
    %92 = vector.shape_cast %91 : vector<1x8x8xf32> to vector<8x8xf32>
    %93 = vector.extract_strided_slice %86 {offsets = [3, 0, 0], sizes = [1, 8, 8], strides = [1, 1, 1]} : vector<4x8x8xf32> to vector<1x8x8xf32>
    %94 = vector.shape_cast %93 : vector<1x8x8xf32> to vector<8x8xf32>
    %95 = tpu.concatenate %88, %90, %92, %94 in 1 : vector<8x8xf32>, vector<8x8xf32>, vector<8x8xf32>, vector<8x8xf32> -> vector<8x32xf32>
    %96 = arith.truncf %95 : vector<8x32xf32> to vector<8x32xbf16>
    %cst_46 = arith.constant dense<0.000000e+00> : vector<8x32xf32>
    %97 = tpu.matmul %96, %43, %cst_46 {dimension_numbers = #tpu.dot_dimension_numbers<[1], [0], [0], [1], [0, 0, 1, 1], [], []>} : vector<8x32xbf16>, vector<32x32xbf16>, vector<8x32xf32> -> vector<8x32xf32>
    %98 = vector.broadcast %44 : vector<1x32xf32> to vector<8x32xf32>
    %99 = arith.addf %97, %98 : vector<8x32xf32>
    %100 = arith.addf %99, %1 : vector<8x32xf32>
    %101 = tpu.concatenate %100, %2 in 1 : vector<8x32xf32>, vector<8x96xf32> -> vector<8x128xf32>
    %c0_47 = arith.constant 0 : index
    %c0_48 = arith.constant 0 : index
    %c0_49 = arith.constant 0 : index
    %102 = vector.load %arg29[%c0_47, %c0_48, %c0_49] : memref<2x8x128xf32, #tpu.memory_space<vmem>>, vector<1x8x128xf32>
    %103 = vector.shape_cast %102 : vector<1x8x128xf32> to vector<8x128xf32>
    %104 = vector.shape_cast %101 : vector<8x128xf32> to vector<1x8x128xf32>
    tpu.vector_store %arg29[%c0_47, %c0_48, %c0_49], %104 {strides = array<i32>} : memref<2x8x128xf32, #tpu.memory_space<vmem>>, vector<1x8x128xf32>,
    %105 = arith.truncf %100 : vector<8x32xf32> to vector<8x32xbf16>
    %c0_50 = arith.constant 0 : index
    %c0_51 = arith.constant 0 : index
    %c0_52 = arith.constant 0 : index
    %106 = vector.load %arg17[%c0_50, %c0_51, %c0_52] : memref<2x32x96xbf16, #tpu.memory_space<vmem>>, vector<1x32x96xbf16>
    %107 = vector.shape_cast %106 : vector<1x32x96xbf16> to vector<32x96xbf16>
    %cst_53 = arith.constant dense<0.000000e+00> : vector<8x96xf32>
    %108 = tpu.matmul %105, %107, %cst_53 {dimension_numbers = #tpu.dot_dimension_numbers<[1], [0], [0], [1], [0, 0, 1, 1], [], []>} : vector<8x32xbf16>, vector<32x96xbf16>, vector<8x96xf32> -> vector<8x96xf32>
    %c0_54 = arith.constant 0 : index
    %c0_55 = arith.constant 0 : index
    %c0_56 = arith.constant 0 : index
    %109 = vector.load %arg18[%c0_54, %c0_55, %c0_56] : memref<2x1x96xf32, #tpu.memory_space<vmem>>, vector<1x1x96xf32>
    %110 = vector.shape_cast %109 : vector<1x1x96xf32> to vector<1x96xf32>
    %111 = vector.broadcast %110 : vector<1x96xf32> to vector<8x96xf32>
    %112 = arith.addf %108, %111 : vector<8x96xf32>
    %113 = arith.truncf %112 : vector<8x96xf32> to vector<8x96xbf16>
    %114 = vector.extract_strided_slice %113 {offsets = [0, 0], sizes = [8, 32], strides = [1, 1]} : vector<8x96xbf16> to vector<8x32xbf16>
    %115 = vector.extract_strided_slice %113 {offsets = [0, 32], sizes = [8, 32], strides = [1, 1]} : vector<8x96xbf16> to vector<8x32xbf16>
    %116 = vector.extract_strided_slice %113 {offsets = [0, 64], sizes = [8, 32], strides = [1, 1]} : vector<8x96xbf16> to vector<8x32xbf16>
    %c0_57 = arith.constant 0 : index
    %c0_58 = arith.constant 0 : index
    %c0_59 = arith.constant 0 : index
    %117 = vector.load %arg19[%c0_57, %c0_58, %c0_59] : memref<2x32x32xbf16, #tpu.memory_space<vmem>>, vector<1x32x32xbf16>
    %118 = vector.shape_cast %117 : vector<1x32x32xbf16> to vector<32x32xbf16>
    %c0_60 = arith.constant 0 : index
    %c0_61 = arith.constant 0 : index
    %c0_62 = arith.constant 0 : index
    %119 = vector.load %arg20[%c0_60, %c0_61, %c0_62] : memref<2x1x32xf32, #tpu.memory_space<vmem>>, vector<1x1x32xf32>
    %120 = vector.shape_cast %119 : vector<1x1x32xf32> to vector<1x32xf32>
    %121 = vector.extract_strided_slice %114 {offsets = [0, 0], sizes = [8, 8], strides = [1, 1]} : vector<8x32xbf16> to vector<8x8xbf16>
    %122 = vector.extract_strided_slice %114 {offsets = [0, 8], sizes = [8, 8], strides = [1, 1]} : vector<8x32xbf16> to vector<8x8xbf16>
    %123 = vector.extract_strided_slice %114 {offsets = [0, 16], sizes = [8, 8], strides = [1, 1]} : vector<8x32xbf16> to vector<8x8xbf16>
    %124 = vector.extract_strided_slice %114 {offsets = [0, 24], sizes = [8, 8], strides = [1, 1]} : vector<8x32xbf16> to vector<8x8xbf16>
    %125 = vector.shape_cast %121 : vector<8x8xbf16> to vector<1x8x8xbf16>
    %126 = vector.shape_cast %122 : vector<8x8xbf16> to vector<1x8x8xbf16>
    %127 = vector.shape_cast %123 : vector<8x8xbf16> to vector<1x8x8xbf16>
    %128 = vector.shape_cast %124 : vector<8x8xbf16> to vector<1x8x8xbf16>
    %129 = tpu.concatenate %125, %126, %127, %128 in 0 : vector<1x8x8xbf16>, vector<1x8x8xbf16>, vector<1x8x8xbf16>, vector<1x8x8xbf16> -> vector<4x8x8xbf16>
    %130 = vector.extract_strided_slice %115 {offsets = [0, 0], sizes = [8, 8], strides = [1, 1]} : vector<8x32xbf16> to vector<8x8xbf16>
    %131 = vector.extract_strided_slice %115 {offsets = [0, 8], sizes = [8, 8], strides = [1, 1]} : vector<8x32xbf16> to vector<8x8xbf16>
    %132 = vector.extract_strided_slice %115 {offsets = [0, 16], sizes = [8, 8], strides = [1, 1]} : vector<8x32xbf16> to vector<8x8xbf16>
    %133 = vector.extract_strided_slice %115 {offsets = [0, 24], sizes = [8, 8], strides = [1, 1]} : vector<8x32xbf16> to vector<8x8xbf16>
    %134 = vector.shape_cast %130 : vector<8x8xbf16> to vector<1x8x8xbf16>
    %135 = vector.shape_cast %131 : vector<8x8xbf16> to vector<1x8x8xbf16>
    %136 = vector.shape_cast %132 : vector<8x8xbf16> to vector<1x8x8xbf16>
    %137 = vector.shape_cast %133 : vector<8x8xbf16> to vector<1x8x8xbf16>
    %138 = tpu.concatenate %134, %135, %136, %137 in 0 : vector<1x8x8xbf16>, vector<1x8x8xbf16>, vector<1x8x8xbf16>, vector<1x8x8xbf16> -> vector<4x8x8xbf16>
    %139 = vector.extract_strided_slice %116 {offsets = [0, 0], sizes = [8, 8], strides = [1, 1]} : vector<8x32xbf16> to vector<8x8xbf16>
    %140 = vector.extract_strided_slice %116 {offsets = [0, 8], sizes = [8, 8], strides = [1, 1]} : vector<8x32xbf16> to vector<8x8xbf16>
    %141 = vector.extract_strided_slice %116 {offsets = [0, 16], sizes = [8, 8], strides = [1, 1]} : vector<8x32xbf16> to vector<8x8xbf16>
    %142 = vector.extract_strided_slice %116 {offsets = [0, 24], sizes = [8, 8], strides = [1, 1]} : vector<8x32xbf16> to vector<8x8xbf16>
    %143 = vector.shape_cast %139 : vector<8x8xbf16> to vector<1x8x8xbf16>
    %144 = vector.shape_cast %140 : vector<8x8xbf16> to vector<1x8x8xbf16>
    %145 = vector.shape_cast %141 : vector<8x8xbf16> to vector<1x8x8xbf16>
    %146 = vector.shape_cast %142 : vector<8x8xbf16> to vector<1x8x8xbf16>
    %147 = tpu.concatenate %143, %144, %145, %146 in 0 : vector<1x8x8xbf16>, vector<1x8x8xbf16>, vector<1x8x8xbf16>, vector<1x8x8xbf16> -> vector<4x8x8xbf16>
    "tpu.trace_start"() <{level = 10 : i32, message = "hqd,hkd->hqk"}> : () -> ()
    %cst_63 = arith.constant dense<0.000000e+00> : vector<4x8x8xf32>
    %148 = tpu.matmul %129, %138, %cst_63 {dimension_numbers = #tpu.dot_dimension_numbers<[2], [2], [1], [1], [0, 0, 0, 1, 1, 1], [0], [0]>} : vector<4x8x8xbf16>, vector<4x8x8xbf16>, vector<4x8x8xf32> -> vector<4x8x8xf32>
    "tpu.trace_stop"() : () -> ()
    %cst_64 = arith.constant 0.353553385 : f32
    %149 = vector.broadcast %cst_64 : f32 to vector<4x8x8xf32>
    %150 = arith.mulf %148, %149 : vector<4x8x8xf32>
    %cst_65 = arith.constant dense<0xFF800000> : vector<4x8xf32>
    %151 = vector.multi_reduction <maximumf>, %150, %cst_65 [2] : vector<4x8x8xf32> to vector<4x8xf32>
    %152 = vector.shape_cast %151 : vector<4x8xf32> to vector<4x8x1xf32>
    %153 = vector.broadcast %152 : vector<4x8x1xf32> to vector<4x8x8xf32>
    %154 = arith.subf %150, %153 : vector<4x8x8xf32>
    %155 = math.exp %154 : vector<4x8x8xf32>
    %cst_66 = arith.constant dense<0.000000e+00> : vector<4x8xf32>
    %156 = vector.multi_reduction <add>, %155, %cst_66 [2] : vector<4x8x8xf32> to vector<4x8xf32>
    %157 = vector.shape_cast %156 : vector<4x8xf32> to vector<4x8x1xf32>
    %158 = tpu.reciprocal %157 {approx = true} : vector<4x8x1xf32> -> vector<4x8x1xf32>
    %159 = vector.broadcast %158 : vector<4x8x1xf32> to vector<4x8x8xf32>
    %160 = arith.mulf %155, %159 : vector<4x8x8xf32>
    %161 = arith.truncf %160 : vector<4x8x8xf32> to vector<4x8x8xbf16>
    "tpu.trace_start"() <{level = 10 : i32, message = "hqk,hkd->hqd"}> : () -> ()
    %cst_67 = arith.constant dense<0.000000e+00> : vector<4x8x8xf32>
    %162 = tpu.matmul %161, %147, %cst_67 {dimension_numbers = #tpu.dot_dimension_numbers<[2], [1], [1], [2], [0, 0, 0, 1, 1, 2], [0], [0]>} : vector<4x8x8xbf16>, vector<4x8x8xbf16>, vector<4x8x8xf32> -> vector<4x8x8xf32>
    "tpu.trace_stop"() : () -> ()
    %163 = vector.extract_strided_slice %162 {offsets = [0, 0, 0], sizes = [1, 8, 8], strides = [1, 1, 1]} : vector<4x8x8xf32> to vector<1x8x8xf32>
    %164 = vector.shape_cast %163 : vector<1x8x8xf32> to vector<8x8xf32>
    %165 = vector.extract_strided_slice %162 {offsets = [1, 0, 0], sizes = [1, 8, 8], strides = [1, 1, 1]} : vector<4x8x8xf32> to vector<1x8x8xf32>
    %166 = vector.shape_cast %165 : vector<1x8x8xf32> to vector<8x8xf32>
    %167 = vector.extract_strided_slice %162 {offsets = [2, 0, 0], sizes = [1, 8, 8], strides = [1, 1, 1]} : vector<4x8x8xf32> to vector<1x8x8xf32>
    %168 = vector.shape_cast %167 : vector<1x8x8xf32> to vector<8x8xf32>
    %169 = vector.extract_strided_slice %162 {offsets = [3, 0, 0], sizes = [1, 8, 8], strides = [1, 1, 1]} : vector<4x8x8xf32> to vector<1x8x8xf32>
    %170 = vector.shape_cast %169 : vector<1x8x8xf32> to vector<8x8xf32>
    %171 = tpu.concatenate %164, %166, %168, %170 in 1 : vector<8x8xf32>, vector<8x8xf32>, vector<8x8xf32>, vector<8x8xf32> -> vector<8x32xf32>
    %172 = arith.truncf %171 : vector<8x32xf32> to vector<8x32xbf16>
    %cst_68 = arith.constant dense<0.000000e+00> : vector<8x32xf32>
    %173 = tpu.matmul %172, %118, %cst_68 {dimension_numbers = #tpu.dot_dimension_numbers<[1], [0], [0], [1], [0, 0, 1, 1], [], []>} : vector<8x32xbf16>, vector<32x32xbf16>, vector<8x32xf32> -> vector<8x32xf32>
    %174 = vector.broadcast %120 : vector<1x32xf32> to vector<8x32xf32>
    %175 = arith.addf %173, %174 : vector<8x32xf32>
    %c0_69 = arith.constant 0 : index
    %c0_70 = arith.constant 0 : index
    %c0_71 = arith.constant 0 : index
    %176 = vector.load %arg21[%c0_69, %c0_70, %c0_71] : memref<2x2x32xf32, #tpu.memory_space<vmem>>, vector<1x2x32xf32>
    %177 = vector.shape_cast %176 : vector<1x2x32xf32> to vector<2x32xf32>
    %c0_72 = arith.constant 0 : index
    %c0_73 = arith.constant 0 : index
    %c0_74 = arith.constant 0 : index
    %178 = vector.load %arg22[%c0_72, %c0_73, %c0_74] : memref<2x2x32xf32, #tpu.memory_space<vmem>>, vector<1x2x32xf32>
    %179 = vector.shape_cast %178 : vector<1x2x32xf32> to vector<2x32xf32>
    %180 = arith.addf %100, %175 : vector<8x32xf32>
    %181 = vector.extract_strided_slice %177 {offsets = [0, 0], sizes = [1, 32], strides = [1, 1]} : vector<2x32xf32> to vector<1x32xf32>
    %182 = vector.extract_strided_slice %179 {offsets = [0, 0], sizes = [1, 32], strides = [1, 1]} : vector<2x32xf32> to vector<1x32xf32>
    %cst_75 = arith.constant dense<0.000000e+00> : vector<8xf32>
    %183 = vector.multi_reduction <add>, %180, %cst_75 [1] : vector<8x32xf32> to vector<8xf32>
    %184 = vector.shape_cast %183 : vector<8xf32> to vector<8x1xf32>
    %cst_76 = arith.constant 3.200000e+01 : f32
    %185 = vector.broadcast %cst_76 : f32 to vector<8x1xf32>
    %186 = arith.divf %184, %185 : vector<8x1xf32>
    %187 = vector.broadcast %186 : vector<8x1xf32> to vector<8x32xf32>
    %188 = arith.subf %180, %187 : vector<8x32xf32>
    %189 = arith.mulf %188, %188 : vector<8x32xf32>
    %cst_77 = arith.constant dense<0.000000e+00> : vector<8xf32>
    %190 = vector.multi_reduction <add>, %189, %cst_77 [1] : vector<8x32xf32> to vector<8xf32>
    %191 = vector.shape_cast %190 : vector<8xf32> to vector<8x1xf32>
    %cst_78 = arith.constant 3.200000e+01 : f32
    %192 = vector.broadcast %cst_78 : f32 to vector<8x1xf32>
    %193 = arith.divf %191, %192 : vector<8x1xf32>
    %194 = vector.broadcast %186 : vector<8x1xf32> to vector<8x32xf32>
    %195 = arith.subf %180, %194 : vector<8x32xf32>
    %cst_79 = arith.constant 9.99999974E-6 : f32
    %196 = vector.broadcast %cst_79 : f32 to vector<8x1xf32>
    %197 = arith.addf %193, %196 : vector<8x1xf32>
    %198 = math.rsqrt %197 : vector<8x1xf32>
    %199 = vector.broadcast %198 : vector<8x1xf32> to vector<8x32xf32>
    %200 = arith.mulf %195, %199 : vector<8x32xf32>
    %201 = vector.broadcast %181 : vector<1x32xf32> to vector<8x32xf32>
    %202 = arith.mulf %200, %201 : vector<8x32xf32>
    %203 = vector.broadcast %182 : vector<1x32xf32> to vector<8x32xf32>
    %204 = arith.addf %202, %203 : vector<8x32xf32>
    %205 = arith.truncf %204 : vector<8x32xf32> to vector<8x32xbf16>
    %c0_80 = arith.constant 0 : index
    %c0_81 = arith.constant 0 : index
    %c0_82 = arith.constant 0 : index
    %206 = vector.load %arg23[%c0_80, %c0_81, %c0_82] : memref<2x32x64xbf16, #tpu.memory_space<vmem>>, vector<1x32x64xbf16>
    %207 = vector.shape_cast %206 : vector<1x32x64xbf16> to vector<32x64xbf16>
    %cst_83 = arith.constant dense<0.000000e+00> : vector<8x64xf32>
    %208 = tpu.matmul %205, %207, %cst_83 {dimension_numbers = #tpu.dot_dimension_numbers<[1], [0], [0], [1], [0, 0, 1, 1], [], []>} : vector<8x32xbf16>, vector<32x64xbf16>, vector<8x64xf32> -> vector<8x64xf32>
    %c0_84 = arith.constant 0 : index
    %c0_85 = arith.constant 0 : index
    %c0_86 = arith.constant 0 : index
    %209 = vector.load %arg24[%c0_84, %c0_85, %c0_86] : memref<2x1x64xf32, #tpu.memory_space<vmem>>, vector<1x1x64xf32>
    %210 = vector.shape_cast %209 : vector<1x1x64xf32> to vector<1x64xf32>
    %211 = vector.broadcast %210 : vector<1x64xf32> to vector<8x64xf32>
    %212 = arith.addf %208, %211 : vector<8x64xf32>
    %cst_87 = arith.constant 0.000000e+00 : f32
    %213 = vector.broadcast %cst_87 : f32 to vector<8x64xf32>
    %214 = arith.maximumf %212, %213 : vector<8x64xf32>
    %215 = arith.truncf %214 : vector<8x64xf32> to vector<8x64xbf16>
    %c0_88 = arith.constant 0 : index
    %c0_89 = arith.constant 0 : index
    %c0_90 = arith.constant 0 : index
    %216 = vector.load %arg25[%c0_88, %c0_89, %c0_90] : memref<2x64x32xbf16, #tpu.memory_space<vmem>>, vector<1x64x32xbf16>
    %217 = vector.shape_cast %216 : vector<1x64x32xbf16> to vector<64x32xbf16>
    %cst_91 = arith.constant dense<0.000000e+00> : vector<8x32xf32>
    %218 = tpu.matmul %215, %217, %cst_91 {dimension_numbers = #tpu.dot_dimension_numbers<[1], [0], [0], [1], [0, 0, 1, 1], [], []>} : vector<8x64xbf16>, vector<64x32xbf16>, vector<8x32xf32> -> vector<8x32xf32>
    %c0_92 = arith.constant 0 : index
    %c0_93 = arith.constant 0 : index
    %c0_94 = arith.constant 0 : index
    %219 = vector.load %arg26[%c0_92, %c0_93, %c0_94] : memref<2x1x32xf32, #tpu.memory_space<vmem>>, vector<1x1x32xf32>
    %220 = vector.shape_cast %219 : vector<1x1x32xf32> to vector<1x32xf32>
    %221 = vector.broadcast %220 : vector<1x32xf32> to vector<8x32xf32>
    %222 = arith.addf %218, %221 : vector<8x32xf32>
    %223 = arith.addf %204, %222 : vector<8x32xf32>
    %224 = vector.extract_strided_slice %177 {offsets = [1, 0], sizes = [1, 32], strides = [1, 1]} : vector<2x32xf32> to vector<1x32xf32>
    %225 = vector.extract_strided_slice %179 {offsets = [1, 0], sizes = [1, 32], strides = [1, 1]} : vector<2x32xf32> to vector<1x32xf32>
    %cst_95 = arith.constant dense<0.000000e+00> : vector<8xf32>
    %226 = vector.multi_reduction <add>, %223, %cst_95 [1] : vector<8x32xf32> to vector<8xf32>
    %227 = vector.shape_cast %226 : vector<8xf32> to vector<8x1xf32>
    %cst_96 = arith.constant 3.200000e+01 : f32
    %228 = vector.broadcast %cst_96 : f32 to vector<8x1xf32>
    %229 = arith.divf %227, %228 : vector<8x1xf32>
    %230 = vector.broadcast %229 : vector<8x1xf32> to vector<8x32xf32>
    %231 = arith.subf %223, %230 : vector<8x32xf32>
    %232 = arith.mulf %231, %231 : vector<8x32xf32>
    %cst_97 = arith.constant dense<0.000000e+00> : vector<8xf32>
    %233 = vector.multi_reduction <add>, %232, %cst_97 [1] : vector<8x32xf32> to vector<8xf32>
    %234 = vector.shape_cast %233 : vector<8xf32> to vector<8x1xf32>
    %cst_98 = arith.constant 3.200000e+01 : f32
    %235 = vector.broadcast %cst_98 : f32 to vector<8x1xf32>
    %236 = arith.divf %234, %235 : vector<8x1xf32>
    %237 = vector.broadcast %229 : vector<8x1xf32> to vector<8x32xf32>
    %238 = arith.subf %223, %237 : vector<8x32xf32>
    %cst_99 = arith.constant 9.99999974E-6 : f32
    %239 = vector.broadcast %cst_99 : f32 to vector<8x1xf32>
    %240 = arith.addf %236, %239 : vector<8x1xf32>
    %241 = math.rsqrt %240 : vector<8x1xf32>
    %242 = vector.broadcast %241 : vector<8x1xf32> to vector<8x32xf32>
    %243 = arith.mulf %238, %242 : vector<8x32xf32>
    %244 = vector.broadcast %224 : vector<1x32xf32> to vector<8x32xf32>
    %245 = arith.mulf %243, %244 : vector<8x32xf32>
    %246 = vector.broadcast %225 : vector<1x32xf32> to vector<8x32xf32>
    %247 = arith.addf %245, %246 : vector<8x32xf32>
    %248 = arith.truncf %247 : vector<8x32xf32> to vector<8x32xbf16>
    %c1 = arith.constant 1 : index
    %c0_100 = arith.constant 0 : index
    %c0_101 = arith.constant 0 : index
    %249 = vector.load %arg17[%c1, %c0_100, %c0_101] : memref<2x32x96xbf16, #tpu.memory_space<vmem>>, vector<1x32x96xbf16>
    %250 = vector.shape_cast %249 : vector<1x32x96xbf16> to vector<32x96xbf16>
    %cst_102 = arith.constant dense<0.000000e+00> : vector<8x96xf32>
    %251 = tpu.matmul %248, %250, %cst_102 {dimension_numbers = #tpu.dot_dimension_numbers<[1], [0], [0], [1], [0, 0, 1, 1], [], []>} : vector<8x32xbf16>, vector<32x96xbf16>, vector<8x96xf32> -> vector<8x96xf32>
    %c1_103 = arith.constant 1 : index
    %c0_104 = arith.constant 0 : index
    %c0_105 = arith.constant 0 : index
    %252 = vector.load %arg18[%c1_103, %c0_104, %c0_105] : memref<2x1x96xf32, #tpu.memory_space<vmem>>, vector<1x1x96xf32>
    %253 = vector.shape_cast %252 : vector<1x1x96xf32> to vector<1x96xf32>
    %254 = vector.broadcast %253 : vector<1x96xf32> to vector<8x96xf32>
    %255 = arith.addf %251, %254 : vector<8x96xf32>
    %256 = arith.truncf %255 : vector<8x96xf32> to vector<8x96xbf16>
    %257 = vector.extract_strided_slice %256 {offsets = [0, 0], sizes = [8, 32], strides = [1, 1]} : vector<8x96xbf16> to vector<8x32xbf16>
    %258 = vector.extract_strided_slice %256 {offsets = [0, 32], sizes = [8, 32], strides = [1, 1]} : vector<8x96xbf16> to vector<8x32xbf16>
    %259 = vector.extract_strided_slice %256 {offsets = [0, 64], sizes = [8, 32], strides = [1, 1]} : vector<8x96xbf16> to vector<8x32xbf16>
    %c1_106 = arith.constant 1 : index
    %c0_107 = arith.constant 0 : index
    %c0_108 = arith.constant 0 : index
    %260 = vector.load %arg19[%c1_106, %c0_107, %c0_108] : memref<2x32x32xbf16, #tpu.memory_space<vmem>>, vector<1x32x32xbf16>
    %261 = vector.shape_cast %260 : vector<1x32x32xbf16> to vector<32x32xbf16>
    %c1_109 = arith.constant 1 : index
    %c0_110 = arith.constant 0 : index
    %c0_111 = arith.constant 0 : index
    %262 = vector.load %arg20[%c1_109, %c0_110, %c0_111] : memref<2x1x32xf32, #tpu.memory_space<vmem>>, vector<1x1x32xf32>
    %263 = vector.shape_cast %262 : vector<1x1x32xf32> to vector<1x32xf32>
    %264 = vector.extract_strided_slice %257 {offsets = [0, 0], sizes = [8, 8], strides = [1, 1]} : vector<8x32xbf16> to vector<8x8xbf16>
    %265 = vector.extract_strided_slice %257 {offsets = [0, 8], sizes = [8, 8], strides = [1, 1]} : vector<8x32xbf16> to vector<8x8xbf16>
    %266 = vector.extract_strided_slice %257 {offsets = [0, 16], sizes = [8, 8], strides = [1, 1]} : vector<8x32xbf16> to vector<8x8xbf16>
    %267 = vector.extract_strided_slice %257 {offsets = [0, 24], sizes = [8, 8], strides = [1, 1]} : vector<8x32xbf16> to vector<8x8xbf16>
    %268 = vector.shape_cast %264 : vector<8x8xbf16> to vector<1x8x8xbf16>
    %269 = vector.shape_cast %265 : vector<8x8xbf16> to vector<1x8x8xbf16>
    %270 = vector.shape_cast %266 : vector<8x8xbf16> to vector<1x8x8xbf16>
    %271 = vector.shape_cast %267 : vector<8x8xbf16> to vector<1x8x8xbf16>
    %272 = tpu.concatenate %268, %269, %270, %271 in 0 : vector<1x8x8xbf16>, vector<1x8x8xbf16>, vector<1x8x8xbf16>, vector<1x8x8xbf16> -> vector<4x8x8xbf16>
    %273 = vector.extract_strided_slice %258 {offsets = [0, 0], sizes = [8, 8], strides = [1, 1]} : vector<8x32xbf16> to vector<8x8xbf16>
    %274 = vector.extract_strided_slice %258 {offsets = [0, 8], sizes = [8, 8], strides = [1, 1]} : vector<8x32xbf16> to vector<8x8xbf16>
    %275 = vector.extract_strided_slice %258 {offsets = [0, 16], sizes = [8, 8], strides = [1, 1]} : vector<8x32xbf16> to vector<8x8xbf16>
    %276 = vector.extract_strided_slice %258 {offsets = [0, 24], sizes = [8, 8], strides = [1, 1]} : vector<8x32xbf16> to vector<8x8xbf16>
    %277 = vector.shape_cast %273 : vector<8x8xbf16> to vector<1x8x8xbf16>
    %278 = vector.shape_cast %274 : vector<8x8xbf16> to vector<1x8x8xbf16>
    %279 = vector.shape_cast %275 : vector<8x8xbf16> to vector<1x8x8xbf16>
    %280 = vector.shape_cast %276 : vector<8x8xbf16> to vector<1x8x8xbf16>
    %281 = tpu.concatenate %277, %278, %279, %280 in 0 : vector<1x8x8xbf16>, vector<1x8x8xbf16>, vector<1x8x8xbf16>, vector<1x8x8xbf16> -> vector<4x8x8xbf16>
    %282 = vector.extract_strided_slice %259 {offsets = [0, 0], sizes = [8, 8], strides = [1, 1]} : vector<8x32xbf16> to vector<8x8xbf16>
    %283 = vector.extract_strided_slice %259 {offsets = [0, 8], sizes = [8, 8], strides = [1, 1]} : vector<8x32xbf16> to vector<8x8xbf16>
    %284 = vector.extract_strided_slice %259 {offsets = [0, 16], sizes = [8, 8], strides = [1, 1]} : vector<8x32xbf16> to vector<8x8xbf16>
    %285 = vector.extract_strided_slice %259 {offsets = [0, 24], sizes = [8, 8], strides = [1, 1]} : vector<8x32xbf16> to vector<8x8xbf16>
    %286 = vector.shape_cast %282 : vector<8x8xbf16> to vector<1x8x8xbf16>
    %287 = vector.shape_cast %283 : vector<8x8xbf16> to vector<1x8x8xbf16>
    %288 = vector.shape_cast %284 : vector<8x8xbf16> to vector<1x8x8xbf16>
    %289 = vector.shape_cast %285 : vector<8x8xbf16> to vector<1x8x8xbf16>
    %290 = tpu.concatenate %286, %287, %288, %289 in 0 : vector<1x8x8xbf16>, vector<1x8x8xbf16>, vector<1x8x8xbf16>, vector<1x8x8xbf16> -> vector<4x8x8xbf16>
    "tpu.trace_start"() <{level = 10 : i32, message = "hqd,hkd->hqk"}> : () -> ()
    %cst_112 = arith.constant dense<0.000000e+00> : vector<4x8x8xf32>
    %291 = tpu.matmul %272, %281, %cst_112 {dimension_numbers = #tpu.dot_dimension_numbers<[2], [2], [1], [1], [0, 0, 0, 1, 1, 1], [0], [0]>} : vector<4x8x8xbf16>, vector<4x8x8xbf16>, vector<4x8x8xf32> -> vector<4x8x8xf32>
    "tpu.trace_stop"() : () -> ()
    %cst_113 = arith.constant 0.353553385 : f32
    %292 = vector.broadcast %cst_113 : f32 to vector<4x8x8xf32>
    %293 = arith.mulf %291, %292 : vector<4x8x8xf32>
    %cst_114 = arith.constant dense<0xFF800000> : vector<4x8xf32>
    %294 = vector.multi_reduction <maximumf>, %293, %cst_114 [2] : vector<4x8x8xf32> to vector<4x8xf32>
    %295 = vector.shape_cast %294 : vector<4x8xf32> to vector<4x8x1xf32>
    %296 = vector.broadcast %295 : vector<4x8x1xf32> to vector<4x8x8xf32>
    %297 = arith.subf %293, %296 : vector<4x8x8xf32>
    %298 = math.exp %297 : vector<4x8x8xf32>
    %cst_115 = arith.constant dense<0.000000e+00> : vector<4x8xf32>
    %299 = vector.multi_reduction <add>, %298, %cst_115 [2] : vector<4x8x8xf32> to vector<4x8xf32>
    %300 = vector.shape_cast %299 : vector<4x8xf32> to vector<4x8x1xf32>
    %301 = tpu.reciprocal %300 {approx = true} : vector<4x8x1xf32> -> vector<4x8x1xf32>
    %302 = vector.broadcast %301 : vector<4x8x1xf32> to vector<4x8x8xf32>
    %303 = arith.mulf %298, %302 : vector<4x8x8xf32>
    %304 = arith.truncf %303 : vector<4x8x8xf32> to vector<4x8x8xbf16>
    "tpu.trace_start"() <{level = 10 : i32, message = "hqk,hkd->hqd"}> : () -> ()
    %cst_116 = arith.constant dense<0.000000e+00> : vector<4x8x8xf32>
    %305 = tpu.matmul %304, %290, %cst_116 {dimension_numbers = #tpu.dot_dimension_numbers<[2], [1], [1], [2], [0, 0, 0, 1, 1, 2], [0], [0]>} : vector<4x8x8xbf16>, vector<4x8x8xbf16>, vector<4x8x8xf32> -> vector<4x8x8xf32>
    "tpu.trace_stop"() : () -> ()
    %306 = vector.extract_strided_slice %305 {offsets = [0, 0, 0], sizes = [1, 8, 8], strides = [1, 1, 1]} : vector<4x8x8xf32> to vector<1x8x8xf32>
    %307 = vector.shape_cast %306 : vector<1x8x8xf32> to vector<8x8xf32>
    %308 = vector.extract_strided_slice %305 {offsets = [1, 0, 0], sizes = [1, 8, 8], strides = [1, 1, 1]} : vector<4x8x8xf32> to vector<1x8x8xf32>
    %309 = vector.shape_cast %308 : vector<1x8x8xf32> to vector<8x8xf32>
    %310 = vector.extract_strided_slice %305 {offsets = [2, 0, 0], sizes = [1, 8, 8], strides = [1, 1, 1]} : vector<4x8x8xf32> to vector<1x8x8xf32>
    %311 = vector.shape_cast %310 : vector<1x8x8xf32> to vector<8x8xf32>
    %312 = vector.extract_strided_slice %305 {offsets = [3, 0, 0], sizes = [1, 8, 8], strides = [1, 1, 1]} : vector<4x8x8xf32> to vector<1x8x8xf32>
    %313 = vector.shape_cast %312 : vector<1x8x8xf32> to vector<8x8xf32>
    %314 = tpu.concatenate %307, %309, %311, %313 in 1 : vector<8x8xf32>, vector<8x8xf32>, vector<8x8xf32>, vector<8x8xf32> -> vector<8x32xf32>
    %315 = arith.truncf %314 : vector<8x32xf32> to vector<8x32xbf16>
    %cst_117 = arith.constant dense<0.000000e+00> : vector<8x32xf32>
    %316 = tpu.matmul %315, %261, %cst_117 {dimension_numbers = #tpu.dot_dimension_numbers<[1], [0], [0], [1], [0, 0, 1, 1], [], []>} : vector<8x32xbf16>, vector<32x32xbf16>, vector<8x32xf32> -> vector<8x32xf32>
    %317 = vector.broadcast %263 : vector<1x32xf32> to vector<8x32xf32>
    %318 = arith.addf %316, %317 : vector<8x32xf32>
    %c1_118 = arith.constant 1 : index
    %c0_119 = arith.constant 0 : index
    %c0_120 = arith.constant 0 : index
    %319 = vector.load %arg21[%c1_118, %c0_119, %c0_120] : memref<2x2x32xf32, #tpu.memory_space<vmem>>, vector<1x2x32xf32>
    %320 = vector.shape_cast %319 : vector<1x2x32xf32> to vector<2x32xf32>
    %c1_121 = arith.constant 1 : index
    %c0_122 = arith.constant 0 : index
    %c0_123 = arith.constant 0 : index
    %321 = vector.load %arg22[%c1_121, %c0_122, %c0_123] : memref<2x2x32xf32, #tpu.memory_space<vmem>>, vector<1x2x32xf32>
    %322 = vector.shape_cast %321 : vector<1x2x32xf32> to vector<2x32xf32>
    %323 = arith.addf %247, %318 : vector<8x32xf32>
    %324 = vector.extract_strided_slice %320 {offsets = [0, 0], sizes = [1, 32], strides = [1, 1]} : vector<2x32xf32> to vector<1x32xf32>
    %325 = vector.extract_strided_slice %322 {offsets = [0, 0], sizes = [1, 32], strides = [1, 1]} : vector<2x32xf32> to vector<1x32xf32>
    %cst_124 = arith.constant dense<0.000000e+00> : vector<8xf32>
    %326 = vector.multi_reduction <add>, %323, %cst_124 [1] : vector<8x32xf32> to vector<8xf32>
    %327 = vector.shape_cast %326 : vector<8xf32> to vector<8x1xf32>
    %cst_125 = arith.constant 3.200000e+01 : f32
    %328 = vector.broadcast %cst_125 : f32 to vector<8x1xf32>
    %329 = arith.divf %327, %328 : vector<8x1xf32>
    %330 = vector.broadcast %329 : vector<8x1xf32> to vector<8x32xf32>
    %331 = arith.subf %323, %330 : vector<8x32xf32>
    %332 = arith.mulf %331, %331 : vector<8x32xf32>
    %cst_126 = arith.constant dense<0.000000e+00> : vector<8xf32>
    %333 = vector.multi_reduction <add>, %332, %cst_126 [1] : vector<8x32xf32> to vector<8xf32>
    %334 = vector.shape_cast %333 : vector<8xf32> to vector<8x1xf32>
    %cst_127 = arith.constant 3.200000e+01 : f32
    %335 = vector.broadcast %cst_127 : f32 to vector<8x1xf32>
    %336 = arith.divf %334, %335 : vector<8x1xf32>
    %337 = vector.broadcast %329 : vector<8x1xf32> to vector<8x32xf32>
    %338 = arith.subf %323, %337 : vector<8x32xf32>
    %cst_128 = arith.constant 9.99999974E-6 : f32
    %339 = vector.broadcast %cst_128 : f32 to vector<8x1xf32>
    %340 = arith.addf %336, %339 : vector<8x1xf32>
    %341 = math.rsqrt %340 : vector<8x1xf32>
    %342 = vector.broadcast %341 : vector<8x1xf32> to vector<8x32xf32>
    %343 = arith.mulf %338, %342 : vector<8x32xf32>
    %344 = vector.broadcast %324 : vector<1x32xf32> to vector<8x32xf32>
    %345 = arith.mulf %343, %344 : vector<8x32xf32>
    %346 = vector.broadcast %325 : vector<1x32xf32> to vector<8x32xf32>
    %347 = arith.addf %345, %346 : vector<8x32xf32>
    %348 = arith.truncf %347 : vector<8x32xf32> to vector<8x32xbf16>
    %c1_129 = arith.constant 1 : index
    %c0_130 = arith.constant 0 : index
    %c0_131 = arith.constant 0 : index
    %349 = vector.load %arg23[%c1_129, %c0_130, %c0_131] : memref<2x32x64xbf16, #tpu.memory_space<vmem>>, vector<1x32x64xbf16>
    %350 = vector.shape_cast %349 : vector<1x32x64xbf16> to vector<32x64xbf16>
    %cst_132 = arith.constant dense<0.000000e+00> : vector<8x64xf32>
    %351 = tpu.matmul %348, %350, %cst_132 {dimension_numbers = #tpu.dot_dimension_numbers<[1], [0], [0], [1], [0, 0, 1, 1], [], []>} : vector<8x32xbf16>, vector<32x64xbf16>, vector<8x64xf32> -> vector<8x64xf32>
    %c1_133 = arith.constant 1 : index
    %c0_134 = arith.constant 0 : index
    %c0_135 = arith.constant 0 : index
    %352 = vector.load %arg24[%c1_133, %c0_134, %c0_135] : memref<2x1x64xf32, #tpu.memory_space<vmem>>, vector<1x1x64xf32>
    %353 = vector.shape_cast %352 : vector<1x1x64xf32> to vector<1x64xf32>
    %354 = vector.broadcast %353 : vector<1x64xf32> to vector<8x64xf32>
    %355 = arith.addf %351, %354 : vector<8x64xf32>
    %cst_136 = arith.constant 0.000000e+00 : f32
    %356 = vector.broadcast %cst_136 : f32 to vector<8x64xf32>
    %357 = arith.maximumf %355, %356 : vector<8x64xf32>
    %358 = arith.truncf %357 : vector<8x64xf32> to vector<8x64xbf16>
    %c1_137 = arith.constant 1 : index
    %c0_138 = arith.constant 0 : index
    %c0_139 = arith.constant 0 : index
    %359 = vector.load %arg25[%c1_137, %c0_138, %c0_139] : memref<2x64x32xbf16, #tpu.memory_space<vmem>>, vector<1x64x32xbf16>
    %360 = vector.shape_cast %359 : vector<1x64x32xbf16> to vector<64x32xbf16>
    %cst_140 = arith.constant dense<0.000000e+00> : vector<8x32xf32>
    %361 = tpu.matmul %358, %360, %cst_140 {dimension_numbers = #tpu.dot_dimension_numbers<[1], [0], [0], [1], [0, 0, 1, 1], [], []>} : vector<8x64xbf16>, vector<64x32xbf16>, vector<8x32xf32> -> vector<8x32xf32>
    %c1_141 = arith.constant 1 : index
    %c0_142 = arith.constant 0 : index
    %c0_143 = arith.constant 0 : index
    %362 = vector.load %arg26[%c1_141, %c0_142, %c0_143] : memref<2x1x32xf32, #tpu.memory_space<vmem>>, vector<1x1x32xf32>
    %363 = vector.shape_cast %362 : vector<1x1x32xf32> to vector<1x32xf32>
    %364 = vector.broadcast %363 : vector<1x32xf32> to vector<8x32xf32>
    %365 = arith.addf %361, %364 : vector<8x32xf32>
    %366 = arith.addf %347, %365 : vector<8x32xf32>
    %367 = vector.extract_strided_slice %320 {offsets = [1, 0], sizes = [1, 32], strides = [1, 1]} : vector<2x32xf32> to vector<1x32xf32>
    %368 = vector.extract_strided_slice %322 {offsets = [1, 0], sizes = [1, 32], strides = [1, 1]} : vector<2x32xf32> to vector<1x32xf32>
    %cst_144 = arith.constant dense<0.000000e+00> : vector<8xf32>
    %369 = vector.multi_reduction <add>, %366, %cst_144 [1] : vector<8x32xf32> to vector<8xf32>
    %370 = vector.shape_cast %369 : vector<8xf32> to vector<8x1xf32>
    %cst_145 = arith.constant 3.200000e+01 : f32
    %371 = vector.broadcast %cst_145 : f32 to vector<8x1xf32>
    %372 = arith.divf %370, %371 : vector<8x1xf32>
    %373 = vector.broadcast %372 : vector<8x1xf32> to vector<8x32xf32>
    %374 = arith.subf %366, %373 : vector<8x32xf32>
    %375 = arith.mulf %374, %374 : vector<8x32xf32>
    %cst_146 = arith.constant dense<0.000000e+00> : vector<8xf32>
    %376 = vector.multi_reduction <add>, %375, %cst_146 [1] : vector<8x32xf32> to vector<8xf32>
    %377 = vector.shape_cast %376 : vector<8xf32> to vector<8x1xf32>
    %cst_147 = arith.constant 3.200000e+01 : f32
    %378 = vector.broadcast %cst_147 : f32 to vector<8x1xf32>
    %379 = arith.divf %377, %378 : vector<8x1xf32>
    %380 = vector.broadcast %372 : vector<8x1xf32> to vector<8x32xf32>
    %381 = arith.subf %366, %380 : vector<8x32xf32>
    %cst_148 = arith.constant 9.99999974E-6 : f32
    %382 = vector.broadcast %cst_148 : f32 to vector<8x1xf32>
    %383 = arith.addf %379, %382 : vector<8x1xf32>
    %384 = math.rsqrt %383 : vector<8x1xf32>
    %385 = vector.broadcast %384 : vector<8x1xf32> to vector<8x32xf32>
    %386 = arith.mulf %381, %385 : vector<8x32xf32>
    %387 = vector.broadcast %367 : vector<1x32xf32> to vector<8x32xf32>
    %388 = arith.mulf %386, %387 : vector<8x32xf32>
    %389 = vector.broadcast %368 : vector<1x32xf32> to vector<8x32xf32>
    %390 = arith.addf %388, %389 : vector<8x32xf32>
    %391 = arith.truncf %390 : vector<8x32xf32> to vector<8x32xbf16>
    %c0_149 = arith.constant 0 : index
    %c0_150 = arith.constant 0 : index
    %392 = vector.load %arg27[%c0_149, %c0_150] : memref<32x128xbf16, #tpu.memory_space<vmem>>, vector<32x128xbf16>
    %cst_151 = arith.constant dense<0.000000e+00> : vector<8x128xf32>
    %393 = tpu.matmul %391, %392, %cst_151 {dimension_numbers = #tpu.dot_dimension_numbers<[1], [0], [0], [1], [0, 0, 1, 1], [], []>} : vector<8x32xbf16>, vector<32x128xbf16>, vector<8x128xf32> -> vector<8x128xf32>
    %c0_152 = arith.constant 0 : index
    %c0_153 = arith.constant 0 : index
    %394 = vector.load %arg28[%c0_152, %c0_153] : memref<1x128xf32, #tpu.memory_space<vmem>>, vector<1x128xf32>
    %395 = vector.broadcast %394 : vector<1x128xf32> to vector<8x128xf32>
    %396 = arith.addf %393, %395 : vector<8x128xf32>
    %c0_154 = arith.constant 0 : index
    %c0_155 = arith.constant 0 : index
    %c0_156 = arith.constant 0 : index
    %397 = vector.load %arg30[%c0_154, %c0_155, %c0_156] : memref<2x8x128xf32, #tpu.memory_space<vmem>>, vector<1x8x128xf32>
    %398 = vector.shape_cast %397 : vector<1x8x128xf32> to vector<8x128xf32>
    %399 = vector.shape_cast %396 : vector<8x128xf32> to vector<1x8x128xf32>
    tpu.vector_store %arg30[%c0_154, %c0_155, %c0_156], %399 {strides = array<i32>} : memref<2x8x128xf32, #tpu.memory_space<vmem>>, vector<1x8x128xf32>,
    %c1_157 = arith.constant 1 : index
    %c0_158 = arith.constant 0 : index
    %c0_159 = arith.constant 0 : index
    %400 = vector.load %arg3[%c1_157, %c0_158, %c0_159] : memref<2x1x8xbf16, #tpu.memory_space<vmem>>, vector<1x1x8xbf16>
    %401 = vector.shape_cast %400 : vector<1x1x8xbf16> to vector<1x8xbf16>
    %c1_160 = arith.constant 1 : index
    %c0_161 = arith.constant 0 : index
    %c0_162 = arith.constant 0 : index
    %402 = vector.load %arg1[%c1_160, %c0_161, %c0_162] : memref<2x8x256xbf16, #tpu.memory_space<vmem>>, vector<1x8x256xbf16>
    %403 = vector.shape_cast %402 : vector<1x8x256xbf16> to vector<8x256xbf16>
    %c0_163 = arith.constant 0 : index
    %c0_164 = arith.constant 0 : index
    %404 = vector.load %arg5[%c0_163, %c0_164] : memref<256x32xbf16, #tpu.memory_space<vmem>>, vector<256x32xbf16>
    %cst_165 = arith.constant dense<0.000000e+00> : vector<8x32xf32>
    %405 = tpu.matmul %403, %404, %cst_165 {dimension_numbers = #tpu.dot_dimension_numbers<[1], [0], [0], [1], [0, 0, 1, 1], [], []>} : vector<8x256xbf16>, vector<256x32xbf16>, vector<8x32xf32> -> vector<8x32xf32>
    %c0_166 = arith.constant 0 : index
    %c0_167 = arith.constant 0 : index
    %406 = vector.load %arg6[%c0_166, %c0_167] : memref<8x32xbf16, #tpu.memory_space<vmem>>, vector<8x32xbf16>
    %cst_168 = arith.constant dense<0.000000e+00> : vector<1x32xf32>
    %407 = tpu.matmul %401, %406, %cst_168 {dimension_numbers = #tpu.dot_dimension_numbers<[1], [0], [0], [1], [0, 0, 1, 1], [], []>} : vector<1x8xbf16>, vector<8x32xbf16>, vector<1x32xf32> -> vector<1x32xf32>
    %408 = vector.broadcast %407 : vector<1x32xf32> to vector<8x32xf32>
    %409 = arith.addf %405, %408 : vector<8x32xf32>
    %c0_169 = arith.constant 0 : index
    %c0_170 = arith.constant 0 : index
    %410 = vector.load %arg7[%c0_169, %c0_170] : memref<1x32xf32, #tpu.memory_space<vmem>>, vector<1x32xf32>
    %411 = vector.broadcast %410 : vector<1x32xf32> to vector<8x32xf32>
    %412 = arith.addf %409, %411 : vector<8x32xf32>
    %c1_171 = arith.constant 1 : index
    %c0_172 = arith.constant 0 : index
    %c0_173 = arith.constant 0 : index
    %413 = vector.load %arg2[%c1_171, %c0_172, %c0_173] : memref<2x6x4096xbf16, #tpu.memory_space<vmem>>, vector<1x6x4096xbf16>
    %414 = vector.shape_cast %413 : vector<1x6x4096xbf16> to vector<6x4096xbf16>
    %c0_174 = arith.constant 0 : index
    %c0_175 = arith.constant 0 : index
    %415 = vector.load %arg8[%c0_174, %c0_175] : memref<4096x32xbf16, #tpu.memory_space<vmem>>, vector<4096x32xbf16>
    %cst_176 = arith.constant dense<0.000000e+00> : vector<6x32xf32>
    %416 = tpu.matmul %414, %415, %cst_176 {dimension_numbers = #tpu.dot_dimension_numbers<[1], [0], [0], [1], [0, 0, 1, 1], [], []>} : vector<6x4096xbf16>, vector<4096x32xbf16>, vector<6x32xf32> -> vector<6x32xf32>
    %c0_177 = arith.constant 0 : index
    %c0_178 = arith.constant 0 : index
    %417 = vector.load %arg9[%c0_177, %c0_178] : memref<8x32xbf16, #tpu.memory_space<vmem>>, vector<8x32xbf16>
    %cst_179 = arith.constant dense<0.000000e+00> : vector<1x32xf32>
    %418 = tpu.matmul %401, %417, %cst_179 {dimension_numbers = #tpu.dot_dimension_numbers<[1], [0], [0], [1], [0, 0, 1, 1], [], []>} : vector<1x8xbf16>, vector<8x32xbf16>, vector<1x32xf32> -> vector<1x32xf32>
    %419 = vector.broadcast %418 : vector<1x32xf32> to vector<6x32xf32>
    %420 = arith.addf %416, %419 : vector<6x32xf32>
    %c0_180 = arith.constant 0 : index
    %c0_181 = arith.constant 0 : index
    %421 = vector.load %arg10[%c0_180, %c0_181] : memref<1x32xf32, #tpu.memory_space<vmem>>, vector<1x32xf32>
    %422 = vector.broadcast %421 : vector<1x32xf32> to vector<6x32xf32>
    %423 = arith.addf %420, %422 : vector<6x32xf32>
    %424 = arith.truncf %412 : vector<8x32xf32> to vector<8x32xbf16>
    %c0_182 = arith.constant 0 : index
    %c0_183 = arith.constant 0 : index
    %425 = vector.load %arg11[%c0_182, %c0_183] : memref<32x32xbf16, #tpu.memory_space<vmem>>, vector<32x32xbf16>
    %cst_184 = arith.constant dense<0.000000e+00> : vector<8x32xf32>
    %426 = tpu.matmul %424, %425, %cst_184 {dimension_numbers = #tpu.dot_dimension_numbers<[1], [0], [0], [1], [0, 0, 1, 1], [], []>} : vector<8x32xbf16>, vector<32x32xbf16>, vector<8x32xf32> -> vector<8x32xf32>
    %c0_185 = arith.constant 0 : index
    %c0_186 = arith.constant 0 : index
    %427 = vector.load %arg12[%c0_185, %c0_186] : memref<1x32xf32, #tpu.memory_space<vmem>>, vector<1x32xf32>
    %428 = vector.broadcast %427 : vector<1x32xf32> to vector<8x32xf32>
    %429 = arith.addf %426, %428 : vector<8x32xf32>
    %430 = arith.truncf %429 : vector<8x32xf32> to vector<8x32xbf16>
    %431 = arith.truncf %423 : vector<6x32xf32> to vector<6x32xbf16>
    %c0_187 = arith.constant 0 : index
    %c0_188 = arith.constant 0 : index
    %432 = vector.load %arg13[%c0_187, %c0_188] : memref<32x64xbf16, #tpu.memory_space<vmem>>, vector<32x64xbf16>
    %cst_189 = arith.constant dense<0.000000e+00> : vector<6x64xf32>
    %433 = tpu.matmul %431, %432, %cst_189 {dimension_numbers = #tpu.dot_dimension_numbers<[1], [0], [0], [1], [0, 0, 1, 1], [], []>} : vector<6x32xbf16>, vector<32x64xbf16>, vector<6x64xf32> -> vector<6x64xf32>
    %c0_190 = arith.constant 0 : index
    %c0_191 = arith.constant 0 : index
    %434 = vector.load %arg14[%c0_190, %c0_191] : memref<1x64xf32, #tpu.memory_space<vmem>>, vector<1x64xf32>
    %435 = vector.broadcast %434 : vector<1x64xf32> to vector<6x64xf32>
    %436 = arith.addf %433, %435 : vector<6x64xf32>
    %437 = arith.truncf %436 : vector<6x64xf32> to vector<6x64xbf16>
    %438 = vector.extract_strided_slice %437 {offsets = [0, 0], sizes = [6, 32], strides = [1, 1]} : vector<6x64xbf16> to vector<6x32xbf16>
    %439 = vector.extract_strided_slice %437 {offsets = [0, 32], sizes = [6, 32], strides = [1, 1]} : vector<6x64xbf16> to vector<6x32xbf16>
    %c0_192 = arith.constant 0 : index
    %c0_193 = arith.constant 0 : index
    %440 = vector.load %arg15[%c0_192, %c0_193] : memref<32x32xbf16, #tpu.memory_space<vmem>>, vector<32x32xbf16>
    %c0_194 = arith.constant 0 : index
    %c0_195 = arith.constant 0 : index
    %441 = vector.load %arg16[%c0_194, %c0_195] : memref<1x32xf32, #tpu.memory_space<vmem>>, vector<1x32xf32>
    %442 = vector.extract_strided_slice %430 {offsets = [0, 0], sizes = [8, 8], strides = [1, 1]} : vector<8x32xbf16> to vector<8x8xbf16>
    %443 = vector.extract_strided_slice %430 {offsets = [0, 8], sizes = [8, 8], strides = [1, 1]} : vector<8x32xbf16> to vector<8x8xbf16>
    %444 = vector.extract_strided_slice %430 {offsets = [0, 16], sizes = [8, 8], strides = [1, 1]} : vector<8x32xbf16> to vector<8x8xbf16>
    %445 = vector.extract_strided_slice %430 {offsets = [0, 24], sizes = [8, 8], strides = [1, 1]} : vector<8x32xbf16> to vector<8x8xbf16>
    %446 = vector.shape_cast %442 : vector<8x8xbf16> to vector<1x8x8xbf16>
    %447 = vector.shape_cast %443 : vector<8x8xbf16> to vector<1x8x8xbf16>
    %448 = vector.shape_cast %444 : vector<8x8xbf16> to vector<1x8x8xbf16>
    %449 = vector.shape_cast %445 : vector<8x8xbf16> to vector<1x8x8xbf16>
    %450 = tpu.concatenate %446, %447, %448, %449 in 0 : vector<1x8x8xbf16>, vector<1x8x8xbf16>, vector<1x8x8xbf16>, vector<1x8x8xbf16> -> vector<4x8x8xbf16>
    %451 = vector.extract_strided_slice %438 {offsets = [0, 0], sizes = [6, 8], strides = [1, 1]} : vector<6x32xbf16> to vector<6x8xbf16>
    %452 = vector.extract_strided_slice %438 {offsets = [0, 8], sizes = [6, 8], strides = [1, 1]} : vector<6x32xbf16> to vector<6x8xbf16>
    %453 = vector.extract_strided_slice %438 {offsets = [0, 16], sizes = [6, 8], strides = [1, 1]} : vector<6x32xbf16> to vector<6x8xbf16>
    %454 = vector.extract_strided_slice %438 {offsets = [0, 24], sizes = [6, 8], strides = [1, 1]} : vector<6x32xbf16> to vector<6x8xbf16>
    %455 = vector.shape_cast %451 : vector<6x8xbf16> to vector<1x6x8xbf16>
    %456 = vector.shape_cast %452 : vector<6x8xbf16> to vector<1x6x8xbf16>
    %457 = vector.shape_cast %453 : vector<6x8xbf16> to vector<1x6x8xbf16>
    %458 = vector.shape_cast %454 : vector<6x8xbf16> to vector<1x6x8xbf16>
    %459 = tpu.concatenate %455, %456, %457, %458 in 0 : vector<1x6x8xbf16>, vector<1x6x8xbf16>, vector<1x6x8xbf16>, vector<1x6x8xbf16> -> vector<4x6x8xbf16>
    %460 = vector.extract_strided_slice %439 {offsets = [0, 0], sizes = [6, 8], strides = [1, 1]} : vector<6x32xbf16> to vector<6x8xbf16>
    %461 = vector.extract_strided_slice %439 {offsets = [0, 8], sizes = [6, 8], strides = [1, 1]} : vector<6x32xbf16> to vector<6x8xbf16>
    %462 = vector.extract_strided_slice %439 {offsets = [0, 16], sizes = [6, 8], strides = [1, 1]} : vector<6x32xbf16> to vector<6x8xbf16>
    %463 = vector.extract_strided_slice %439 {offsets = [0, 24], sizes = [6, 8], strides = [1, 1]} : vector<6x32xbf16> to vector<6x8xbf16>
    %464 = vector.shape_cast %460 : vector<6x8xbf16> to vector<1x6x8xbf16>
    %465 = vector.shape_cast %461 : vector<6x8xbf16> to vector<1x6x8xbf16>
    %466 = vector.shape_cast %462 : vector<6x8xbf16> to vector<1x6x8xbf16>
    %467 = vector.shape_cast %463 : vector<6x8xbf16> to vector<1x6x8xbf16>
    %468 = tpu.concatenate %464, %465, %466, %467 in 0 : vector<1x6x8xbf16>, vector<1x6x8xbf16>, vector<1x6x8xbf16>, vector<1x6x8xbf16> -> vector<4x6x8xbf16>
    "tpu.trace_start"() <{level = 10 : i32, message = "hqd,hkd->hqk"}> : () -> ()
    %cst_196 = arith.constant dense<0.000000e+00> : vector<4x8x6xf32>
    %469 = tpu.matmul %450, %459, %cst_196 {dimension_numbers = #tpu.dot_dimension_numbers<[2], [2], [1], [1], [0, 0, 0, 1, 1, 1], [0], [0]>} : vector<4x8x8xbf16>, vector<4x6x8xbf16>, vector<4x8x6xf32> -> vector<4x8x6xf32>
    "tpu.trace_stop"() : () -> ()
    %cst_197 = arith.constant 0.353553385 : f32
    %470 = vector.broadcast %cst_197 : f32 to vector<4x8x6xf32>
    %471 = arith.mulf %469, %470 : vector<4x8x6xf32>
    %cst_198 = arith.constant dense<0xFF800000> : vector<4x8xf32>
    %472 = vector.multi_reduction <maximumf>, %471, %cst_198 [2] : vector<4x8x6xf32> to vector<4x8xf32>
    %473 = vector.shape_cast %472 : vector<4x8xf32> to vector<4x8x1xf32>
    %474 = vector.broadcast %473 : vector<4x8x1xf32> to vector<4x8x6xf32>
    %475 = arith.subf %471, %474 : vector<4x8x6xf32>
    %476 = math.exp %475 : vector<4x8x6xf32>
    %cst_199 = arith.constant dense<0.000000e+00> : vector<4x8xf32>
    %477 = vector.multi_reduction <add>, %476, %cst_199 [2] : vector<4x8x6xf32> to vector<4x8xf32>
    %478 = vector.shape_cast %477 : vector<4x8xf32> to vector<4x8x1xf32>
    %479 = tpu.reciprocal %478 {approx = true} : vector<4x8x1xf32> -> vector<4x8x1xf32>
    %480 = vector.broadcast %479 : vector<4x8x1xf32> to vector<4x8x6xf32>
    %481 = arith.mulf %476, %480 : vector<4x8x6xf32>
    %482 = arith.truncf %481 : vector<4x8x6xf32> to vector<4x8x6xbf16>
    "tpu.trace_start"() <{level = 10 : i32, message = "hqk,hkd->hqd"}> : () -> ()
    %cst_200 = arith.constant dense<0.000000e+00> : vector<4x8x8xf32>
    %483 = tpu.matmul %482, %468, %cst_200 {dimension_numbers = #tpu.dot_dimension_numbers<[2], [1], [1], [2], [0, 0, 0, 1, 1, 2], [0], [0]>} : vector<4x8x6xbf16>, vector<4x6x8xbf16>, vector<4x8x8xf32> -> vector<4x8x8xf32>
    "tpu.trace_stop"() : () -> ()
    %484 = vector.extract_strided_slice %483 {offsets = [0, 0, 0], sizes = [1, 8, 8], strides = [1, 1, 1]} : vector<4x8x8xf32> to vector<1x8x8xf32>
    %485 = vector.shape_cast %484 : vector<1x8x8xf32> to vector<8x8xf32>
    %486 = vector.extract_strided_slice %483 {offsets = [1, 0, 0], sizes = [1, 8, 8], strides = [1, 1, 1]} : vector<4x8x8xf32> to vector<1x8x8xf32>
    %487 = vector.shape_cast %486 : vector<1x8x8xf32> to vector<8x8xf32>
    %488 = vector.extract_strided_slice %483 {offsets = [2, 0, 0], sizes = [1, 8, 8], strides = [1, 1, 1]} : vector<4x8x8xf32> to vector<1x8x8xf32>
    %489 = vector.shape_cast %488 : vector<1x8x8xf32> to vector<8x8xf32>
    %490 = vector.extract_strided_slice %483 {offsets = [3, 0, 0], sizes = [1, 8, 8], strides = [1, 1, 1]} : vector<4x8x8xf32> to vector<1x8x8xf32>
    %491 = vector.shape_cast %490 : vector<1x8x8xf32> to vector<8x8xf32>
    %492 = tpu.concatenate %485, %487, %489, %491 in 1 : vector<8x8xf32>, vector<8x8xf32>, vector<8x8xf32>, vector<8x8xf32> -> vector<8x32xf32>
    %493 = arith.truncf %492 : vector<8x32xf32> to vector<8x32xbf16>
    %cst_201 = arith.constant dense<0.000000e+00> : vector<8x32xf32>
    %494 = tpu.matmul %493, %440, %cst_201 {dimension_numbers = #tpu.dot_dimension_numbers<[1], [0], [0], [1], [0, 0, 1, 1], [], []>} : vector<8x32xbf16>, vector<32x32xbf16>, vector<8x32xf32> -> vector<8x32xf32>
    %495 = vector.broadcast %441 : vector<1x32xf32> to vector<8x32xf32>
    %496 = arith.addf %494, %495 : vector<8x32xf32>
    %497 = arith.addf %496, %1 : vector<8x32xf32>
    %498 = tpu.concatenate %497, %2 in 1 : vector<8x32xf32>, vector<8x96xf32> -> vector<8x128xf32>
    %c1_202 = arith.constant 1 : index
    %c0_203 = arith.constant 0 : index
    %c0_204 = arith.constant 0 : index
    %499 = vector.load %arg29[%c1_202, %c0_203, %c0_204] : memref<2x8x128xf32, #tpu.memory_space<vmem>>, vector<1x8x128xf32>
    %500 = vector.shape_cast %499 : vector<1x8x128xf32> to vector<8x128xf32>
    %501 = vector.shape_cast %498 : vector<8x128xf32> to vector<1x8x128xf32>
    tpu.vector_store %arg29[%c1_202, %c0_203, %c0_204], %501 {strides = array<i32>} : memref<2x8x128xf32, #tpu.memory_space<vmem>>, vector<1x8x128xf32>,
    %502 = arith.truncf %497 : vector<8x32xf32> to vector<8x32xbf16>
    %c0_205 = arith.constant 0 : index
    %c0_206 = arith.constant 0 : index
    %c0_207 = arith.constant 0 : index
    %503 = vector.load %arg17[%c0_205, %c0_206, %c0_207] : memref<2x32x96xbf16, #tpu.memory_space<vmem>>, vector<1x32x96xbf16>
    %504 = vector.shape_cast %503 : vector<1x32x96xbf16> to vector<32x96xbf16>
    %cst_208 = arith.constant dense<0.000000e+00> : vector<8x96xf32>
    %505 = tpu.matmul %502, %504, %cst_208 {dimension_numbers = #tpu.dot_dimension_numbers<[1], [0], [0], [1], [0, 0, 1, 1], [], []>} : vector<8x32xbf16>, vector<32x96xbf16>, vector<8x96xf32> -> vector<8x96xf32>
    %c0_209 = arith.constant 0 : index
    %c0_210 = arith.constant 0 : index
    %c0_211 = arith.constant 0 : index
    %506 = vector.load %arg18[%c0_209, %c0_210, %c0_211] : memref<2x1x96xf32, #tpu.memory_space<vmem>>, vector<1x1x96xf32>
    %507 = vector.shape_cast %506 : vector<1x1x96xf32> to vector<1x96xf32>
    %508 = vector.broadcast %507 : vector<1x96xf32> to vector<8x96xf32>
    %509 = arith.addf %505, %508 : vector<8x96xf32>
    %510 = arith.truncf %509 : vector<8x96xf32> to vector<8x96xbf16>
    %511 = vector.extract_strided_slice %510 {offsets = [0, 0], sizes = [8, 32], strides = [1, 1]} : vector<8x96xbf16> to vector<8x32xbf16>
    %512 = vector.extract_strided_slice %510 {offsets = [0, 32], sizes = [8, 32], strides = [1, 1]} : vector<8x96xbf16> to vector<8x32xbf16>
    %513 = vector.extract_strided_slice %510 {offsets = [0, 64], sizes = [8, 32], strides = [1, 1]} : vector<8x96xbf16> to vector<8x32xbf16>
    %c0_212 = arith.constant 0 : index
    %c0_213 = arith.constant 0 : index
    %c0_214 = arith.constant 0 : index
    %514 = vector.load %arg19[%c0_212, %c0_213, %c0_214] : memref<2x32x32xbf16, #tpu.memory_space<vmem>>, vector<1x32x32xbf16>
    %515 = vector.shape_cast %514 : vector<1x32x32xbf16> to vector<32x32xbf16>
    %c0_215 = arith.constant 0 : index
    %c0_216 = arith.constant 0 : index
    %c0_217 = arith.constant 0 : index
    %516 = vector.load %arg20[%c0_215, %c0_216, %c0_217] : memref<2x1x32xf32, #tpu.memory_space<vmem>>, vector<1x1x32xf32>
    %517 = vector.shape_cast %516 : vector<1x1x32xf32> to vector<1x32xf32>
    %518 = vector.extract_strided_slice %511 {offsets = [0, 0], sizes = [8, 8], strides = [1, 1]} : vector<8x32xbf16> to vector<8x8xbf16>
    %519 = vector.extract_strided_slice %511 {offsets = [0, 8], sizes = [8, 8], strides = [1, 1]} : vector<8x32xbf16> to vector<8x8xbf16>
    %520 = vector.extract_strided_slice %511 {offsets = [0, 16], sizes = [8, 8], strides = [1, 1]} : vector<8x32xbf16> to vector<8x8xbf16>
    %521 = vector.extract_strided_slice %511 {offsets = [0, 24], sizes = [8, 8], strides = [1, 1]} : vector<8x32xbf16> to vector<8x8xbf16>
    %522 = vector.shape_cast %518 : vector<8x8xbf16> to vector<1x8x8xbf16>
    %523 = vector.shape_cast %519 : vector<8x8xbf16> to vector<1x8x8xbf16>
    %524 = vector.shape_cast %520 : vector<8x8xbf16> to vector<1x8x8xbf16>
    %525 = vector.shape_cast %521 : vector<8x8xbf16> to vector<1x8x8xbf16>
    %526 = tpu.concatenate %522, %523, %524, %525 in 0 : vector<1x8x8xbf16>, vector<1x8x8xbf16>, vector<1x8x8xbf16>, vector<1x8x8xbf16> -> vector<4x8x8xbf16>
    %527 = vector.extract_strided_slice %512 {offsets = [0, 0], sizes = [8, 8], strides = [1, 1]} : vector<8x32xbf16> to vector<8x8xbf16>
    %528 = vector.extract_strided_slice %512 {offsets = [0, 8], sizes = [8, 8], strides = [1, 1]} : vector<8x32xbf16> to vector<8x8xbf16>
    %529 = vector.extract_strided_slice %512 {offsets = [0, 16], sizes = [8, 8], strides = [1, 1]} : vector<8x32xbf16> to vector<8x8xbf16>
    %530 = vector.extract_strided_slice %512 {offsets = [0, 24], sizes = [8, 8], strides = [1, 1]} : vector<8x32xbf16> to vector<8x8xbf16>
    %531 = vector.shape_cast %527 : vector<8x8xbf16> to vector<1x8x8xbf16>
    %532 = vector.shape_cast %528 : vector<8x8xbf16> to vector<1x8x8xbf16>
    %533 = vector.shape_cast %529 : vector<8x8xbf16> to vector<1x8x8xbf16>
    %534 = vector.shape_cast %530 : vector<8x8xbf16> to vector<1x8x8xbf16>
    %535 = tpu.concatenate %531, %532, %533, %534 in 0 : vector<1x8x8xbf16>, vector<1x8x8xbf16>, vector<1x8x8xbf16>, vector<1x8x8xbf16> -> vector<4x8x8xbf16>
    %536 = vector.extract_strided_slice %513 {offsets = [0, 0], sizes = [8, 8], strides = [1, 1]} : vector<8x32xbf16> to vector<8x8xbf16>
    %537 = vector.extract_strided_slice %513 {offsets = [0, 8], sizes = [8, 8], strides = [1, 1]} : vector<8x32xbf16> to vector<8x8xbf16>
    %538 = vector.extract_strided_slice %513 {offsets = [0, 16], sizes = [8, 8], strides = [1, 1]} : vector<8x32xbf16> to vector<8x8xbf16>
    %539 = vector.extract_strided_slice %513 {offsets = [0, 24], sizes = [8, 8], strides = [1, 1]} : vector<8x32xbf16> to vector<8x8xbf16>
    %540 = vector.shape_cast %536 : vector<8x8xbf16> to vector<1x8x8xbf16>
    %541 = vector.shape_cast %537 : vector<8x8xbf16> to vector<1x8x8xbf16>
    %542 = vector.shape_cast %538 : vector<8x8xbf16> to vector<1x8x8xbf16>
    %543 = vector.shape_cast %539 : vector<8x8xbf16> to vector<1x8x8xbf16>
    %544 = tpu.concatenate %540, %541, %542, %543 in 0 : vector<1x8x8xbf16>, vector<1x8x8xbf16>, vector<1x8x8xbf16>, vector<1x8x8xbf16> -> vector<4x8x8xbf16>
    "tpu.trace_start"() <{level = 10 : i32, message = "hqd,hkd->hqk"}> : () -> ()
    %cst_218 = arith.constant dense<0.000000e+00> : vector<4x8x8xf32>
    %545 = tpu.matmul %526, %535, %cst_218 {dimension_numbers = #tpu.dot_dimension_numbers<[2], [2], [1], [1], [0, 0, 0, 1, 1, 1], [0], [0]>} : vector<4x8x8xbf16>, vector<4x8x8xbf16>, vector<4x8x8xf32> -> vector<4x8x8xf32>
    "tpu.trace_stop"() : () -> ()
    %cst_219 = arith.constant 0.353553385 : f32
    %546 = vector.broadcast %cst_219 : f32 to vector<4x8x8xf32>
    %547 = arith.mulf %545, %546 : vector<4x8x8xf32>
    %cst_220 = arith.constant dense<0xFF800000> : vector<4x8xf32>
    %548 = vector.multi_reduction <maximumf>, %547, %cst_220 [2] : vector<4x8x8xf32> to vector<4x8xf32>
    %549 = vector.shape_cast %548 : vector<4x8xf32> to vector<4x8x1xf32>
    %550 = vector.broadcast %549 : vector<4x8x1xf32> to vector<4x8x8xf32>
    %551 = arith.subf %547, %550 : vector<4x8x8xf32>
    %552 = math.exp %551 : vector<4x8x8xf32>
    %cst_221 = arith.constant dense<0.000000e+00> : vector<4x8xf32>
    %553 = vector.multi_reduction <add>, %552, %cst_221 [2] : vector<4x8x8xf32> to vector<4x8xf32>
    %554 = vector.shape_cast %553 : vector<4x8xf32> to vector<4x8x1xf32>
    %555 = tpu.reciprocal %554 {approx = true} : vector<4x8x1xf32> -> vector<4x8x1xf32>
    %556 = vector.broadcast %555 : vector<4x8x1xf32> to vector<4x8x8xf32>
    %557 = arith.mulf %552, %556 : vector<4x8x8xf32>
    %558 = arith.truncf %557 : vector<4x8x8xf32> to vector<4x8x8xbf16>
    "tpu.trace_start"() <{level = 10 : i32, message = "hqk,hkd->hqd"}> : () -> ()
    %cst_222 = arith.constant dense<0.000000e+00> : vector<4x8x8xf32>
    %559 = tpu.matmul %558, %544, %cst_222 {dimension_numbers = #tpu.dot_dimension_numbers<[2], [1], [1], [2], [0, 0, 0, 1, 1, 2], [0], [0]>} : vector<4x8x8xbf16>, vector<4x8x8xbf16>, vector<4x8x8xf32> -> vector<4x8x8xf32>
    "tpu.trace_stop"() : () -> ()
    %560 = vector.extract_strided_slice %559 {offsets = [0, 0, 0], sizes = [1, 8, 8], strides = [1, 1, 1]} : vector<4x8x8xf32> to vector<1x8x8xf32>
    %561 = vector.shape_cast %560 : vector<1x8x8xf32> to vector<8x8xf32>
    %562 = vector.extract_strided_slice %559 {offsets = [1, 0, 0], sizes = [1, 8, 8], strides = [1, 1, 1]} : vector<4x8x8xf32> to vector<1x8x8xf32>
    %563 = vector.shape_cast %562 : vector<1x8x8xf32> to vector<8x8xf32>
    %564 = vector.extract_strided_slice %559 {offsets = [2, 0, 0], sizes = [1, 8, 8], strides = [1, 1, 1]} : vector<4x8x8xf32> to vector<1x8x8xf32>
    %565 = vector.shape_cast %564 : vector<1x8x8xf32> to vector<8x8xf32>
    %566 = vector.extract_strided_slice %559 {offsets = [3, 0, 0], sizes = [1, 8, 8], strides = [1, 1, 1]} : vector<4x8x8xf32> to vector<1x8x8xf32>
    %567 = vector.shape_cast %566 : vector<1x8x8xf32> to vector<8x8xf32>
    %568 = tpu.concatenate %561, %563, %565, %567 in 1 : vector<8x8xf32>, vector<8x8xf32>, vector<8x8xf32>, vector<8x8xf32> -> vector<8x32xf32>
    %569 = arith.truncf %568 : vector<8x32xf32> to vector<8x32xbf16>
    %cst_223 = arith.constant dense<0.000000e+00> : vector<8x32xf32>
    %570 = tpu.matmul %569, %515, %cst_223 {dimension_numbers = #tpu.dot_dimension_numbers<[1], [0], [0], [1], [0, 0, 1, 1], [], []>} : vector<8x32xbf16>, vector<32x32xbf16>, vector<8x32xf32> -> vector<8x32xf32>
    %571 = vector.broadcast %517 : vector<1x32xf32> to vector<8x32xf32>
    %572 = arith.addf %570, %571 : vector<8x32xf32>
    %c0_224 = arith.constant 0 : index
    %c0_225 = arith.constant 0 : index
    %c0_226 = arith.constant 0 : index
    %573 = vector.load %arg21[%c0_224, %c0_225, %c0_226] : memref<2x2x32xf32, #tpu.memory_space<vmem>>, vector<1x2x32xf32>
    %574 = vector.shape_cast %573 : vector<1x2x32xf32> to vector<2x32xf32>
    %c0_227 = arith.constant 0 : index
    %c0_228 = arith.constant 0 : index
    %c0_229 = arith.constant 0 : index
    %575 = vector.load %arg22[%c0_227, %c0_228, %c0_229] : memref<2x2x32xf32, #tpu.memory_space<vmem>>, vector<1x2x32xf32>
    %576 = vector.shape_cast %575 : vector<1x2x32xf32> to vector<2x32xf32>
    %577 = arith.addf %497, %572 : vector<8x32xf32>
    %578 = vector.extract_strided_slice %574 {offsets = [0, 0], sizes = [1, 32], strides = [1, 1]} : vector<2x32xf32> to vector<1x32xf32>
    %579 = vector.extract_strided_slice %576 {offsets = [0, 0], sizes = [1, 32], strides = [1, 1]} : vector<2x32xf32> to vector<1x32xf32>
    %cst_230 = arith.constant dense<0.000000e+00> : vector<8xf32>
    %580 = vector.multi_reduction <add>, %577, %cst_230 [1] : vector<8x32xf32> to vector<8xf32>
    %581 = vector.shape_cast %580 : vector<8xf32> to vector<8x1xf32>
    %cst_231 = arith.constant 3.200000e+01 : f32
    %582 = vector.broadcast %cst_231 : f32 to vector<8x1xf32>
    %583 = arith.divf %581, %582 : vector<8x1xf32>
    %584 = vector.broadcast %583 : vector<8x1xf32> to vector<8x32xf32>
    %585 = arith.subf %577, %584 : vector<8x32xf32>
    %586 = arith.mulf %585, %585 : vector<8x32xf32>
    %cst_232 = arith.constant dense<0.000000e+00> : vector<8xf32>
    %587 = vector.multi_reduction <add>, %586, %cst_232 [1] : vector<8x32xf32> to vector<8xf32>
    %588 = vector.shape_cast %587 : vector<8xf32> to vector<8x1xf32>
    %cst_233 = arith.constant 3.200000e+01 : f32
    %589 = vector.broadcast %cst_233 : f32 to vector<8x1xf32>
    %590 = arith.divf %588, %589 : vector<8x1xf32>
    %591 = vector.broadcast %583 : vector<8x1xf32> to vector<8x32xf32>
    %592 = arith.subf %577, %591 : vector<8x32xf32>
    %cst_234 = arith.constant 9.99999974E-6 : f32
    %593 = vector.broadcast %cst_234 : f32 to vector<8x1xf32>
    %594 = arith.addf %590, %593 : vector<8x1xf32>
    %595 = math.rsqrt %594 : vector<8x1xf32>
    %596 = vector.broadcast %595 : vector<8x1xf32> to vector<8x32xf32>
    %597 = arith.mulf %592, %596 : vector<8x32xf32>
    %598 = vector.broadcast %578 : vector<1x32xf32> to vector<8x32xf32>
    %599 = arith.mulf %597, %598 : vector<8x32xf32>
    %600 = vector.broadcast %579 : vector<1x32xf32> to vector<8x32xf32>
    %601 = arith.addf %599, %600 : vector<8x32xf32>
    %602 = arith.truncf %601 : vector<8x32xf32> to vector<8x32xbf16>
    %c0_235 = arith.constant 0 : index
    %c0_236 = arith.constant 0 : index
    %c0_237 = arith.constant 0 : index
    %603 = vector.load %arg23[%c0_235, %c0_236, %c0_237] : memref<2x32x64xbf16, #tpu.memory_space<vmem>>, vector<1x32x64xbf16>
    %604 = vector.shape_cast %603 : vector<1x32x64xbf16> to vector<32x64xbf16>
    %cst_238 = arith.constant dense<0.000000e+00> : vector<8x64xf32>
    %605 = tpu.matmul %602, %604, %cst_238 {dimension_numbers = #tpu.dot_dimension_numbers<[1], [0], [0], [1], [0, 0, 1, 1], [], []>} : vector<8x32xbf16>, vector<32x64xbf16>, vector<8x64xf32> -> vector<8x64xf32>
    %c0_239 = arith.constant 0 : index
    %c0_240 = arith.constant 0 : index
    %c0_241 = arith.constant 0 : index
    %606 = vector.load %arg24[%c0_239, %c0_240, %c0_241] : memref<2x1x64xf32, #tpu.memory_space<vmem>>, vector<1x1x64xf32>
    %607 = vector.shape_cast %606 : vector<1x1x64xf32> to vector<1x64xf32>
    %608 = vector.broadcast %607 : vector<1x64xf32> to vector<8x64xf32>
    %609 = arith.addf %605, %608 : vector<8x64xf32>
    %cst_242 = arith.constant 0.000000e+00 : f32
    %610 = vector.broadcast %cst_242 : f32 to vector<8x64xf32>
    %611 = arith.maximumf %609, %610 : vector<8x64xf32>
    %612 = arith.truncf %611 : vector<8x64xf32> to vector<8x64xbf16>
    %c0_243 = arith.constant 0 : index
    %c0_244 = arith.constant 0 : index
    %c0_245 = arith.constant 0 : index
    %613 = vector.load %arg25[%c0_243, %c0_244, %c0_245] : memref<2x64x32xbf16, #tpu.memory_space<vmem>>, vector<1x64x32xbf16>
    %614 = vector.shape_cast %613 : vector<1x64x32xbf16> to vector<64x32xbf16>
    %cst_246 = arith.constant dense<0.000000e+00> : vector<8x32xf32>
    %615 = tpu.matmul %612, %614, %cst_246 {dimension_numbers = #tpu.dot_dimension_numbers<[1], [0], [0], [1], [0, 0, 1, 1], [], []>} : vector<8x64xbf16>, vector<64x32xbf16>, vector<8x32xf32> -> vector<8x32xf32>
    %c0_247 = arith.constant 0 : index
    %c0_248 = arith.constant 0 : index
    %c0_249 = arith.constant 0 : index
    %616 = vector.load %arg26[%c0_247, %c0_248, %c0_249] : memref<2x1x32xf32, #tpu.memory_space<vmem>>, vector<1x1x32xf32>
    %617 = vector.shape_cast %616 : vector<1x1x32xf32> to vector<1x32xf32>
    %618 = vector.broadcast %617 : vector<1x32xf32> to vector<8x32xf32>
    %619 = arith.addf %615, %618 : vector<8x32xf32>
    %620 = arith.addf %601, %619 : vector<8x32xf32>
    %621 = vector.extract_strided_slice %574 {offsets = [1, 0], sizes = [1, 32], strides = [1, 1]} : vector<2x32xf32> to vector<1x32xf32>
    %622 = vector.extract_strided_slice %576 {offsets = [1, 0], sizes = [1, 32], strides = [1, 1]} : vector<2x32xf32> to vector<1x32xf32>
    %cst_250 = arith.constant dense<0.000000e+00> : vector<8xf32>
    %623 = vector.multi_reduction <add>, %620, %cst_250 [1] : vector<8x32xf32> to vector<8xf32>
    %624 = vector.shape_cast %623 : vector<8xf32> to vector<8x1xf32>
    %cst_251 = arith.constant 3.200000e+01 : f32
    %625 = vector.broadcast %cst_251 : f32 to vector<8x1xf32>
    %626 = arith.divf %624, %625 : vector<8x1xf32>
    %627 = vector.broadcast %626 : vector<8x1xf32> to vector<8x32xf32>
    %628 = arith.subf %620, %627 : vector<8x32xf32>
    %629 = arith.mulf %628, %628 : vector<8x32xf32>
    %cst_252 = arith.constant dense<0.000000e+00> : vector<8xf32>
    %630 = vector.multi_reduction <add>, %629, %cst_252 [1] : vector<8x32xf32> to vector<8xf32>
    %631 = vector.shape_cast %630 : vector<8xf32> to vector<8x1xf32>
    %cst_253 = arith.constant 3.200000e+01 : f32
    %632 = vector.broadcast %cst_253 : f32 to vector<8x1xf32>
    %633 = arith.divf %631, %632 : vector<8x1xf32>
    %634 = vector.broadcast %626 : vector<8x1xf32> to vector<8x32xf32>
    %635 = arith.subf %620, %634 : vector<8x32xf32>
    %cst_254 = arith.constant 9.99999974E-6 : f32
    %636 = vector.broadcast %cst_254 : f32 to vector<8x1xf32>
    %637 = arith.addf %633, %636 : vector<8x1xf32>
    %638 = math.rsqrt %637 : vector<8x1xf32>
    %639 = vector.broadcast %638 : vector<8x1xf32> to vector<8x32xf32>
    %640 = arith.mulf %635, %639 : vector<8x32xf32>
    %641 = vector.broadcast %621 : vector<1x32xf32> to vector<8x32xf32>
    %642 = arith.mulf %640, %641 : vector<8x32xf32>
    %643 = vector.broadcast %622 : vector<1x32xf32> to vector<8x32xf32>
    %644 = arith.addf %642, %643 : vector<8x32xf32>
    %645 = arith.truncf %644 : vector<8x32xf32> to vector<8x32xbf16>
    %c1_255 = arith.constant 1 : index
    %c0_256 = arith.constant 0 : index
    %c0_257 = arith.constant 0 : index
    %646 = vector.load %arg17[%c1_255, %c0_256, %c0_257] : memref<2x32x96xbf16, #tpu.memory_space<vmem>>, vector<1x32x96xbf16>
    %647 = vector.shape_cast %646 : vector<1x32x96xbf16> to vector<32x96xbf16>
    %cst_258 = arith.constant dense<0.000000e+00> : vector<8x96xf32>
    %648 = tpu.matmul %645, %647, %cst_258 {dimension_numbers = #tpu.dot_dimension_numbers<[1], [0], [0], [1], [0, 0, 1, 1], [], []>} : vector<8x32xbf16>, vector<32x96xbf16>, vector<8x96xf32> -> vector<8x96xf32>
    %c1_259 = arith.constant 1 : index
    %c0_260 = arith.constant 0 : index
    %c0_261 = arith.constant 0 : index
    %649 = vector.load %arg18[%c1_259, %c0_260, %c0_261] : memref<2x1x96xf32, #tpu.memory_space<vmem>>, vector<1x1x96xf32>
    %650 = vector.shape_cast %649 : vector<1x1x96xf32> to vector<1x96xf32>
    %651 = vector.broadcast %650 : vector<1x96xf32> to vector<8x96xf32>
    %652 = arith.addf %648, %651 : vector<8x96xf32>
    %653 = arith.truncf %652 : vector<8x96xf32> to vector<8x96xbf16>
    %654 = vector.extract_strided_slice %653 {offsets = [0, 0], sizes = [8, 32], strides = [1, 1]} : vector<8x96xbf16> to vector<8x32xbf16>
    %655 = vector.extract_strided_slice %653 {offsets = [0, 32], sizes = [8, 32], strides = [1, 1]} : vector<8x96xbf16> to vector<8x32xbf16>
    %656 = vector.extract_strided_slice %653 {offsets = [0, 64], sizes = [8, 32], strides = [1, 1]} : vector<8x96xbf16> to vector<8x32xbf16>
    %c1_262 = arith.constant 1 : index
    %c0_263 = arith.constant 0 : index
    %c0_264 = arith.constant 0 : index
    %657 = vector.load %arg19[%c1_262, %c0_263, %c0_264] : memref<2x32x32xbf16, #tpu.memory_space<vmem>>, vector<1x32x32xbf16>
    %658 = vector.shape_cast %657 : vector<1x32x32xbf16> to vector<32x32xbf16>
    %c1_265 = arith.constant 1 : index
    %c0_266 = arith.constant 0 : index
    %c0_267 = arith.constant 0 : index
    %659 = vector.load %arg20[%c1_265, %c0_266, %c0_267] : memref<2x1x32xf32, #tpu.memory_space<vmem>>, vector<1x1x32xf32>
    %660 = vector.shape_cast %659 : vector<1x1x32xf32> to vector<1x32xf32>
    %661 = vector.extract_strided_slice %654 {offsets = [0, 0], sizes = [8, 8], strides = [1, 1]} : vector<8x32xbf16> to vector<8x8xbf16>
    %662 = vector.extract_strided_slice %654 {offsets = [0, 8], sizes = [8, 8], strides = [1, 1]} : vector<8x32xbf16> to vector<8x8xbf16>
    %663 = vector.extract_strided_slice %654 {offsets = [0, 16], sizes = [8, 8], strides = [1, 1]} : vector<8x32xbf16> to vector<8x8xbf16>
    %664 = vector.extract_strided_slice %654 {offsets = [0, 24], sizes = [8, 8], strides = [1, 1]} : vector<8x32xbf16> to vector<8x8xbf16>
    %665 = vector.shape_cast %661 : vector<8x8xbf16> to vector<1x8x8xbf16>
    %666 = vector.shape_cast %662 : vector<8x8xbf16> to vector<1x8x8xbf16>
    %667 = vector.shape_cast %663 : vector<8x8xbf16> to vector<1x8x8xbf16>
    %668 = vector.shape_cast %664 : vector<8x8xbf16> to vector<1x8x8xbf16>
    %669 = tpu.concatenate %665, %666, %667, %668 in 0 : vector<1x8x8xbf16>, vector<1x8x8xbf16>, vector<1x8x8xbf16>, vector<1x8x8xbf16> -> vector<4x8x8xbf16>
    %670 = vector.extract_strided_slice %655 {offsets = [0, 0], sizes = [8, 8], strides = [1, 1]} : vector<8x32xbf16> to vector<8x8xbf16>
    %671 = vector.extract_strided_slice %655 {offsets = [0, 8], sizes = [8, 8], strides = [1, 1]} : vector<8x32xbf16> to vector<8x8xbf16>
    %672 = vector.extract_strided_slice %655 {offsets = [0, 16], sizes = [8, 8], strides = [1, 1]} : vector<8x32xbf16> to vector<8x8xbf16>
    %673 = vector.extract_strided_slice %655 {offsets = [0, 24], sizes = [8, 8], strides = [1, 1]} : vector<8x32xbf16> to vector<8x8xbf16>
    %674 = vector.shape_cast %670 : vector<8x8xbf16> to vector<1x8x8xbf16>
    %675 = vector.shape_cast %671 : vector<8x8xbf16> to vector<1x8x8xbf16>
    %676 = vector.shape_cast %672 : vector<8x8xbf16> to vector<1x8x8xbf16>
    %677 = vector.shape_cast %673 : vector<8x8xbf16> to vector<1x8x8xbf16>
    %678 = tpu.concatenate %674, %675, %676, %677 in 0 : vector<1x8x8xbf16>, vector<1x8x8xbf16>, vector<1x8x8xbf16>, vector<1x8x8xbf16> -> vector<4x8x8xbf16>
    %679 = vector.extract_strided_slice %656 {offsets = [0, 0], sizes = [8, 8], strides = [1, 1]} : vector<8x32xbf16> to vector<8x8xbf16>
    %680 = vector.extract_strided_slice %656 {offsets = [0, 8], sizes = [8, 8], strides = [1, 1]} : vector<8x32xbf16> to vector<8x8xbf16>
    %681 = vector.extract_strided_slice %656 {offsets = [0, 16], sizes = [8, 8], strides = [1, 1]} : vector<8x32xbf16> to vector<8x8xbf16>
    %682 = vector.extract_strided_slice %656 {offsets = [0, 24], sizes = [8, 8], strides = [1, 1]} : vector<8x32xbf16> to vector<8x8xbf16>
    %683 = vector.shape_cast %679 : vector<8x8xbf16> to vector<1x8x8xbf16>
    %684 = vector.shape_cast %680 : vector<8x8xbf16> to vector<1x8x8xbf16>
    %685 = vector.shape_cast %681 : vector<8x8xbf16> to vector<1x8x8xbf16>
    %686 = vector.shape_cast %682 : vector<8x8xbf16> to vector<1x8x8xbf16>
    %687 = tpu.concatenate %683, %684, %685, %686 in 0 : vector<1x8x8xbf16>, vector<1x8x8xbf16>, vector<1x8x8xbf16>, vector<1x8x8xbf16> -> vector<4x8x8xbf16>
    "tpu.trace_start"() <{level = 10 : i32, message = "hqd,hkd->hqk"}> : () -> ()
    %cst_268 = arith.constant dense<0.000000e+00> : vector<4x8x8xf32>
    %688 = tpu.matmul %669, %678, %cst_268 {dimension_numbers = #tpu.dot_dimension_numbers<[2], [2], [1], [1], [0, 0, 0, 1, 1, 1], [0], [0]>} : vector<4x8x8xbf16>, vector<4x8x8xbf16>, vector<4x8x8xf32> -> vector<4x8x8xf32>
    "tpu.trace_stop"() : () -> ()
    %cst_269 = arith.constant 0.353553385 : f32
    %689 = vector.broadcast %cst_269 : f32 to vector<4x8x8xf32>
    %690 = arith.mulf %688, %689 : vector<4x8x8xf32>
    %cst_270 = arith.constant dense<0xFF800000> : vector<4x8xf32>
    %691 = vector.multi_reduction <maximumf>, %690, %cst_270 [2] : vector<4x8x8xf32> to vector<4x8xf32>
    %692 = vector.shape_cast %691 : vector<4x8xf32> to vector<4x8x1xf32>
    %693 = vector.broadcast %692 : vector<4x8x1xf32> to vector<4x8x8xf32>
    %694 = arith.subf %690, %693 : vector<4x8x8xf32>
    %695 = math.exp %694 : vector<4x8x8xf32>
    %cst_271 = arith.constant dense<0.000000e+00> : vector<4x8xf32>
    %696 = vector.multi_reduction <add>, %695, %cst_271 [2] : vector<4x8x8xf32> to vector<4x8xf32>
    %697 = vector.shape_cast %696 : vector<4x8xf32> to vector<4x8x1xf32>
    %698 = tpu.reciprocal %697 {approx = true} : vector<4x8x1xf32> -> vector<4x8x1xf32>
    %699 = vector.broadcast %698 : vector<4x8x1xf32> to vector<4x8x8xf32>
    %700 = arith.mulf %695, %699 : vector<4x8x8xf32>
    %701 = arith.truncf %700 : vector<4x8x8xf32> to vector<4x8x8xbf16>
    "tpu.trace_start"() <{level = 10 : i32, message = "hqk,hkd->hqd"}> : () -> ()
    %cst_272 = arith.constant dense<0.000000e+00> : vector<4x8x8xf32>
    %702 = tpu.matmul %701, %687, %cst_272 {dimension_numbers = #tpu.dot_dimension_numbers<[2], [1], [1], [2], [0, 0, 0, 1, 1, 2], [0], [0]>} : vector<4x8x8xbf16>, vector<4x8x8xbf16>, vector<4x8x8xf32> -> vector<4x8x8xf32>
    "tpu.trace_stop"() : () -> ()
    %703 = vector.extract_strided_slice %702 {offsets = [0, 0, 0], sizes = [1, 8, 8], strides = [1, 1, 1]} : vector<4x8x8xf32> to vector<1x8x8xf32>
    %704 = vector.shape_cast %703 : vector<1x8x8xf32> to vector<8x8xf32>
    %705 = vector.extract_strided_slice %702 {offsets = [1, 0, 0], sizes = [1, 8, 8], strides = [1, 1, 1]} : vector<4x8x8xf32> to vector<1x8x8xf32>
    %706 = vector.shape_cast %705 : vector<1x8x8xf32> to vector<8x8xf32>
    %707 = vector.extract_strided_slice %702 {offsets = [2, 0, 0], sizes = [1, 8, 8], strides = [1, 1, 1]} : vector<4x8x8xf32> to vector<1x8x8xf32>
    %708 = vector.shape_cast %707 : vector<1x8x8xf32> to vector<8x8xf32>
    %709 = vector.extract_strided_slice %702 {offsets = [3, 0, 0], sizes = [1, 8, 8], strides = [1, 1, 1]} : vector<4x8x8xf32> to vector<1x8x8xf32>
    %710 = vector.shape_cast %709 : vector<1x8x8xf32> to vector<8x8xf32>
    %711 = tpu.concatenate %704, %706, %708, %710 in 1 : vector<8x8xf32>, vector<8x8xf32>, vector<8x8xf32>, vector<8x8xf32> -> vector<8x32xf32>
    %712 = arith.truncf %711 : vector<8x32xf32> to vector<8x32xbf16>
    %cst_273 = arith.constant dense<0.000000e+00> : vector<8x32xf32>
    %713 = tpu.matmul %712, %658, %cst_273 {dimension_numbers = #tpu.dot_dimension_numbers<[1], [0], [0], [1], [0, 0, 1, 1], [], []>} : vector<8x32xbf16>, vector<32x32xbf16>, vector<8x32xf32> -> vector<8x32xf32>
    %714 = vector.broadcast %660 : vector<1x32xf32> to vector<8x32xf32>
    %715 = arith.addf %713, %714 : vector<8x32xf32>
    %c1_274 = arith.constant 1 : index
    %c0_275 = arith.constant 0 : index
    %c0_276 = arith.constant 0 : index
    %716 = vector.load %arg21[%c1_274, %c0_275, %c0_276] : memref<2x2x32xf32, #tpu.memory_space<vmem>>, vector<1x2x32xf32>
    %717 = vector.shape_cast %716 : vector<1x2x32xf32> to vector<2x32xf32>
    %c1_277 = arith.constant 1 : index
    %c0_278 = arith.constant 0 : index
    %c0_279 = arith.constant 0 : index
    %718 = vector.load %arg22[%c1_277, %c0_278, %c0_279] : memref<2x2x32xf32, #tpu.memory_space<vmem>>, vector<1x2x32xf32>
    %719 = vector.shape_cast %718 : vector<1x2x32xf32> to vector<2x32xf32>
    %720 = arith.addf %644, %715 : vector<8x32xf32>
    %721 = vector.extract_strided_slice %717 {offsets = [0, 0], sizes = [1, 32], strides = [1, 1]} : vector<2x32xf32> to vector<1x32xf32>
    %722 = vector.extract_strided_slice %719 {offsets = [0, 0], sizes = [1, 32], strides = [1, 1]} : vector<2x32xf32> to vector<1x32xf32>
    %cst_280 = arith.constant dense<0.000000e+00> : vector<8xf32>
    %723 = vector.multi_reduction <add>, %720, %cst_280 [1] : vector<8x32xf32> to vector<8xf32>
    %724 = vector.shape_cast %723 : vector<8xf32> to vector<8x1xf32>
    %cst_281 = arith.constant 3.200000e+01 : f32
    %725 = vector.broadcast %cst_281 : f32 to vector<8x1xf32>
    %726 = arith.divf %724, %725 : vector<8x1xf32>
    %727 = vector.broadcast %726 : vector<8x1xf32> to vector<8x32xf32>
    %728 = arith.subf %720, %727 : vector<8x32xf32>
    %729 = arith.mulf %728, %728 : vector<8x32xf32>
    %cst_282 = arith.constant dense<0.000000e+00> : vector<8xf32>
    %730 = vector.multi_reduction <add>, %729, %cst_282 [1] : vector<8x32xf32> to vector<8xf32>
    %731 = vector.shape_cast %730 : vector<8xf32> to vector<8x1xf32>
    %cst_283 = arith.constant 3.200000e+01 : f32
    %732 = vector.broadcast %cst_283 : f32 to vector<8x1xf32>
    %733 = arith.divf %731, %732 : vector<8x1xf32>
    %734 = vector.broadcast %726 : vector<8x1xf32> to vector<8x32xf32>
    %735 = arith.subf %720, %734 : vector<8x32xf32>
    %cst_284 = arith.constant 9.99999974E-6 : f32
    %736 = vector.broadcast %cst_284 : f32 to vector<8x1xf32>
    %737 = arith.addf %733, %736 : vector<8x1xf32>
    %738 = math.rsqrt %737 : vector<8x1xf32>
    %739 = vector.broadcast %738 : vector<8x1xf32> to vector<8x32xf32>
    %740 = arith.mulf %735, %739 : vector<8x32xf32>
    %741 = vector.broadcast %721 : vector<1x32xf32> to vector<8x32xf32>
    %742 = arith.mulf %740, %741 : vector<8x32xf32>
    %743 = vector.broadcast %722 : vector<1x32xf32> to vector<8x32xf32>
    %744 = arith.addf %742, %743 : vector<8x32xf32>
    %745 = arith.truncf %744 : vector<8x32xf32> to vector<8x32xbf16>
    %c1_285 = arith.constant 1 : index
    %c0_286 = arith.constant 0 : index
    %c0_287 = arith.constant 0 : index
    %746 = vector.load %arg23[%c1_285, %c0_286, %c0_287] : memref<2x32x64xbf16, #tpu.memory_space<vmem>>, vector<1x32x64xbf16>
    %747 = vector.shape_cast %746 : vector<1x32x64xbf16> to vector<32x64xbf16>
    %cst_288 = arith.constant dense<0.000000e+00> : vector<8x64xf32>
    %748 = tpu.matmul %745, %747, %cst_288 {dimension_numbers = #tpu.dot_dimension_numbers<[1], [0], [0], [1], [0, 0, 1, 1], [], []>} : vector<8x32xbf16>, vector<32x64xbf16>, vector<8x64xf32> -> vector<8x64xf32>
    %c1_289 = arith.constant 1 : index
    %c0_290 = arith.constant 0 : index
    %c0_291 = arith.constant 0 : index
    %749 = vector.load %arg24[%c1_289, %c0_290, %c0_291] : memref<2x1x64xf32, #tpu.memory_space<vmem>>, vector<1x1x64xf32>
    %750 = vector.shape_cast %749 : vector<1x1x64xf32> to vector<1x64xf32>
    %751 = vector.broadcast %750 : vector<1x64xf32> to vector<8x64xf32>
    %752 = arith.addf %748, %751 : vector<8x64xf32>
    %cst_292 = arith.constant 0.000000e+00 : f32
    %753 = vector.broadcast %cst_292 : f32 to vector<8x64xf32>
    %754 = arith.maximumf %752, %753 : vector<8x64xf32>
    %755 = arith.truncf %754 : vector<8x64xf32> to vector<8x64xbf16>
    %c1_293 = arith.constant 1 : index
    %c0_294 = arith.constant 0 : index
    %c0_295 = arith.constant 0 : index
    %756 = vector.load %arg25[%c1_293, %c0_294, %c0_295] : memref<2x64x32xbf16, #tpu.memory_space<vmem>>, vector<1x64x32xbf16>
    %757 = vector.shape_cast %756 : vector<1x64x32xbf16> to vector<64x32xbf16>
    %cst_296 = arith.constant dense<0.000000e+00> : vector<8x32xf32>
    %758 = tpu.matmul %755, %757, %cst_296 {dimension_numbers = #tpu.dot_dimension_numbers<[1], [0], [0], [1], [0, 0, 1, 1], [], []>} : vector<8x64xbf16>, vector<64x32xbf16>, vector<8x32xf32> -> vector<8x32xf32>
    %c1_297 = arith.constant 1 : index
    %c0_298 = arith.constant 0 : index
    %c0_299 = arith.constant 0 : index
    %759 = vector.load %arg26[%c1_297, %c0_298, %c0_299] : memref<2x1x32xf32, #tpu.memory_space<vmem>>, vector<1x1x32xf32>
    %760 = vector.shape_cast %759 : vector<1x1x32xf32> to vector<1x32xf32>
    %761 = vector.broadcast %760 : vector<1x32xf32> to vector<8x32xf32>
    %762 = arith.addf %758, %761 : vector<8x32xf32>
    %763 = arith.addf %744, %762 : vector<8x32xf32>
    %764 = vector.extract_strided_slice %717 {offsets = [1, 0], sizes = [1, 32], strides = [1, 1]} : vector<2x32xf32> to vector<1x32xf32>
    %765 = vector.extract_strided_slice %719 {offsets = [1, 0], sizes = [1, 32], strides = [1, 1]} : vector<2x32xf32> to vector<1x32xf32>
    %cst_300 = arith.constant dense<0.000000e+00> : vector<8xf32>
    %766 = vector.multi_reduction <add>, %763, %cst_300 [1] : vector<8x32xf32> to vector<8xf32>
    %767 = vector.shape_cast %766 : vector<8xf32> to vector<8x1xf32>
    %cst_301 = arith.constant 3.200000e+01 : f32
    %768 = vector.broadcast %cst_301 : f32 to vector<8x1xf32>
    %769 = arith.divf %767, %768 : vector<8x1xf32>
    %770 = vector.broadcast %769 : vector<8x1xf32> to vector<8x32xf32>
    %771 = arith.subf %763, %770 : vector<8x32xf32>
    %772 = arith.mulf %771, %771 : vector<8x32xf32>
    %cst_302 = arith.constant dense<0.000000e+00> : vector<8xf32>
    %773 = vector.multi_reduction <add>, %772, %cst_302 [1] : vector<8x32xf32> to vector<8xf32>
    %774 = vector.shape_cast %773 : vector<8xf32> to vector<8x1xf32>
    %cst_303 = arith.constant 3.200000e+01 : f32
    %775 = vector.broadcast %cst_303 : f32 to vector<8x1xf32>
    %776 = arith.divf %774, %775 : vector<8x1xf32>
    %777 = vector.broadcast %769 : vector<8x1xf32> to vector<8x32xf32>
    %778 = arith.subf %763, %777 : vector<8x32xf32>
    %cst_304 = arith.constant 9.99999974E-6 : f32
    %779 = vector.broadcast %cst_304 : f32 to vector<8x1xf32>
    %780 = arith.addf %776, %779 : vector<8x1xf32>
    %781 = math.rsqrt %780 : vector<8x1xf32>
    %782 = vector.broadcast %781 : vector<8x1xf32> to vector<8x32xf32>
    %783 = arith.mulf %778, %782 : vector<8x32xf32>
    %784 = vector.broadcast %764 : vector<1x32xf32> to vector<8x32xf32>
    %785 = arith.mulf %783, %784 : vector<8x32xf32>
    %786 = vector.broadcast %765 : vector<1x32xf32> to vector<8x32xf32>
    %787 = arith.addf %785, %786 : vector<8x32xf32>
    %788 = arith.truncf %787 : vector<8x32xf32> to vector<8x32xbf16>
    %c0_305 = arith.constant 0 : index
    %c0_306 = arith.constant 0 : index
    %789 = vector.load %arg27[%c0_305, %c0_306] : memref<32x128xbf16, #tpu.memory_space<vmem>>, vector<32x128xbf16>
    %cst_307 = arith.constant dense<0.000000e+00> : vector<8x128xf32>
    %790 = tpu.matmul %788, %789, %cst_307 {dimension_numbers = #tpu.dot_dimension_numbers<[1], [0], [0], [1], [0, 0, 1, 1], [], []>} : vector<8x32xbf16>, vector<32x128xbf16>, vector<8x128xf32> -> vector<8x128xf32>
    %c0_308 = arith.constant 0 : index
    %c0_309 = arith.constant 0 : index
    %791 = vector.load %arg28[%c0_308, %c0_309] : memref<1x128xf32, #tpu.memory_space<vmem>>, vector<1x128xf32>
    %792 = vector.broadcast %791 : vector<1x128xf32> to vector<8x128xf32>
    %793 = arith.addf %790, %792 : vector<8x128xf32>
    %c1_310 = arith.constant 1 : index
    %c0_311 = arith.constant 0 : index
    %c0_312 = arith.constant 0 : index
    %794 = vector.load %arg30[%c1_310, %c0_311, %c0_312] : memref<2x8x128xf32, #tpu.memory_space<vmem>>, vector<1x8x128xf32>
    %795 = vector.shape_cast %794 : vector<1x8x128xf32> to vector<8x128xf32>
    %796 = vector.shape_cast %793 : vector<8x128xf32> to vector<1x8x128xf32>
    tpu.vector_store %arg30[%c1_310, %c0_311, %c0_312], %796 {strides = array<i32>} : memref<2x8x128xf32, #tpu.memory_space<vmem>>, vector<1x8x128xf32>,
    return
  }
  func.func @transform_0(%arg0: i32) -> (i32, i32, i32) {
    %c0_i32 = arith.constant 0 : i32
    %c0_i32_0 = arith.constant 0 : i32
    %c0_i32_1 = arith.constant 0 : i32
    return %arg0, %c0_i32, %c0_i32_0 : i32, i32, i32
  }
  func.func @transform_1(%arg0: i32) -> (i32, i32, i32) {
    %c0_i32 = arith.constant 0 : i32
    %c0_i32_0 = arith.constant 0 : i32
    %c0_i32_1 = arith.constant 0 : i32
    return %arg0, %c0_i32, %c0_i32_0 : i32, i32, i32
  }
  func.func @transform_2(%arg0: i32) -> (i32, i32, i32) {
    %c0_i32 = arith.constant 0 : i32
    %c0_i32_0 = arith.constant 0 : i32
    %c0_i32_1 = arith.constant 0 : i32
    return %arg0, %c0_i32, %c0_i32_0 : i32, i32, i32
  }
  func.func @transform_3(%arg0: i32) -> (i32, i32, i32) {
    %c0_i32 = arith.constant 0 : i32
    %c0_i32_0 = arith.constant 0 : i32
    %c0_i32_1 = arith.constant 0 : i32
    %c0_i32_2 = arith.constant 0 : i32
    return %c0_i32, %c0_i32_0, %c0_i32_1 : i32, i32, i32
  }
  func.func @transform_4(%arg0: i32) -> (i32, i32) {
    %c0_i32 = arith.constant 0 : i32
    %c0_i32_0 = arith.constant 0 : i32
    %c0_i32_1 = arith.constant 0 : i32
    return %c0_i32, %c0_i32_0 : i32, i32
  }
  func.func @transform_5(%arg0: i32) -> (i32, i32) {
    %c0_i32 = arith.constant 0 : i32
    %c0_i32_0 = arith.constant 0 : i32
    %c0_i32_1 = arith.constant 0 : i32
    return %c0_i32, %c0_i32_0 : i32, i32
  }
  func.func @transform_6(%arg0: i32) -> (i32, i32) {
    %c0_i32 = arith.constant 0 : i32
    %c0_i32_0 = arith.constant 0 : i32
    %c0_i32_1 = arith.constant 0 : i32
    return %c0_i32, %c0_i32_0 : i32, i32
  }
  func.func @transform_7(%arg0: i32) -> (i32, i32) {
    %c0_i32 = arith.constant 0 : i32
    %c0_i32_0 = arith.constant 0 : i32
    %c0_i32_1 = arith.constant 0 : i32
    return %c0_i32, %c0_i32_0 : i32, i32
  }
  func.func @transform_8(%arg0: i32) -> (i32, i32) {
    %c0_i32 = arith.constant 0 : i32
    %c0_i32_0 = arith.constant 0 : i32
    %c0_i32_1 = arith.constant 0 : i32
    return %c0_i32, %c0_i32_0 : i32, i32
  }
  func.func @transform_9(%arg0: i32) -> (i32, i32) {
    %c0_i32 = arith.constant 0 : i32
    %c0_i32_0 = arith.constant 0 : i32
    %c0_i32_1 = arith.constant 0 : i32
    return %c0_i32, %c0_i32_0 : i32, i32
  }
  func.func @transform_10(%arg0: i32) -> (i32, i32) {
    %c0_i32 = arith.constant 0 : i32
    %c0_i32_0 = arith.constant 0 : i32
    %c0_i32_1 = arith.constant 0 : i32
    return %c0_i32, %c0_i32_0 : i32, i32
  }
  func.func @transform_11(%arg0: i32) -> (i32, i32) {
    %c0_i32 = arith.constant 0 : i32
    %c0_i32_0 = arith.constant 0 : i32
    %c0_i32_1 = arith.constant 0 : i32
    return %c0_i32, %c0_i32_0 : i32, i32
  }
  func.func @transform_12(%arg0: i32) -> (i32, i32) {
    %c0_i32 = arith.constant 0 : i32
    %c0_i32_0 = arith.constant 0 : i32
    %c0_i32_1 = arith.constant 0 : i32
    return %c0_i32, %c0_i32_0 : i32, i32
  }
  func.func @transform_13(%arg0: i32) -> (i32, i32) {
    %c0_i32 = arith.constant 0 : i32
    %c0_i32_0 = arith.constant 0 : i32
    %c0_i32_1 = arith.constant 0 : i32
    return %c0_i32, %c0_i32_0 : i32, i32
  }
  func.func @transform_14(%arg0: i32) -> (i32, i32) {
    %c0_i32 = arith.constant 0 : i32
    %c0_i32_0 = arith.constant 0 : i32
    %c0_i32_1 = arith.constant 0 : i32
    return %c0_i32, %c0_i32_0 : i32, i32
  }
  func.func @transform_15(%arg0: i32) -> (i32, i32) {
    %c0_i32 = arith.constant 0 : i32
    %c0_i32_0 = arith.constant 0 : i32
    %c0_i32_1 = arith.constant 0 : i32
    return %c0_i32, %c0_i32_0 : i32, i32
  }
  func.func @transform_16(%arg0: i32) -> (i32, i32, i32) {
    %c0_i32 = arith.constant 0 : i32
    %c0_i32_0 = arith.constant 0 : i32
    %c0_i32_1 = arith.constant 0 : i32
    %c0_i32_2 = arith.constant 0 : i32
    return %c0_i32, %c0_i32_0, %c0_i32_1 : i32, i32, i32
  }
  func.func @transform_17(%arg0: i32) -> (i32, i32, i32) {
    %c0_i32 = arith.constant 0 : i32
    %c0_i32_0 = arith.constant 0 : i32
    %c0_i32_1 = arith.constant 0 : i32
    %c0_i32_2 = arith.constant 0 : i32
    return %c0_i32, %c0_i32_0, %c0_i32_1 : i32, i32, i32
  }
  func.func @transform_18(%arg0: i32) -> (i32, i32, i32) {
    %c0_i32 = arith.constant 0 : i32
    %c0_i32_0 = arith.constant 0 : i32
    %c0_i32_1 = arith.constant 0 : i32
    %c0_i32_2 = arith.constant 0 : i32
    return %c0_i32, %c0_i32_0, %c0_i32_1 : i32, i32, i32
  }
  func.func @transform_19(%arg0: i32) -> (i32, i32, i32) {
    %c0_i32 = arith.constant 0 : i32
    %c0_i32_0 = arith.constant 0 : i32
    %c0_i32_1 = arith.constant 0 : i32
    %c0_i32_2 = arith.constant 0 : i32
    return %c0_i32, %c0_i32_0, %c0_i32_1 : i32, i32, i32
  }
  func.func @transform_20(%arg0: i32) -> (i32, i32, i32) {
    %c0_i32 = arith.constant 0 : i32
    %c0_i32_0 = arith.constant 0 : i32
    %c0_i32_1 = arith.constant 0 : i32
    %c0_i32_2 = arith.constant 0 : i32
    return %c0_i32, %c0_i32_0, %c0_i32_1 : i32, i32, i32
  }
  func.func @transform_21(%arg0: i32) -> (i32, i32, i32) {
    %c0_i32 = arith.constant 0 : i32
    %c0_i32_0 = arith.constant 0 : i32
    %c0_i32_1 = arith.constant 0 : i32
    %c0_i32_2 = arith.constant 0 : i32
    return %c0_i32, %c0_i32_0, %c0_i32_1 : i32, i32, i32
  }
  func.func @transform_22(%arg0: i32) -> (i32, i32, i32) {
    %c0_i32 = arith.constant 0 : i32
    %c0_i32_0 = arith.constant 0 : i32
    %c0_i32_1 = arith.constant 0 : i32
    %c0_i32_2 = arith.constant 0 : i32
    return %c0_i32, %c0_i32_0, %c0_i32_1 : i32, i32, i32
  }
  func.func @transform_23(%arg0: i32) -> (i32, i32, i32) {
    %c0_i32 = arith.constant 0 : i32
    %c0_i32_0 = arith.constant 0 : i32
    %c0_i32_1 = arith.constant 0 : i32
    %c0_i32_2 = arith.constant 0 : i32
    return %c0_i32, %c0_i32_0, %c0_i32_1 : i32, i32, i32
  }
  func.func @transform_24(%arg0: i32) -> (i32, i32, i32) {
    %c0_i32 = arith.constant 0 : i32
    %c0_i32_0 = arith.constant 0 : i32
    %c0_i32_1 = arith.constant 0 : i32
    %c0_i32_2 = arith.constant 0 : i32
    return %c0_i32, %c0_i32_0, %c0_i32_1 : i32, i32, i32
  }
  func.func @transform_25(%arg0: i32) -> (i32, i32, i32) {
    %c0_i32 = arith.constant 0 : i32
    %c0_i32_0 = arith.constant 0 : i32
    %c0_i32_1 = arith.constant 0 : i32
    %c0_i32_2 = arith.constant 0 : i32
    return %c0_i32, %c0_i32_0, %c0_i32_1 : i32, i32, i32
  }
  func.func @transform_26(%arg0: i32) -> (i32, i32) {
    %c0_i32 = arith.constant 0 : i32
    %c0_i32_0 = arith.constant 0 : i32
    %c0_i32_1 = arith.constant 0 : i32
    return %c0_i32, %c0_i32_0 : i32, i32
  }
  func.func @transform_27(%arg0: i32) -> (i32, i32) {
    %c0_i32 = arith.constant 0 : i32
    %c0_i32_0 = arith.constant 0 : i32
    %c0_i32_1 = arith.constant 0 : i32
    return %c0_i32, %c0_i32_0 : i32, i32
  }
  func.func @transform_28(%arg0: i32) -> (i32, i32, i32) {
    %c0_i32 = arith.constant 0 : i32
    %c0_i32_0 = arith.constant 0 : i32
    %c0_i32_1 = arith.constant 0 : i32
    return %arg0, %c0_i32, %c0_i32_0 : i32, i32, i32
  }
  func.func @transform_29(%arg0: i32) -> (i32, i32, i32) {
    %c0_i32 = arith.constant 0 : i32
    %c0_i32_0 = arith.constant 0 : i32
    %c0_i32_1 = arith.constant 0 : i32
    return %arg0, %c0_i32, %c0_i32_0 : i32, i32, i32
  }
}

</mosaic_0001>

<llo_original>
// kernel: _lambda_.1
$region0: #{_lambda_.1}
  #allocation0 [shape = 'u32[]', space=smem, size = 0x4, offset = 0x4, fixed_abs, tag = 'smem constant byte address 0x4 - core index']
  #allocation1 [shape = 'u32[72,128]{1,0:T(1,128)}', space=vmem, size = 0x9000, scoped, tag = 'internal scratch']
  %s0 = inlined_call_operand.smem [shape: u32[30], index: -1, kind: input, shape index: {}]
  %s1 = sld [smem:[%s0]]
  %s2 = scalar_lea.smem %s0, 1
  %s3 = sld [smem:[%s2]]
  %s4 = scalar_lea.smem %s0, 2
  %s5 = sld [smem:[%s4]]
  %s6 = scalar_lea.smem %s0, 3
  %s7 = sld [smem:[%s6]]
  %s8 = scalar_lea.smem %s0, 4
  %s9 = sld [smem:[%s8]]
  %s10 = scalar_lea.smem %s0, 5
  %s11 = sld [smem:[%s10]]
  %s12 = scalar_lea.smem %s0, 6
  %s13 = sld [smem:[%s12]]
  %s14 = scalar_lea.smem %s0, 7
  %s15 = sld [smem:[%s14]]
  %s16 = scalar_lea.smem %s0, 8
  %s17 = sld [smem:[%s16]]
  %s18 = scalar_lea.smem %s0, 9
  %s19 = sld [smem:[%s18]]
  %s20 = scalar_lea.smem %s0, 10
  %s21 = sld [smem:[%s20]]
  %s22 = scalar_lea.smem %s0, 11
  %s23 = sld [smem:[%s22]]
  %s24 = scalar_lea.smem %s0, 12
  %s25 = sld [smem:[%s24]]
  %s26 = scalar_lea.smem %s0, 13
  %s27 = sld [smem:[%s26]]
  %s28 = scalar_lea.smem %s0, 14
  %s29 = sld [smem:[%s28]]
  %s30 = scalar_lea.smem %s0, 15
  %s31 = sld [smem:[%s30]]
  %s32 = scalar_lea.smem %s0, 16
  %s33 = sld [smem:[%s32]]
  %s34 = scalar_lea.smem %s0, 17
  %s35 = sld [smem:[%s34]]
  %s36 = scalar_lea.smem %s0, 18
  %s37 = sld [smem:[%s36]]
  %s38 = scalar_lea.smem %s0, 19
  %s39 = sld [smem:[%s38]]
  %s40 = scalar_lea.smem %s0, 20
  %s41 = sld [smem:[%s40]]
  %s42 = scalar_lea.smem %s0, 21
  %s43 = sld [smem:[%s42]]
  %s44 = scalar_lea.smem %s0, 22
  %s45 = sld [smem:[%s44]]
  %s46 = scalar_lea.smem %s0, 23
  %s47 = sld [smem:[%s46]]
  %s48 = scalar_lea.smem %s0, 24
  %s49 = sld [smem:[%s48]]
  %s50 = scalar_lea.smem %s0, 25
  %s51 = sld [smem:[%s50]]
  %s52 = scalar_lea.smem %s0, 26
  %s53 = sld [smem:[%s52]]
  %s54 = scalar_lea.smem %s0, 27
  %s55 = sld [smem:[%s54]]
  %s56 = scalar_lea.smem %s0, 28
  %s57 = sld [smem:[%s56]]
  %s58 = scalar_lea.smem %s0, 29
  %s59 = sld [smem:[%s58]]
  %60 = xla_tuple %s57, %s59
  %s61 = sld [smem:[#allocation0]]
  $region146: #{_lambda_.1} parent=0
    _
  %s63 = ssub.s32 1, %s61
  %s64 = scalar_select 0, %s63, %s61
  $region1: #{_lambda_.1} parent=0
    #allocation2 [shape = 'u8[512]{0}', space=vmem, size = 0x400, scoped, tag = 'input window, operand 6, single buffered']
    #allocation3 [shape = 's32[1]{0}', space=sflag, size = 0x4, scoped, tag = 'scoped memory for _lambda_.1']
    #allocation4 [shape = 's32[1]{0}', space=sflag, size = 0x4, scoped, tag = 'scoped memory for _lambda_.1']
    #allocation5 [shape = 'u8[512]{0}', space=vmem, size = 0x400, scoped, tag = 'input window, operand 9, single buffered']
    #allocation6 [shape = 's32[1]{0}', space=sflag, size = 0x4, scoped, tag = 'scoped memory for _lambda_.1']
    #allocation7 [shape = 'u8[512]{0}', space=vmem, size = 0x400, scoped, tag = 'input window, operand 11, single buffered']
    #allocation8 [shape = 'u8[512]{0}', space=vmem, size = 0x400, scoped, tag = 'input window, operand 15, single buffered']
    #allocation9 [shape = 's32[1]{0}', space=sflag, size = 0x4, scoped, tag = 'scoped memory for _lambda_.1']
    #allocation10 [shape = 'u8[8192]{0}', space=vmem, size = 0x2000, scoped, tag = 'output window, operand 0, single buffered']
    #allocation11 [shape = 'u8[8192]{0}', space=vmem, size = 0x2000, scoped, tag = 'output window, operand 1, single buffered']
    #allocation12 [shape = 's32[1]{0}', space=sflag, size = 0x4, scoped, tag = 'scoped memory for _lambda_.1']
    %65 = vsyncpa [#allocation3], 0
    %66 = vsyncpa [#allocation6], 0
    %67 = vsyncpa [#allocation9], 0
    %68 = vsyncpa [#allocation4], 0
    %69 = vsyncpa [#allocation12], 0
    // Predicated region
    $region2: #{_lambda_.1} parent=1 // pred_check
      _
    $region3: #{_lambda_.1} parent=1 // pred_check_branch
      %71 = sbr.rel (0) target = $region5
    $region4: #{_lambda_.1} parent=1 // pred_region
      _
    $region5: #{_lambda_.1} parent=1 // pred_fallthru
      _
    // Predicated region
    $region6: #{_lambda_.1} parent=1 // pred_check
      _
    $region7: #{_lambda_.1} parent=1 // pred_check_branch
      %73 = sbr.rel (0) target = $region9
    $region8: #{_lambda_.1} parent=1 // pred_region
      _
    $region9: #{_lambda_.1} parent=1 // pred_fallthru
      _
    // Predicated region
    $region10: #{_lambda_.1} parent=1 // pred_check
      _
    $region11: #{_lambda_.1} parent=1 // pred_check_branch
      %75 = sbr.rel (0) target = $region13
    $region12: #{_lambda_.1} parent=1 // pred_region
      _
    $region13: #{_lambda_.1} parent=1 // pred_fallthru
      _
    // Predicated region
    $region14: #{_lambda_.1} parent=1 // pred_check
      _
    $region15: #{_lambda_.1} parent=1 // pred_check_branch
      %77 = sbr.rel (0) target = $region17
    $region16: #{_lambda_.1} parent=1 // pred_region
      _
    $region17: #{_lambda_.1} parent=1 // pred_fallthru
      _
    // Predicated region
    $region18: #{_lambda_.1} parent=1 // pred_check
      _
    $region19: #{_lambda_.1} parent=1 // pred_check_branch
      %79 = sbr.rel (0) target = $region21
    $region20: #{_lambda_.1} parent=1 // pred_region
      _
    $region21: #{_lambda_.1} parent=1 // pred_fallthru
      _
    // Predicated region
    $region22: #{_lambda_.1} parent=1 // pred_check
      _
    $region23: #{_lambda_.1} parent=1 // pred_check_branch
      %81 = sbr.rel (0) target = $region25
    $region24: #{_lambda_.1} parent=1 // pred_region
      _
    $region25: #{_lambda_.1} parent=1 // pred_fallthru
      _
    // Predicated region
    $region26: #{_lambda_.1} parent=1 // pred_check
      _
    $region27: #{_lambda_.1} parent=1 // pred_check_branch
      %83 = sbr.rel (0) target = $region29
    $region28: #{_lambda_.1} parent=1 // pred_region
      %85 = vsyncadd [#allocation3], 0
      %s87 = sshll.u32 %s13, 4
      %s88 = int_to_ptr.hbm [resolvable:$true] %s87
      %s89 = sshll.u32 [#allocation2], 4
      %s90 = int_to_ptr.vmem [resolvable:$true] %s89
      %92 = dma.hbm_to_vmem [thread:$0]  %s88, 16, %s90, [#allocation3]
    $region29: #{_lambda_.1} parent=1 // pred_fallthru
      _
    // Predicated region
    $region30: #{_lambda_.1} parent=1 // pred_check
      _
    $region31: #{_lambda_.1} parent=1 // pred_check_branch
      %94 = sbr.rel (0) target = $region33
    $region32: #{_lambda_.1} parent=1 // pred_region
      _
    $region33: #{_lambda_.1} parent=1 // pred_fallthru
      _
    // Predicated region
    $region34: #{_lambda_.1} parent=1 // pred_check
      _
    $region35: #{_lambda_.1} parent=1 // pred_check_branch
      %96 = sbr.rel (0) target = $region37
    $region36: #{_lambda_.1} parent=1 // pred_region
      _
    $region37: #{_lambda_.1} parent=1 // pred_fallthru
      _
    // Predicated region
    $region38: #{_lambda_.1} parent=1 // pred_check
      _
    $region39: #{_lambda_.1} parent=1 // pred_check_branch
      %98 = sbr.rel (0) target = $region41
    $region40: #{_lambda_.1} parent=1 // pred_region
      %100 = vsyncadd [#allocation6], 0
      %s102 = sshll.u32 %s19, 4
      %s103 = int_to_ptr.hbm [resolvable:$true] %s102
      %s104 = sshll.u32 [#allocation5], 4
      %s105 = int_to_ptr.vmem [resolvable:$true] %s104
      %107 = dma.hbm_to_vmem [thread:$0]  %s103, 16, %s105, [#allocation6]
    $region41: #{_lambda_.1} parent=1 // pred_fallthru
      _
    // Predicated region
    $region42: #{_lambda_.1} parent=1 // pred_check
      _
    $region43: #{_lambda_.1} parent=1 // pred_check_branch
      %109 = sbr.rel (0) target = $region45
    $region44: #{_lambda_.1} parent=1 // pred_region
      _
    $region45: #{_lambda_.1} parent=1 // pred_fallthru
      _
    // Predicated region
    $region46: #{_lambda_.1} parent=1 // pred_check
      _
    $region47: #{_lambda_.1} parent=1 // pred_check_branch
      %111 = sbr.rel (0) target = $region49
    $region48: #{_lambda_.1} parent=1 // pred_region
      %113 = vsyncadd [#allocation6], 0
      %s115 = sshll.u32 %s23, 4
      %s116 = int_to_ptr.hbm [resolvable:$true] %s115
      %s117 = sshll.u32 [#allocation7], 4
      %s118 = int_to_ptr.vmem [resolvable:$true] %s117
      %120 = dma.hbm_to_vmem [thread:$0]  %s116, 16, %s118, [#allocation6]
    $region49: #{_lambda_.1} parent=1 // pred_fallthru
      _
    // Predicated region
    $region50: #{_lambda_.1} parent=1 // pred_check
      _
    $region51: #{_lambda_.1} parent=1 // pred_check_branch
      %122 = sbr.rel (0) target = $region53
    $region52: #{_lambda_.1} parent=1 // pred_region
      _
    $region53: #{_lambda_.1} parent=1 // pred_fallthru
      _
    // Predicated region
    $region54: #{_lambda_.1} parent=1 // pred_check
      _
    $region55: #{_lambda_.1} parent=1 // pred_check_branch
      %124 = sbr.rel (0) target = $region57
    $region56: #{_lambda_.1} parent=1 // pred_region
      _
    $region57: #{_lambda_.1} parent=1 // pred_fallthru
      _
    // Predicated region
    $region58: #{_lambda_.1} parent=1 // pred_check
      _
    $region59: #{_lambda_.1} parent=1 // pred_check_branch
      %126 = sbr.rel (0) target = $region61
    $region60: #{_lambda_.1} parent=1 // pred_region
      _
    $region61: #{_lambda_.1} parent=1 // pred_fallthru
      _
    // Predicated region
    $region62: #{_lambda_.1} parent=1 // pred_check
      _
    $region63: #{_lambda_.1} parent=1 // pred_check_branch
      %128 = sbr.rel (0) target = $region65
    $region64: #{_lambda_.1} parent=1 // pred_region
      %130 = vsyncadd [#allocation9], 0
      %s132 = sshll.u32 %s31, 4
      %s133 = int_to_ptr.hbm [resolvable:$true] %s132
      %s134 = sshll.u32 [#allocation8], 4
      %s135 = int_to_ptr.vmem [resolvable:$true] %s134
      %137 = dma.hbm_to_vmem [thread:$0]  %s133, 16, %s135, [#allocation9]
    $region65: #{_lambda_.1} parent=1 // pred_fallthru
      _
    // Predicated region
    $region66: #{_lambda_.1} parent=1 // pred_check
      _
    $region67: #{_lambda_.1} parent=1 // pred_check_branch
      %139 = sbr.rel (0) target = $region69
    $region68: #{_lambda_.1} parent=1 // pred_region
      _
    $region69: #{_lambda_.1} parent=1 // pred_fallthru
      _
    // Predicated region
    $region70: #{_lambda_.1} parent=1 // pred_check
      _
    $region71: #{_lambda_.1} parent=1 // pred_check_branch
      %141 = sbr.rel (0) target = $region73
    $region72: #{_lambda_.1} parent=1 // pred_region
      _
    $region73: #{_lambda_.1} parent=1 // pred_fallthru
      _
    // Predicated region
    $region74: #{_lambda_.1} parent=1 // pred_check
      _
    $region75: #{_lambda_.1} parent=1 // pred_check_branch
      %143 = sbr.rel (0) target = $region77
    $region76: #{_lambda_.1} parent=1 // pred_region
      _
    $region77: #{_lambda_.1} parent=1 // pred_fallthru
      _
    // Predicated region
    $region78: #{_lambda_.1} parent=1 // pred_check
      _
    $region79: #{_lambda_.1} parent=1 // pred_check_branch
      %145 = sbr.rel (0) target = $region81
    $region80: #{_lambda_.1} parent=1 // pred_region
      _
    $region81: #{_lambda_.1} parent=1 // pred_fallthru
      _
    // Predicated region
    $region82: #{_lambda_.1} parent=1 // pred_check
      _
    $region83: #{_lambda_.1} parent=1 // pred_check_branch
      %147 = sbr.rel (0) target = $region85
    $region84: #{_lambda_.1} parent=1 // pred_region
      _
    $region85: #{_lambda_.1} parent=1 // pred_fallthru
      _
    // Predicated region
    $region86: #{_lambda_.1} parent=1 // pred_check
      _
    $region87: #{_lambda_.1} parent=1 // pred_check_branch
      %149 = sbr.rel (0) target = $region89
    $region88: #{_lambda_.1} parent=1 // pred_region
      _
    $region89: #{_lambda_.1} parent=1 // pred_fallthru
      _
    // Predicated region
    $region90: #{_lambda_.1} parent=1 // pred_check
      _
    $region91: #{_lambda_.1} parent=1 // pred_check_branch
      %151 = sbr.rel (0) target = $region93
    $region92: #{_lambda_.1} parent=1 // pred_region
      _
    $region93: #{_lambda_.1} parent=1 // pred_fallthru
      _
    // Predicated region
    $region94: #{_lambda_.1} parent=1 // pred_check
      _
    $region95: #{_lambda_.1} parent=1 // pred_check_branch
      %153 = sbr.rel (0) target = $region97
    $region96: #{_lambda_.1} parent=1 // pred_region
      _
    $region97: #{_lambda_.1} parent=1 // pred_fallthru
      _
    // Predicated region
    $region98: #{_lambda_.1} parent=1 // pred_check
      _
    $region99: #{_lambda_.1} parent=1 // pred_check_branch
      %155 = sbr.rel (0) target = $region101
    $region100: #{_lambda_.1} parent=1 // pred_region
      _
    $region101: #{_lambda_.1} parent=1 // pred_fallthru
      _
    // Predicated region
    $region102: #{_lambda_.1} parent=1 // pred_check
      _
    $region103: #{_lambda_.1} parent=1 // pred_check_branch
      %157 = sbr.rel (0) target = $region105
    $region104: #{_lambda_.1} parent=1 // pred_region
      _
    $region105: #{_lambda_.1} parent=1 // pred_fallthru
      _
    // Predicated region
    $region106: #{_lambda_.1} parent=1 // pred_check
      _
    $region107: #{_lambda_.1} parent=1 // pred_check_branch
      %159 = sbr.rel (0) target = $region109
    $region108: #{_lambda_.1} parent=1 // pred_region
      _
    $region109: #{_lambda_.1} parent=1 // pred_fallthru
      _
    // Predicated region
    $region110: #{_lambda_.1} parent=1 // pred_check
      _
    $region111: #{_lambda_.1} parent=1 // pred_check_branch
      %161 = sbr.rel (0) target = $region113
    $region112: #{_lambda_.1} parent=1 // pred_region
      _
    $region113: #{_lambda_.1} parent=1 // pred_fallthru
      _
    // Predicated region
    $region114: #{_lambda_.1} parent=1 // pred_check
      _
    $region115: #{_lambda_.1} parent=1 // pred_check_branch
      %163 = sbr.rel (0) target = $region117
    $region116: #{_lambda_.1} parent=1 // pred_region
      %165 = dma.done [#allocation3], 16
    $region117: #{_lambda_.1} parent=1 // pred_fallthru
      _
    // Predicated region
    $region118: #{_lambda_.1} parent=1 // pred_check
      _
    $region119: #{_lambda_.1} parent=1 // pred_check_branch
      %167 = sbr.rel (0) target = $region121
    $region120: #{_lambda_.1} parent=1 // pred_region
      %169 = dma.done [#allocation6], 16
    $region121: #{_lambda_.1} parent=1 // pred_fallthru
      _
    // Predicated region
    $region122: #{_lambda_.1} parent=1 // pred_check
      _
    $region123: #{_lambda_.1} parent=1 // pred_check_branch
      %171 = sbr.rel (0) target = $region125
    $region124: #{_lambda_.1} parent=1 // pred_region
      %173 = dma.done [#allocation6], 16
    $region125: #{_lambda_.1} parent=1 // pred_fallthru
      _
    // Predicated region
    $region126: #{_lambda_.1} parent=1 // pred_check
      _
    $region127: #{_lambda_.1} parent=1 // pred_check_branch
      %175 = sbr.rel (0) target = $region129
    $region128: #{_lambda_.1} parent=1 // pred_region
      %177 = dma.done [#allocation9], 16
    $region129: #{_lambda_.1} parent=1 // pred_fallthru
      _
    %v179 = vld [vmem:[%s7] sm:$0xff]
    %v180 = vld [vmem:[%s5] sm:$0x1]
    %v181 = vld [vmem:[%s1] sm:$0xff]
    %v182 = vld [vmem:[%s9] sm:$0xf]
    %v183 = vld [vmem:[%s9 + $0x4] sm:$0xf]
    %v184 = vld [vmem:[%s9 + $0x8] sm:$0xf]
    %v185 = vld [vmem:[%s9 + $0xc] sm:$0xf]
    %v186 = vld [vmem:[%s9 + $0x10] sm:$0xf]
    %v187 = vld [vmem:[%s9 + $0x14] sm:$0xf]
    %v188 = vld [vmem:[%s9 + $0x18] sm:$0xf]
    %v189 = vld [vmem:[%s9 + $0x1c] sm:$0xf]
    %v190 = vld [vmem:[%s9 + $0x20] sm:$0xf]
    %v191 = vld [vmem:[%s9 + $0x24] sm:$0xf]
    %v192 = vld [vmem:[%s9 + $0x28] sm:$0xf]
    %v193 = vld [vmem:[%s9 + $0x2c] sm:$0xf]
    %v194 = vld [vmem:[%s9 + $0x30] sm:$0xf]
    %v195 = vld [vmem:[%s9 + $0x34] sm:$0xf]
    %v196 = vld [vmem:[%s9 + $0x38] sm:$0xf]
    %v197 = vld [vmem:[%s9 + $0x3c] sm:$0xf]
    %v198 = vld [vmem:[%s9 + $0x40] sm:$0xf]
    %v199 = vld [vmem:[%s9 + $0x44] sm:$0xf]
    %v200 = vld [vmem:[%s9 + $0x48] sm:$0xf]
    %v201 = vld [vmem:[%s9 + $0x4c] sm:$0xf]
    %v202 = vld [vmem:[%s9 + $0x50] sm:$0xf]
    %v203 = vld [vmem:[%s9 + $0x54] sm:$0xf]
    %v204 = vld [vmem:[%s9 + $0x58] sm:$0xf]
    %v205 = vld [vmem:[%s9 + $0x5c] sm:$0xf]
    %v206 = vld [vmem:[%s9 + $0x60] sm:$0xf]
    %v207 = vld [vmem:[%s9 + $0x64] sm:$0xf]
    %v208 = vld [vmem:[%s9 + $0x68] sm:$0xf]
    %v209 = vld [vmem:[%s9 + $0x6c] sm:$0xf]
    %v210 = vld [vmem:[%s9 + $0x70] sm:$0xf]
    %v211 = vld [vmem:[%s9 + $0x74] sm:$0xf]
    %v212 = vld [vmem:[%s9 + $0x78] sm:$0xf]
    %v213 = vld [vmem:[%s9 + $0x7c] sm:$0xf]
    %v214 = vld [vmem:[%s11] sm:$0xf]
    %vm215 = vcmask 64512
    %v217 = vsel %vm215, %v180, 0
    %vm219 = vcmask 1043456
    %v221 = vsel %vm219, %v214, 0
    %223 = vmatpush.bf16.msra.mxu0 0
    %224 = vmatpush.bf16.msra.mxu0 0
    %225 = vmatpush.bf16.msra.mxu0 0
    %226 = vmatpush.bf16.msra.mxu0 0
    %227 = vmatpush.bf16.msra.mxu0 0
    %228 = vmatpush.bf16.msra.mxu0 0
    %229 = vmatpush.bf16.msra.mxu0 0
    %230 = vmatpush.bf16.msra.mxu0 %v221
    %231 = vmatmul.bf16.gmra.mxu0 %v217
    %v232 = vpop.f32.mrf.mxu0
    %v233 = vadd.f32 0.0, %v232
    %v234 = vpop.f32.mrf.mxu0
    %235 = vdwg.mxu0
    %v236 = vperm.slane %v233, 0
    %v238 = vunpack.c.l.b16 %v181
    %v239 = vunpack.c.h.b16 %v181
    %v240 = vpack.c.b16 %v238, %v238
    %v241 = vpack.c.b16 %v239, %v239
    %v276 = vunpack.c.l.b16 %v182
    %v277 = vunpack.c.l.b16 %v183
    %v278 = vunpack.c.l.b16 %v184
    %v279 = vunpack.c.l.b16 %v185
    %v280 = vunpack.c.l.b16 %v186
    %v281 = vunpack.c.l.b16 %v187
    %v282 = vunpack.c.l.b16 %v188
    %v283 = vunpack.c.l.b16 %v189
    %v284 = vunpack.c.l.b16 %v190
    %v285 = vunpack.c.l.b16 %v191
    %v286 = vunpack.c.l.b16 %v192
    %v287 = vunpack.c.l.b16 %v193
    %v288 = vunpack.c.l.b16 %v194
    %v289 = vunpack.c.l.b16 %v195
    %v290 = vunpack.c.l.b16 %v196
    %v291 = vunpack.c.l.b16 %v197
    %v292 = vunpack.c.l.b16 %v198
    %v293 = vunpack.c.l.b16 %v199
    %v294 = vunpack.c.l.b16 %v200
    %v295 = vunpack.c.l.b16 %v201
    %v296 = vunpack.c.l.b16 %v202
    %v297 = vunpack.c.l.b16 %v203
    %v298 = vunpack.c.l.b16 %v204
    %v299 = vunpack.c.l.b16 %v205
    %v300 = vunpack.c.l.b16 %v206
    %v301 = vunpack.c.l.b16 %v207
    %v302 = vunpack.c.l.b16 %v208
    %v303 = vunpack.c.l.b16 %v209
    %v304 = vunpack.c.l.b16 %v210
    %v305 = vunpack.c.l.b16 %v211
    %v306 = vunpack.c.l.b16 %v212
    %v307 = vunpack.c.l.b16 %v213
    %v308 = vpack.c.b16 %v277, %v276
    %v309 = vpack.c.b16 %v279, %v278
    %v310 = vpack.c.b16 %v281, %v280
    %v311 = vpack.c.b16 %v283, %v282
    %v312 = vpack.c.b16 %v285, %v284
    %v313 = vpack.c.b16 %v287, %v286
    %v314 = vpack.c.b16 %v289, %v288
    %v315 = vpack.c.b16 %v291, %v290
    %v316 = vpack.c.b16 %v293, %v292
    %v317 = vpack.c.b16 %v295, %v294
    %v318 = vpack.c.b16 %v297, %v296
    %v319 = vpack.c.b16 %v299, %v298
    %v320 = vpack.c.b16 %v301, %v300
    %v321 = vpack.c.b16 %v303, %v302
    %v322 = vpack.c.b16 %v305, %v304
    %v323 = vpack.c.b16 %v307, %v306
    %340 = vmatpush.bf16.msra.mxu0 %v315
    %341 = vmatpush.bf16.msra.mxu0 %v314
    %342 = vmatpush.bf16.msra.mxu0 %v313
    %343 = vmatpush.bf16.msra.mxu0 %v312
    %344 = vmatpush.bf16.msra.mxu0 %v311
    %345 = vmatpush.bf16.msra.mxu0 %v310
    %346 = vmatpush.bf16.msra.mxu0 %v309
    %347 = vmatpush.bf16.msra.mxu0 %v308
    %348 = vmatmul.bf16.gmra.mxu0 %v240
    %v349 = vpop.f32.mrf.mxu0
    %v350 = vadd.f32 %v236, %v349
    %v351 = vpop.f32.mrf.mxu0
    %352 = vdwg.mxu0
    %353 = vmatpush.bf16.msra.mxu0 %v323
    %354 = vmatpush.bf16.msra.mxu0 %v322
    %355 = vmatpush.bf16.msra.mxu0 %v321
    %356 = vmatpush.bf16.msra.mxu0 %v320
    %357 = vmatpush.bf16.msra.mxu0 %v319
    %358 = vmatpush.bf16.msra.mxu0 %v318
    %359 = vmatpush.bf16.msra.mxu0 %v317
    %360 = vmatpush.bf16.msra.mxu0 %v316
    %361 = vmatmul.bf16.gmra.mxu0 %v241
    %v362 = vpop.f32.mrf.mxu0
    %v363 = vadd.f32 %v350, %v362
    %v364 = vpop.f32.mrf.mxu0
    %365 = vdwg.mxu0
    %v366 = vld [vmem:[#allocation2] sm:$0x1]
    %v368 = vperm.slane %v366, 0
    %v370 = vadd.f32 %v363, %v368
    %v371 = vld [vmem:[%s3] sm:$0x77]
    %v372 = vld [vmem:[%s3 + $0x8] sm:$0x77]
    %v373 = vld [vmem:[%s3 + $0x10] sm:$0x77]
    %v374 = vld [vmem:[%s3 + $0x18] sm:$0x77]
    %v375 = vld [vmem:[%s3 + $0x20] sm:$0x77]
    %v376 = vld [vmem:[%s3 + $0x28] sm:$0x77]
    %v377 = vld [vmem:[%s3 + $0x30] sm:$0x77]
    %v378 = vld [vmem:[%s3 + $0x38] sm:$0x77]
    %v379 = vld [vmem:[%s3 + $0x40] sm:$0x77]
    %v380 = vld [vmem:[%s3 + $0x48] sm:$0x77]
    %v381 = vld [vmem:[%s3 + $0x50] sm:$0x77]
    %v382 = vld [vmem:[%s3 + $0x58] sm:$0x77]
    %v383 = vld [vmem:[%s3 + $0x60] sm:$0x77]
    %v384 = vld [vmem:[%s3 + $0x68] sm:$0x77]
    %v385 = vld [vmem:[%s3 + $0x70] sm:$0x77]
    %v386 = vld [vmem:[%s3 + $0x78] sm:$0x77]
    %v387 = vld [vmem:[%s15] sm:$0xf]
    %v388 = vld [vmem:[%s15 + $0x4] sm:$0xf]
    %v389 = vld [vmem:[%s15 + $0x8] sm:$0xf]
    %v390 = vld [vmem:[%s15 + $0xc] sm:$0xf]
    %v391 = vld [vmem:[%s15 + $0x10] sm:$0xf]
    %v392 = vld [vmem:[%s15 + $0x14] sm:$0xf]
    %v393 = vld [vmem:[%s15 + $0x18] sm:$0xf]
    %v394 = vld [vmem:[%s15 + $0x1c] sm:$0xf]
    %v395 = vld [vmem:[%s15 + $0x20] sm:$0xf]
    %v396 = vld [vmem:[%s15 + $0x24] sm:$0xf]
    %v397 = vld [vmem:[%s15 + $0x28] sm:$0xf]
    %v398 = vld [vmem:[%s15 + $0x2c] sm:$0xf]
    %v399 = vld [vmem:[%s15 + $0x30] sm:$0xf]
    %v400 = vld [vmem:[%s15 + $0x34] sm:$0xf]
    %v401 = vld [vmem:[%s15 + $0x38] sm:$0xf]
    %v402 = vld [vmem:[%s15 + $0x3c] sm:$0xf]
    %v403 = vld [vmem:[%s15 + $0x40] sm:$0xf]
    %v404 = vld [vmem:[%s15 + $0x44] sm:$0xf]
    %v405 = vld [vmem:[%s15 + $0x48] sm:$0xf]
    %v406 = vld [vmem:[%s15 + $0x4c] sm:$0xf]
    %v407 = vld [vmem:[%s15 + $0x50] sm:$0xf]
    %v408 = vld [vmem:[%s15 + $0x54] sm:$0xf]
    %v409 = vld [vmem:[%s15 + $0x58] sm:$0xf]
    %v410 = vld [vmem:[%s15 + $0x5c] sm:$0xf]
    %v411 = vld [vmem:[%s15 + $0x60] sm:$0xf]
    %v412 = vld [vmem:[%s15 + $0x64] sm:$0xf]
    %v413 = vld [vmem:[%s15 + $0x68] sm:$0xf]
    %v414 = vld [vmem:[%s15 + $0x6c] sm:$0xf]
    %v415 = vld [vmem:[%s15 + $0x70] sm:$0xf]
    %v416 = vld [vmem:[%s15 + $0x74] sm:$0xf]
    %v417 = vld [vmem:[%s15 + $0x78] sm:$0xf]
    %v418 = vld [vmem:[%s15 + $0x7c] sm:$0xf]
    %v419 = vld [vmem:[%s15 + $0x80] sm:$0xf]
    %v420 = vld [vmem:[%s15 + $0x84] sm:$0xf]
    %v421 = vld [vmem:[%s15 + $0x88] sm:$0xf]
    %v422 = vld [vmem:[%s15 + $0x8c] sm:$0xf]
    %v423 = vld [vmem:[%s15 + $0x90] sm:$0xf]
    %v424 = vld [vmem:[%s15 + $0x94] sm:$0xf]
    %v425 = vld [vmem:[%s15 + $0x98] sm:$0xf]
    %v426 = vld [vmem:[%s15 + $0x9c] sm:$0xf]
    %v427 = vld [vmem:[%s15 + $0xa0] sm:$0xf]
    %v428 = vld [vmem:[%s15 + $0xa4] sm:$0xf]
    %v429 = vld [vmem:[%s15 + $0xa8] sm:$0xf]
    %v430 = vld [vmem:[%s15 + $0xac] sm:$0xf]
    %v431 = vld [vmem:[%s15 + $0xb0] sm:$0xf]
    %v432 = vld [vmem:[%s15 + $0xb4] sm:$0xf]
    %v433 = vld [vmem:[%s15 + $0xb8] sm:$0xf]
    %v434 = vld [vmem:[%s15 + $0xbc] sm:$0xf]
    %v435 = vld [vmem:[%s15 + $0xc0] sm:$0xf]
    %v436 = vld [vmem:[%s15 + $0xc4] sm:$0xf]
    %v437 = vld [vmem:[%s15 + $0xc8] sm:$0xf]
    %v438 = vld [vmem:[%s15 + $0xcc] sm:$0xf]
    %v439 = vld [vmem:[%s15 + $0xd0] sm:$0xf]
    %v440 = vld [vmem:[%s15 + $0xd4] sm:$0xf]
    %v441 = vld [vmem:[%s15 + $0xd8] sm:$0xf]
    %v442 = vld [vmem:[%s15 + $0xdc] sm:$0xf]
    %v443 = vld [vmem:[%s15 + $0xe0] sm:$0xf]
    %v444 = vld [vmem:[%s15 + $0xe4] sm:$0xf]
    %v445 = vld [vmem:[%s15 + $0xe8] sm:$0xf]
    %v446 = vld [vmem:[%s15 + $0xec] sm:$0xf]
    %v447 = vld [vmem:[%s15 + $0xf0] sm:$0xf]
    %v448 = vld [vmem:[%s15 + $0xf4] sm:$0xf]
    %v449 = vld [vmem:[%s15 + $0xf8] sm:$0xf]
    %v450 = vld [vmem:[%s15 + $0xfc] sm:$0xf]
    %v451 = vld [vmem:[%s15 + $0x100] sm:$0xf]
    %v452 = vld [vmem:[%s15 + $0x104] sm:$0xf]
    %v453 = vld [vmem:[%s15 + $0x108] sm:$0xf]
    %v454 = vld [vmem:[%s15 + $0x10c] sm:$0xf]
    %v455 = vld [vmem:[%s15 + $0x110] sm:$0xf]
    %v456 = vld [vmem:[%s15 + $0x114] sm:$0xf]
    %v457 = vld [vmem:[%s15 + $0x118] sm:$0xf]
    %v458 = vld [vmem:[%s15 + $0x11c] sm:$0xf]
    %v459 = vld [vmem:[%s15 + $0x120] sm:$0xf]
    %v460 = vld [vmem:[%s15 + $0x124] sm:$0xf]
    %v461 = vld [vmem:[%s15 + $0x128] sm:$0xf]
    %v462 = vld [vmem:[%s15 + $0x12c] sm:$0xf]
    %v463 = vld [vmem:[%s15 + $0x130] sm:$0xf]
    %v464 = vld [vmem:[%s15 + $0x134] sm:$0xf]
    %v465 = vld [vmem:[%s15 + $0x138] sm:$0xf]
    %v466 = vld [vmem:[%s15 + $0x13c] sm:$0xf]
    %v467 = vld [vmem:[%s15 + $0x140] sm:$0xf]
    %v468 = vld [vmem:[%s15 + $0x144] sm:$0xf]
    %v469 = vld [vmem:[%s15 + $0x148] sm:$0xf]
    %v470 = vld [vmem:[%s15 + $0x14c] sm:$0xf]
    %v471 = vld [vmem:[%s15 + $0x150] sm:$0xf]
    %v472 = vld [vmem:[%s15 + $0x154] sm:$0xf]
    %v473 = vld [vmem:[%s15 + $0x158] sm:$0xf]
    %v474 = vld [vmem:[%s15 + $0x15c] sm:$0xf]
    %v475 = vld [vmem:[%s15 + $0x160] sm:$0xf]
    %v476 = vld [vmem:[%s15 + $0x164] sm:$0xf]
    %v477 = vld [vmem:[%s15 + $0x168] sm:$0xf]
    %v478 = vld [vmem:[%s15 + $0x16c] sm:$0xf]
    %v479 = vld [vmem:[%s15 + $0x170] sm:$0xf]
    %v480 = vld [vmem:[%s15 + $0x174] sm:$0xf]
    %v481 = vld [vmem:[%s15 + $0x178] sm:$0xf]
    %v482 = vld [vmem:[%s15 + $0x17c] sm:$0xf]
    %v483 = vld [vmem:[%s15 + $0x180] sm:$0xf]
    %v484 = vld [vmem:[%s15 + $0x184] sm:$0xf]
    %v485 = vld [vmem:[%s15 + $0x188] sm:$0xf]
    %v486 = vld [vmem:[%s15 + $0x18c] sm:$0xf]
    %v487 = vld [vmem:[%s15 + $0x190] sm:$0xf]
    %v488 = vld [vmem:[%s15 + $0x194] sm:$0xf]
    %v489 = vld [vmem:[%s15 + $0x198] sm:$0xf]
    %v490 = vld [vmem:[%s15 + $0x19c] sm:$0xf]
    %v491 = vld [vmem:[%s15 + $0x1a0] sm:$0xf]
    %v492 = vld [vmem:[%s15 + $0x1a4] sm:$0xf]
    %v493 = vld [vmem:[%s15 + $0x1a8] sm:$0xf]
    %v494 = vld [vmem:[%s15 + $0x1ac] sm:$0xf]
    %v495 = vld [vmem:[%s15 + $0x1b0] sm:$0xf]
    %v496 = vld [vmem:[%s15 + $0x1b4] sm:$0xf]
    %v497 = vld [vmem:[%s15 + $0x1b8] sm:$0xf]
    %v498 = vld [vmem:[%s15 + $0x1bc] sm:$0xf]
    %v499 = vld [vmem:[%s15 + $0x1c0] sm:$0xf]
    %v500 = vld [vmem:[%s15 + $0x1c4] sm:$0xf]
    %v501 = vld [vmem:[%s15 + $0x1c8] sm:$0xf]
    %v502 = vld [vmem:[%s15 + $0x1cc] sm:$0xf]
    %v503 = vld [vmem:[%s15 + $0x1d0] sm:$0xf]
    %v504 = vld [vmem:[%s15 + $0x1d4] sm:$0xf]
    %v505 = vld [vmem:[%s15 + $0x1d8] sm:$0xf]
    %v506 = vld [vmem:[%s15 + $0x1dc] sm:$0xf]
    %v507 = vld [vmem:[%s15 + $0x1e0] sm:$0xf]
    %v508 = vld [vmem:[%s15 + $0x1e4] sm:$0xf]
    %v509 = vld [vmem:[%s15 + $0x1e8] sm:$0xf]
    %v510 = vld [vmem:[%s15 + $0x1ec] sm:$0xf]
    %v511 = vld [vmem:[%s15 + $0x1f0] sm:$0xf]
    %v512 = vld [vmem:[%s15 + $0x1f4] sm:$0xf]
    %v513 = vld [vmem:[%s15 + $0x1f8] sm:$0xf]
    %v514 = vld [vmem:[%s15 + $0x1fc] sm:$0xf]
    %v515 = vld [vmem:[%s15 + $0x200] sm:$0xf]
    %v516 = vld [vmem:[%s15 + $0x204] sm:$0xf]
    %v517 = vld [vmem:[%s15 + $0x208] sm:$0xf]
    %v518 = vld [vmem:[%s15 + $0x20c] sm:$0xf]
    %v519 = vld [vmem:[%s15 + $0x210] sm:$0xf]
    %v520 = vld [vmem:[%s15 + $0x214] sm:$0xf]
    %v521 = vld [vmem:[%s15 + $0x218] sm:$0xf]
    %v522 = vld [vmem:[%s15 + $0x21c] sm:$0xf]
    %v523 = vld [vmem:[%s15 + $0x220] sm:$0xf]
    %v524 = vld [vmem:[%s15 + $0x224] sm:$0xf]
    %v525 = vld [vmem:[%s15 + $0x228] sm:$0xf]
    %v526 = vld [vmem:[%s15 + $0x22c] sm:$0xf]
    %v527 = vld [vmem:[%s15 + $0x230] sm:$0xf]
    %v528 = vld [vmem:[%s15 + $0x234] sm:$0xf]
    %v529 = vld [vmem:[%s15 + $0x238] sm:$0xf]
    %v530 = vld [vmem:[%s15 + $0x23c] sm:$0xf]
    %v531 = vld [vmem:[%s15 + $0x240] sm:$0xf]
    %v532 = vld [vmem:[%s15 + $0x244] sm:$0xf]
    %v533 = vld [vmem:[%s15 + $0x248] sm:$0xf]
    %v534 = vld [vmem:[%s15 + $0x24c] sm:$0xf]
    %v535 = vld [vmem:[%s15 + $0x250] sm:$0xf]
    %v536 = vld [vmem:[%s15 + $0x254] sm:$0xf]
    %v537 = vld [vmem:[%s15 + $0x258] sm:$0xf]
    %v538 = vld [vmem:[%s15 + $0x25c] sm:$0xf]
    %v539 = vld [vmem:[%s15 + $0x260] sm:$0xf]
    %v540 = vld [vmem:[%s15 + $0x264] sm:$0xf]
    %v541 = vld [vmem:[%s15 + $0x268] sm:$0xf]
    %v542 = vld [vmem:[%s15 + $0x26c] sm:$0xf]
    %v543 = vld [vmem:[%s15 + $0x270] sm:$0xf]
    %v544 = vld [vmem:[%s15 + $0x274] sm:$0xf]
    %v545 = vld [vmem:[%s15 + $0x278] sm:$0xf]
    %v546 = vld [vmem:[%s15 + $0x27c] sm:$0xf]
    %v547 = vld [vmem:[%s15 + $0x280] sm:$0xf]
    %v548 = vld [vmem:[%s15 + $0x284] sm:$0xf]
    %v549 = vld [vmem:[%s15 + $0x288] sm:$0xf]
    %v550 = vld [vmem:[%s15 + $0x28c] sm:$0xf]
    %v551 = vld [vmem:[%s15 + $0x290] sm:$0xf]
    %v552 = vld [vmem:[%s15 + $0x294] sm:$0xf]
    %v553 = vld [vmem:[%s15 + $0x298] sm:$0xf]
    %v554 = vld [vmem:[%s15 + $0x29c] sm:$0xf]
    %v555 = vld [vmem:[%s15 + $0x2a0] sm:$0xf]
    %v556 = vld [vmem:[%s15 + $0x2a4] sm:$0xf]
    %v557 = vld [vmem:[%s15 + $0x2a8] sm:$0xf]
    %v558 = vld [vmem:[%s15 + $0x2ac] sm:$0xf]
    %v559 = vld [vmem:[%s15 + $0x2b0] sm:$0xf]
    %v560 = vld [vmem:[%s15 + $0x2b4] sm:$0xf]
    %v561 = vld [vmem:[%s15 + $0x2b8] sm:$0xf]
    %v562 = vld [vmem:[%s15 + $0x2bc] sm:$0xf]
    %v563 = vld [vmem:[%s15 + $0x2c0] sm:$0xf]
    %v564 = vld [vmem:[%s15 + $0x2c4] sm:$0xf]
    %v565 = vld [vmem:[%s15 + $0x2c8] sm:$0xf]
    %v566 = vld [vmem:[%s15 + $0x2cc] sm:$0xf]
    %v567 = vld [vmem:[%s15 + $0x2d0] sm:$0xf]
    %v568 = vld [vmem:[%s15 + $0x2d4] sm:$0xf]
    %v569 = vld [vmem:[%s15 + $0x2d8] sm:$0xf]
    %v570 = vld [vmem:[%s15 + $0x2dc] sm:$0xf]
    %v571 = vld [vmem:[%s15 + $0x2e0] sm:$0xf]
    %v572 = vld [vmem:[%s15 + $0x2e4] sm:$0xf]
    %v573 = vld [vmem:[%s15 + $0x2e8] sm:$0xf]
    %v574 = vld [vmem:[%s15 + $0x2ec] sm:$0xf]
    %v575 = vld [vmem:[%s15 + $0x2f0] sm:$0xf]
    %v576 = vld [vmem:[%s15 + $0x2f4] sm:$0xf]
    %v577 = vld [vmem:[%s15 + $0x2f8] sm:$0xf]
    %v578 = vld [vmem:[%s15 + $0x2fc] sm:$0xf]
    %v579 = vld [vmem:[%s15 + $0x300] sm:$0xf]
    %v580 = vld [vmem:[%s15 + $0x304] sm:$0xf]
    %v581 = vld [vmem:[%s15 + $0x308] sm:$0xf]
    %v582 = vld [vmem:[%s15 + $0x30c] sm:$0xf]
    %v583 = vld [vmem:[%s15 + $0x310] sm:$0xf]
    %v584 = vld [vmem:[%s15 + $0x314] sm:$0xf]
    %v585 = vld [vmem:[%s15 + $0x318] sm:$0xf]
    %v586 = vld [vmem:[%s15 + $0x31c] sm:$0xf]
    %v587 = vld [vmem:[%s15 + $0x320] sm:$0xf]
    %v588 = vld [vmem:[%s15 + $0x324] sm:$0xf]
    %v589 = vld [vmem:[%s15 + $0x328] sm:$0xf]
    %v590 = vld [vmem:[%s15 + $0x32c] sm:$0xf]
    %v591 = vld [vmem:[%s15 + $0x330] sm:$0xf]
    %v592 = vld [vmem:[%s15 + $0x334] sm:$0xf]
    %v593 = vld [vmem:[%s15 + $0x338] sm:$0xf]
    %v594 = vld [vmem:[%s15 + $0x33c] sm:$0xf]
    %v595 = vld [vmem:[%s15 + $0x340] sm:$0xf]
    %v596 = vld [vmem:[%s15 + $0x344] sm:$0xf]
    %v597 = vld [vmem:[%s15 + $0x348] sm:$0xf]
    %v598 = vld [vmem:[%s15 + $0x34c] sm:$0xf]
    %v599 = vld [vmem:[%s15 + $0x350] sm:$0xf]
    %v600 = vld [vmem:[%s15 + $0x354] sm:$0xf]
    %v601 = vld [vmem:[%s15 + $0x358] sm:$0xf]
    %v602 = vld [vmem:[%s15 + $0x35c] sm:$0xf]
    %v603 = vld [vmem:[%s15 + $0x360] sm:$0xf]
    %v604 = vld [vmem:[%s15 + $0x364] sm:$0xf]
    %v605 = vld [vmem:[%s15 + $0x368] sm:$0xf]
    %v606 = vld [vmem:[%s15 + $0x36c] sm:$0xf]
    %v607 = vld [vmem:[%s15 + $0x370] sm:$0xf]
    %v608 = vld [vmem:[%s15 + $0x374] sm:$0xf]
    %v609 = vld [vmem:[%s15 + $0x378] sm:$0xf]
    %v610 = vld [vmem:[%s15 + $0x37c] sm:$0xf]
    %v611 = vld [vmem:[%s15 + $0x380] sm:$0xf]
    %v612 = vld [vmem:[%s15 + $0x384] sm:$0xf]
    %v613 = vld [vmem:[%s15 + $0x388] sm:$0xf]
    %v614 = vld [vmem:[%s15 + $0x38c] sm:$0xf]
    %v615 = vld [vmem:[%s15 + $0x390] sm:$0xf]
    %v616 = vld [vmem:[%s15 + $0x394] sm:$0xf]
    %v617 = vld [vmem:[%s15 + $0x398] sm:$0xf]
    %v618 = vld [vmem:[%s15 + $0x39c] sm:$0xf]
    %v619 = vld [vmem:[%s15 + $0x3a0] sm:$0xf]
    %v620 = vld [vmem:[%s15 + $0x3a4] sm:$0xf]
    %v621 = vld [vmem:[%s15 + $0x3a8] sm:$0xf]
    %v622 = vld [vmem:[%s15 + $0x3ac] sm:$0xf]
    %v623 = vld [vmem:[%s15 + $0x3b0] sm:$0xf]
    %v624 = vld [vmem:[%s15 + $0x3b4] sm:$0xf]
    %v625 = vld [vmem:[%s15 + $0x3b8] sm:$0xf]
    %v626 = vld [vmem:[%s15 + $0x3bc] sm:$0xf]
    %v627 = vld [vmem:[%s15 + $0x3c0] sm:$0xf]
    %v628 = vld [vmem:[%s15 + $0x3c4] sm:$0xf]
    %v629 = vld [vmem:[%s15 + $0x3c8] sm:$0xf]
    %v630 = vld [vmem:[%s15 + $0x3cc] sm:$0xf]
    %v631 = vld [vmem:[%s15 + $0x3d0] sm:$0xf]
    %v632 = vld [vmem:[%s15 + $0x3d4] sm:$0xf]
    %v633 = vld [vmem:[%s15 + $0x3d8] sm:$0xf]
    %v634 = vld [vmem:[%s15 + $0x3dc] sm:$0xf]
    %v635 = vld [vmem:[%s15 + $0x3e0] sm:$0xf]
    %v636 = vld [vmem:[%s15 + $0x3e4] sm:$0xf]
    %v637 = vld [vmem:[%s15 + $0x3e8] sm:$0xf]
    %v638 = vld [vmem:[%s15 + $0x3ec] sm:$0xf]
    %v639 = vld [vmem:[%s15 + $0x3f0] sm:$0xf]
    %v640 = vld [vmem:[%s15 + $0x3f4] sm:$0xf]
    %v641 = vld [vmem:[%s15 + $0x3f8] sm:$0xf]
    %v642 = vld [vmem:[%s15 + $0x3fc] sm:$0xf]
    %v643 = vld [vmem:[%s15 + $0x400] sm:$0xf]
    %v644 = vld [vmem:[%s15 + $0x404] sm:$0xf]
    %v645 = vld [vmem:[%s15 + $0x408] sm:$0xf]
    %v646 = vld [vmem:[%s15 + $0x40c] sm:$0xf]
    %v647 = vld [vmem:[%s15 + $0x410] sm:$0xf]
    %v648 = vld [vmem:[%s15 + $0x414] sm:$0xf]
    %v649 = vld [vmem:[%s15 + $0x418] sm:$0xf]
    %v650 = vld [vmem:[%s15 + $0x41c] sm:$0xf]
    %v651 = vld [vmem:[%s15 + $0x420] sm:$0xf]
    %v652 = vld [vmem:[%s15 + $0x424] sm:$0xf]
    %v653 = vld [vmem:[%s15 + $0x428] sm:$0xf]
    %v654 = vld [vmem:[%s15 + $0x42c] sm:$0xf]
    %v655 = vld [vmem:[%s15 + $0x430] sm:$0xf]
    %v656 = vld [vmem:[%s15 + $0x434] sm:$0xf]
    %v657 = vld [vmem:[%s15 + $0x438] sm:$0xf]
    %v658 = vld [vmem:[%s15 + $0x43c] sm:$0xf]
    %v659 = vld [vmem:[%s15 + $0x440] sm:$0xf]
    %v660 = vld [vmem:[%s15 + $0x444] sm:$0xf]
    %v661 = vld [vmem:[%s15 + $0x448] sm:$0xf]
    %v662 = vld [vmem:[%s15 + $0x44c] sm:$0xf]
    %v663 = vld [vmem:[%s15 + $0x450] sm:$0xf]
    %v664 = vld [vmem:[%s15 + $0x454] sm:$0xf]
    %v665 = vld [vmem:[%s15 + $0x458] sm:$0xf]
    %v666 = vld [vmem:[%s15 + $0x45c] sm:$0xf]
    %v667 = vld [vmem:[%s15 + $0x460] sm:$0xf]
    %v668 = vld [vmem:[%s15 + $0x464] sm:$0xf]
    %v669 = vld [vmem:[%s15 + $0x468] sm:$0xf]
    %v670 = vld [vmem:[%s15 + $0x46c] sm:$0xf]
    %v671 = vld [vmem:[%s15 + $0x470] sm:$0xf]
    %v672 = vld [vmem:[%s15 + $0x474] sm:$0xf]
    %v673 = vld [vmem:[%s15 + $0x478] sm:$0xf]
    %v674 = vld [vmem:[%s15 + $0x47c] sm:$0xf]
    %v675 = vld [vmem:[%s15 + $0x480] sm:$0xf]
    %v676 = vld [vmem:[%s15 + $0x484] sm:$0xf]
    %v677 = vld [vmem:[%s15 + $0x488] sm:$0xf]
    %v678 = vld [vmem:[%s15 + $0x48c] sm:$0xf]
    %v679 = vld [vmem:[%s15 + $0x490] sm:$0xf]
    %v680 = vld [vmem:[%s15 + $0x494] sm:$0xf]
    %v681 = vld [vmem:[%s15 + $0x498] sm:$0xf]
    %v682 = vld [vmem:[%s15 + $0x49c] sm:$0xf]
    %v683 = vld [vmem:[%s15 + $0x4a0] sm:$0xf]
    %v684 = vld [vmem:[%s15 + $0x4a4] sm:$0xf]
    %v685 = vld [vmem:[%s15 + $0x4a8] sm:$0xf]
    %v686 = vld [vmem:[%s15 + $0x4ac] sm:$0xf]
    %v687 = vld [vmem:[%s15 + $0x4b0] sm:$0xf]
    %v688 = vld [vmem:[%s15 + $0x4b4] sm:$0xf]
    %v689 = vld [vmem:[%s15 + $0x4b8] sm:$0xf]
    %v690 = vld [vmem:[%s15 + $0x4bc] sm:$0xf]
    %v691 = vld [vmem:[%s15 + $0x4c0] sm:$0xf]
    %v692 = vld [vmem:[%s15 + $0x4c4] sm:$0xf]
    %v693 = vld [vmem:[%s15 + $0x4c8] sm:$0xf]
    %v694 = vld [vmem:[%s15 + $0x4cc] sm:$0xf]
    %v695 = vld [vmem:[%s15 + $0x4d0] sm:$0xf]
    %v696 = vld [vmem:[%s15 + $0x4d4] sm:$0xf]
    %v697 = vld [vmem:[%s15 + $0x4d8] sm:$0xf]
    %v698 = vld [vmem:[%s15 + $0x4dc] sm:$0xf]
    %v699 = vld [vmem:[%s15 + $0x4e0] sm:$0xf]
    %v700 = vld [vmem:[%s15 + $0x4e4] sm:$0xf]
    %v701 = vld [vmem:[%s15 + $0x4e8] sm:$0xf]
    %v702 = vld [vmem:[%s15 + $0x4ec] sm:$0xf]
    %v703 = vld [vmem:[%s15 + $0x4f0] sm:$0xf]
    %v704 = vld [vmem:[%s15 + $0x4f4] sm:$0xf]
    %v705 = vld [vmem:[%s15 + $0x4f8] sm:$0xf]
    %v706 = vld [vmem:[%s15 + $0x4fc] sm:$0xf]
    %v707 = vld [vmem:[%s15 + $0x500] sm:$0xf]
    %v708 = vld [vmem:[%s15 + $0x504] sm:$0xf]
    %v709 = vld [vmem:[%s15 + $0x508] sm:$0xf]
    %v710 = vld [vmem:[%s15 + $0x50c] sm:$0xf]
    %v711 = vld [vmem:[%s15 + $0x510] sm:$0xf]
    %v712 = vld [vmem:[%s15 + $0x514] sm:$0xf]
    %v713 = vld [vmem:[%s15 + $0x518] sm:$0xf]
    %v714 = vld [vmem:[%s15 + $0x51c] sm:$0xf]
    %v715 = vld [vmem:[%s15 + $0x520] sm:$0xf]
    %v716 = vld [vmem:[%s15 + $0x524] sm:$0xf]
    %v717 = vld [vmem:[%s15 + $0x528] sm:$0xf]
    %v718 = vld [vmem:[%s15 + $0x52c] sm:$0xf]
    %v719 = vld [vmem:[%s15 + $0x530] sm:$0xf]
    %v720 = vld [vmem:[%s15 + $0x534] sm:$0xf]
    %v721 = vld [vmem:[%s15 + $0x538] sm:$0xf]
    %v722 = vld [vmem:[%s15 + $0x53c] sm:$0xf]
    %v723 = vld [vmem:[%s15 + $0x540] sm:$0xf]
    %v724 = vld [vmem:[%s15 + $0x544] sm:$0xf]
    %v725 = vld [vmem:[%s15 + $0x548] sm:$0xf]
    %v726 = vld [vmem:[%s15 + $0x54c] sm:$0xf]
    %v727 = vld [vmem:[%s15 + $0x550] sm:$0xf]
    %v728 = vld [vmem:[%s15 + $0x554] sm:$0xf]
    %v729 = vld [vmem:[%s15 + $0x558] sm:$0xf]
    %v730 = vld [vmem:[%s15 + $0x55c] sm:$0xf]
    %v731 = vld [vmem:[%s15 + $0x560] sm:$0xf]
    %v732 = vld [vmem:[%s15 + $0x564] sm:$0xf]
    %v733 = vld [vmem:[%s15 + $0x568] sm:$0xf]
    %v734 = vld [vmem:[%s15 + $0x56c] sm:$0xf]
    %v735 = vld [vmem:[%s15 + $0x570] sm:$0xf]
    %v736 = vld [vmem:[%s15 + $0x574] sm:$0xf]
    %v737 = vld [vmem:[%s15 + $0x578] sm:$0xf]
    %v738 = vld [vmem:[%s15 + $0x57c] sm:$0xf]
    %v739 = vld [vmem:[%s15 + $0x580] sm:$0xf]
    %v740 = vld [vmem:[%s15 + $0x584] sm:$0xf]
    %v741 = vld [vmem:[%s15 + $0x588] sm:$0xf]
    %v742 = vld [vmem:[%s15 + $0x58c] sm:$0xf]
    %v743 = vld [vmem:[%s15 + $0x590] sm:$0xf]
    %v744 = vld [vmem:[%s15 + $0x594] sm:$0xf]
    %v745 = vld [vmem:[%s15 + $0x598] sm:$0xf]
    %v746 = vld [vmem:[%s15 + $0x59c] sm:$0xf]
    %v747 = vld [vmem:[%s15 + $0x5a0] sm:$0xf]
    %v748 = vld [vmem:[%s15 + $0x5a4] sm:$0xf]
    %v749 = vld [vmem:[%s15 + $0x5a8] sm:$0xf]
    %v750 = vld [vmem:[%s15 + $0x5ac] sm:$0xf]
    %v751 = vld [vmem:[%s15 + $0x5b0] sm:$0xf]
    %v752 = vld [vmem:[%s15 + $0x5b4] sm:$0xf]
    %v753 = vld [vmem:[%s15 + $0x5b8] sm:$0xf]
    %v754 = vld [vmem:[%s15 + $0x5bc] sm:$0xf]
    %v755 = vld [vmem:[%s15 + $0x5c0] sm:$0xf]
    %v756 = vld [vmem:[%s15 + $0x5c4] sm:$0xf]
    %v757 = vld [vmem:[%s15 + $0x5c8] sm:$0xf]
    %v758 = vld [vmem:[%s15 + $0x5cc] sm:$0xf]
    %v759 = vld [vmem:[%s15 + $0x5d0] sm:$0xf]
    %v760 = vld [vmem:[%s15 + $0x5d4] sm:$0xf]
    %v761 = vld [vmem:[%s15 + $0x5d8] sm:$0xf]
    %v762 = vld [vmem:[%s15 + $0x5dc] sm:$0xf]
    %v763 = vld [vmem:[%s15 + $0x5e0] sm:$0xf]
    %v764 = vld [vmem:[%s15 + $0x5e4] sm:$0xf]
    %v765 = vld [vmem:[%s15 + $0x5e8] sm:$0xf]
    %v766 = vld [vmem:[%s15 + $0x5ec] sm:$0xf]
    %v767 = vld [vmem:[%s15 + $0x5f0] sm:$0xf]
    %v768 = vld [vmem:[%s15 + $0x5f4] sm:$0xf]
    %v769 = vld [vmem:[%s15 + $0x5f8] sm:$0xf]
    %v770 = vld [vmem:[%s15 + $0x5fc] sm:$0xf]
    %v771 = vld [vmem:[%s15 + $0x600] sm:$0xf]
    %v772 = vld [vmem:[%s15 + $0x604] sm:$0xf]
    %v773 = vld [vmem:[%s15 + $0x608] sm:$0xf]
    %v774 = vld [vmem:[%s15 + $0x60c] sm:$0xf]
    %v775 = vld [vmem:[%s15 + $0x610] sm:$0xf]
    %v776 = vld [vmem:[%s15 + $0x614] sm:$0xf]
    %v777 = vld [vmem:[%s15 + $0x618] sm:$0xf]
    %v778 = vld [vmem:[%s15 + $0x61c] sm:$0xf]
    %v779 = vld [vmem:[%s15 + $0x620] sm:$0xf]
    %v780 = vld [vmem:[%s15 + $0x624] sm:$0xf]
    %v781 = vld [vmem:[%s15 + $0x628] sm:$0xf]
    %v782 = vld [vmem:[%s15 + $0x62c] sm:$0xf]
    %v783 = vld [vmem:[%s15 + $0x630] sm:$0xf]
    %v784 = vld [vmem:[%s15 + $0x634] sm:$0xf]
    %v785 = vld [vmem:[%s15 + $0x638] sm:$0xf]
    %v786 = vld [vmem:[%s15 + $0x63c] sm:$0xf]
    %v787 = vld [vmem:[%s15 + $0x640] sm:$0xf]
    %v788 = vld [vmem:[%s15 + $0x644] sm:$0xf]
    %v789 = vld [vmem:[%s15 + $0x648] sm:$0xf]
    %v790 = vld [vmem:[%s15 + $0x64c] sm:$0xf]
    %v791 = vld [vmem:[%s15 + $0x650] sm:$0xf]
    %v792 = vld [vmem:[%s15 + $0x654] sm:$0xf]
    %v793 = vld [vmem:[%s15 + $0x658] sm:$0xf]
    %v794 = vld [vmem:[%s15 + $0x65c] sm:$0xf]
    %v795 = vld [vmem:[%s15 + $0x660] sm:$0xf]
    %v796 = vld [vmem:[%s15 + $0x664] sm:$0xf]
    %v797 = vld [vmem:[%s15 + $0x668] sm:$0xf]
    %v798 = vld [vmem:[%s15 + $0x66c] sm:$0xf]
    %v799 = vld [vmem:[%s15 + $0x670] sm:$0xf]
    %v800 = vld [vmem:[%s15 + $0x674] sm:$0xf]
    %v801 = vld [vmem:[%s15 + $0x678] sm:$0xf]
    %v802 = vld [vmem:[%s15 + $0x67c] sm:$0xf]
    %v803 = vld [vmem:[%s15 + $0x680] sm:$0xf]
    %v804 = vld [vmem:[%s15 + $0x684] sm:$0xf]
    %v805 = vld [vmem:[%s15 + $0x688] sm:$0xf]
    %v806 = vld [vmem:[%s15 + $0x68c] sm:$0xf]
    %v807 = vld [vmem:[%s15 + $0x690] sm:$0xf]
    %v808 = vld [vmem:[%s15 + $0x694] sm:$0xf]
    %v809 = vld [vmem:[%s15 + $0x698] sm:$0xf]
    %v810 = vld [vmem:[%s15 + $0x69c] sm:$0xf]
    %v811 = vld [vmem:[%s15 + $0x6a0] sm:$0xf]
    %v812 = vld [vmem:[%s15 + $0x6a4] sm:$0xf]
    %v813 = vld [vmem:[%s15 + $0x6a8] sm:$0xf]
    %v814 = vld [vmem:[%s15 + $0x6ac] sm:$0xf]
    %v815 = vld [vmem:[%s15 + $0x6b0] sm:$0xf]
    %v816 = vld [vmem:[%s15 + $0x6b4] sm:$0xf]
    %v817 = vld [vmem:[%s15 + $0x6b8] sm:$0xf]
    %v818 = vld [vmem:[%s15 + $0x6bc] sm:$0xf]
    %v819 = vld [vmem:[%s15 + $0x6c0] sm:$0xf]
    %v820 = vld [vmem:[%s15 + $0x6c4] sm:$0xf]
    %v821 = vld [vmem:[%s15 + $0x6c8] sm:$0xf]
    %v822 = vld [vmem:[%s15 + $0x6cc] sm:$0xf]
    %v823 = vld [vmem:[%s15 + $0x6d0] sm:$0xf]
    %v824 = vld [vmem:[%s15 + $0x6d4] sm:$0xf]
    %v825 = vld [vmem:[%s15 + $0x6d8] sm:$0xf]
    %v826 = vld [vmem:[%s15 + $0x6dc] sm:$0xf]
    %v827 = vld [vmem:[%s15 + $0x6e0] sm:$0xf]
    %v828 = vld [vmem:[%s15 + $0x6e4] sm:$0xf]
    %v829 = vld [vmem:[%s15 + $0x6e8] sm:$0xf]
    %v830 = vld [vmem:[%s15 + $0x6ec] sm:$0xf]
    %v831 = vld [vmem:[%s15 + $0x6f0] sm:$0xf]
    %v832 = vld [vmem:[%s15 + $0x6f4] sm:$0xf]
    %v833 = vld [vmem:[%s15 + $0x6f8] sm:$0xf]
    %v834 = vld [vmem:[%s15 + $0x6fc] sm:$0xf]
    %v835 = vld [vmem:[%s15 + $0x700] sm:$0xf]
    %v836 = vld [vmem:[%s15 + $0x704] sm:$0xf]
    %v837 = vld [vmem:[%s15 + $0x708] sm:$0xf]
    %v838 = vld [vmem:[%s15 + $0x70c] sm:$0xf]
    %v839 = vld [vmem:[%s15 + $0x710] sm:$0xf]
    %v840 = vld [vmem:[%s15 + $0x714] sm:$0xf]
    %v841 = vld [vmem:[%s15 + $0x718] sm:$0xf]
    %v842 = vld [vmem:[%s15 + $0x71c] sm:$0xf]
    %v843 = vld [vmem:[%s15 + $0x720] sm:$0xf]
    %v844 = vld [vmem:[%s15 + $0x724] sm:$0xf]
    %v845 = vld [vmem:[%s15 + $0x728] sm:$0xf]
    %v846 = vld [vmem:[%s15 + $0x72c] sm:$0xf]
    %v847 = vld [vmem:[%s15 + $0x730] sm:$0xf]
    %v848 = vld [vmem:[%s15 + $0x734] sm:$0xf]
    %v849 = vld [vmem:[%s15 + $0x738] sm:$0xf]
    %v850 = vld [vmem:[%s15 + $0x73c] sm:$0xf]
    %v851 = vld [vmem:[%s15 + $0x740] sm:$0xf]
    %v852 = vld [vmem:[%s15 + $0x744] sm:$0xf]
    %v853 = vld [vmem:[%s15 + $0x748] sm:$0xf]
    %v854 = vld [vmem:[%s15 + $0x74c] sm:$0xf]
    %v855 = vld [vmem:[%s15 + $0x750] sm:$0xf]
    %v856 = vld [vmem:[%s15 + $0x754] sm:$0xf]
    %v857 = vld [vmem:[%s15 + $0x758] sm:$0xf]
    %v858 = vld [vmem:[%s15 + $0x75c] sm:$0xf]
    %v859 = vld [vmem:[%s15 + $0x760] sm:$0xf]
    %v860 = vld [vmem:[%s15 + $0x764] sm:$0xf]
    %v861 = vld [vmem:[%s15 + $0x768] sm:$0xf]
    %v862 = vld [vmem:[%s15 + $0x76c] sm:$0xf]
    %v863 = vld [vmem:[%s15 + $0x770] sm:$0xf]
    %v864 = vld [vmem:[%s15 + $0x774] sm:$0xf]
    %v865 = vld [vmem:[%s15 + $0x778] sm:$0xf]
    %v866 = vld [vmem:[%s15 + $0x77c] sm:$0xf]
    %v867 = vld [vmem:[%s15 + $0x780] sm:$0xf]
    %v868 = vld [vmem:[%s15 + $0x784] sm:$0xf]
    %v869 = vld [vmem:[%s15 + $0x788] sm:$0xf]
    %v870 = vld [vmem:[%s15 + $0x78c] sm:$0xf]
    %v871 = vld [vmem:[%s15 + $0x790] sm:$0xf]
    %v872 = vld [vmem:[%s15 + $0x794] sm:$0xf]
    %v873 = vld [vmem:[%s15 + $0x798] sm:$0xf]
    %v874 = vld [vmem:[%s15 + $0x79c] sm:$0xf]
    %v875 = vld [vmem:[%s15 + $0x7a0] sm:$0xf]
    %v876 = vld [vmem:[%s15 + $0x7a4] sm:$0xf]
    %v877 = vld [vmem:[%s15 + $0x7a8] sm:$0xf]
    %v878 = vld [vmem:[%s15 + $0x7ac] sm:$0xf]
    %v879 = vld [vmem:[%s15 + $0x7b0] sm:$0xf]
    %v880 = vld [vmem:[%s15 + $0x7b4] sm:$0xf]
    %v881 = vld [vmem:[%s15 + $0x7b8] sm:$0xf]
    %v882 = vld [vmem:[%s15 + $0x7bc] sm:$0xf]
    %v883 = vld [vmem:[%s15 + $0x7c0] sm:$0xf]
    %v884 = vld [vmem:[%s15 + $0x7c4] sm:$0xf]
    %v885 = vld [vmem:[%s15 + $0x7c8] sm:$0xf]
    %v886 = vld [vmem:[%s15 + $0x7cc] sm:$0xf]
    %v887 = vld [vmem:[%s15 + $0x7d0] sm:$0xf]
    %v888 = vld [vmem:[%s15 + $0x7d4] sm:$0xf]
    %v889 = vld [vmem:[%s15 + $0x7d8] sm:$0xf]
    %v890 = vld [vmem:[%s15 + $0x7dc] sm:$0xf]
    %v891 = vld [vmem:[%s15 + $0x7e0] sm:$0xf]
    %v892 = vld [vmem:[%s15 + $0x7e4] sm:$0xf]
    %v893 = vld [vmem:[%s15 + $0x7e8] sm:$0xf]
    %v894 = vld [vmem:[%s15 + $0x7ec] sm:$0xf]
    %v895 = vld [vmem:[%s15 + $0x7f0] sm:$0xf]
    %v896 = vld [vmem:[%s15 + $0x7f4] sm:$0xf]
    %v897 = vld [vmem:[%s15 + $0x7f8] sm:$0xf]
    %v898 = vld [vmem:[%s15 + $0x7fc] sm:$0xf]
    %v899 = vld [vmem:[%s17] sm:$0xf]
    %v901 = vsel %vm219, %v899, 0
    %903 = vmatpush.bf16.msra.mxu0 0
    %904 = vmatpush.bf16.msra.mxu0 0
    %905 = vmatpush.bf16.msra.mxu0 0
    %906 = vmatpush.bf16.msra.mxu0 0
    %907 = vmatpush.bf16.msra.mxu0 0
    %908 = vmatpush.bf16.msra.mxu0 0
    %909 = vmatpush.bf16.msra.mxu0 0
    %910 = vmatpush.bf16.msra.mxu0 %v901
    %911 = vmatmul.bf16.gmra.mxu0 %v217
    %v912 = vpop.f32.mrf.mxu0
    %v913 = vadd.f32 0.0, %v912
    %v914 = vpop.f32.mrf.mxu0
    %915 = vdwg.mxu0
    %v916 = vperm.slane %v913, 0
    %v933 = vunpack.c.l.b16 %v371
    %v934 = vunpack.c.h.b16 %v371
    %v935 = vunpack.c.l.b16 %v372
    %v936 = vunpack.c.h.b16 %v372
    %v937 = vunpack.c.l.b16 %v373
    %v938 = vunpack.c.h.b16 %v373
    %v939 = vunpack.c.l.b16 %v374
    %v940 = vunpack.c.h.b16 %v374
    %v941 = vunpack.c.l.b16 %v375
    %v942 = vunpack.c.h.b16 %v375
    %v943 = vunpack.c.l.b16 %v376
    %v944 = vunpack.c.h.b16 %v376
    %v945 = vunpack.c.l.b16 %v377
    %v946 = vunpack.c.h.b16 %v377
    %v947 = vunpack.c.l.b16 %v378
    %v948 = vunpack.c.h.b16 %v378
    %v949 = vunpack.c.l.b16 %v379
    %v950 = vunpack.c.h.b16 %v379
    %v951 = vunpack.c.l.b16 %v380
    %v952 = vunpack.c.h.b16 %v380
    %v953 = vunpack.c.l.b16 %v381
    %v954 = vunpack.c.h.b16 %v381
    %v955 = vunpack.c.l.b16 %v382
    %v956 = vunpack.c.h.b16 %v382
    %v957 = vunpack.c.l.b16 %v383
    %v958 = vunpack.c.h.b16 %v383
    %v959 = vunpack.c.l.b16 %v384
    %v960 = vunpack.c.h.b16 %v384
    %v961 = vunpack.c.l.b16 %v385
    %v962 = vunpack.c.h.b16 %v385
    %v963 = vunpack.c.l.b16 %v386
    %v964 = vunpack.c.h.b16 %v386
    %v965 = vpack.c.b16 %v933, %v933
    %v966 = vpack.c.b16 %v934, %v934
    %v967 = vpack.c.b16 %v935, %v935
    %v968 = vpack.c.b16 %v936, %v936
    %v969 = vpack.c.b16 %v937, %v937
    %v970 = vpack.c.b16 %v938, %v938
    %v971 = vpack.c.b16 %v939, %v939
    %v972 = vpack.c.b16 %v940, %v940
    %v973 = vpack.c.b16 %v941, %v941
    %v974 = vpack.c.b16 %v942, %v942
    %v975 = vpack.c.b16 %v943, %v943
    %v976 = vpack.c.b16 %v944, %v944
    %v977 = vpack.c.b16 %v945, %v945
    %v978 = vpack.c.b16 %v946, %v946
    %v979 = vpack.c.b16 %v947, %v947
    %v980 = vpack.c.b16 %v948, %v948
    %v981 = vpack.c.b16 %v949, %v949
    %v982 = vpack.c.b16 %v950, %v950
    %v983 = vpack.c.b16 %v951, %v951
    %v984 = vpack.c.b16 %v952, %v952
    %v985 = vpack.c.b16 %v953, %v953
    %v986 = vpack.c.b16 %v954, %v954
    %v987 = vpack.c.b16 %v955, %v955
    %v988 = vpack.c.b16 %v956, %v956
    %v989 = vpack.c.b16 %v957, %v957
    %v990 = vpack.c.b16 %v958, %v958
    %v991 = vpack.c.b16 %v959, %v959
    %v992 = vpack.c.b16 %v960, %v960
    %v993 = vpack.c.b16 %v961, %v961
    %v994 = vpack.c.b16 %v962, %v962
    %v995 = vpack.c.b16 %v963, %v963
    %v996 = vpack.c.b16 %v964, %v964
    %v1541 = vunpack.c.l.b16 %v387
    %v1542 = vunpack.c.l.b16 %v388
    %v1543 = vunpack.c.l.b16 %v389
    %v1544 = vunpack.c.l.b16 %v390
    %v1545 = vunpack.c.l.b16 %v391
    %v1546 = vunpack.c.l.b16 %v392
    %v1547 = vunpack.c.l.b16 %v393
    %v1548 = vunpack.c.l.b16 %v394
    %v1549 = vunpack.c.l.b16 %v395
    %v1550 = vunpack.c.l.b16 %v396
    %v1551 = vunpack.c.l.b16 %v397
    %v1552 = vunpack.c.l.b16 %v398
    %v1553 = vunpack.c.l.b16 %v399
    %v1554 = vunpack.c.l.b16 %v400
    %v1555 = vunpack.c.l.b16 %v401
    %v1556 = vunpack.c.l.b16 %v402
    %v1557 = vunpack.c.l.b16 %v403
    %v1558 = vunpack.c.l.b16 %v404
    %v1559 = vunpack.c.l.b16 %v405
    %v1560 = vunpack.c.l.b16 %v406
    %v1561 = vunpack.c.l.b16 %v407
    %v1562 = vunpack.c.l.b16 %v408
    %v1563 = vunpack.c.l.b16 %v409
    %v1564 = vunpack.c.l.b16 %v410
    %v1565 = vunpack.c.l.b16 %v411
    %v1566 = vunpack.c.l.b16 %v412
    %v1567 = vunpack.c.l.b16 %v413
    %v1568 = vunpack.c.l.b16 %v414
    %v1569 = vunpack.c.l.b16 %v415
    %v1570 = vunpack.c.l.b16 %v416
    %v1571 = vunpack.c.l.b16 %v417
    %v1572 = vunpack.c.l.b16 %v418
    %v1573 = vunpack.c.l.b16 %v419
    %v1574 = vunpack.c.l.b16 %v420
    %v1575 = vunpack.c.l.b16 %v421
    %v1576 = vunpack.c.l.b16 %v422
    %v1577 = vunpack.c.l.b16 %v423
    %v1578 = vunpack.c.l.b16 %v424
    %v1579 = vunpack.c.l.b16 %v425
    %v1580 = vunpack.c.l.b16 %v426
    %v1581 = vunpack.c.l.b16 %v427
    %v1582 = vunpack.c.l.b16 %v428
    %v1583 = vunpack.c.l.b16 %v429
    %v1584 = vunpack.c.l.b16 %v430
    %v1585 = vunpack.c.l.b16 %v431
    %v1586 = vunpack.c.l.b16 %v432
    %v1587 = vunpack.c.l.b16 %v433
    %v1588 = vunpack.c.l.b16 %v434
    %v1589 = vunpack.c.l.b16 %v435
    %v1590 = vunpack.c.l.b16 %v436
    %v1591 = vunpack.c.l.b16 %v437
    %v1592 = vunpack.c.l.b16 %v438
    %v1593 = vunpack.c.l.b16 %v439
    %v1594 = vunpack.c.l.b16 %v440
    %v1595 = vunpack.c.l.b16 %v441
    %v1596 = vunpack.c.l.b16 %v442
    %v1597 = vunpack.c.l.b16 %v443
    %v1598 = vunpack.c.l.b16 %v444
    %v1599 = vunpack.c.l.b16 %v445
    %v1600 = vunpack.c.l.b16 %v446
    %v1601 = vunpack.c.l.b16 %v447
    %v1602 = vunpack.c.l.b16 %v448
    %v1603 = vunpack.c.l.b16 %v449
    %v1604 = vunpack.c.l.b16 %v450
    %v1605 = vunpack.c.l.b16 %v451
    %v1606 = vunpack.c.l.b16 %v452
    %v1607 = vunpack.c.l.b16 %v453
    %v1608 = vunpack.c.l.b16 %v454
    %v1609 = vunpack.c.l.b16 %v455
    %v1610 = vunpack.c.l.b16 %v456
    %v1611 = vunpack.c.l.b16 %v457
    %v1612 = vunpack.c.l.b16 %v458
    %v1613 = vunpack.c.l.b16 %v459
    %v1614 = vunpack.c.l.b16 %v460
    %v1615 = vunpack.c.l.b16 %v461
    %v1616 = vunpack.c.l.b16 %v462
    %v1617 = vunpack.c.l.b16 %v463
    %v1618 = vunpack.c.l.b16 %v464
    %v1619 = vunpack.c.l.b16 %v465
    %v1620 = vunpack.c.l.b16 %v466
    %v1621 = vunpack.c.l.b16 %v467
    %v1622 = vunpack.c.l.b16 %v468
    %v1623 = vunpack.c.l.b16 %v469
    %v1624 = vunpack.c.l.b16 %v470
    %v1625 = vunpack.c.l.b16 %v471
    %v1626 = vunpack.c.l.b16 %v472
    %v1627 = vunpack.c.l.b16 %v473
    %v1628 = vunpack.c.l.b16 %v474
    %v1629 = vunpack.c.l.b16 %v475
    %v1630 = vunpack.c.l.b16 %v476
    %v1631 = vunpack.c.l.b16 %v477
    %v1632 = vunpack.c.l.b16 %v478
    %v1633 = vunpack.c.l.b16 %v479
    %v1634 = vunpack.c.l.b16 %v480
    %v1635 = vunpack.c.l.b16 %v481
    %v1636 = vunpack.c.l.b16 %v482
    %v1637 = vunpack.c.l.b16 %v483
    %v1638 = vunpack.c.l.b16 %v484
    %v1639 = vunpack.c.l.b16 %v485
    %v1640 = vunpack.c.l.b16 %v486
    %v1641 = vunpack.c.l.b16 %v487
    %v1642 = vunpack.c.l.b16 %v488
    %v1643 = vunpack.c.l.b16 %v489
    %v1644 = vunpack.c.l.b16 %v490
    %v1645 = vunpack.c.l.b16 %v491
    %v1646 = vunpack.c.l.b16 %v492
    %v1647 = vunpack.c.l.b16 %v493
    %v1648 = vunpack.c.l.b16 %v494
    %v1649 = vunpack.c.l.b16 %v495
    %v1650 = vunpack.c.l.b16 %v496
    %v1651 = vunpack.c.l.b16 %v497
    %v1652 = vunpack.c.l.b16 %v498
    %v1653 = vunpack.c.l.b16 %v499
    %v1654 = vunpack.c.l.b16 %v500
    %v1655 = vunpack.c.l.b16 %v501
    %v1656 = vunpack.c.l.b16 %v502
    %v1657 = vunpack.c.l.b16 %v503
    %v1658 = vunpack.c.l.b16 %v504
    %v1659 = vunpack.c.l.b16 %v505
    %v1660 = vunpack.c.l.b16 %v506
    %v1661 = vunpack.c.l.b16 %v507
    %v1662 = vunpack.c.l.b16 %v508
    %v1663 = vunpack.c.l.b16 %v509
    %v1664 = vunpack.c.l.b16 %v510
    %v1665 = vunpack.c.l.b16 %v511
    %v1666 = vunpack.c.l.b16 %v512
    %v1667 = vunpack.c.l.b16 %v513
    %v1668 = vunpack.c.l.b16 %v514
    %v1669 = vunpack.c.l.b16 %v515
    %v1670 = vunpack.c.l.b16 %v516
    %v1671 = vunpack.c.l.b16 %v517
    %v1672 = vunpack.c.l.b16 %v518
    %v1673 = vunpack.c.l.b16 %v519
    %v1674 = vunpack.c.l.b16 %v520
    %v1675 = vunpack.c.l.b16 %v521
    %v1676 = vunpack.c.l.b16 %v522
    %v1677 = vunpack.c.l.b16 %v523
    %v1678 = vunpack.c.l.b16 %v524
    %v1679 = vunpack.c.l.b16 %v525
    %v1680 = vunpack.c.l.b16 %v526
    %v1681 = vunpack.c.l.b16 %v527
    %v1682 = vunpack.c.l.b16 %v528
    %v1683 = vunpack.c.l.b16 %v529
    %v1684 = vunpack.c.l.b16 %v530
    %v1685 = vunpack.c.l.b16 %v531
    %v1686 = vunpack.c.l.b16 %v532
    %v1687 = vunpack.c.l.b16 %v533
    %v1688 = vunpack.c.l.b16 %v534
    %v1689 = vunpack.c.l.b16 %v535
    %v1690 = vunpack.c.l.b16 %v536
    %v1691 = vunpack.c.l.b16 %v537
    %v1692 = vunpack.c.l.b16 %v538
    %v1693 = vunpack.c.l.b16 %v539
    %v1694 = vunpack.c.l.b16 %v540
    %v1695 = vunpack.c.l.b16 %v541
    %v1696 = vunpack.c.l.b16 %v542
    %v1697 = vunpack.c.l.b16 %v543
    %v1698 = vunpack.c.l.b16 %v544
    %v1699 = vunpack.c.l.b16 %v545
    %v1700 = vunpack.c.l.b16 %v546
    %v1701 = vunpack.c.l.b16 %v547
    %v1702 = vunpack.c.l.b16 %v548
    %v1703 = vunpack.c.l.b16 %v549
    %v1704 = vunpack.c.l.b16 %v550
    %v1705 = vunpack.c.l.b16 %v551
    %v1706 = vunpack.c.l.b16 %v552
    %v1707 = vunpack.c.l.b16 %v553
    %v1708 = vunpack.c.l.b16 %v554
    %v1709 = vunpack.c.l.b16 %v555
    %v1710 = vunpack.c.l.b16 %v556
    %v1711 = vunpack.c.l.b16 %v557
    %v1712 = vunpack.c.l.b16 %v558
    %v1713 = vunpack.c.l.b16 %v559
    %v1714 = vunpack.c.l.b16 %v560
    %v1715 = vunpack.c.l.b16 %v561
    %v1716 = vunpack.c.l.b16 %v562
    %v1717 = vunpack.c.l.b16 %v563
    %v1718 = vunpack.c.l.b16 %v564
    %v1719 = vunpack.c.l.b16 %v565
    %v1720 = vunpack.c.l.b16 %v566
    %v1721 = vunpack.c.l.b16 %v567
    %v1722 = vunpack.c.l.b16 %v568
    %v1723 = vunpack.c.l.b16 %v569
    %v1724 = vunpack.c.l.b16 %v570
    %v1725 = vunpack.c.l.b16 %v571
    %v1726 = vunpack.c.l.b16 %v572
    %v1727 = vunpack.c.l.b16 %v573
    %v1728 = vunpack.c.l.b16 %v574
    %v1729 = vunpack.c.l.b16 %v575
    %v1730 = vunpack.c.l.b16 %v576
    %v1731 = vunpack.c.l.b16 %v577
    %v1732 = vunpack.c.l.b16 %v578
    %v1733 = vunpack.c.l.b16 %v579
    %v1734 = vunpack.c.l.b16 %v580
    %v1735 = vunpack.c.l.b16 %v581
    %v1736 = vunpack.c.l.b16 %v582
    %v1737 = vunpack.c.l.b16 %v583
    %v1738 = vunpack.c.l.b16 %v584
    %v1739 = vunpack.c.l.b16 %v585
    %v1740 = vunpack.c.l.b16 %v586
    %v1741 = vunpack.c.l.b16 %v587
    %v1742 = vunpack.c.l.b16 %v588
    %v1743 = vunpack.c.l.b16 %v589
    %v1744 = vunpack.c.l.b16 %v590
    %v1745 = vunpack.c.l.b16 %v591
    %v1746 = vunpack.c.l.b16 %v592
    %v1747 = vunpack.c.l.b16 %v593
    %v1748 = vunpack.c.l.b16 %v594
    %v1749 = vunpack.c.l.b16 %v595
    %v1750 = vunpack.c.l.b16 %v596
    %v1751 = vunpack.c.l.b16 %v597
    %v1752 = vunpack.c.l.b16 %v598
    %v1753 = vunpack.c.l.b16 %v599
    %v1754 = vunpack.c.l.b16 %v600
    %v1755 = vunpack.c.l.b16 %v601
    %v1756 = vunpack.c.l.b16 %v602
    %v1757 = vunpack.c.l.b16 %v603
    %v1758 = vunpack.c.l.b16 %v604
    %v1759 = vunpack.c.l.b16 %v605
    %v1760 = vunpack.c.l.b16 %v606
    %v1761 = vunpack.c.l.b16 %v607
    %v1762 = vunpack.c.l.b16 %v608
    %v1763 = vunpack.c.l.b16 %v609
    %v1764 = vunpack.c.l.b16 %v610
    %v1765 = vunpack.c.l.b16 %v611
    %v1766 = vunpack.c.l.b16 %v612
    %v1767 = vunpack.c.l.b16 %v613
    %v1768 = vunpack.c.l.b16 %v614
    %v1769 = vunpack.c.l.b16 %v615
    %v1770 = vunpack.c.l.b16 %v616
    %v1771 = vunpack.c.l.b16 %v617
    %v1772 = vunpack.c.l.b16 %v618
    %v1773 = vunpack.c.l.b16 %v619
    %v1774 = vunpack.c.l.b16 %v620
    %v1775 = vunpack.c.l.b16 %v621
    %v1776 = vunpack.c.l.b16 %v622
    %v1777 = vunpack.c.l.b16 %v623
    %v1778 = vunpack.c.l.b16 %v624
    %v1779 = vunpack.c.l.b16 %v625
    %v1780 = vunpack.c.l.b16 %v626
    %v1781 = vunpack.c.l.b16 %v627
    %v1782 = vunpack.c.l.b16 %v628
    %v1783 = vunpack.c.l.b16 %v629
    %v1784 = vunpack.c.l.b16 %v630
    %v1785 = vunpack.c.l.b16 %v631
    %v1786 = vunpack.c.l.b16 %v632
    %v1787 = vunpack.c.l.b16 %v633
    %v1788 = vunpack.c.l.b16 %v634
    %v1789 = vunpack.c.l.b16 %v635
    %v1790 = vunpack.c.l.b16 %v636
    %v1791 = vunpack.c.l.b16 %v637
    %v1792 = vunpack.c.l.b16 %v638
    %v1793 = vunpack.c.l.b16 %v639
    %v1794 = vunpack.c.l.b16 %v640
    %v1795 = vunpack.c.l.b16 %v641
    %v1796 = vunpack.c.l.b16 %v642
    %v1797 = vunpack.c.l.b16 %v643
    %v1798 = vunpack.c.l.b16 %v644
    %v1799 = vunpack.c.l.b16 %v645
    %v1800 = vunpack.c.l.b16 %v646
    %v1801 = vunpack.c.l.b16 %v647
    %v1802 = vunpack.c.l.b16 %v648
    %v1803 = vunpack.c.l.b16 %v649
    %v1804 = vunpack.c.l.b16 %v650
    %v1805 = vunpack.c.l.b16 %v651
    %v1806 = vunpack.c.l.b16 %v652
    %v1807 = vunpack.c.l.b16 %v653
    %v1808 = vunpack.c.l.b16 %v654
    %v1809 = vunpack.c.l.b16 %v655
    %v1810 = vunpack.c.l.b16 %v656
    %v1811 = vunpack.c.l.b16 %v657
    %v1812 = vunpack.c.l.b16 %v658
    %v1813 = vunpack.c.l.b16 %v659
    %v1814 = vunpack.c.l.b16 %v660
    %v1815 = vunpack.c.l.b16 %v661
    %v1816 = vunpack.c.l.b16 %v662
    %v1817 = vunpack.c.l.b16 %v663
    %v1818 = vunpack.c.l.b16 %v664
    %v1819 = vunpack.c.l.b16 %v665
    %v1820 = vunpack.c.l.b16 %v666
    %v1821 = vunpack.c.l.b16 %v667
    %v1822 = vunpack.c.l.b16 %v668
    %v1823 = vunpack.c.l.b16 %v669
    %v1824 = vunpack.c.l.b16 %v670
    %v1825 = vunpack.c.l.b16 %v671
    %v1826 = vunpack.c.l.b16 %v672
    %v1827 = vunpack.c.l.b16 %v673
    %v1828 = vunpack.c.l.b16 %v674
    %v1829 = vunpack.c.l.b16 %v675
    %v1830 = vunpack.c.l.b16 %v676
    %v1831 = vunpack.c.l.b16 %v677
    %v1832 = vunpack.c.l.b16 %v678
    %v1833 = vunpack.c.l.b16 %v679
    %v1834 = vunpack.c.l.b16 %v680
    %v1835 = vunpack.c.l.b16 %v681
    %v1836 = vunpack.c.l.b16 %v682
    %v1837 = vunpack.c.l.b16 %v683
    %v1838 = vunpack.c.l.b16 %v684
    %v1839 = vunpack.c.l.b16 %v685
    %v1840 = vunpack.c.l.b16 %v686
    %v1841 = vunpack.c.l.b16 %v687
    %v1842 = vunpack.c.l.b16 %v688
    %v1843 = vunpack.c.l.b16 %v689
    %v1844 = vunpack.c.l.b16 %v690
    %v1845 = vunpack.c.l.b16 %v691
    %v1846 = vunpack.c.l.b16 %v692
    %v1847 = vunpack.c.l.b16 %v693
    %v1848 = vunpack.c.l.b16 %v694
    %v1849 = vunpack.c.l.b16 %v695
    %v1850 = vunpack.c.l.b16 %v696
    %v1851 = vunpack.c.l.b16 %v697
    %v1852 = vunpack.c.l.b16 %v698
    %v1853 = vunpack.c.l.b16 %v699
    %v1854 = vunpack.c.l.b16 %v700
    %v1855 = vunpack.c.l.b16 %v701
    %v1856 = vunpack.c.l.b16 %v702
    %v1857 = vunpack.c.l.b16 %v703
    %v1858 = vunpack.c.l.b16 %v704
    %v1859 = vunpack.c.l.b16 %v705
    %v1860 = vunpack.c.l.b16 %v706
    %v1861 = vunpack.c.l.b16 %v707
    %v1862 = vunpack.c.l.b16 %v708
    %v1863 = vunpack.c.l.b16 %v709
    %v1864 = vunpack.c.l.b16 %v710
    %v1865 = vunpack.c.l.b16 %v711
    %v1866 = vunpack.c.l.b16 %v712
    %v1867 = vunpack.c.l.b16 %v713
    %v1868 = vunpack.c.l.b16 %v714
    %v1869 = vunpack.c.l.b16 %v715
    %v1870 = vunpack.c.l.b16 %v716
    %v1871 = vunpack.c.l.b16 %v717
    %v1872 = vunpack.c.l.b16 %v718
    %v1873 = vunpack.c.l.b16 %v719
    %v1874 = vunpack.c.l.b16 %v720
    %v1875 = vunpack.c.l.b16 %v721
    %v1876 = vunpack.c.l.b16 %v722
    %v1877 = vunpack.c.l.b16 %v723
    %v1878 = vunpack.c.l.b16 %v724
    %v1879 = vunpack.c.l.b16 %v725
    %v1880 = vunpack.c.l.b16 %v726
    %v1881 = vunpack.c.l.b16 %v727
    %v1882 = vunpack.c.l.b16 %v728
    %v1883 = vunpack.c.l.b16 %v729
    %v1884 = vunpack.c.l.b16 %v730
    %v1885 = vunpack.c.l.b16 %v731
    %v1886 = vunpack.c.l.b16 %v732
    %v1887 = vunpack.c.l.b16 %v733
    %v1888 = vunpack.c.l.b16 %v734
    %v1889 = vunpack.c.l.b16 %v735
    %v1890 = vunpack.c.l.b16 %v736
    %v1891 = vunpack.c.l.b16 %v737
    %v1892 = vunpack.c.l.b16 %v738
    %v1893 = vunpack.c.l.b16 %v739
    %v1894 = vunpack.c.l.b16 %v740
    %v1895 = vunpack.c.l.b16 %v741
    %v1896 = vunpack.c.l.b16 %v742
    %v1897 = vunpack.c.l.b16 %v743
    %v1898 = vunpack.c.l.b16 %v744
    %v1899 = vunpack.c.l.b16 %v745
    %v1900 = vunpack.c.l.b16 %v746
    %v1901 = vunpack.c.l.b16 %v747
    %v1902 = vunpack.c.l.b16 %v748
    %v1903 = vunpack.c.l.b16 %v749
    %v1904 = vunpack.c.l.b16 %v750
    %v1905 = vunpack.c.l.b16 %v751
    %v1906 = vunpack.c.l.b16 %v752
    %v1907 = vunpack.c.l.b16 %v753
    %v1908 = vunpack.c.l.b16 %v754
    %v1909 = vunpack.c.l.b16 %v755
    %v1910 = vunpack.c.l.b16 %v756
    %v1911 = vunpack.c.l.b16 %v757
    %v1912 = vunpack.c.l.b16 %v758
    %v1913 = vunpack.c.l.b16 %v759
    %v1914 = vunpack.c.l.b16 %v760
    %v1915 = vunpack.c.l.b16 %v761
    %v1916 = vunpack.c.l.b16 %v762
    %v1917 = vunpack.c.l.b16 %v763
    %v1918 = vunpack.c.l.b16 %v764
    %v1919 = vunpack.c.l.b16 %v765
    %v1920 = vunpack.c.l.b16 %v766
    %v1921 = vunpack.c.l.b16 %v767
    %v1922 = vunpack.c.l.b16 %v768
    %v1923 = vunpack.c.l.b16 %v769
    %v1924 = vunpack.c.l.b16 %v770
    %v1925 = vunpack.c.l.b16 %v771
    %v1926 = vunpack.c.l.b16 %v772
    %v1927 = vunpack.c.l.b16 %v773
    %v1928 = vunpack.c.l.b16 %v774
    %v1929 = vunpack.c.l.b16 %v775
    %v1930 = vunpack.c.l.b16 %v776
    %v1931 = vunpack.c.l.b16 %v777
    %v1932 = vunpack.c.l.b16 %v778
    %v1933 = vunpack.c.l.b16 %v779
    %v1934 = vunpack.c.l.b16 %v780
    %v1935 = vunpack.c.l.b16 %v781
    %v1936 = vunpack.c.l.b16 %v782
    %v1937 = vunpack.c.l.b16 %v783
    %v1938 = vunpack.c.l.b16 %v784
    %v1939 = vunpack.c.l.b16 %v785
    %v1940 = vunpack.c.l.b16 %v786
    %v1941 = vunpack.c.l.b16 %v787
    %v1942 = vunpack.c.l.b16 %v788
    %v1943 = vunpack.c.l.b16 %v789
    %v1944 = vunpack.c.l.b16 %v790
    %v1945 = vunpack.c.l.b16 %v791
    %v1946 = vunpack.c.l.b16 %v792
    %v1947 = vunpack.c.l.b16 %v793
    %v1948 = vunpack.c.l.b16 %v794
    %v1949 = vunpack.c.l.b16 %v795
    %v1950 = vunpack.c.l.b16 %v796
    %v1951 = vunpack.c.l.b16 %v797
    %v1952 = vunpack.c.l.b16 %v798
    %v1953 = vunpack.c.l.b16 %v799
    %v1954 = vunpack.c.l.b16 %v800
    %v1955 = vunpack.c.l.b16 %v801
    %v1956 = vunpack.c.l.b16 %v802
    %v1957 = vunpack.c.l.b16 %v803
    %v1958 = vunpack.c.l.b16 %v804
    %v1959 = vunpack.c.l.b16 %v805
    %v1960 = vunpack.c.l.b16 %v806
    %v1961 = vunpack.c.l.b16 %v807
    %v1962 = vunpack.c.l.b16 %v808
    %v1963 = vunpack.c.l.b16 %v809
    %v1964 = vunpack.c.l.b16 %v810
    %v1965 = vunpack.c.l.b16 %v811
    %v1966 = vunpack.c.l.b16 %v812
    %v1967 = vunpack.c.l.b16 %v813
    %v1968 = vunpack.c.l.b16 %v814
    %v1969 = vunpack.c.l.b16 %v815
    %v1970 = vunpack.c.l.b16 %v816
    %v1971 = vunpack.c.l.b16 %v817
    %v1972 = vunpack.c.l.b16 %v818
    %v1973 = vunpack.c.l.b16 %v819
    %v1974 = vunpack.c.l.b16 %v820
    %v1975 = vunpack.c.l.b16 %v821
    %v1976 = vunpack.c.l.b16 %v822
    %v1977 = vunpack.c.l.b16 %v823
    %v1978 = vunpack.c.l.b16 %v824
    %v1979 = vunpack.c.l.b16 %v825
    %v1980 = vunpack.c.l.b16 %v826
    %v1981 = vunpack.c.l.b16 %v827
    %v1982 = vunpack.c.l.b16 %v828
    %v1983 = vunpack.c.l.b16 %v829
    %v1984 = vunpack.c.l.b16 %v830
    %v1985 = vunpack.c.l.b16 %v831
    %v1986 = vunpack.c.l.b16 %v832
    %v1987 = vunpack.c.l.b16 %v833
    %v1988 = vunpack.c.l.b16 %v834
    %v1989 = vunpack.c.l.b16 %v835
    %v1990 = vunpack.c.l.b16 %v836
    %v1991 = vunpack.c.l.b16 %v837
    %v1992 = vunpack.c.l.b16 %v838
    %v1993 = vunpack.c.l.b16 %v839
    %v1994 = vunpack.c.l.b16 %v840
    %v1995 = vunpack.c.l.b16 %v841
    %v1996 = vunpack.c.l.b16 %v842
    %v1997 = vunpack.c.l.b16 %v843
    %v1998 = vunpack.c.l.b16 %v844
    %v1999 = vunpack.c.l.b16 %v845
    %v2000 = vunpack.c.l.b16 %v846
    %v2001 = vunpack.c.l.b16 %v847
    %v2002 = vunpack.c.l.b16 %v848
    %v2003 = vunpack.c.l.b16 %v849
    %v2004 = vunpack.c.l.b16 %v850
    %v2005 = vunpack.c.l.b16 %v851
    %v2006 = vunpack.c.l.b16 %v852
    %v2007 = vunpack.c.l.b16 %v853
    %v2008 = vunpack.c.l.b16 %v854
    %v2009 = vunpack.c.l.b16 %v855
    %v2010 = vunpack.c.l.b16 %v856
    %v2011 = vunpack.c.l.b16 %v857
    %v2012 = vunpack.c.l.b16 %v858
    %v2013 = vunpack.c.l.b16 %v859
    %v2014 = vunpack.c.l.b16 %v860
    %v2015 = vunpack.c.l.b16 %v861
    %v2016 = vunpack.c.l.b16 %v862
    %v2017 = vunpack.c.l.b16 %v863
    %v2018 = vunpack.c.l.b16 %v864
    %v2019 = vunpack.c.l.b16 %v865
    %v2020 = vunpack.c.l.b16 %v866
    %v2021 = vunpack.c.l.b16 %v867
    %v2022 = vunpack.c.l.b16 %v868
    %v2023 = vunpack.c.l.b16 %v869
    %v2024 = vunpack.c.l.b16 %v870
    %v2025 = vunpack.c.l.b16 %v871
    %v2026 = vunpack.c.l.b16 %v872
    %v2027 = vunpack.c.l.b16 %v873
    %v2028 = vunpack.c.l.b16 %v874
    %v2029 = vunpack.c.l.b16 %v875
    %v2030 = vunpack.c.l.b16 %v876
    %v2031 = vunpack.c.l.b16 %v877
    %v2032 = vunpack.c.l.b16 %v878
    %v2033 = vunpack.c.l.b16 %v879
    %v2034 = vunpack.c.l.b16 %v880
    %v2035 = vunpack.c.l.b16 %v881
    %v2036 = vunpack.c.l.b16 %v882
    %v2037 = vunpack.c.l.b16 %v883
    %v2038 = vunpack.c.l.b16 %v884
    %v2039 = vunpack.c.l.b16 %v885
    %v2040 = vunpack.c.l.b16 %v886
    %v2041 = vunpack.c.l.b16 %v887
    %v2042 = vunpack.c.l.b16 %v888
    %v2043 = vunpack.c.l.b16 %v889
    %v2044 = vunpack.c.l.b16 %v890
    %v2045 = vunpack.c.l.b16 %v891
    %v2046 = vunpack.c.l.b16 %v892
    %v2047 = vunpack.c.l.b16 %v893
    %v2048 = vunpack.c.l.b16 %v894
    %v2049 = vunpack.c.l.b16 %v895
    %v2050 = vunpack.c.l.b16 %v896
    %v2051 = vunpack.c.l.b16 %v897
    %v2052 = vunpack.c.l.b16 %v898
    %v2053 = vpack.c.b16 %v1542, %v1541
    %v2054 = vpack.c.b16 %v1544, %v1543
    %v2055 = vpack.c.b16 %v1546, %v1545
    %v2056 = vpack.c.b16 %v1548, %v1547
    %v2057 = vpack.c.b16 %v1550, %v1549
    %v2058 = vpack.c.b16 %v1552, %v1551
    %v2059 = vpack.c.b16 %v1554, %v1553
    %v2060 = vpack.c.b16 %v1556, %v1555
    %v2061 = vpack.c.b16 %v1558, %v1557
    %v2062 = vpack.c.b16 %v1560, %v1559
    %v2063 = vpack.c.b16 %v1562, %v1561
    %v2064 = vpack.c.b16 %v1564, %v1563
    %v2065 = vpack.c.b16 %v1566, %v1565
    %v2066 = vpack.c.b16 %v1568, %v1567
    %v2067 = vpack.c.b16 %v1570, %v1569
    %v2068 = vpack.c.b16 %v1572, %v1571
    %v2069 = vpack.c.b16 %v1574, %v1573
    %v2070 = vpack.c.b16 %v1576, %v1575
    %v2071 = vpack.c.b16 %v1578, %v1577
    %v2072 = vpack.c.b16 %v1580, %v1579
    %v2073 = vpack.c.b16 %v1582, %v1581
    %v2074 = vpack.c.b16 %v1584, %v1583
    %v2075 = vpack.c.b16 %v1586, %v1585
    %v2076 = vpack.c.b16 %v1588, %v1587
    %v2077 = vpack.c.b16 %v1590, %v1589
    %v2078 = vpack.c.b16 %v1592, %v1591
    %v2079 = vpack.c.b16 %v1594, %v1593
    %v2080 = vpack.c.b16 %v1596, %v1595
    %v2081 = vpack.c.b16 %v1598, %v1597
    %v2082 = vpack.c.b16 %v1600, %v1599
    %v2083 = vpack.c.b16 %v1602, %v1601
    %v2084 = vpack.c.b16 %v1604, %v1603
    %v2085 = vpack.c.b16 %v1606, %v1605
    %v2086 = vpack.c.b16 %v1608, %v1607
    %v2087 = vpack.c.b16 %v1610, %v1609
    %v2088 = vpack.c.b16 %v1612, %v1611
    %v2089 = vpack.c.b16 %v1614, %v1613
    %v2090 = vpack.c.b16 %v1616, %v1615
    %v2091 = vpack.c.b16 %v1618, %v1617
    %v2092 = vpack.c.b16 %v1620, %v1619
    %v2093 = vpack.c.b16 %v1622, %v1621
    %v2094 = vpack.c.b16 %v1624, %v1623
    %v2095 = vpack.c.b16 %v1626, %v1625
    %v2096 = vpack.c.b16 %v1628, %v1627
    %v2097 = vpack.c.b16 %v1630, %v1629
    %v2098 = vpack.c.b16 %v1632, %v1631
    %v2099 = vpack.c.b16 %v1634, %v1633
    %v2100 = vpack.c.b16 %v1636, %v1635
    %v2101 = vpack.c.b16 %v1638, %v1637
    %v2102 = vpack.c.b16 %v1640, %v1639
    %v2103 = vpack.c.b16 %v1642, %v1641
    %v2104 = vpack.c.b16 %v1644, %v1643
    %v2105 = vpack.c.b16 %v1646, %v1645
    %v2106 = vpack.c.b16 %v1648, %v1647
    %v2107 = vpack.c.b16 %v1650, %v1649
    %v2108 = vpack.c.b16 %v1652, %v1651
    %v2109 = vpack.c.b16 %v1654, %v1653
    %v2110 = vpack.c.b16 %v1656, %v1655
    %v2111 = vpack.c.b16 %v1658, %v1657
    %v2112 = vpack.c.b16 %v1660, %v1659
    %v2113 = vpack.c.b16 %v1662, %v1661
    %v2114 = vpack.c.b16 %v1664, %v1663
    %v2115 = vpack.c.b16 %v1666, %v1665
    %v2116 = vpack.c.b16 %v1668, %v1667
    %v2117 = vpack.c.b16 %v1670, %v1669
    %v2118 = vpack.c.b16 %v1672, %v1671
    %v2119 = vpack.c.b16 %v1674, %v1673
    %v2120 = vpack.c.b16 %v1676, %v1675
    %v2121 = vpack.c.b16 %v1678, %v1677
    %v2122 = vpack.c.b16 %v1680, %v1679
    %v2123 = vpack.c.b16 %v1682, %v1681
    %v2124 = vpack.c.b16 %v1684, %v1683
    %v2125 = vpack.c.b16 %v1686, %v1685
    %v2126 = vpack.c.b16 %v1688, %v1687
    %v2127 = vpack.c.b16 %v1690, %v1689
    %v2128 = vpack.c.b16 %v1692, %v1691
    %v2129 = vpack.c.b16 %v1694, %v1693
    %v2130 = vpack.c.b16 %v1696, %v1695
    %v2131 = vpack.c.b16 %v1698, %v1697
    %v2132 = vpack.c.b16 %v1700, %v1699
    %v2133 = vpack.c.b16 %v1702, %v1701
    %v2134 = vpack.c.b16 %v1704, %v1703
    %v2135 = vpack.c.b16 %v1706, %v1705
    %v2136 = vpack.c.b16 %v1708, %v1707
    %v2137 = vpack.c.b16 %v1710, %v1709
    %v2138 = vpack.c.b16 %v1712, %v1711
    %v2139 = vpack.c.b16 %v1714, %v1713
    %v2140 = vpack.c.b16 %v1716, %v1715
    %v2141 = vpack.c.b16 %v1718, %v1717
    %v2142 = vpack.c.b16 %v1720, %v1719
    %v2143 = vpack.c.b16 %v1722, %v1721
    %v2144 = vpack.c.b16 %v1724, %v1723
    %v2145 = vpack.c.b16 %v1726, %v1725
    %v2146 = vpack.c.b16 %v1728, %v1727
    %v2147 = vpack.c.b16 %v1730, %v1729
    %v2148 = vpack.c.b16 %v1732, %v1731
    %v2149 = vpack.c.b16 %v1734, %v1733
    %v2150 = vpack.c.b16 %v1736, %v1735
    %v2151 = vpack.c.b16 %v1738, %v1737
    %v2152 = vpack.c.b16 %v1740, %v1739
    %v2153 = vpack.c.b16 %v1742, %v1741
    %v2154 = vpack.c.b16 %v1744, %v1743
    %v2155 = vpack.c.b16 %v1746, %v1745
    %v2156 = vpack.c.b16 %v1748, %v1747
    %v2157 = vpack.c.b16 %v1750, %v1749
    %v2158 = vpack.c.b16 %v1752, %v1751
    %v2159 = vpack.c.b16 %v1754, %v1753
    %v2160 = vpack.c.b16 %v1756, %v1755
    %v2161 = vpack.c.b16 %v1758, %v1757
    %v2162 = vpack.c.b16 %v1760, %v1759
    %v2163 = vpack.c.b16 %v1762, %v1761
    %v2164 = vpack.c.b16 %v1764, %v1763
    %v2165 = vpack.c.b16 %v1766, %v1765
    %v2166 = vpack.c.b16 %v1768, %v1767
    %v2167 = vpack.c.b16 %v1770, %v1769
    %v2168 = vpack.c.b16 %v1772, %v1771
    %v2169 = vpack.c.b16 %v1774, %v1773
    %v2170 = vpack.c.b16 %v1776, %v1775
    %v2171 = vpack.c.b16 %v1778, %v1777
    %v2172 = vpack.c.b16 %v1780, %v1779
    %v2173 = vpack.c.b16 %v1782, %v1781
    %v2174 = vpack.c.b16 %v1784, %v1783
    %v2175 = vpack.c.b16 %v1786, %v1785
    %v2176 = vpack.c.b16 %v1788, %v1787
    %v2177 = vpack.c.b16 %v1790, %v1789
    %v2178 = vpack.c.b16 %v1792, %v1791
    %v2179 = vpack.c.b16 %v1794, %v1793
    %v2180 = vpack.c.b16 %v1796, %v1795
    %v2181 = vpack.c.b16 %v1798, %v1797
    %v2182 = vpack.c.b16 %v1800, %v1799
    %v2183 = vpack.c.b16 %v1802, %v1801
    %v2184 = vpack.c.b16 %v1804, %v1803
    %v2185 = vpack.c.b16 %v1806, %v1805
    %v2186 = vpack.c.b16 %v1808, %v1807
    %v2187 = vpack.c.b16 %v1810, %v1809
    %v2188 = vpack.c.b16 %v1812, %v1811
    %v2189 = vpack.c.b16 %v1814, %v1813
    %v2190 = vpack.c.b16 %v1816, %v1815
    %v2191 = vpack.c.b16 %v1818, %v1817
    %v2192 = vpack.c.b16 %v1820, %v1819
    %v2193 = vpack.c.b16 %v1822, %v1821
    %v2194 = vpack.c.b16 %v1824, %v1823
    %v2195 = vpack.c.b16 %v1826, %v1825
    %v2196 = vpack.c.b16 %v1828, %v1827
    %v2197 = vpack.c.b16 %v1830, %v1829
    %v2198 = vpack.c.b16 %v1832, %v1831
    %v2199 = vpack.c.b16 %v1834, %v1833
    %v2200 = vpack.c.b16 %v1836, %v1835
    %v2201 = vpack.c.b16 %v1838, %v1837
    %v2202 = vpack.c.b16 %v1840, %v1839
    %v2203 = vpack.c.b16 %v1842, %v1841
    %v2204 = vpack.c.b16 %v1844, %v1843
    %v2205 = vpack.c.b16 %v1846, %v1845
    %v2206 = vpack.c.b16 %v1848, %v1847
    %v2207 = vpack.c.b16 %v1850, %v1849
    %v2208 = vpack.c.b16 %v1852, %v1851
    %v2209 = vpack.c.b16 %v1854, %v1853
    %v2210 = vpack.c.b16 %v1856, %v1855
    %v2211 = vpack.c.b16 %v1858, %v1857
    %v2212 = vpack.c.b16 %v1860, %v1859
    %v2213 = vpack.c.b16 %v1862, %v1861
    %v2214 = vpack.c.b16 %v1864, %v1863
    %v2215 = vpack.c.b16 %v1866, %v1865
    %v2216 = vpack.c.b16 %v1868, %v1867
    %v2217 = vpack.c.b16 %v1870, %v1869
    %v2218 = vpack.c.b16 %v1872, %v1871
    %v2219 = vpack.c.b16 %v1874, %v1873
    %v2220 = vpack.c.b16 %v1876, %v1875
    %v2221 = vpack.c.b16 %v1878, %v1877
    %v2222 = vpack.c.b16 %v1880, %v1879
    %v2223 = vpack.c.b16 %v1882, %v1881
    %v2224 = vpack.c.b16 %v1884, %v1883
    %v2225 = vpack.c.b16 %v1886, %v1885
    %v2226 = vpack.c.b16 %v1888, %v1887
    %v2227 = vpack.c.b16 %v1890, %v1889
    %v2228 = vpack.c.b16 %v1892, %v1891
    %v2229 = vpack.c.b16 %v1894, %v1893
    %v2230 = vpack.c.b16 %v1896, %v1895
    %v2231 = vpack.c.b16 %v1898, %v1897
    %v2232 = vpack.c.b16 %v1900, %v1899
    %v2233 = vpack.c.b16 %v1902, %v1901
    %v2234 = vpack.c.b16 %v1904, %v1903
    %v2235 = vpack.c.b16 %v1906, %v1905
    %v2236 = vpack.c.b16 %v1908, %v1907
    %v2237 = vpack.c.b16 %v1910, %v1909
    %v2238 = vpack.c.b16 %v1912, %v1911
    %v2239 = vpack.c.b16 %v1914, %v1913
    %v2240 = vpack.c.b16 %v1916, %v1915
    %v2241 = vpack.c.b16 %v1918, %v1917
    %v2242 = vpack.c.b16 %v1920, %v1919
    %v2243 = vpack.c.b16 %v1922, %v1921
    %v2244 = vpack.c.b16 %v1924, %v1923
    %v2245 = vpack.c.b16 %v1926, %v1925
    %v2246 = vpack.c.b16 %v1928, %v1927
    %v2247 = vpack.c.b16 %v1930, %v1929
    %v2248 = vpack.c.b16 %v1932, %v1931
    %v2249 = vpack.c.b16 %v1934, %v1933
    %v2250 = vpack.c.b16 %v1936, %v1935
    %v2251 = vpack.c.b16 %v1938, %v1937
    %v2252 = vpack.c.b16 %v1940, %v1939
    %v2253 = vpack.c.b16 %v1942, %v1941
    %v2254 = vpack.c.b16 %v1944, %v1943
    %v2255 = vpack.c.b16 %v1946, %v1945
    %v2256 = vpack.c.b16 %v1948, %v1947
    %v2257 = vpack.c.b16 %v1950, %v1949
    %v2258 = vpack.c.b16 %v1952, %v1951
    %v2259 = vpack.c.b16 %v1954, %v1953
    %v2260 = vpack.c.b16 %v1956, %v1955
    %v2261 = vpack.c.b16 %v1958, %v1957
    %v2262 = vpack.c.b16 %v1960, %v1959
    %v2263 = vpack.c.b16 %v1962, %v1961
    %v2264 = vpack.c.b16 %v1964, %v1963
    %v2265 = vpack.c.b16 %v1966, %v1965
    %v2266 = vpack.c.b16 %v1968, %v1967
    %v2267 = vpack.c.b16 %v1970, %v1969
    %v2268 = vpack.c.b16 %v1972, %v1971
    %v2269 = vpack.c.b16 %v1974, %v1973
    %v2270 = vpack.c.b16 %v1976, %v1975
    %v2271 = vpack.c.b16 %v1978, %v1977
    %v2272 = vpack.c.b16 %v1980, %v1979
    %v2273 = vpack.c.b16 %v1982, %v1981
    %v2274 = vpack.c.b16 %v1984, %v1983
    %v2275 = vpack.c.b16 %v1986, %v1985
    %v2276 = vpack.c.b16 %v1988, %v1987
    %v2277 = vpack.c.b16 %v1990, %v1989
    %v2278 = vpack.c.b16 %v1992, %v1991
    %v2279 = vpack.c.b16 %v1994, %v1993
    %v2280 = vpack.c.b16 %v1996, %v1995
    %v2281 = vpack.c.b16 %v1998, %v1997
    %v2282 = vpack.c.b16 %v2000, %v1999
    %v2283 = vpack.c.b16 %v2002, %v2001
    %v2284 = vpack.c.b16 %v2004, %v2003
    %v2285 = vpack.c.b16 %v2006, %v2005
    %v2286 = vpack.c.b16 %v2008, %v2007
    %v2287 = vpack.c.b16 %v2010, %v2009
    %v2288 = vpack.c.b16 %v2012, %v2011
    %v2289 = vpack.c.b16 %v2014, %v2013
    %v2290 = vpack.c.b16 %v2016, %v2015
    %v2291 = vpack.c.b16 %v2018, %v2017
    %v2292 = vpack.c.b16 %v2020, %v2019
    %v2293 = vpack.c.b16 %v2022, %v2021
    %v2294 = vpack.c.b16 %v2024, %v2023
    %v2295 = vpack.c.b16 %v2026, %v2025
    %v2296 = vpack.c.b16 %v2028, %v2027
    %v2297 = vpack.c.b16 %v2030, %v2029
    %v2298 = vpack.c.b16 %v2032, %v2031
    %v2299 = vpack.c.b16 %v2034, %v2033
    %v2300 = vpack.c.b16 %v2036, %v2035
    %v2301 = vpack.c.b16 %v2038, %v2037
    %v2302 = vpack.c.b16 %v2040, %v2039
    %v2303 = vpack.c.b16 %v2042, %v2041
    %v2304 = vpack.c.b16 %v2044, %v2043
    %v2305 = vpack.c.b16 %v2046, %v2045
    %v2306 = vpack.c.b16 %v2048, %v2047
    %v2307 = vpack.c.b16 %v2050, %v2049
    %v2308 = vpack.c.b16 %v2052, %v2051
    %2565 = vmatpush.bf16.msra.mxu0 %v2060
    %2566 = vmatpush.bf16.msra.mxu0 %v2059
    %2567 = vmatpush.bf16.msra.mxu0 %v2058
    %2568 = vmatpush.bf16.msra.mxu0 %v2057
    %2569 = vmatpush.bf16.msra.mxu0 %v2056
    %2570 = vmatpush.bf16.msra.mxu0 %v2055
    %2571 = vmatpush.bf16.msra.mxu0 %v2054
    %2572 = vmatpush.bf16.msra.mxu0 %v2053
    %2573 = vmatmul.bf16.gmra.mxu0 %v965
    %v2574 = vpop.f32.mrf.mxu0
    %v2575 = vadd.f32 %v916, %v2574
    %v2576 = vpop.f32.mrf.mxu0
    %2577 = vdwg.mxu0
    %2578 = vmatpush.bf16.msra.mxu0 %v2068
    %2579 = vmatpush.bf16.msra.mxu0 %v2067
    %2580 = vmatpush.bf16.msra.mxu0 %v2066
    %2581 = vmatpush.bf16.msra.mxu0 %v2065
    %2582 = vmatpush.bf16.msra.mxu0 %v2064
    %2583 = vmatpush.bf16.msra.mxu0 %v2063
    %2584 = vmatpush.bf16.msra.mxu0 %v2062
    %2585 = vmatpush.bf16.msra.mxu0 %v2061
    %2586 = vmatmul.bf16.gmra.mxu0 %v966
    %v2587 = vpop.f32.mrf.mxu0
    %v2588 = vadd.f32 %v2575, %v2587
    %v2589 = vpop.f32.mrf.mxu0
    %2590 = vdwg.mxu0
    %2591 = vmatpush.bf16.msra.mxu0 %v2076
    %2592 = vmatpush.bf16.msra.mxu0 %v2075
    %2593 = vmatpush.bf16.msra.mxu0 %v2074
    %2594 = vmatpush.bf16.msra.mxu0 %v2073
    %2595 = vmatpush.bf16.msra.mxu0 %v2072
    %2596 = vmatpush.bf16.msra.mxu0 %v2071
    %2597 = vmatpush.bf16.msra.mxu0 %v2070
    %2598 = vmatpush.bf16.msra.mxu0 %v2069
    %2599 = vmatmul.bf16.gmra.mxu0 %v967
    %v2600 = vpop.f32.mrf.mxu0
    %v2601 = vadd.f32 %v2588, %v2600
    %v2602 = vpop.f32.mrf.mxu0
    %2603 = vdwg.mxu0
    %2604 = vmatpush.bf16.msra.mxu0 %v2084
    %2605 = vmatpush.bf16.msra.mxu0 %v2083
    %2606 = vmatpush.bf16.msra.mxu0 %v2082
    %2607 = vmatpush.bf16.msra.mxu0 %v2081
    %2608 = vmatpush.bf16.msra.mxu0 %v2080
    %2609 = vmatpush.bf16.msra.mxu0 %v2079
    %2610 = vmatpush.bf16.msra.mxu0 %v2078
    %2611 = vmatpush.bf16.msra.mxu0 %v2077
    %2612 = vmatmul.bf16.gmra.mxu0 %v968
    %v2613 = vpop.f32.mrf.mxu0
    %v2614 = vadd.f32 %v2601, %v2613
    %v2615 = vpop.f32.mrf.mxu0
    %2616 = vdwg.mxu0
    %2617 = vmatpush.bf16.msra.mxu0 %v2092
    %2618 = vmatpush.bf16.msra.mxu0 %v2091
    %2619 = vmatpush.bf16.msra.mxu0 %v2090
    %2620 = vmatpush.bf16.msra.mxu0 %v2089
    %2621 = vmatpush.bf16.msra.mxu0 %v2088
    %2622 = vmatpush.bf16.msra.mxu0 %v2087
    %2623 = vmatpush.bf16.msra.mxu0 %v2086
    %2624 = vmatpush.bf16.msra.mxu0 %v2085
    %2625 = vmatmul.bf16.gmra.mxu0 %v969
    %v2626 = vpop.f32.mrf.mxu0
    %v2627 = vadd.f32 %v2614, %v2626
    %v2628 = vpop.f32.mrf.mxu0
    %2629 = vdwg.mxu0
    %2630 = vmatpush.bf16.msra.mxu0 %v2100
    %2631 = vmatpush.bf16.msra.mxu0 %v2099
    %2632 = vmatpush.bf16.msra.mxu0 %v2098
    %2633 = vmatpush.bf16.msra.mxu0 %v2097
    %2634 = vmatpush.bf16.msra.mxu0 %v2096
    %2635 = vmatpush.bf16.msra.mxu0 %v2095
    %2636 = vmatpush.bf16.msra.mxu0 %v2094
    %2637 = vmatpush.bf16.msra.mxu0 %v2093
    %2638 = vmatmul.bf16.gmra.mxu0 %v970
    %v2639 = vpop.f32.mrf.mxu0
    %v2640 = vadd.f32 %v2627, %v2639
    %v2641 = vpop.f32.mrf.mxu0
    %2642 = vdwg.mxu0
    %2643 = vmatpush.bf16.msra.mxu0 %v2108
    %2644 = vmatpush.bf16.msra.mxu0 %v2107
    %2645 = vmatpush.bf16.msra.mxu0 %v2106
    %2646 = vmatpush.bf16.msra.mxu0 %v2105
    %2647 = vmatpush.bf16.msra.mxu0 %v2104
    %2648 = vmatpush.bf16.msra.mxu0 %v2103
    %2649 = vmatpush.bf16.msra.mxu0 %v2102
    %2650 = vmatpush.bf16.msra.mxu0 %v2101
    %2651 = vmatmul.bf16.gmra.mxu0 %v971
    %v2652 = vpop.f32.mrf.mxu0
    %v2653 = vadd.f32 %v2640, %v2652
    %v2654 = vpop.f32.mrf.mxu0
    %2655 = vdwg.mxu0
    %2656 = vmatpush.bf16.msra.mxu0 %v2116
    %2657 = vmatpush.bf16.msra.mxu0 %v2115
    %2658 = vmatpush.bf16.msra.mxu0 %v2114
    %2659 = vmatpush.bf16.msra.mxu0 %v2113
    %2660 = vmatpush.bf16.msra.mxu0 %v2112
    %2661 = vmatpush.bf16.msra.mxu0 %v2111
    %2662 = vmatpush.bf16.msra.mxu0 %v2110
    %2663 = vmatpush.bf16.msra.mxu0 %v2109
    %2664 = vmatmul.bf16.gmra.mxu0 %v972
    %v2665 = vpop.f32.mrf.mxu0
    %v2666 = vadd.f32 %v2653, %v2665
    %v2667 = vpop.f32.mrf.mxu0
    %2668 = vdwg.mxu0
    %2669 = vmatpush.bf16.msra.mxu0 %v2124
    %2670 = vmatpush.bf16.msra.mxu0 %v2123
    %2671 = vmatpush.bf16.msra.mxu0 %v2122
    %2672 = vmatpush.bf16.msra.mxu0 %v2121
    %2673 = vmatpush.bf16.msra.mxu0 %v2120
    %2674 = vmatpush.bf16.msra.mxu0 %v2119
    %2675 = vmatpush.bf16.msra.mxu0 %v2118
    %2676 = vmatpush.bf16.msra.mxu0 %v2117
    %2677 = vmatmul.bf16.gmra.mxu0 %v973
    %v2678 = vpop.f32.mrf.mxu0
    %v2679 = vadd.f32 %v2666, %v2678
    %v2680 = vpop.f32.mrf.mxu0
    %2681 = vdwg.mxu0
    %2682 = vmatpush.bf16.msra.mxu0 %v2132
    %2683 = vmatpush.bf16.msra.mxu0 %v2131
    %2684 = vmatpush.bf16.msra.mxu0 %v2130
    %2685 = vmatpush.bf16.msra.mxu0 %v2129
    %2686 = vmatpush.bf16.msra.mxu0 %v2128
    %2687 = vmatpush.bf16.msra.mxu0 %v2127
    %2688 = vmatpush.bf16.msra.mxu0 %v2126
    %2689 = vmatpush.bf16.msra.mxu0 %v2125
    %2690 = vmatmul.bf16.gmra.mxu0 %v974
    %v2691 = vpop.f32.mrf.mxu0
    %v2692 = vadd.f32 %v2679, %v2691
    %v2693 = vpop.f32.mrf.mxu0
    %2694 = vdwg.mxu0
    %2695 = vmatpush.bf16.msra.mxu0 %v2140
    %2696 = vmatpush.bf16.msra.mxu0 %v2139
    %2697 = vmatpush.bf16.msra.mxu0 %v2138
    %2698 = vmatpush.bf16.msra.mxu0 %v2137
    %2699 = vmatpush.bf16.msra.mxu0 %v2136
    %2700 = vmatpush.bf16.msra.mxu0 %v2135
    %2701 = vmatpush.bf16.msra.mxu0 %v2134
    %2702 = vmatpush.bf16.msra.mxu0 %v2133
    %2703 = vmatmul.bf16.gmra.mxu0 %v975
    %v2704 = vpop.f32.mrf.mxu0
    %v2705 = vadd.f32 %v2692, %v2704
    %v2706 = vpop.f32.mrf.mxu0
    %2707 = vdwg.mxu0
    %2708 = vmatpush.bf16.msra.mxu0 %v2148
    %2709 = vmatpush.bf16.msra.mxu0 %v2147
    %2710 = vmatpush.bf16.msra.mxu0 %v2146
    %2711 = vmatpush.bf16.msra.mxu0 %v2145
    %2712 = vmatpush.bf16.msra.mxu0 %v2144
    %2713 = vmatpush.bf16.msra.mxu0 %v2143
    %2714 = vmatpush.bf16.msra.mxu0 %v2142
    %2715 = vmatpush.bf16.msra.mxu0 %v2141
    %2716 = vmatmul.bf16.gmra.mxu0 %v976
    %v2717 = vpop.f32.mrf.mxu0
    %v2718 = vadd.f32 %v2705, %v2717
    %v2719 = vpop.f32.mrf.mxu0
    %2720 = vdwg.mxu0
    %2721 = vmatpush.bf16.msra.mxu0 %v2156
    %2722 = vmatpush.bf16.msra.mxu0 %v2155
    %2723 = vmatpush.bf16.msra.mxu0 %v2154
    %2724 = vmatpush.bf16.msra.mxu0 %v2153
    %2725 = vmatpush.bf16.msra.mxu0 %v2152
    %2726 = vmatpush.bf16.msra.mxu0 %v2151
    %2727 = vmatpush.bf16.msra.mxu0 %v2150
    %2728 = vmatpush.bf16.msra.mxu0 %v2149
    %2729 = vmatmul.bf16.gmra.mxu0 %v977
    %v2730 = vpop.f32.mrf.mxu0
    %v2731 = vadd.f32 %v2718, %v2730
    %v2732 = vpop.f32.mrf.mxu0
    %2733 = vdwg.mxu0
    %2734 = vmatpush.bf16.msra.mxu0 %v2164
    %2735 = vmatpush.bf16.msra.mxu0 %v2163
    %2736 = vmatpush.bf16.msra.mxu0 %v2162
    %2737 = vmatpush.bf16.msra.mxu0 %v2161
    %2738 = vmatpush.bf16.msra.mxu0 %v2160
    %2739 = vmatpush.bf16.msra.mxu0 %v2159
    %2740 = vmatpush.bf16.msra.mxu0 %v2158
    %2741 = vmatpush.bf16.msra.mxu0 %v2157
    %2742 = vmatmul.bf16.gmra.mxu0 %v978
    %v2743 = vpop.f32.mrf.mxu0
    %v2744 = vadd.f32 %v2731, %v2743
    %v2745 = vpop.f32.mrf.mxu0
    %2746 = vdwg.mxu0
    %2747 = vmatpush.bf16.msra.mxu0 %v2172
    %2748 = vmatpush.bf16.msra.mxu0 %v2171
    %2749 = vmatpush.bf16.msra.mxu0 %v2170
    %2750 = vmatpush.bf16.msra.mxu0 %v2169
    %2751 = vmatpush.bf16.msra.mxu0 %v2168
    %2752 = vmatpush.bf16.msra.mxu0 %v2167
    %2753 = vmatpush.bf16.msra.mxu0 %v2166
    %2754 = vmatpush.bf16.msra.mxu0 %v2165
    %2755 = vmatmul.bf16.gmra.mxu0 %v979
    %v2756 = vpop.f32.mrf.mxu0
    %v2757 = vadd.f32 %v2744, %v2756
    %v2758 = vpop.f32.mrf.mxu0
    %2759 = vdwg.mxu0
    %2760 = vmatpush.bf16.msra.mxu0 %v2180
    %2761 = vmatpush.bf16.msra.mxu0 %v2179
    %2762 = vmatpush.bf16.msra.mxu0 %v2178
    %2763 = vmatpush.bf16.msra.mxu0 %v2177
    %2764 = vmatpush.bf16.msra.mxu0 %v2176
    %2765 = vmatpush.bf16.msra.mxu0 %v2175
    %2766 = vmatpush.bf16.msra.mxu0 %v2174
    %2767 = vmatpush.bf16.msra.mxu0 %v2173
    %2768 = vmatmul.bf16.gmra.mxu0 %v980
    %v2769 = vpop.f32.mrf.mxu0
    %v2770 = vadd.f32 %v2757, %v2769
    %v2771 = vpop.f32.mrf.mxu0
    %2772 = vdwg.mxu0
    %2773 = vmatpush.bf16.msra.mxu0 %v2188
    %2774 = vmatpush.bf16.msra.mxu0 %v2187
    %2775 = vmatpush.bf16.msra.mxu0 %v2186
    %2776 = vmatpush.bf16.msra.mxu0 %v2185
    %2777 = vmatpush.bf16.msra.mxu0 %v2184
    %2778 = vmatpush.bf16.msra.mxu0 %v2183
    %2779 = vmatpush.bf16.msra.mxu0 %v2182
    %2780 = vmatpush.bf16.msra.mxu0 %v2181
    %2781 = vmatmul.bf16.gmra.mxu0 %v981
    %v2782 = vpop.f32.mrf.mxu0
    %v2783 = vadd.f32 %v2770, %v2782
    %v2784 = vpop.f32.mrf.mxu0
    %2785 = vdwg.mxu0
    %2786 = vmatpush.bf16.msra.mxu0 %v2196
    %2787 = vmatpush.bf16.msra.mxu0 %v2195
    %2788 = vmatpush.bf16.msra.mxu0 %v2194
    %2789 = vmatpush.bf16.msra.mxu0 %v2193
    %2790 = vmatpush.bf16.msra.mxu0 %v2192
    %2791 = vmatpush.bf16.msra.mxu0 %v2191
    %2792 = vmatpush.bf16.msra.mxu0 %v2190
    %2793 = vmatpush.bf16.msra.mxu0 %v2189
    %2794 = vmatmul.bf16.gmra.mxu0 %v982
    %v2795 = vpop.f32.mrf.mxu0
    %v2796 = vadd.f32 %v2783, %v2795
    %v2797 = vpop.f32.mrf.mxu0
    %2798 = vdwg.mxu0
    %2799 = vmatpush.bf16.msra.mxu0 %v2204
    %2800 = vmatpush.bf16.msra.mxu0 %v2203
    %2801 = vmatpush.bf16.msra.mxu0 %v2202
    %2802 = vmatpush.bf16.msra.mxu0 %v2201
    %2803 = vmatpush.bf16.msra.mxu0 %v2200
    %2804 = vmatpush.bf16.msra.mxu0 %v2199
    %2805 = vmatpush.bf16.msra.mxu0 %v2198
    %2806 = vmatpush.bf16.msra.mxu0 %v2197
    %2807 = vmatmul.bf16.gmra.mxu0 %v983
    %v2808 = vpop.f32.mrf.mxu0
    %v2809 = vadd.f32 %v2796, %v2808
    %v2810 = vpop.f32.mrf.mxu0
    %2811 = vdwg.mxu0
    %2812 = vmatpush.bf16.msra.mxu0 %v2212
    %2813 = vmatpush.bf16.msra.mxu0 %v2211
    %2814 = vmatpush.bf16.msra.mxu0 %v2210
    %2815 = vmatpush.bf16.msra.mxu0 %v2209
    %2816 = vmatpush.bf16.msra.mxu0 %v2208
    %2817 = vmatpush.bf16.msra.mxu0 %v2207
    %2818 = vmatpush.bf16.msra.mxu0 %v2206
    %2819 = vmatpush.bf16.msra.mxu0 %v2205
    %2820 = vmatmul.bf16.gmra.mxu0 %v984
    %v2821 = vpop.f32.mrf.mxu0
    %v2822 = vadd.f32 %v2809, %v2821
    %v2823 = vpop.f32.mrf.mxu0
    %2824 = vdwg.mxu0
    %2825 = vmatpush.bf16.msra.mxu0 %v2220
    %2826 = vmatpush.bf16.msra.mxu0 %v2219
    %2827 = vmatpush.bf16.msra.mxu0 %v2218
    %2828 = vmatpush.bf16.msra.mxu0 %v2217
    %2829 = vmatpush.bf16.msra.mxu0 %v2216
    %2830 = vmatpush.bf16.msra.mxu0 %v2215
    %2831 = vmatpush.bf16.msra.mxu0 %v2214
    %2832 = vmatpush.bf16.msra.mxu0 %v2213
    %2833 = vmatmul.bf16.gmra.mxu0 %v985
    %v2834 = vpop.f32.mrf.mxu0
    %v2835 = vadd.f32 %v2822, %v2834
    %v2836 = vpop.f32.mrf.mxu0
    %2837 = vdwg.mxu0
    %2838 = vmatpush.bf16.msra.mxu0 %v2228
    %2839 = vmatpush.bf16.msra.mxu0 %v2227
    %2840 = vmatpush.bf16.msra.mxu0 %v2226
    %2841 = vmatpush.bf16.msra.mxu0 %v2225
    %2842 = vmatpush.bf16.msra.mxu0 %v2224
    %2843 = vmatpush.bf16.msra.mxu0 %v2223
    %2844 = vmatpush.bf16.msra.mxu0 %v2222
    %2845 = vmatpush.bf16.msra.mxu0 %v2221
    %2846 = vmatmul.bf16.gmra.mxu0 %v986
    %v2847 = vpop.f32.mrf.mxu0
    %v2848 = vadd.f32 %v2835, %v2847
    %v2849 = vpop.f32.mrf.mxu0
    %2850 = vdwg.mxu0
    %2851 = vmatpush.bf16.msra.mxu0 %v2236
    %2852 = vmatpush.bf16.msra.mxu0 %v2235
    %2853 = vmatpush.bf16.msra.mxu0 %v2234
    %2854 = vmatpush.bf16.msra.mxu0 %v2233
    %2855 = vmatpush.bf16.msra.mxu0 %v2232
    %2856 = vmatpush.bf16.msra.mxu0 %v2231
    %2857 = vmatpush.bf16.msra.mxu0 %v2230
    %2858 = vmatpush.bf16.msra.mxu0 %v2229
    %2859 = vmatmul.bf16.gmra.mxu0 %v987
    %v2860 = vpop.f32.mrf.mxu0
    %v2861 = vadd.f32 %v2848, %v2860
    %v2862 = vpop.f32.mrf.mxu0
    %2863 = vdwg.mxu0
    %2864 = vmatpush.bf16.msra.mxu0 %v2244
    %2865 = vmatpush.bf16.msra.mxu0 %v2243
    %2866 = vmatpush.bf16.msra.mxu0 %v2242
    %2867 = vmatpush.bf16.msra.mxu0 %v2241
    %2868 = vmatpush.bf16.msra.mxu0 %v2240
    %2869 = vmatpush.bf16.msra.mxu0 %v2239
    %2870 = vmatpush.bf16.msra.mxu0 %v2238
    %2871 = vmatpush.bf16.msra.mxu0 %v2237
    %2872 = vmatmul.bf16.gmra.mxu0 %v988
    %v2873 = vpop.f32.mrf.mxu0
    %v2874 = vadd.f32 %v2861, %v2873
    %v2875 = vpop.f32.mrf.mxu0
    %2876 = vdwg.mxu0
    %2877 = vmatpush.bf16.msra.mxu0 %v2252
    %2878 = vmatpush.bf16.msra.mxu0 %v2251
    %2879 = vmatpush.bf16.msra.mxu0 %v2250
    %2880 = vmatpush.bf16.msra.mxu0 %v2249
    %2881 = vmatpush.bf16.msra.mxu0 %v2248
    %2882 = vmatpush.bf16.msra.mxu0 %v2247
    %2883 = vmatpush.bf16.msra.mxu0 %v2246
    %2884 = vmatpush.bf16.msra.mxu0 %v2245
    %2885 = vmatmul.bf16.gmra.mxu0 %v989
    %v2886 = vpop.f32.mrf.mxu0
    %v2887 = vadd.f32 %v2874, %v2886
    %v2888 = vpop.f32.mrf.mxu0
    %2889 = vdwg.mxu0
    %2890 = vmatpush.bf16.msra.mxu0 %v2260
    %2891 = vmatpush.bf16.msra.mxu0 %v2259
    %2892 = vmatpush.bf16.msra.mxu0 %v2258
    %2893 = vmatpush.bf16.msra.mxu0 %v2257
    %2894 = vmatpush.bf16.msra.mxu0 %v2256
    %2895 = vmatpush.bf16.msra.mxu0 %v2255
    %2896 = vmatpush.bf16.msra.mxu0 %v2254
    %2897 = vmatpush.bf16.msra.mxu0 %v2253
    %2898 = vmatmul.bf16.gmra.mxu0 %v990
    %v2899 = vpop.f32.mrf.mxu0
    %v2900 = vadd.f32 %v2887, %v2899
    %v2901 = vpop.f32.mrf.mxu0
    %2902 = vdwg.mxu0
    %2903 = vmatpush.bf16.msra.mxu0 %v2268
    %2904 = vmatpush.bf16.msra.mxu0 %v2267
    %2905 = vmatpush.bf16.msra.mxu0 %v2266
    %2906 = vmatpush.bf16.msra.mxu0 %v2265
    %2907 = vmatpush.bf16.msra.mxu0 %v2264
    %2908 = vmatpush.bf16.msra.mxu0 %v2263
    %2909 = vmatpush.bf16.msra.mxu0 %v2262
    %2910 = vmatpush.bf16.msra.mxu0 %v2261
    %2911 = vmatmul.bf16.gmra.mxu0 %v991
    %v2912 = vpop.f32.mrf.mxu0
    %v2913 = vadd.f32 %v2900, %v2912
    %v2914 = vpop.f32.mrf.mxu0
    %2915 = vdwg.mxu0
    %2916 = vmatpush.bf16.msra.mxu0 %v2276
    %2917 = vmatpush.bf16.msra.mxu0 %v2275
    %2918 = vmatpush.bf16.msra.mxu0 %v2274
    %2919 = vmatpush.bf16.msra.mxu0 %v2273
    %2920 = vmatpush.bf16.msra.mxu0 %v2272
    %2921 = vmatpush.bf16.msra.mxu0 %v2271
    %2922 = vmatpush.bf16.msra.mxu0 %v2270
    %2923 = vmatpush.bf16.msra.mxu0 %v2269
    %2924 = vmatmul.bf16.gmra.mxu0 %v992
    %v2925 = vpop.f32.mrf.mxu0
    %v2926 = vadd.f32 %v2913, %v2925
    %v2927 = vpop.f32.mrf.mxu0
    %2928 = vdwg.mxu0
    %2929 = vmatpush.bf16.msra.mxu0 %v2284
    %2930 = vmatpush.bf16.msra.mxu0 %v2283
    %2931 = vmatpush.bf16.msra.mxu0 %v2282
    %2932 = vmatpush.bf16.msra.mxu0 %v2281
    %2933 = vmatpush.bf16.msra.mxu0 %v2280
    %2934 = vmatpush.bf16.msra.mxu0 %v2279
    %2935 = vmatpush.bf16.msra.mxu0 %v2278
    %2936 = vmatpush.bf16.msra.mxu0 %v2277
    %2937 = vmatmul.bf16.gmra.mxu0 %v993
    %v2938 = vpop.f32.mrf.mxu0
    %v2939 = vadd.f32 %v2926, %v2938
    %v2940 = vpop.f32.mrf.mxu0
    %2941 = vdwg.mxu0
    %2942 = vmatpush.bf16.msra.mxu0 %v2292
    %2943 = vmatpush.bf16.msra.mxu0 %v2291
    %2944 = vmatpush.bf16.msra.mxu0 %v2290
    %2945 = vmatpush.bf16.msra.mxu0 %v2289
    %2946 = vmatpush.bf16.msra.mxu0 %v2288
    %2947 = vmatpush.bf16.msra.mxu0 %v2287
    %2948 = vmatpush.bf16.msra.mxu0 %v2286
    %2949 = vmatpush.bf16.msra.mxu0 %v2285
    %2950 = vmatmul.bf16.gmra.mxu0 %v994
    %v2951 = vpop.f32.mrf.mxu0
    %v2952 = vadd.f32 %v2939, %v2951
    %v2953 = vpop.f32.mrf.mxu0
    %2954 = vdwg.mxu0
    %2955 = vmatpush.bf16.msra.mxu0 %v2300
    %2956 = vmatpush.bf16.msra.mxu0 %v2299
    %2957 = vmatpush.bf16.msra.mxu0 %v2298
    %2958 = vmatpush.bf16.msra.mxu0 %v2297
    %2959 = vmatpush.bf16.msra.mxu0 %v2296
    %2960 = vmatpush.bf16.msra.mxu0 %v2295
    %2961 = vmatpush.bf16.msra.mxu0 %v2294
    %2962 = vmatpush.bf16.msra.mxu0 %v2293
    %2963 = vmatmul.bf16.gmra.mxu0 %v995
    %v2964 = vpop.f32.mrf.mxu0
    %v2965 = vadd.f32 %v2952, %v2964
    %v2966 = vpop.f32.mrf.mxu0
    %2967 = vdwg.mxu0
    %2968 = vmatpush.bf16.msra.mxu0 %v2308
    %2969 = vmatpush.bf16.msra.mxu0 %v2307
    %2970 = vmatpush.bf16.msra.mxu0 %v2306
    %2971 = vmatpush.bf16.msra.mxu0 %v2305
    %2972 = vmatpush.bf16.msra.mxu0 %v2304
    %2973 = vmatpush.bf16.msra.mxu0 %v2303
    %2974 = vmatpush.bf16.msra.mxu0 %v2302
    %2975 = vmatpush.bf16.msra.mxu0 %v2301
    %2976 = vmatmul.bf16.gmra.mxu0 %v996
    %v2977 = vpop.f32.mrf.mxu0
    %v2978 = vadd.f32 %v2965, %v2977
    %v2979 = vpop.f32.mrf.mxu0
    %2980 = vdwg.mxu0
    %v2981 = vld [vmem:[#allocation5] sm:$0x1]
    %v2983 = vperm.slane %v2981, 0
    %v2985 = vadd.f32 %v2978, %v2983
    %v2986 = vpack.c.bf16 %v370, %v370
    %v2987 = vld [vmem:[%s21] sm:$0xf]
    %v2988 = vld [vmem:[%s21 + $0x4] sm:$0xf]
    %v2989 = vld [vmem:[%s21 + $0x8] sm:$0xf]
    %v2990 = vld [vmem:[%s21 + $0xc] sm:$0xf]
    %v2991 = vld [vmem:[#allocation7] sm:$0x1]
    %v2993 = vperm.slane %v2991, 0
    %v2999 = vunpack.c.l.b16 %v2987
    %v3000 = vunpack.c.l.b16 %v2988
    %v3001 = vunpack.c.l.b16 %v2989
    %v3002 = vunpack.c.l.b16 %v2990
    %v3003 = vpack.c.b16 %v3000, %v2999
    %v3004 = vpack.c.b16 %v3002, %v3001
    %vm3007 = vcmask 261120
    %v3009 = vsel %vm3007, %v2986, 0
    %3011 = vmatpush.bf16.msra.mxu0 0
    %3012 = vmatpush.bf16.msra.mxu0 0
    %3013 = vmatpush.bf16.msra.mxu0 0
    %3014 = vmatpush.bf16.msra.mxu0 0
    %3015 = vmatpush.bf16.msra.mxu0 0
    %3016 = vmatpush.bf16.msra.mxu0 0
    %3017 = vmatpush.bf16.msra.mxu0 %v3004
    %3018 = vmatpush.bf16.msra.mxu0 %v3003
    %3019 = vmatmul.bf16.gmra.mxu0 %v3009
    %v3020 = vpop.f32.mrf.mxu0
    %v3021 = vadd.f32 %v2993, %v3020
    %v3022 = vpop.f32.mrf.mxu0
    %3023 = vdwg.mxu0
    %v3024 = vpack.c.bf16 %v3021, %v3021
    %v3025 = vpack.c.bf16 %v2985, %v2985
    %v3026 = vld [vmem:[%s25] sm:$0xf]
    %v3027 = vld [vmem:[%s25 + $0x4] sm:$0xf]
    %v3028 = vld [vmem:[%s25 + $0x8] sm:$0xf]
    %v3029 = vld [vmem:[%s25 + $0xc] sm:$0xf]
    %v3030 = vld [vmem:[%s27] sm:$0x1]
    %v3032 = vperm.slane %v3030, 0
    %v3038 = vunpack.c.l.b16 %v3026
    %v3039 = vunpack.c.l.b16 %v3027
    %v3040 = vunpack.c.l.b16 %v3028
    %v3041 = vunpack.c.l.b16 %v3029
    %v3042 = vpack.c.b16 %v3039, %v3038
    %v3043 = vpack.c.b16 %v3041, %v3040
    %v3047 = vsel %vm3007, %v3025, 0
    %3049 = vmatpush.bf16.msra.mxu0 0
    %3050 = vmatpush.bf16.msra.mxu0 0
    %3051 = vmatpush.bf16.msra.mxu0 0
    %3052 = vmatpush.bf16.msra.mxu0 0
    %3053 = vmatpush.bf16.msra.mxu0 0
    %3054 = vmatpush.bf16.msra.mxu0 0
    %3055 = vmatpush.bf16.msra.mxu0 %v3043
    %3056 = vmatpush.bf16.msra.mxu0 %v3042
    %3057 = vmatmul.bf16.gmra.mxu0 %v3047
    %v3058 = vpop.f32.mrf.mxu0
    %v3059 = vadd.f32 %v3032, %v3058
    %v3060 = vpop.f32.mrf.mxu0
    %3061 = vdwg.mxu0
    %v3062 = vpack.c.bf16 %v3059, %v3059
    %v3063 = vld [vmem:[%s29] sm:$0xf]
    %v3064 = vld [vmem:[%s29 + $0x4] sm:$0xf]
    %v3065 = vld [vmem:[%s29 + $0x8] sm:$0xf]
    %v3066 = vld [vmem:[%s29 + $0xc] sm:$0xf]
    %v3067 = vld [vmem:[#allocation8] sm:$0x1]
    %3069 = vrot.lane.b32.xlu0 %v3024, 120
    %v3070 = vpop.permute.xlu0 %3069
    %3071 = vrot.lane.b32.xlu0 %v3024, 112
    %v3072 = vpop.permute.xlu0 %3071
    %3073 = vrot.lane.b32.xlu0 %v3024, 104
    %v3074 = vpop.permute.xlu0 %3073
    %3076 = vrot.lane.b32.xlu0 %v3062, 120
    %v3077 = vpop.permute.xlu0 %3076
    %3078 = vrot.lane.b32.xlu0 %v3062, 112
    %v3079 = vpop.permute.xlu0 %3078
    %3080 = vrot.lane.b32.xlu0 %v3062, 104
    %v3081 = vpop.permute.xlu0 %3080
    %v3083 = vsel %vm215, %v3024, 0
    %v3086 = vsel %vm215, %v3062, 0
    %3088 = vmatpush.bf16.xpose.msra.mxu0 0
    %3089 = vmatpush.bf16.xpose.msra.mxu0 0
    %3090 = vmatpush.bf16.xpose.msra.mxu0 0
    %3091 = vmatpush.bf16.xpose.msra.mxu0 0
    %3092 = vmatpush.bf16.xpose.msra.mxu0 0
    %3093 = vmatpush.bf16.xpose.msra.mxu0 0
    %3094 = vmatpush.bf16.xpose.msra.mxu0 0
    %3095 = vmatpush.bf16.xpose.msra.mxu0 %v3086
    %3096 = vmatmul.bf16.gmra.mxu0 %v3083
    %v3097 = vpop.f32.mrf.mxu0
    %v3098 = vadd.f32 0.0, %v3097
    %v3099 = vpop.f32.mrf.mxu0
    %3100 = vdwg.mxu0
    %v3102 = vsel %vm215, %v3070, 0
    %v3105 = vsel %vm215, %v3077, 0
    %3107 = vmatpush.bf16.xpose.msra.mxu0 0
    %3108 = vmatpush.bf16.xpose.msra.mxu0 0
    %3109 = vmatpush.bf16.xpose.msra.mxu0 0
    %3110 = vmatpush.bf16.xpose.msra.mxu0 0
    %3111 = vmatpush.bf16.xpose.msra.mxu0 0
    %3112 = vmatpush.bf16.xpose.msra.mxu0 0
    %3113 = vmatpush.bf16.xpose.msra.mxu0 0
    %3114 = vmatpush.bf16.xpose.msra.mxu0 %v3105
    %3115 = vmatmul.bf16.gmra.mxu0 %v3102
    %v3116 = vpop.f32.mrf.mxu0
    %v3117 = vadd.f32 0.0, %v3116
    %v3118 = vpop.f32.mrf.mxu0
    %3119 = vdwg.mxu0
    %v3121 = vsel %vm215, %v3072, 0
    %v3124 = vsel %vm215, %v3079, 0
    %3126 = vmatpush.bf16.xpose.msra.mxu0 0
    %3127 = vmatpush.bf16.xpose.msra.mxu0 0
    %3128 = vmatpush.bf16.xpose.msra.mxu0 0
    %3129 = vmatpush.bf16.xpose.msra.mxu0 0
    %3130 = vmatpush.bf16.xpose.msra.mxu0 0
    %3131 = vmatpush.bf16.xpose.msra.mxu0 0
    %3132 = vmatpush.bf16.xpose.msra.mxu0 0
    %3133 = vmatpush.bf16.xpose.msra.mxu0 %v3124
    %3134 = vmatmul.bf16.gmra.mxu0 %v3121
    %v3135 = vpop.f32.mrf.mxu0
    %v3136 = vadd.f32 0.0, %v3135
    %v3137 = vpop.f32.mrf.mxu0
    %3138 = vdwg.mxu0
    %v3140 = vsel %vm215, %v3074, 0
    %v3143 = vsel %vm215, %v3081, 0
    %3145 = vmatpush.bf16.xpose.msra.mxu0 0
    %3146 = vmatpush.bf16.xpose.msra.mxu0 0
    %3147 = vmatpush.bf16.xpose.msra.mxu0 0
    %3148 = vmatpush.bf16.xpose.msra.mxu0 0
    %3149 = vmatpush.bf16.xpose.msra.mxu0 0
    %3150 = vmatpush.bf16.xpose.msra.mxu0 0
    %3151 = vmatpush.bf16.xpose.msra.mxu0 0
    %3152 = vmatpush.bf16.xpose.msra.mxu0 %v3143
    %3153 = vmatmul.bf16.gmra.mxu0 %v3140
    %v3154 = vpop.f32.mrf.mxu0
    %v3155 = vadd.f32 0.0, %v3154
    %v3156 = vpop.f32.mrf.mxu0
    %3157 = vdwg.mxu0
    %v3158 = vmul.f32 %v3098, 0.35355338
    %v3159 = vmul.f32 %v3117, 0.35355338
    %v3160 = vmul.f32 %v3136, 0.35355338
    %v3161 = vmul.f32 %v3155, 0.35355338
    %vm3162 = vcmask 48128
    %v3163 = vsel %vm3162, %v3158, -inf
    %3164 = vmax.xlane.f32.xlu0 %v3163
    %v3165 = vpop.xlane.xlu0 %3164
    %v3166 = vsel %vm3162, %v3159, -inf
    %3167 = vmax.xlane.f32.xlu0 %v3166
    %v3168 = vpop.xlane.xlu0 %3167
    %v3169 = vsel %vm3162, %v3160, -inf
    %3170 = vmax.xlane.f32.xlu0 %v3169
    %v3171 = vpop.xlane.xlu0 %3170
    %v3172 = vsel %vm3162, %v3161, -inf
    %3173 = vmax.xlane.f32.xlu0 %v3172
    %v3174 = vpop.xlane.xlu0 %3173
    %v3175 = vsub.f32 %v3158, %v3165
    %v3176 = vsub.f32 %v3159, %v3168
    %v3177 = vsub.f32 %v3160, %v3171
    %v3178 = vsub.f32 %v3161, %v3174
    %v3179 = vmul.f32 %v3175, 1.442695
    %v3180 = vpow.pop %v3179
    %v3181 = vmul.f32 %v3176, 1.442695
    %v3182 = vpow.pop %v3181
    %v3183 = vmul.f32 %v3177, 1.442695
    %v3184 = vpow.pop %v3183
    %v3185 = vmul.f32 %v3178, 1.442695
    %v3186 = vpow.pop %v3185
    %v3187 = vsel %vm3162, %v3180, 0.0
    %3188 = vadd.xlane.f32.xlu0 %v3187
    %v3189 = vpop.xlane.xlu0 %3188
    %v3190 = vsel %vm3162, %v3182, 0.0
    %3191 = vadd.xlane.f32.xlu0 %v3190
    %v3192 = vpop.xlane.xlu0 %3191
    %v3193 = vsel %vm3162, %v3184, 0.0
    %3194 = vadd.xlane.f32.xlu0 %v3193
    %v3195 = vpop.xlane.xlu0 %3194
    %v3196 = vsel %vm3162, %v3186, 0.0
    %3197 = vadd.xlane.f32.xlu0 %v3196
    %v3198 = vpop.xlane.xlu0 %3197
    %v3199 = vrcp.pop %v3189
    %v3200 = vrcp.pop %v3192
    %v3201 = vrcp.pop %v3195
    %v3202 = vrcp.pop %v3198
    %v3203 = vmul.f32 %v3180, %v3199
    %v3204 = vmul.f32 %v3182, %v3200
    %v3205 = vmul.f32 %v3184, %v3201
    %v3206 = vmul.f32 %v3186, %v3202
    %v3207 = vpack.c.bf16 %v3203, %v3203
    %v3208 = vpack.c.bf16 %v3204, %v3204
    %v3209 = vpack.c.bf16 %v3205, %v3205
    %v3210 = vpack.c.bf16 %v3206, %v3206
    %v3211 = vunpack.c.l.b16 %v3062
    %v3212 = vpack.c.b16 %v3211, %v3211
    %3213 = vrot.lane.b32.xlu0 %v3212, 96
    %v3214 = vpop.permute.xlu0 %3213
    %v3216 = vsel %vm3162, %v3207, 0
    %vm3218 = vcmask 1042432
    %v3220 = vsel %vm3218, %v3214, 0
    %3222 = vmatpush.bf16.msra.mxu0 0
    %3223 = vmatpush.bf16.msra.mxu0 0
    %3224 = vmatpush.bf16.msra.mxu0 0
    %3225 = vmatpush.bf16.msra.mxu0 0
    %3226 = vmatpush.bf16.msra.mxu0 0
    %3227 = vmatpush.bf16.msra.mxu0 0
    %3228 = vmatpush.bf16.msra.mxu0 0
    %3229 = vmatpush.bf16.msra.mxu0 %v3220
    %3230 = vmatmul.bf16.gmra.mxu0 %v3216
    %v3231 = vpop.f32.mrf.mxu0
    %v3232 = vadd.f32 0.0, %v3231
    %v3233 = vpop.f32.mrf.mxu0
    %3234 = vdwg.mxu0
    %v3235 = vunpack.c.l.b16 %v3077
    %v3236 = vpack.c.b16 %v3235, %v3235
    %3237 = vrot.lane.b32.xlu0 %v3236, 96
    %v3238 = vpop.permute.xlu0 %3237
    %v3240 = vsel %vm3162, %v3208, 0
    %v3243 = vsel %vm3218, %v3238, 0
    %3245 = vmatpush.bf16.msra.mxu0 0
    %3246 = vmatpush.bf16.msra.mxu0 0
    %3247 = vmatpush.bf16.msra.mxu0 0
    %3248 = vmatpush.bf16.msra.mxu0 0
    %3249 = vmatpush.bf16.msra.mxu0 0
    %3250 = vmatpush.bf16.msra.mxu0 0
    %3251 = vmatpush.bf16.msra.mxu0 0
    %3252 = vmatpush.bf16.msra.mxu0 %v3243
    %3253 = vmatmul.bf16.gmra.mxu0 %v3240
    %v3254 = vpop.f32.mrf.mxu0
    %v3255 = vadd.f32 0.0, %v3254
    %v3256 = vpop.f32.mrf.mxu0
    %3257 = vdwg.mxu0
    %v3258 = vunpack.c.l.b16 %v3079
    %v3259 = vpack.c.b16 %v3258, %v3258
    %3260 = vrot.lane.b32.xlu0 %v3259, 96
    %v3261 = vpop.permute.xlu0 %3260
    %v3263 = vsel %vm3162, %v3209, 0
    %v3266 = vsel %vm3218, %v3261, 0
    %3268 = vmatpush.bf16.msra.mxu0 0
    %3269 = vmatpush.bf16.msra.mxu0 0
    %3270 = vmatpush.bf16.msra.mxu0 0
    %3271 = vmatpush.bf16.msra.mxu0 0
    %3272 = vmatpush.bf16.msra.mxu0 0
    %3273 = vmatpush.bf16.msra.mxu0 0
    %3274 = vmatpush.bf16.msra.mxu0 0
    %3275 = vmatpush.bf16.msra.mxu0 %v3266
    %3276 = vmatmul.bf16.gmra.mxu0 %v3263
    %v3277 = vpop.f32.mrf.mxu0
    %v3278 = vadd.f32 0.0, %v3277
    %v3279 = vpop.f32.mrf.mxu0
    %3280 = vdwg.mxu0
    %v3281 = vunpack.c.l.b16 %v3081
    %v3282 = vpack.c.b16 %v3281, %v3281
    %3283 = vrot.lane.b32.xlu0 %v3282, 96
    %v3284 = vpop.permute.xlu0 %3283
    %v3286 = vsel %vm3162, %v3210, 0
    %v3289 = vsel %vm3218, %v3284, 0
    %3291 = vmatpush.bf16.msra.mxu0 0
    %3292 = vmatpush.bf16.msra.mxu0 0
    %3293 = vmatpush.bf16.msra.mxu0 0
    %3294 = vmatpush.bf16.msra.mxu0 0
    %3295 = vmatpush.bf16.msra.mxu0 0
    %3296 = vmatpush.bf16.msra.mxu0 0
    %3297 = vmatpush.bf16.msra.mxu0 0
    %3298 = vmatpush.bf16.msra.mxu0 %v3289
    %3299 = vmatmul.bf16.gmra.mxu0 %v3286
    %v3300 = vpop.f32.mrf.mxu0
    %v3301 = vadd.f32 0.0, %v3300
    %v3302 = vpop.f32.mrf.mxu0
    %3303 = vdwg.mxu0
    %3305 = vrot.lane.b32.xlu0 %v3255, 8
    %v3306 = vpop.permute.xlu0 %3305
    %3309 = vrot.lane.b32.xlu0 %v3278, 16
    %v3310 = vpop.permute.xlu0 %3309
    %3313 = vrot.lane.b32.xlu0 %v3301, 24
    %v3314 = vpop.permute.xlu0 %3313
    %v3316 = vsel %vm215, %v3232, %v3306
    %vm3317 = vcmask 130048
    %v3318 = vsel %vm3317, %v3316, %v3310
    %vm3319 = vcmask 195584
    %v3320 = vsel %vm3319, %v3318, %v3314
    %v3321 = vpack.c.bf16 %v3320, %v3320
    %v3323 = vperm.slane %v3067, 0
    %v3329 = vunpack.c.l.b16 %v3063
    %v3330 = vunpack.c.l.b16 %v3064
    %v3331 = vunpack.c.l.b16 %v3065
    %v3332 = vunpack.c.l.b16 %v3066
    %v3333 = vpack.c.b16 %v3330, %v3329
    %v3334 = vpack.c.b16 %v3332, %v3331
    %v3338 = vsel %vm3007, %v3321, 0
    %3340 = vmatpush.bf16.msra.mxu0 0
    %3341 = vmatpush.bf16.msra.mxu0 0
    %3342 = vmatpush.bf16.msra.mxu0 0
    %3343 = vmatpush.bf16.msra.mxu0 0
    %3344 = vmatpush.bf16.msra.mxu0 0
    %3345 = vmatpush.bf16.msra.mxu0 0
    %3346 = vmatpush.bf16.msra.mxu0 %v3334
    %3347 = vmatpush.bf16.msra.mxu0 %v3333
    %3348 = vmatmul.bf16.gmra.mxu0 %v3338
    %v3349 = vpop.f32.mrf.mxu0
    %v3350 = vadd.f32 %v3323, %v3349
    %v3351 = vpop.f32.mrf.mxu0
    %3352 = vdwg.mxu0
    %v3353 = vadd.f32 %v3350, %v179
    %v3354 = vsel %vm3007, %v3353, 0.0
    %3355 = vst [vmem:[#allocation10] sm:$0xff] %v3354
    %v3356 = vpack.c.bf16 %v3353, %v3353
    %v3357 = vld [vmem:[%s33] sm:$0xf]
    %v3358 = vld [vmem:[%s33 + $0x4] sm:$0xf]
    %v3359 = vld [vmem:[%s33 + $0x8] sm:$0xf]
    %v3360 = vld [vmem:[%s33 + $0xc] sm:$0xf]
    %v3361 = vld [vmem:[%s35] sm:$0x1]
    %v3363 = vperm.slane %v3361, 0
    %v3369 = vunpack.c.l.b16 %v3357
    %v3370 = vunpack.c.l.b16 %v3358
    %v3371 = vunpack.c.l.b16 %v3359
    %v3372 = vunpack.c.l.b16 %v3360
    %v3373 = vpack.c.b16 %v3370, %v3369
    %v3374 = vpack.c.b16 %v3372, %v3371
    %v3378 = vsel %vm3007, %v3356, 0
    %3380 = vmatpush.bf16.msra.mxu0 0
    %3381 = vmatpush.bf16.msra.mxu0 0
    %3382 = vmatpush.bf16.msra.mxu0 0
    %3383 = vmatpush.bf16.msra.mxu0 0
    %3384 = vmatpush.bf16.msra.mxu0 0
    %3385 = vmatpush.bf16.msra.mxu0 0
    %3386 = vmatpush.bf16.msra.mxu0 %v3374
    %3387 = vmatpush.bf16.msra.mxu0 %v3373
    %3388 = vmatmul.bf16.gmra.mxu0 %v3378
    %v3389 = vpop.f32.mrf.mxu0
    %v3390 = vadd.f32 %v3363, %v3389
    %v3391 = vpop.f32.mrf.mxu0
    %3392 = vdwg.mxu0
    %v3393 = vpack.c.bf16 %v3390, %v3390
    %v3394 = vld [vmem:[%s37] sm:$0xf]
    %v3395 = vld [vmem:[%s37 + $0x4] sm:$0xf]
    %v3396 = vld [vmem:[%s37 + $0x8] sm:$0xf]
    %v3397 = vld [vmem:[%s37 + $0xc] sm:$0xf]
    %v3398 = vld [vmem:[%s39] sm:$0x1]
    %3400 = vrot.lane.b32.xlu0 %v3393, 120
    %v3401 = vpop.permute.xlu0 %3400
    %3402 = vrot.lane.b32.xlu0 %v3393, 112
    %v3403 = vpop.permute.xlu0 %3402
    %3404 = vrot.lane.b32.xlu0 %v3393, 104
    %v3405 = vpop.permute.xlu0 %3404
    %v3406 = vunpack.c.l.b16 %v3393
    %v3407 = vpack.c.b16 %v3406, %v3406
    %3408 = vrot.lane.b32.xlu0 %v3407, 96
    %v3409 = vpop.permute.xlu0 %3408
    %v3411 = vsel %vm215, %v3393, 0
    %v3414 = vsel %vm215, %v3409, 0
    %3416 = vmatpush.bf16.xpose.msra.mxu0 0
    %3417 = vmatpush.bf16.xpose.msra.mxu0 0
    %3418 = vmatpush.bf16.xpose.msra.mxu0 0
    %3419 = vmatpush.bf16.xpose.msra.mxu0 0
    %3420 = vmatpush.bf16.xpose.msra.mxu0 0
    %3421 = vmatpush.bf16.xpose.msra.mxu0 0
    %3422 = vmatpush.bf16.xpose.msra.mxu0 0
    %3423 = vmatpush.bf16.xpose.msra.mxu0 %v3414
    %3424 = vmatmul.bf16.gmra.mxu0 %v3411
    %v3425 = vpop.f32.mrf.mxu0
    %v3426 = vadd.f32 0.0, %v3425
    %v3427 = vpop.f32.mrf.mxu0
    %3428 = vdwg.mxu0
    %v3429 = vunpack.c.l.b16 %v3401
    %v3430 = vpack.c.b16 %v3429, %v3429
    %3431 = vrot.lane.b32.xlu0 %v3430, 96
    %v3432 = vpop.permute.xlu0 %3431
    %v3434 = vsel %vm215, %v3401, 0
    %v3437 = vsel %vm215, %v3432, 0
    %3439 = vmatpush.bf16.xpose.msra.mxu0 0
    %3440 = vmatpush.bf16.xpose.msra.mxu0 0
    %3441 = vmatpush.bf16.xpose.msra.mxu0 0
    %3442 = vmatpush.bf16.xpose.msra.mxu0 0
    %3443 = vmatpush.bf16.xpose.msra.mxu0 0
    %3444 = vmatpush.bf16.xpose.msra.mxu0 0
    %3445 = vmatpush.bf16.xpose.msra.mxu0 0
    %3446 = vmatpush.bf16.xpose.msra.mxu0 %v3437
    %3447 = vmatmul.bf16.gmra.mxu0 %v3434
    %v3448 = vpop.f32.mrf.mxu0
    %v3449 = vadd.f32 0.0, %v3448
    %v3450 = vpop.f32.mrf.mxu0
    %3451 = vdwg.mxu0
    %v3452 = vunpack.c.l.b16 %v3403
    %v3453 = vpack.c.b16 %v3452, %v3452
    %3454 = vrot.lane.b32.xlu0 %v3453, 96
    %v3455 = vpop.permute.xlu0 %3454
    %v3457 = vsel %vm215, %v3403, 0
    %v3460 = vsel %vm215, %v3455, 0
    %3462 = vmatpush.bf16.xpose.msra.mxu0 0
    %3463 = vmatpush.bf16.xpose.msra.mxu0 0
    %3464 = vmatpush.bf16.xpose.msra.mxu0 0
    %3465 = vmatpush.bf16.xpose.msra.mxu0 0
    %3466 = vmatpush.bf16.xpose.msra.mxu0 0
    %3467 = vmatpush.bf16.xpose.msra.mxu0 0
    %3468 = vmatpush.bf16.xpose.msra.mxu0 0
    %3469 = vmatpush.bf16.xpose.msra.mxu0 %v3460
    %3470 = vmatmul.bf16.gmra.mxu0 %v3457
    %v3471 = vpop.f32.mrf.mxu0
    %v3472 = vadd.f32 0.0, %v3471
    %v3473 = vpop.f32.mrf.mxu0
    %3474 = vdwg.mxu0
    %v3475 = vunpack.c.l.b16 %v3405
    %v3476 = vpack.c.b16 %v3475, %v3475
    %3477 = vrot.lane.b32.xlu0 %v3476, 96
    %v3478 = vpop.permute.xlu0 %3477
    %v3480 = vsel %vm215, %v3405, 0
    %v3483 = vsel %vm215, %v3478, 0
    %3485 = vmatpush.bf16.xpose.msra.mxu0 0
    %3486 = vmatpush.bf16.xpose.msra.mxu0 0
    %3487 = vmatpush.bf16.xpose.msra.mxu0 0
    %3488 = vmatpush.bf16.xpose.msra.mxu0 0
    %3489 = vmatpush.bf16.xpose.msra.mxu0 0
    %3490 = vmatpush.bf16.xpose.msra.mxu0 0
    %3491 = vmatpush.bf16.xpose.msra.mxu0 0
    %3492 = vmatpush.bf16.xpose.msra.mxu0 %v3483
    %3493 = vmatmul.bf16.gmra.mxu0 %v3480
    %v3494 = vpop.f32.mrf.mxu0
    %v3495 = vadd.f32 0.0, %v3494
    %v3496 = vpop.f32.mrf.mxu0
    %3497 = vdwg.mxu0
    %v3498 = vmul.f32 %v3426, 0.35355338
    %v3499 = vmul.f32 %v3449, 0.35355338
    %v3500 = vmul.f32 %v3472, 0.35355338
    %v3501 = vmul.f32 %v3495, 0.35355338
    %v3502 = vsel %vm215, %v3498, -inf
    %3503 = vmax.xlane.f32.xlu0 %v3502
    %v3504 = vpop.xlane.xlu0 %3503
    %v3505 = vsel %vm215, %v3499, -inf
    %3506 = vmax.xlane.f32.xlu0 %v3505
    %v3507 = vpop.xlane.xlu0 %3506
    %v3508 = vsel %vm215, %v3500, -inf
    %3509 = vmax.xlane.f32.xlu0 %v3508
    %v3510 = vpop.xlane.xlu0 %3509
    %v3511 = vsel %vm215, %v3501, -inf
    %3512 = vmax.xlane.f32.xlu0 %v3511
    %v3513 = vpop.xlane.xlu0 %3512
    %v3514 = vsub.f32 %v3498, %v3504
    %v3515 = vsub.f32 %v3499, %v3507
    %v3516 = vsub.f32 %v3500, %v3510
    %v3517 = vsub.f32 %v3501, %v3513
    %v3518 = vmul.f32 %v3514, 1.442695
    %v3519 = vpow.pop %v3518
    %v3520 = vmul.f32 %v3515, 1.442695
    %v3521 = vpow.pop %v3520
    %v3522 = vmul.f32 %v3516, 1.442695
    %v3523 = vpow.pop %v3522
    %v3524 = vmul.f32 %v3517, 1.442695
    %v3525 = vpow.pop %v3524
    %v3526 = vsel %vm215, %v3519, 0.0
    %3527 = vadd.xlane.f32.xlu0 %v3526
    %v3528 = vpop.xlane.xlu0 %3527
    %v3529 = vsel %vm215, %v3521, 0.0
    %3530 = vadd.xlane.f32.xlu0 %v3529
    %v3531 = vpop.xlane.xlu0 %3530
    %v3532 = vsel %vm215, %v3523, 0.0
    %3533 = vadd.xlane.f32.xlu0 %v3532
    %v3534 = vpop.xlane.xlu0 %3533
    %v3535 = vsel %vm215, %v3525, 0.0
    %3536 = vadd.xlane.f32.xlu0 %v3535
    %v3537 = vpop.xlane.xlu0 %3536
    %v3538 = vrcp.pop %v3528
    %v3539 = vrcp.pop %v3531
    %v3540 = vrcp.pop %v3534
    %v3541 = vrcp.pop %v3537
    %v3542 = vmul.f32 %v3519, %v3538
    %v3543 = vmul.f32 %v3521, %v3539
    %v3544 = vmul.f32 %v3523, %v3540
    %v3545 = vmul.f32 %v3525, %v3541
    %v3546 = vpack.c.bf16 %v3542, %v3542
    %v3547 = vpack.c.bf16 %v3543, %v3543
    %v3548 = vpack.c.bf16 %v3544, %v3544
    %v3549 = vpack.c.bf16 %v3545, %v3545
    %3550 = vrot.lane.b32.xlu0 %v3407, 64
    %v3551 = vpop.permute.xlu0 %3550
    %v3553 = vsel %vm215, %v3546, 0
    %v3556 = vsel %vm219, %v3551, 0
    %3558 = vmatpush.bf16.msra.mxu0 0
    %3559 = vmatpush.bf16.msra.mxu0 0
    %3560 = vmatpush.bf16.msra.mxu0 0
    %3561 = vmatpush.bf16.msra.mxu0 0
    %3562 = vmatpush.bf16.msra.mxu0 0
    %3563 = vmatpush.bf16.msra.mxu0 0
    %3564 = vmatpush.bf16.msra.mxu0 0
    %3565 = vmatpush.bf16.msra.mxu0 %v3556
    %3566 = vmatmul.bf16.gmra.mxu0 %v3553
    %v3567 = vpop.f32.mrf.mxu0
    %v3568 = vadd.f32 0.0, %v3567
    %v3569 = vpop.f32.mrf.mxu0
    %3570 = vdwg.mxu0
    %3571 = vrot.lane.b32.xlu0 %v3430, 64
    %v3572 = vpop.permute.xlu0 %3571
    %v3574 = vsel %vm215, %v3547, 0
    %v3577 = vsel %vm219, %v3572, 0
    %3579 = vmatpush.bf16.msra.mxu0 0
    %3580 = vmatpush.bf16.msra.mxu0 0
    %3581 = vmatpush.bf16.msra.mxu0 0
    %3582 = vmatpush.bf16.msra.mxu0 0
    %3583 = vmatpush.bf16.msra.mxu0 0
    %3584 = vmatpush.bf16.msra.mxu0 0
    %3585 = vmatpush.bf16.msra.mxu0 0
    %3586 = vmatpush.bf16.msra.mxu0 %v3577
    %3587 = vmatmul.bf16.gmra.mxu0 %v3574
    %v3588 = vpop.f32.mrf.mxu0
    %v3589 = vadd.f32 0.0, %v3588
    %v3590 = vpop.f32.mrf.mxu0
    %3591 = vdwg.mxu0
    %3592 = vrot.lane.b32.xlu0 %v3453, 64
    %v3593 = vpop.permute.xlu0 %3592
    %v3595 = vsel %vm215, %v3548, 0
    %v3598 = vsel %vm219, %v3593, 0
    %3600 = vmatpush.bf16.msra.mxu0 0
    %3601 = vmatpush.bf16.msra.mxu0 0
    %3602 = vmatpush.bf16.msra.mxu0 0
    %3603 = vmatpush.bf16.msra.mxu0 0
    %3604 = vmatpush.bf16.msra.mxu0 0
    %3605 = vmatpush.bf16.msra.mxu0 0
    %3606 = vmatpush.bf16.msra.mxu0 0
    %3607 = vmatpush.bf16.msra.mxu0 %v3598
    %3608 = vmatmul.bf16.gmra.mxu0 %v3595
    %v3609 = vpop.f32.mrf.mxu0
    %v3610 = vadd.f32 0.0, %v3609
    %v3611 = vpop.f32.mrf.mxu0
    %3612 = vdwg.mxu0
    %3613 = vrot.lane.b32.xlu0 %v3476, 64
    %v3614 = vpop.permute.xlu0 %3613
    %v3616 = vsel %vm215, %v3549, 0
    %v3619 = vsel %vm219, %v3614, 0
    %3621 = vmatpush.bf16.msra.mxu0 0
    %3622 = vmatpush.bf16.msra.mxu0 0
    %3623 = vmatpush.bf16.msra.mxu0 0
    %3624 = vmatpush.bf16.msra.mxu0 0
    %3625 = vmatpush.bf16.msra.mxu0 0
    %3626 = vmatpush.bf16.msra.mxu0 0
    %3627 = vmatpush.bf16.msra.mxu0 0
    %3628 = vmatpush.bf16.msra.mxu0 %v3619
    %3629 = vmatmul.bf16.gmra.mxu0 %v3616
    %v3630 = vpop.f32.mrf.mxu0
    %v3631 = vadd.f32 0.0, %v3630
    %v3632 = vpop.f32.mrf.mxu0
    %3633 = vdwg.mxu0
    %3635 = vrot.lane.b32.xlu0 %v3589, 8
    %v3636 = vpop.permute.xlu0 %3635
    %3639 = vrot.lane.b32.xlu0 %v3610, 16
    %v3640 = vpop.permute.xlu0 %3639
    %3643 = vrot.lane.b32.xlu0 %v3631, 24
    %v3644 = vpop.permute.xlu0 %3643
    %v3646 = vsel %vm215, %v3568, %v3636
    %v3647 = vsel %vm3317, %v3646, %v3640
    %v3648 = vsel %vm3319, %v3647, %v3644
    %v3649 = vpack.c.bf16 %v3648, %v3648
    %v3651 = vperm.slane %v3398, 0
    %v3657 = vunpack.c.l.b16 %v3394
    %v3658 = vunpack.c.l.b16 %v3395
    %v3659 = vunpack.c.l.b16 %v3396
    %v3660 = vunpack.c.l.b16 %v3397
    %v3661 = vpack.c.b16 %v3658, %v3657
    %v3662 = vpack.c.b16 %v3660, %v3659
    %v3666 = vsel %vm3007, %v3649, 0
    %3668 = vmatpush.bf16.msra.mxu0 0
    %3669 = vmatpush.bf16.msra.mxu0 0
    %3670 = vmatpush.bf16.msra.mxu0 0
    %3671 = vmatpush.bf16.msra.mxu0 0
    %3672 = vmatpush.bf16.msra.mxu0 0
    %3673 = vmatpush.bf16.msra.mxu0 0
    %3674 = vmatpush.bf16.msra.mxu0 %v3662
    %3675 = vmatpush.bf16.msra.mxu0 %v3661
    %3676 = vmatmul.bf16.gmra.mxu0 %v3666
    %v3677 = vpop.f32.mrf.mxu0
    %v3678 = vadd.f32 %v3651, %v3677
    %v3679 = vpop.f32.mrf.mxu0
    %3680 = vdwg.mxu0
    %v3681 = vld [vmem:[%s41] sm:$0x3]
    %v3682 = vld [vmem:[%s43] sm:$0x3]
    %v3683 = vadd.f32 %v3353, %v3678
    %v3684 = vsel %vm3007, %v3683, 0.0
    %3685 = vadd.xlane.f32.xlu0 %v3684
    %v3686 = vpop.xlane.xlu0 %3685
    %v3687 = vrcp.pop 32.0
    %v3688 = vmul.f32 32.0, %v3687
    %v3689 = vsub.f32 1.0, %v3688
    %v3690 = vmul.f32 %v3687, %v3689
    %v3691 = vadd.f32 %v3687, %v3690
    %vm3692 = vweird.f32 %v3687
    %v3693 = vsel %vm3692, %v3687, %v3691
    %v3694 = vmul.f32 %v3686, %v3693
    %v3695 = vsub.f32 %v3683, %v3694
    %v3696 = vmul.f32 %v3695, %v3695
    %v3697 = vsel %vm3007, %v3696, 0.0
    %3698 = vadd.xlane.f32.xlu0 %v3697
    %v3699 = vpop.xlane.xlu0 %3698
    %v3700 = vmul.f32 %v3699, %v3693
    %v3701 = vadd.f32 %v3700, 1e-05
    %v3702 = vrsqrt.pop %v3701
    %v3703 = vmul.f32 %v3702, %v3701
    %v3704 = vmul.f32 %v3703, %v3702
    %v3705 = vmul.f32 0.5, %v3704
    %v3706 = vsub.f32 1.5, %v3705
    %v3707 = vmul.f32 %v3702, %v3706
    %vm3708 = vweird.f32 %v3701
    %vm3709 = vweird.f32 %v3702
    %vm3710 = vmor %vm3708, %vm3709
    %v3711 = vsel %vm3710, %v3702, %v3707
    %v3712 = vmul.f32 %v3695, %v3711
    %v3713 = vperm.slane %v3681, 0
    %v3714 = vmul.f32 %v3712, %v3713
    %v3715 = vperm.slane %v3682, 0
    %v3716 = vadd.f32 %v3714, %v3715
    %v3717 = vpack.c.bf16 %v3716, %v3716
    %v3718 = vld [vmem:[%s45] sm:$0xf]
    %v3719 = vld [vmem:[%s45 + $0x4] sm:$0xf]
    %v3720 = vld [vmem:[%s45 + $0x8] sm:$0xf]
    %v3721 = vld [vmem:[%s45 + $0xc] sm:$0xf]
    %v3722 = vld [vmem:[%s47] sm:$0x1]
    %v3724 = vperm.slane %v3722, 0
    %v3730 = vunpack.c.l.b16 %v3718
    %v3731 = vunpack.c.l.b16 %v3719
    %v3732 = vunpack.c.l.b16 %v3720
    %v3733 = vunpack.c.l.b16 %v3721
    %v3734 = vpack.c.b16 %v3731, %v3730
    %v3735 = vpack.c.b16 %v3733, %v3732
    %v3739 = vsel %vm3007, %v3717, 0
    %3741 = vmatpush.bf16.msra.mxu0 0
    %3742 = vmatpush.bf16.msra.mxu0 0
    %3743 = vmatpush.bf16.msra.mxu0 0
    %3744 = vmatpush.bf16.msra.mxu0 0
    %3745 = vmatpush.bf16.msra.mxu0 0
    %3746 = vmatpush.bf16.msra.mxu0 0
    %3747 = vmatpush.bf16.msra.mxu0 %v3735
    %3748 = vmatpush.bf16.msra.mxu0 %v3734
    %3749 = vmatmul.bf16.gmra.mxu0 %v3739
    %v3750 = vpop.f32.mrf.mxu0
    %v3751 = vadd.f32 %v3724, %v3750
    %v3752 = vpop.f32.mrf.mxu0
    %3753 = vdwg.mxu0
    %v3754 = vmax.f32 %v3751, 0.0
    %v3755 = vpack.c.bf16 %v3754, %v3754
    %v3756 = vld [vmem:[%s49] sm:$0xf]
    %v3757 = vld [vmem:[%s49 + $0x4] sm:$0xf]
    %v3758 = vld [vmem:[%s49 + $0x8] sm:$0xf]
    %v3759 = vld [vmem:[%s49 + $0xc] sm:$0xf]
    %v3760 = vld [vmem:[%s49 + $0x10] sm:$0xf]
    %v3761 = vld [vmem:[%s49 + $0x14] sm:$0xf]
    %v3762 = vld [vmem:[%s49 + $0x18] sm:$0xf]
    %v3763 = vld [vmem:[%s49 + $0x1c] sm:$0xf]
    %v3764 = vld [vmem:[%s51] sm:$0x1]
    %v3766 = vperm.slane %v3764, 0
    %v3776 = vunpack.c.l.b16 %v3756
    %v3777 = vunpack.c.l.b16 %v3757
    %v3778 = vunpack.c.l.b16 %v3758
    %v3779 = vunpack.c.l.b16 %v3759
    %v3780 = vunpack.c.l.b16 %v3760
    %v3781 = vunpack.c.l.b16 %v3761
    %v3782 = vunpack.c.l.b16 %v3762
    %v3783 = vunpack.c.l.b16 %v3763
    %v3784 = vpack.c.b16 %v3777, %v3776
    %v3785 = vpack.c.b16 %v3779, %v3778
    %v3786 = vpack.c.b16 %v3781, %v3780
    %v3787 = vpack.c.b16 %v3783, %v3782
    %vm3792 = vcmask 523264
    %v3794 = vsel %vm3792, %v3755, 0
    %3796 = vmatpush.bf16.msra.mxu0 0
    %3797 = vmatpush.bf16.msra.mxu0 0
    %3798 = vmatpush.bf16.msra.mxu0 0
    %3799 = vmatpush.bf16.msra.mxu0 0
    %3800 = vmatpush.bf16.msra.mxu0 %v3787
    %3801 = vmatpush.bf16.msra.mxu0 %v3786
    %3802 = vmatpush.bf16.msra.mxu0 %v3785
    %3803 = vmatpush.bf16.msra.mxu0 %v3784
    %3804 = vmatmul.bf16.gmra.mxu0 %v3794
    %v3805 = vpop.f32.mrf.mxu0
    %v3806 = vadd.f32 %v3766, %v3805
    %v3807 = vpop.f32.mrf.mxu0
    %3808 = vdwg.mxu0
    %v3809 = vadd.f32 %v3716, %v3806
    %v3810 = vsel %vm3007, %v3809, 0.0
    %3811 = vadd.xlane.f32.xlu0 %v3810
    %v3812 = vpop.xlane.xlu0 %3811
    %v3813 = vmul.f32 %v3812, %v3693
    %v3814 = vsub.f32 %v3809, %v3813
    %v3815 = vmul.f32 %v3814, %v3814
    %v3816 = vsel %vm3007, %v3815, 0.0
    %3817 = vadd.xlane.f32.xlu0 %v3816
    %v3818 = vpop.xlane.xlu0 %3817
    %v3819 = vmul.f32 %v3818, %v3693
    %v3820 = vadd.f32 %v3819, 1e-05
    %v3821 = vrsqrt.pop %v3820
    %v3822 = vmul.f32 %v3821, %v3820
    %v3823 = vmul.f32 %v3822, %v3821
    %v3824 = vmul.f32 0.5, %v3823
    %v3825 = vsub.f32 1.5, %v3824
    %v3826 = vmul.f32 %v3821, %v3825
    %vm3827 = vweird.f32 %v3820
    %vm3828 = vweird.f32 %v3821
    %vm3829 = vmor %vm3827, %vm3828
    %v3830 = vsel %vm3829, %v3821, %v3826
    %v3831 = vmul.f32 %v3814, %v3830
    %v3832 = vperm.slane %v3681, 1
    %v3833 = vmul.f32 %v3831, %v3832
    %v3834 = vperm.slane %v3682, 1
    %v3835 = vadd.f32 %v3833, %v3834
    %v3836 = vpack.c.bf16 %v3835, %v3835
    %s3837 = scalar_lea.vmem %s33, 16
    %v3838 = vld [vmem:[%s3837] sm:$0xf]
    %v3839 = vld [vmem:[%s3837 + $0x4] sm:$0xf]
    %v3840 = vld [vmem:[%s3837 + $0x8] sm:$0xf]
    %v3841 = vld [vmem:[%s3837 + $0xc] sm:$0xf]
    %s3842 = scalar_lea.vmem %s35, 1
    %v3843 = vld [vmem:[%s3842] sm:$0x1]
    %v3845 = vperm.slane %v3843, 0
    %v3851 = vunpack.c.l.b16 %v3838
    %v3852 = vunpack.c.l.b16 %v3839
    %v3853 = vunpack.c.l.b16 %v3840
    %v3854 = vunpack.c.l.b16 %v3841
    %v3855 = vpack.c.b16 %v3852, %v3851
    %v3856 = vpack.c.b16 %v3854, %v3853
    %v3860 = vsel %vm3007, %v3836, 0
    %3862 = vmatpush.bf16.msra.mxu0 0
    %3863 = vmatpush.bf16.msra.mxu0 0
    %3864 = vmatpush.bf16.msra.mxu0 0
    %3865 = vmatpush.bf16.msra.mxu0 0
    %3866 = vmatpush.bf16.msra.mxu0 0
    %3867 = vmatpush.bf16.msra.mxu0 0
    %3868 = vmatpush.bf16.msra.mxu0 %v3856
    %3869 = vmatpush.bf16.msra.mxu0 %v3855
    %3870 = vmatmul.bf16.gmra.mxu0 %v3860
    %v3871 = vpop.f32.mrf.mxu0
    %v3872 = vadd.f32 %v3845, %v3871
    %v3873 = vpop.f32.mrf.mxu0
    %3874 = vdwg.mxu0
    %v3875 = vpack.c.bf16 %v3872, %v3872
    %s3876 = scalar_lea.vmem %s37, 16
    %v3877 = vld [vmem:[%s3876] sm:$0xf]
    %v3878 = vld [vmem:[%s3876 + $0x4] sm:$0xf]
    %v3879 = vld [vmem:[%s3876 + $0x8] sm:$0xf]
    %v3880 = vld [vmem:[%s3876 + $0xc] sm:$0xf]
    %s3881 = scalar_lea.vmem %s39, 1
    %v3882 = vld [vmem:[%s3881] sm:$0x1]
    %3884 = vrot.lane.b32.xlu0 %v3875, 120
    %v3885 = vpop.permute.xlu0 %3884
    %3886 = vrot.lane.b32.xlu0 %v3875, 112
    %v3887 = vpop.permute.xlu0 %3886
    %3888 = vrot.lane.b32.xlu0 %v3875, 104
    %v3889 = vpop.permute.xlu0 %3888
    %v3890 = vunpack.c.l.b16 %v3875
    %v3891 = vpack.c.b16 %v3890, %v3890
    %3892 = vrot.lane.b32.xlu0 %v3891, 96
    %v3893 = vpop.permute.xlu0 %3892
    %v3895 = vsel %vm215, %v3875, 0
    %v3898 = vsel %vm215, %v3893, 0
    %3900 = vmatpush.bf16.xpose.msra.mxu0 0
    %3901 = vmatpush.bf16.xpose.msra.mxu0 0
    %3902 = vmatpush.bf16.xpose.msra.mxu0 0
    %3903 = vmatpush.bf16.xpose.msra.mxu0 0
    %3904 = vmatpush.bf16.xpose.msra.mxu0 0
    %3905 = vmatpush.bf16.xpose.msra.mxu0 0
    %3906 = vmatpush.bf16.xpose.msra.mxu0 0
    %3907 = vmatpush.bf16.xpose.msra.mxu0 %v3898
    %3908 = vmatmul.bf16.gmra.mxu0 %v3895
    %v3909 = vpop.f32.mrf.mxu0
    %v3910 = vadd.f32 0.0, %v3909
    %v3911 = vpop.f32.mrf.mxu0
    %3912 = vdwg.mxu0
    %v3913 = vunpack.c.l.b16 %v3885
    %v3914 = vpack.c.b16 %v3913, %v3913
    %3915 = vrot.lane.b32.xlu0 %v3914, 96
    %v3916 = vpop.permute.xlu0 %3915
    %v3918 = vsel %vm215, %v3885, 0
    %v3921 = vsel %vm215, %v3916, 0
    %3923 = vmatpush.bf16.xpose.msra.mxu0 0
    %3924 = vmatpush.bf16.xpose.msra.mxu0 0
    %3925 = vmatpush.bf16.xpose.msra.mxu0 0
    %3926 = vmatpush.bf16.xpose.msra.mxu0 0
    %3927 = vmatpush.bf16.xpose.msra.mxu0 0
    %3928 = vmatpush.bf16.xpose.msra.mxu0 0
    %3929 = vmatpush.bf16.xpose.msra.mxu0 0
    %3930 = vmatpush.bf16.xpose.msra.mxu0 %v3921
    %3931 = vmatmul.bf16.gmra.mxu0 %v3918
    %v3932 = vpop.f32.mrf.mxu0
    %v3933 = vadd.f32 0.0, %v3932
    %v3934 = vpop.f32.mrf.mxu0
    %3935 = vdwg.mxu0
    %v3936 = vunpack.c.l.b16 %v3887
    %v3937 = vpack.c.b16 %v3936, %v3936
    %3938 = vrot.lane.b32.xlu0 %v3937, 96
    %v3939 = vpop.permute.xlu0 %3938
    %v3941 = vsel %vm215, %v3887, 0
    %v3944 = vsel %vm215, %v3939, 0
    %3946 = vmatpush.bf16.xpose.msra.mxu0 0
    %3947 = vmatpush.bf16.xpose.msra.mxu0 0
    %3948 = vmatpush.bf16.xpose.msra.mxu0 0
    %3949 = vmatpush.bf16.xpose.msra.mxu0 0
    %3950 = vmatpush.bf16.xpose.msra.mxu0 0
    %3951 = vmatpush.bf16.xpose.msra.mxu0 0
    %3952 = vmatpush.bf16.xpose.msra.mxu0 0
    %3953 = vmatpush.bf16.xpose.msra.mxu0 %v3944
    %3954 = vmatmul.bf16.gmra.mxu0 %v3941
    %v3955 = vpop.f32.mrf.mxu0
    %v3956 = vadd.f32 0.0, %v3955
    %v3957 = vpop.f32.mrf.mxu0
    %3958 = vdwg.mxu0
    %v3959 = vunpack.c.l.b16 %v3889
    %v3960 = vpack.c.b16 %v3959, %v3959
    %3961 = vrot.lane.b32.xlu0 %v3960, 96
    %v3962 = vpop.permute.xlu0 %3961
    %v3964 = vsel %vm215, %v3889, 0
    %v3967 = vsel %vm215, %v3962, 0
    %3969 = vmatpush.bf16.xpose.msra.mxu0 0
    %3970 = vmatpush.bf16.xpose.msra.mxu0 0
    %3971 = vmatpush.bf16.xpose.msra.mxu0 0
    %3972 = vmatpush.bf16.xpose.msra.mxu0 0
    %3973 = vmatpush.bf16.xpose.msra.mxu0 0
    %3974 = vmatpush.bf16.xpose.msra.mxu0 0
    %3975 = vmatpush.bf16.xpose.msra.mxu0 0
    %3976 = vmatpush.bf16.xpose.msra.mxu0 %v3967
    %3977 = vmatmul.bf16.gmra.mxu0 %v3964
    %v3978 = vpop.f32.mrf.mxu0
    %v3979 = vadd.f32 0.0, %v3978
    %v3980 = vpop.f32.mrf.mxu0
    %3981 = vdwg.mxu0
    %v3982 = vmul.f32 %v3910, 0.35355338
    %v3983 = vmul.f32 %v3933, 0.35355338
    %v3984 = vmul.f32 %v3956, 0.35355338
    %v3985 = vmul.f32 %v3979, 0.35355338
    %v3986 = vsel %vm215, %v3982, -inf
    %3987 = vmax.xlane.f32.xlu0 %v3986
    %v3988 = vpop.xlane.xlu0 %3987
    %v3989 = vsel %vm215, %v3983, -inf
    %3990 = vmax.xlane.f32.xlu0 %v3989
    %v3991 = vpop.xlane.xlu0 %3990
    %v3992 = vsel %vm215, %v3984, -inf
    %3993 = vmax.xlane.f32.xlu0 %v3992
    %v3994 = vpop.xlane.xlu0 %3993
    %v3995 = vsel %vm215, %v3985, -inf
    %3996 = vmax.xlane.f32.xlu0 %v3995
    %v3997 = vpop.xlane.xlu0 %3996
    %v3998 = vsub.f32 %v3982, %v3988
    %v3999 = vsub.f32 %v3983, %v3991
    %v4000 = vsub.f32 %v3984, %v3994
    %v4001 = vsub.f32 %v3985, %v3997
    %v4002 = vmul.f32 %v3998, 1.442695
    %v4003 = vpow.pop %v4002
    %v4004 = vmul.f32 %v3999, 1.442695
    %v4005 = vpow.pop %v4004
    %v4006 = vmul.f32 %v4000, 1.442695
    %v4007 = vpow.pop %v4006
    %v4008 = vmul.f32 %v4001, 1.442695
    %v4009 = vpow.pop %v4008
    %v4010 = vsel %vm215, %v4003, 0.0
    %4011 = vadd.xlane.f32.xlu0 %v4010
    %v4012 = vpop.xlane.xlu0 %4011
    %v4013 = vsel %vm215, %v4005, 0.0
    %4014 = vadd.xlane.f32.xlu0 %v4013
    %v4015 = vpop.xlane.xlu0 %4014
    %v4016 = vsel %vm215, %v4007, 0.0
    %4017 = vadd.xlane.f32.xlu0 %v4016
    %v4018 = vpop.xlane.xlu0 %4017
    %v4019 = vsel %vm215, %v4009, 0.0
    %4020 = vadd.xlane.f32.xlu0 %v4019
    %v4021 = vpop.xlane.xlu0 %4020
    %v4022 = vrcp.pop %v4012
    %v4023 = vrcp.pop %v4015
    %v4024 = vrcp.pop %v4018
    %v4025 = vrcp.pop %v4021
    %v4026 = vmul.f32 %v4003, %v4022
    %v4027 = vmul.f32 %v4005, %v4023
    %v4028 = vmul.f32 %v4007, %v4024
    %v4029 = vmul.f32 %v4009, %v4025
    %v4030 = vpack.c.bf16 %v4026, %v4026
    %v4031 = vpack.c.bf16 %v4027, %v4027
    %v4032 = vpack.c.bf16 %v4028, %v4028
    %v4033 = vpack.c.bf16 %v4029, %v4029
    %4034 = vrot.lane.b32.xlu0 %v3891, 64
    %v4035 = vpop.permute.xlu0 %4034
    %v4037 = vsel %vm215, %v4030, 0
    %v4040 = vsel %vm219, %v4035, 0
    %4042 = vmatpush.bf16.msra.mxu0 0
    %4043 = vmatpush.bf16.msra.mxu0 0
    %4044 = vmatpush.bf16.msra.mxu0 0
    %4045 = vmatpush.bf16.msra.mxu0 0
    %4046 = vmatpush.bf16.msra.mxu0 0
    %4047 = vmatpush.bf16.msra.mxu0 0
    %4048 = vmatpush.bf16.msra.mxu0 0
    %4049 = vmatpush.bf16.msra.mxu0 %v4040
    %4050 = vmatmul.bf16.gmra.mxu0 %v4037
    %v4051 = vpop.f32.mrf.mxu0
    %v4052 = vadd.f32 0.0, %v4051
    %v4053 = vpop.f32.mrf.mxu0
    %4054 = vdwg.mxu0
    %4055 = vrot.lane.b32.xlu0 %v3914, 64
    %v4056 = vpop.permute.xlu0 %4055
    %v4058 = vsel %vm215, %v4031, 0
    %v4061 = vsel %vm219, %v4056, 0
    %4063 = vmatpush.bf16.msra.mxu0 0
    %4064 = vmatpush.bf16.msra.mxu0 0
    %4065 = vmatpush.bf16.msra.mxu0 0
    %4066 = vmatpush.bf16.msra.mxu0 0
    %4067 = vmatpush.bf16.msra.mxu0 0
    %4068 = vmatpush.bf16.msra.mxu0 0
    %4069 = vmatpush.bf16.msra.mxu0 0
    %4070 = vmatpush.bf16.msra.mxu0 %v4061
    %4071 = vmatmul.bf16.gmra.mxu0 %v4058
    %v4072 = vpop.f32.mrf.mxu0
    %v4073 = vadd.f32 0.0, %v4072
    %v4074 = vpop.f32.mrf.mxu0
    %4075 = vdwg.mxu0
    %4076 = vrot.lane.b32.xlu0 %v3937, 64
    %v4077 = vpop.permute.xlu0 %4076
    %v4079 = vsel %vm215, %v4032, 0
    %v4082 = vsel %vm219, %v4077, 0
    %4084 = vmatpush.bf16.msra.mxu0 0
    %4085 = vmatpush.bf16.msra.mxu0 0
    %4086 = vmatpush.bf16.msra.mxu0 0
    %4087 = vmatpush.bf16.msra.mxu0 0
    %4088 = vmatpush.bf16.msra.mxu0 0
    %4089 = vmatpush.bf16.msra.mxu0 0
    %4090 = vmatpush.bf16.msra.mxu0 0
    %4091 = vmatpush.bf16.msra.mxu0 %v4082
    %4092 = vmatmul.bf16.gmra.mxu0 %v4079
    %v4093 = vpop.f32.mrf.mxu0
    %v4094 = vadd.f32 0.0, %v4093
    %v4095 = vpop.f32.mrf.mxu0
    %4096 = vdwg.mxu0
    %4097 = vrot.lane.b32.xlu0 %v3960, 64
    %v4098 = vpop.permute.xlu0 %4097
    %v4100 = vsel %vm215, %v4033, 0
    %v4103 = vsel %vm219, %v4098, 0
    %4105 = vmatpush.bf16.msra.mxu0 0
    %4106 = vmatpush.bf16.msra.mxu0 0
    %4107 = vmatpush.bf16.msra.mxu0 0
    %4108 = vmatpush.bf16.msra.mxu0 0
    %4109 = vmatpush.bf16.msra.mxu0 0
    %4110 = vmatpush.bf16.msra.mxu0 0
    %4111 = vmatpush.bf16.msra.mxu0 0
    %4112 = vmatpush.bf16.msra.mxu0 %v4103
    %4113 = vmatmul.bf16.gmra.mxu0 %v4100
    %v4114 = vpop.f32.mrf.mxu0
    %v4115 = vadd.f32 0.0, %v4114
    %v4116 = vpop.f32.mrf.mxu0
    %4117 = vdwg.mxu0
    %4119 = vrot.lane.b32.xlu0 %v4073, 8
    %v4120 = vpop.permute.xlu0 %4119
    %4123 = vrot.lane.b32.xlu0 %v4094, 16
    %v4124 = vpop.permute.xlu0 %4123
    %4127 = vrot.lane.b32.xlu0 %v4115, 24
    %v4128 = vpop.permute.xlu0 %4127
    %v4130 = vsel %vm215, %v4052, %v4120
    %v4131 = vsel %vm3317, %v4130, %v4124
    %v4132 = vsel %vm3319, %v4131, %v4128
    %v4133 = vpack.c.bf16 %v4132, %v4132
    %v4135 = vperm.slane %v3882, 0
    %v4141 = vunpack.c.l.b16 %v3877
    %v4142 = vunpack.c.l.b16 %v3878
    %v4143 = vunpack.c.l.b16 %v3879
    %v4144 = vunpack.c.l.b16 %v3880
    %v4145 = vpack.c.b16 %v4142, %v4141
    %v4146 = vpack.c.b16 %v4144, %v4143
    %v4150 = vsel %vm3007, %v4133, 0
    %4152 = vmatpush.bf16.msra.mxu0 0
    %4153 = vmatpush.bf16.msra.mxu0 0
    %4154 = vmatpush.bf16.msra.mxu0 0
    %4155 = vmatpush.bf16.msra.mxu0 0
    %4156 = vmatpush.bf16.msra.mxu0 0
    %4157 = vmatpush.bf16.msra.mxu0 0
    %4158 = vmatpush.bf16.msra.mxu0 %v4146
    %4159 = vmatpush.bf16.msra.mxu0 %v4145
    %4160 = vmatmul.bf16.gmra.mxu0 %v4150
    %v4161 = vpop.f32.mrf.mxu0
    %v4162 = vadd.f32 %v4135, %v4161
    %v4163 = vpop.f32.mrf.mxu0
    %4164 = vdwg.mxu0
    %s4165 = scalar_lea.vmem %s41, 2
    %v4166 = vld [vmem:[%s4165] sm:$0x3]
    %s4167 = scalar_lea.vmem %s43, 2
    %v4168 = vld [vmem:[%s4167] sm:$0x3]
    %v4169 = vadd.f32 %v3835, %v4162
    %v4170 = vsel %vm3007, %v4169, 0.0
    %4171 = vadd.xlane.f32.xlu0 %v4170
    %v4172 = vpop.xlane.xlu0 %4171
    %v4173 = vmul.f32 %v4172, %v3693
    %v4174 = vsub.f32 %v4169, %v4173
    %v4175 = vmul.f32 %v4174, %v4174
    %v4176 = vsel %vm3007, %v4175, 0.0
    %4177 = vadd.xlane.f32.xlu0 %v4176
    %v4178 = vpop.xlane.xlu0 %4177
    %v4179 = vmul.f32 %v4178, %v3693
    %v4180 = vadd.f32 %v4179, 1e-05
    %v4181 = vrsqrt.pop %v4180
    %v4182 = vmul.f32 %v4181, %v4180
    %v4183 = vmul.f32 %v4182, %v4181
    %v4184 = vmul.f32 0.5, %v4183
    %v4185 = vsub.f32 1.5, %v4184
    %v4186 = vmul.f32 %v4181, %v4185
    %vm4187 = vweird.f32 %v4180
    %vm4188 = vweird.f32 %v4181
    %vm4189 = vmor %vm4187, %vm4188
    %v4190 = vsel %vm4189, %v4181, %v4186
    %v4191 = vmul.f32 %v4174, %v4190
    %v4192 = vperm.slane %v4166, 0
    %v4193 = vmul.f32 %v4191, %v4192
    %v4194 = vperm.slane %v4168, 0
    %v4195 = vadd.f32 %v4193, %v4194
    %v4196 = vpack.c.bf16 %v4195, %v4195
    %s4197 = scalar_lea.vmem %s45, 16
    %v4198 = vld [vmem:[%s4197] sm:$0xf]
    %v4199 = vld [vmem:[%s4197 + $0x4] sm:$0xf]
    %v4200 = vld [vmem:[%s4197 + $0x8] sm:$0xf]
    %v4201 = vld [vmem:[%s4197 + $0xc] sm:$0xf]
    %s4202 = scalar_lea.vmem %s47, 1
    %v4203 = vld [vmem:[%s4202] sm:$0x1]
    %v4205 = vperm.slane %v4203, 0
    %v4211 = vunpack.c.l.b16 %v4198
    %v4212 = vunpack.c.l.b16 %v4199
    %v4213 = vunpack.c.l.b16 %v4200
    %v4214 = vunpack.c.l.b16 %v4201
    %v4215 = vpack.c.b16 %v4212, %v4211
    %v4216 = vpack.c.b16 %v4214, %v4213
    %v4220 = vsel %vm3007, %v4196, 0
    %4222 = vmatpush.bf16.msra.mxu0 0
    %4223 = vmatpush.bf16.msra.mxu0 0
    %4224 = vmatpush.bf16.msra.mxu0 0
    %4225 = vmatpush.bf16.msra.mxu0 0
    %4226 = vmatpush.bf16.msra.mxu0 0
    %4227 = vmatpush.bf16.msra.mxu0 0
    %4228 = vmatpush.bf16.msra.mxu0 %v4216
    %4229 = vmatpush.bf16.msra.mxu0 %v4215
    %4230 = vmatmul.bf16.gmra.mxu0 %v4220
    %v4231 = vpop.f32.mrf.mxu0
    %v4232 = vadd.f32 %v4205, %v4231
    %v4233 = vpop.f32.mrf.mxu0
    %4234 = vdwg.mxu0
    %v4235 = vmax.f32 %v4232, 0.0
    %v4236 = vpack.c.bf16 %v4235, %v4235
    %s4237 = scalar_lea.vmem %s49, 32
    %v4238 = vld [vmem:[%s4237] sm:$0xf]
    %v4239 = vld [vmem:[%s4237 + $0x4] sm:$0xf]
    %v4240 = vld [vmem:[%s4237 + $0x8] sm:$0xf]
    %v4241 = vld [vmem:[%s4237 + $0xc] sm:$0xf]
    %v4242 = vld [vmem:[%s4237 + $0x10] sm:$0xf]
    %v4243 = vld [vmem:[%s4237 + $0x14] sm:$0xf]
    %v4244 = vld [vmem:[%s4237 + $0x18] sm:$0xf]
    %v4245 = vld [vmem:[%s4237 + $0x1c] sm:$0xf]
    %s4246 = scalar_lea.vmem %s51, 1
    %v4247 = vld [vmem:[%s4246] sm:$0x1]
    %v4249 = vperm.slane %v4247, 0
    %v4259 = vunpack.c.l.b16 %v4238
    %v4260 = vunpack.c.l.b16 %v4239
    %v4261 = vunpack.c.l.b16 %v4240
    %v4262 = vunpack.c.l.b16 %v4241
    %v4263 = vunpack.c.l.b16 %v4242
    %v4264 = vunpack.c.l.b16 %v4243
    %v4265 = vunpack.c.l.b16 %v4244
    %v4266 = vunpack.c.l.b16 %v4245
    %v4267 = vpack.c.b16 %v4260, %v4259
    %v4268 = vpack.c.b16 %v4262, %v4261
    %v4269 = vpack.c.b16 %v4264, %v4263
    %v4270 = vpack.c.b16 %v4266, %v4265
    %v4276 = vsel %vm3792, %v4236, 0
    %4278 = vmatpush.bf16.msra.mxu0 0
    %4279 = vmatpush.bf16.msra.mxu0 0
    %4280 = vmatpush.bf16.msra.mxu0 0
    %4281 = vmatpush.bf16.msra.mxu0 0
    %4282 = vmatpush.bf16.msra.mxu0 %v4270
    %4283 = vmatpush.bf16.msra.mxu0 %v4269
    %4284 = vmatpush.bf16.msra.mxu0 %v4268
    %4285 = vmatpush.bf16.msra.mxu0 %v4267
    %4286 = vmatmul.bf16.gmra.mxu0 %v4276
    %v4287 = vpop.f32.mrf.mxu0
    %v4288 = vadd.f32 %v4249, %v4287
    %v4289 = vpop.f32.mrf.mxu0
    %4290 = vdwg.mxu0
    %v4291 = vadd.f32 %v4195, %v4288
    %v4292 = vsel %vm3007, %v4291, 0.0
    %4293 = vadd.xlane.f32.xlu0 %v4292
    %v4294 = vpop.xlane.xlu0 %4293
    %v4295 = vmul.f32 %v4294, %v3693
    %v4296 = vsub.f32 %v4291, %v4295
    %v4297 = vmul.f32 %v4296, %v4296
    %v4298 = vsel %vm3007, %v4297, 0.0
    %4299 = vadd.xlane.f32.xlu0 %v4298
    %v4300 = vpop.xlane.xlu0 %4299
    %v4301 = vmul.f32 %v4300, %v3693
    %v4302 = vadd.f32 %v4301, 1e-05
    %v4303 = vrsqrt.pop %v4302
    %v4304 = vmul.f32 %v4303, %v4302
    %v4305 = vmul.f32 %v4304, %v4303
    %v4306 = vmul.f32 0.5, %v4305
    %v4307 = vsub.f32 1.5, %v4306
    %v4308 = vmul.f32 %v4303, %v4307
    %vm4309 = vweird.f32 %v4302
    %vm4310 = vweird.f32 %v4303
    %vm4311 = vmor %vm4309, %vm4310
    %v4312 = vsel %vm4311, %v4303, %v4308
    %v4313 = vmul.f32 %v4296, %v4312
    %v4314 = vperm.slane %v4166, 1
    %v4315 = vmul.f32 %v4313, %v4314
    %v4316 = vperm.slane %v4168, 1
    %v4317 = vadd.f32 %v4315, %v4316
    %v4318 = vpack.c.bf16 %v4317, %v4317
    %v4319 = vld [vmem:[%s53] sm:$0xf]
    %v4320 = vld [vmem:[%s53 + $0x4] sm:$0xf]
    %v4321 = vld [vmem:[%s53 + $0x8] sm:$0xf]
    %v4322 = vld [vmem:[%s53 + $0xc] sm:$0xf]
    %v4323 = vld [vmem:[%s55] sm:$0x1]
    %v4325 = vperm.slane %v4323, 0
    %v4331 = vunpack.c.l.b16 %v4319
    %v4332 = vunpack.c.l.b16 %v4320
    %v4333 = vunpack.c.l.b16 %v4321
    %v4334 = vunpack.c.l.b16 %v4322
    %v4335 = vpack.c.b16 %v4332, %v4331
    %v4336 = vpack.c.b16 %v4334, %v4333
    %v4340 = vsel %vm3007, %v4318, 0
    %4342 = vmatpush.bf16.msra.mxu0 0
    %4343 = vmatpush.bf16.msra.mxu0 0
    %4344 = vmatpush.bf16.msra.mxu0 0
    %4345 = vmatpush.bf16.msra.mxu0 0
    %4346 = vmatpush.bf16.msra.mxu0 0
    %4347 = vmatpush.bf16.msra.mxu0 0
    %4348 = vmatpush.bf16.msra.mxu0 %v4336
    %4349 = vmatpush.bf16.msra.mxu0 %v4335
    %4350 = vmatmul.bf16.gmra.mxu0 %v4340
    %v4351 = vpop.f32.mrf.mxu0
    %v4352 = vadd.f32 %v4325, %v4351
    %v4353 = vpop.f32.mrf.mxu0
    %4354 = vdwg.mxu0
    %4355 = vst [vmem:[#allocation11] sm:$0xff] %v4352
    %s4356 = scalar_lea.vmem %s5, 1
    %v4357 = vld [vmem:[%s4356] sm:$0x1]
    %s4358 = scalar_lea.vmem %s1, 8
    %v4359 = vld [vmem:[%s4358] sm:$0xff]
    %v4360 = vld [vmem:[%s9] sm:$0xf]
    %v4361 = vld [vmem:[%s9 + $0x4] sm:$0xf]
    %v4362 = vld [vmem:[%s9 + $0x8] sm:$0xf]
    %v4363 = vld [vmem:[%s9 + $0xc] sm:$0xf]
    %v4364 = vld [vmem:[%s9 + $0x10] sm:$0xf]
    %v4365 = vld [vmem:[%s9 + $0x14] sm:$0xf]
    %v4366 = vld [vmem:[%s9 + $0x18] sm:$0xf]
    %v4367 = vld [vmem:[%s9 + $0x1c] sm:$0xf]
    %v4368 = vld [vmem:[%s9 + $0x20] sm:$0xf]
    %v4369 = vld [vmem:[%s9 + $0x24] sm:$0xf]
    %v4370 = vld [vmem:[%s9 + $0x28] sm:$0xf]
    %v4371 = vld [vmem:[%s9 + $0x2c] sm:$0xf]
    %v4372 = vld [vmem:[%s9 + $0x30] sm:$0xf]
    %v4373 = vld [vmem:[%s9 + $0x34] sm:$0xf]
    %v4374 = vld [vmem:[%s9 + $0x38] sm:$0xf]
    %v4375 = vld [vmem:[%s9 + $0x3c] sm:$0xf]
    %v4376 = vld [vmem:[%s9 + $0x40] sm:$0xf]
    %v4377 = vld [vmem:[%s9 + $0x44] sm:$0xf]
    %v4378 = vld [vmem:[%s9 + $0x48] sm:$0xf]
    %v4379 = vld [vmem:[%s9 + $0x4c] sm:$0xf]
    %v4380 = vld [vmem:[%s9 + $0x50] sm:$0xf]
    %v4381 = vld [vmem:[%s9 + $0x54] sm:$0xf]
    %v4382 = vld [vmem:[%s9 + $0x58] sm:$0xf]
    %v4383 = vld [vmem:[%s9 + $0x5c] sm:$0xf]
    %v4384 = vld [vmem:[%s9 + $0x60] sm:$0xf]
    %v4385 = vld [vmem:[%s9 + $0x64] sm:$0xf]
    %v4386 = vld [vmem:[%s9 + $0x68] sm:$0xf]
    %v4387 = vld [vmem:[%s9 + $0x6c] sm:$0xf]
    %v4388 = vld [vmem:[%s9 + $0x70] sm:$0xf]
    %v4389 = vld [vmem:[%s9 + $0x74] sm:$0xf]
    %v4390 = vld [vmem:[%s9 + $0x78] sm:$0xf]
    %v4391 = vld [vmem:[%s9 + $0x7c] sm:$0xf]
    %v4392 = vld [vmem:[%s11] sm:$0xf]
    %v4394 = vsel %vm215, %v4357, 0
    %v4397 = vsel %vm219, %v4392, 0
    %4399 = vmatpush.bf16.msra.mxu0 0
    %4400 = vmatpush.bf16.msra.mxu0 0
    %4401 = vmatpush.bf16.msra.mxu0 0
    %4402 = vmatpush.bf16.msra.mxu0 0
    %4403 = vmatpush.bf16.msra.mxu0 0
    %4404 = vmatpush.bf16.msra.mxu0 0
    %4405 = vmatpush.bf16.msra.mxu0 0
    %4406 = vmatpush.bf16.msra.mxu0 %v4397
    %4407 = vmatmul.bf16.gmra.mxu0 %v4394
    %v4408 = vpop.f32.mrf.mxu0
    %v4409 = vadd.f32 0.0, %v4408
    %v4410 = vpop.f32.mrf.mxu0
    %4411 = vdwg.mxu0
    %v4412 = vperm.slane %v4409, 0
    %v4414 = vunpack.c.l.b16 %v4359
    %v4415 = vunpack.c.h.b16 %v4359
    %v4416 = vpack.c.b16 %v4414, %v4414
    %v4417 = vpack.c.b16 %v4415, %v4415
    %v4452 = vunpack.c.l.b16 %v4360
    %v4453 = vunpack.c.l.b16 %v4361
    %v4454 = vunpack.c.l.b16 %v4362
    %v4455 = vunpack.c.l.b16 %v4363
    %v4456 = vunpack.c.l.b16 %v4364
    %v4457 = vunpack.c.l.b16 %v4365
    %v4458 = vunpack.c.l.b16 %v4366
    %v4459 = vunpack.c.l.b16 %v4367
    %v4460 = vunpack.c.l.b16 %v4368
    %v4461 = vunpack.c.l.b16 %v4369
    %v4462 = vunpack.c.l.b16 %v4370
    %v4463 = vunpack.c.l.b16 %v4371
    %v4464 = vunpack.c.l.b16 %v4372
    %v4465 = vunpack.c.l.b16 %v4373
    %v4466 = vunpack.c.l.b16 %v4374
    %v4467 = vunpack.c.l.b16 %v4375
    %v4468 = vunpack.c.l.b16 %v4376
    %v4469 = vunpack.c.l.b16 %v4377
    %v4470 = vunpack.c.l.b16 %v4378
    %v4471 = vunpack.c.l.b16 %v4379
    %v4472 = vunpack.c.l.b16 %v4380
    %v4473 = vunpack.c.l.b16 %v4381
    %v4474 = vunpack.c.l.b16 %v4382
    %v4475 = vunpack.c.l.b16 %v4383
    %v4476 = vunpack.c.l.b16 %v4384
    %v4477 = vunpack.c.l.b16 %v4385
    %v4478 = vunpack.c.l.b16 %v4386
    %v4479 = vunpack.c.l.b16 %v4387
    %v4480 = vunpack.c.l.b16 %v4388
    %v4481 = vunpack.c.l.b16 %v4389
    %v4482 = vunpack.c.l.b16 %v4390
    %v4483 = vunpack.c.l.b16 %v4391
    %v4484 = vpack.c.b16 %v4453, %v4452
    %v4485 = vpack.c.b16 %v4455, %v4454
    %v4486 = vpack.c.b16 %v4457, %v4456
    %v4487 = vpack.c.b16 %v4459, %v4458
    %v4488 = vpack.c.b16 %v4461, %v4460
    %v4489 = vpack.c.b16 %v4463, %v4462
    %v4490 = vpack.c.b16 %v4465, %v4464
    %v4491 = vpack.c.b16 %v4467, %v4466
    %v4492 = vpack.c.b16 %v4469, %v4468
    %v4493 = vpack.c.b16 %v4471, %v4470
    %v4494 = vpack.c.b16 %v4473, %v4472
    %v4495 = vpack.c.b16 %v4475, %v4474
    %v4496 = vpack.c.b16 %v4477, %v4476
    %v4497 = vpack.c.b16 %v4479, %v4478
    %v4498 = vpack.c.b16 %v4481, %v4480
    %v4499 = vpack.c.b16 %v4483, %v4482
    %4516 = vmatpush.bf16.msra.mxu0 %v4491
    %4517 = vmatpush.bf16.msra.mxu0 %v4490
    %4518 = vmatpush.bf16.msra.mxu0 %v4489
    %4519 = vmatpush.bf16.msra.mxu0 %v4488
    %4520 = vmatpush.bf16.msra.mxu0 %v4487
    %4521 = vmatpush.bf16.msra.mxu0 %v4486
    %4522 = vmatpush.bf16.msra.mxu0 %v4485
    %4523 = vmatpush.bf16.msra.mxu0 %v4484
    %4524 = vmatmul.bf16.gmra.mxu0 %v4416
    %v4525 = vpop.f32.mrf.mxu0
    %v4526 = vadd.f32 %v4412, %v4525
    %v4527 = vpop.f32.mrf.mxu0
    %4528 = vdwg.mxu0
    %4529 = vmatpush.bf16.msra.mxu0 %v4499
    %4530 = vmatpush.bf16.msra.mxu0 %v4498
    %4531 = vmatpush.bf16.msra.mxu0 %v4497
    %4532 = vmatpush.bf16.msra.mxu0 %v4496
    %4533 = vmatpush.bf16.msra.mxu0 %v4495
    %4534 = vmatpush.bf16.msra.mxu0 %v4494
    %4535 = vmatpush.bf16.msra.mxu0 %v4493
    %4536 = vmatpush.bf16.msra.mxu0 %v4492
    %4537 = vmatmul.bf16.gmra.mxu0 %v4417
    %v4538 = vpop.f32.mrf.mxu0
    %v4539 = vadd.f32 %v4526, %v4538
    %v4540 = vpop.f32.mrf.mxu0
    %4541 = vdwg.mxu0
    %v4542 = vld [vmem:[#allocation2] sm:$0x1]
    %v4544 = vperm.slane %v4542, 0
    %v4546 = vadd.f32 %v4539, %v4544
    %s4547 = scalar_lea.vmem %s3, 128
    %v4548 = vld [vmem:[%s4547] sm:$0x77]
    %v4549 = vld [vmem:[%s4547 + $0x8] sm:$0x77]
    %v4550 = vld [vmem:[%s4547 + $0x10] sm:$0x77]
    %v4551 = vld [vmem:[%s4547 + $0x18] sm:$0x77]
    %v4552 = vld [vmem:[%s4547 + $0x20] sm:$0x77]
    %v4553 = vld [vmem:[%s4547 + $0x28] sm:$0x77]
    %v4554 = vld [vmem:[%s4547 + $0x30] sm:$0x77]
    %v4555 = vld [vmem:[%s4547 + $0x38] sm:$0x77]
    %v4556 = vld [vmem:[%s4547 + $0x40] sm:$0x77]
    %v4557 = vld [vmem:[%s4547 + $0x48] sm:$0x77]
    %v4558 = vld [vmem:[%s4547 + $0x50] sm:$0x77]
    %v4559 = vld [vmem:[%s4547 + $0x58] sm:$0x77]
    %v4560 = vld [vmem:[%s4547 + $0x60] sm:$0x77]
    %v4561 = vld [vmem:[%s4547 + $0x68] sm:$0x77]
    %v4562 = vld [vmem:[%s4547 + $0x70] sm:$0x77]
    %v4563 = vld [vmem:[%s4547 + $0x78] sm:$0x77]
    %v4564 = vld [vmem:[%s15] sm:$0xf]
    %v4565 = vld [vmem:[%s15 + $0x4] sm:$0xf]
    %v4566 = vld [vmem:[%s15 + $0x8] sm:$0xf]
    %v4567 = vld [vmem:[%s15 + $0xc] sm:$0xf]
    %v4568 = vld [vmem:[%s15 + $0x10] sm:$0xf]
    %v4569 = vld [vmem:[%s15 + $0x14] sm:$0xf]
    %v4570 = vld [vmem:[%s15 + $0x18] sm:$0xf]
    %v4571 = vld [vmem:[%s15 + $0x1c] sm:$0xf]
    %v4572 = vld [vmem:[%s15 + $0x20] sm:$0xf]
    %v4573 = vld [vmem:[%s15 + $0x24] sm:$0xf]
    %v4574 = vld [vmem:[%s15 + $0x28] sm:$0xf]
    %v4575 = vld [vmem:[%s15 + $0x2c] sm:$0xf]
    %v4576 = vld [vmem:[%s15 + $0x30] sm:$0xf]
    %v4577 = vld [vmem:[%s15 + $0x34] sm:$0xf]
    %v4578 = vld [vmem:[%s15 + $0x38] sm:$0xf]
    %v4579 = vld [vmem:[%s15 + $0x3c] sm:$0xf]
    %v4580 = vld [vmem:[%s15 + $0x40] sm:$0xf]
    %v4581 = vld [vmem:[%s15 + $0x44] sm:$0xf]
    %v4582 = vld [vmem:[%s15 + $0x48] sm:$0xf]
    %v4583 = vld [vmem:[%s15 + $0x4c] sm:$0xf]
    %v4584 = vld [vmem:[%s15 + $0x50] sm:$0xf]
    %v4585 = vld [vmem:[%s15 + $0x54] sm:$0xf]
    %v4586 = vld [vmem:[%s15 + $0x58] sm:$0xf]
    %v4587 = vld [vmem:[%s15 + $0x5c] sm:$0xf]
    %v4588 = vld [vmem:[%s15 + $0x60] sm:$0xf]
    %v4589 = vld [vmem:[%s15 + $0x64] sm:$0xf]
    %v4590 = vld [vmem:[%s15 + $0x68] sm:$0xf]
    %v4591 = vld [vmem:[%s15 + $0x6c] sm:$0xf]
    %v4592 = vld [vmem:[%s15 + $0x70] sm:$0xf]
    %v4593 = vld [vmem:[%s15 + $0x74] sm:$0xf]
    %v4594 = vld [vmem:[%s15 + $0x78] sm:$0xf]
    %v4595 = vld [vmem:[%s15 + $0x7c] sm:$0xf]
    %v4596 = vld [vmem:[%s15 + $0x80] sm:$0xf]
    %v4597 = vld [vmem:[%s15 + $0x84] sm:$0xf]
    %v4598 = vld [vmem:[%s15 + $0x88] sm:$0xf]
    %v4599 = vld [vmem:[%s15 + $0x8c] sm:$0xf]
    %v4600 = vld [vmem:[%s15 + $0x90] sm:$0xf]
    %v4601 = vld [vmem:[%s15 + $0x94] sm:$0xf]
    %v4602 = vld [vmem:[%s15 + $0x98] sm:$0xf]
    %v4603 = vld [vmem:[%s15 + $0x9c] sm:$0xf]
    %v4604 = vld [vmem:[%s15 + $0xa0] sm:$0xf]
    %v4605 = vld [vmem:[%s15 + $0xa4] sm:$0xf]
    %v4606 = vld [vmem:[%s15 + $0xa8] sm:$0xf]
    %v4607 = vld [vmem:[%s15 + $0xac] sm:$0xf]
    %v4608 = vld [vmem:[%s15 + $0xb0] sm:$0xf]
    %v4609 = vld [vmem:[%s15 + $0xb4] sm:$0xf]
    %v4610 = vld [vmem:[%s15 + $0xb8] sm:$0xf]
    %v4611 = vld [vmem:[%s15 + $0xbc] sm:$0xf]
    %v4612 = vld [vmem:[%s15 + $0xc0] sm:$0xf]
    %v4613 = vld [vmem:[%s15 + $0xc4] sm:$0xf]
    %v4614 = vld [vmem:[%s15 + $0xc8] sm:$0xf]
    %v4615 = vld [vmem:[%s15 + $0xcc] sm:$0xf]
    %v4616 = vld [vmem:[%s15 + $0xd0] sm:$0xf]
    %v4617 = vld [vmem:[%s15 + $0xd4] sm:$0xf]
    %v4618 = vld [vmem:[%s15 + $0xd8] sm:$0xf]
    %v4619 = vld [vmem:[%s15 + $0xdc] sm:$0xf]
    %v4620 = vld [vmem:[%s15 + $0xe0] sm:$0xf]
    %v4621 = vld [vmem:[%s15 + $0xe4] sm:$0xf]
    %v4622 = vld [vmem:[%s15 + $0xe8] sm:$0xf]
    %v4623 = vld [vmem:[%s15 + $0xec] sm:$0xf]
    %v4624 = vld [vmem:[%s15 + $0xf0] sm:$0xf]
    %v4625 = vld [vmem:[%s15 + $0xf4] sm:$0xf]
    %v4626 = vld [vmem:[%s15 + $0xf8] sm:$0xf]
    %v4627 = vld [vmem:[%s15 + $0xfc] sm:$0xf]
    %v4628 = vld [vmem:[%s15 + $0x100] sm:$0xf]
    %v4629 = vld [vmem:[%s15 + $0x104] sm:$0xf]
    %v4630 = vld [vmem:[%s15 + $0x108] sm:$0xf]
    %v4631 = vld [vmem:[%s15 + $0x10c] sm:$0xf]
    %v4632 = vld [vmem:[%s15 + $0x110] sm:$0xf]
    %v4633 = vld [vmem:[%s15 + $0x114] sm:$0xf]
    %v4634 = vld [vmem:[%s15 + $0x118] sm:$0xf]
    %v4635 = vld [vmem:[%s15 + $0x11c] sm:$0xf]
    %v4636 = vld [vmem:[%s15 + $0x120] sm:$0xf]
    %v4637 = vld [vmem:[%s15 + $0x124] sm:$0xf]
    %v4638 = vld [vmem:[%s15 + $0x128] sm:$0xf]
    %v4639 = vld [vmem:[%s15 + $0x12c] sm:$0xf]
    %v4640 = vld [vmem:[%s15 + $0x130] sm:$0xf]
    %v4641 = vld [vmem:[%s15 + $0x134] sm:$0xf]
    %v4642 = vld [vmem:[%s15 + $0x138] sm:$0xf]
    %v4643 = vld [vmem:[%s15 + $0x13c] sm:$0xf]
    %v4644 = vld [vmem:[%s15 + $0x140] sm:$0xf]
    %v4645 = vld [vmem:[%s15 + $0x144] sm:$0xf]
    %v4646 = vld [vmem:[%s15 + $0x148] sm:$0xf]
    %v4647 = vld [vmem:[%s15 + $0x14c] sm:$0xf]
    %v4648 = vld [vmem:[%s15 + $0x150] sm:$0xf]
    %v4649 = vld [vmem:[%s15 + $0x154] sm:$0xf]
    %v4650 = vld [vmem:[%s15 + $0x158] sm:$0xf]
    %v4651 = vld [vmem:[%s15 + $0x15c] sm:$0xf]
    %v4652 = vld [vmem:[%s15 + $0x160] sm:$0xf]
    %v4653 = vld [vmem:[%s15 + $0x164] sm:$0xf]
    %v4654 = vld [vmem:[%s15 + $0x168] sm:$0xf]
    %v4655 = vld [vmem:[%s15 + $0x16c] sm:$0xf]
    %v4656 = vld [vmem:[%s15 + $0x170] sm:$0xf]
    %v4657 = vld [vmem:[%s15 + $0x174] sm:$0xf]
    %v4658 = vld [vmem:[%s15 + $0x178] sm:$0xf]
    %v4659 = vld [vmem:[%s15 + $0x17c] sm:$0xf]
    %v4660 = vld [vmem:[%s15 + $0x180] sm:$0xf]
    %v4661 = vld [vmem:[%s15 + $0x184] sm:$0xf]
    %v4662 = vld [vmem:[%s15 + $0x188] sm:$0xf]
    %v4663 = vld [vmem:[%s15 + $0x18c] sm:$0xf]
    %v4664 = vld [vmem:[%s15 + $0x190] sm:$0xf]
    %v4665 = vld [vmem:[%s15 + $0x194] sm:$0xf]
    %v4666 = vld [vmem:[%s15 + $0x198] sm:$0xf]
    %v4667 = vld [vmem:[%s15 + $0x19c] sm:$0xf]
    %v4668 = vld [vmem:[%s15 + $0x1a0] sm:$0xf]
    %v4669 = vld [vmem:[%s15 + $0x1a4] sm:$0xf]
    %v4670 = vld [vmem:[%s15 + $0x1a8] sm:$0xf]
    %v4671 = vld [vmem:[%s15 + $0x1ac] sm:$0xf]
    %v4672 = vld [vmem:[%s15 + $0x1b0] sm:$0xf]
    %v4673 = vld [vmem:[%s15 + $0x1b4] sm:$0xf]
    %v4674 = vld [vmem:[%s15 + $0x1b8] sm:$0xf]
    %v4675 = vld [vmem:[%s15 + $0x1bc] sm:$0xf]
    %v4676 = vld [vmem:[%s15 + $0x1c0] sm:$0xf]
    %v4677 = vld [vmem:[%s15 + $0x1c4] sm:$0xf]
    %v4678 = vld [vmem:[%s15 + $0x1c8] sm:$0xf]
    %v4679 = vld [vmem:[%s15 + $0x1cc] sm:$0xf]
    %v4680 = vld [vmem:[%s15 + $0x1d0] sm:$0xf]
    %v4681 = vld [vmem:[%s15 + $0x1d4] sm:$0xf]
    %v4682 = vld [vmem:[%s15 + $0x1d8] sm:$0xf]
    %v4683 = vld [vmem:[%s15 + $0x1dc] sm:$0xf]
    %v4684 = vld [vmem:[%s15 + $0x1e0] sm:$0xf]
    %v4685 = vld [vmem:[%s15 + $0x1e4] sm:$0xf]
    %v4686 = vld [vmem:[%s15 + $0x1e8] sm:$0xf]
    %v4687 = vld [vmem:[%s15 + $0x1ec] sm:$0xf]
    %v4688 = vld [vmem:[%s15 + $0x1f0] sm:$0xf]
    %v4689 = vld [vmem:[%s15 + $0x1f4] sm:$0xf]
    %v4690 = vld [vmem:[%s15 + $0x1f8] sm:$0xf]
    %v4691 = vld [vmem:[%s15 + $0x1fc] sm:$0xf]
    %v4692 = vld [vmem:[%s15 + $0x200] sm:$0xf]
    %v4693 = vld [vmem:[%s15 + $0x204] sm:$0xf]
    %v4694 = vld [vmem:[%s15 + $0x208] sm:$0xf]
    %v4695 = vld [vmem:[%s15 + $0x20c] sm:$0xf]
    %v4696 = vld [vmem:[%s15 + $0x210] sm:$0xf]
    %v4697 = vld [vmem:[%s15 + $0x214] sm:$0xf]
    %v4698 = vld [vmem:[%s15 + $0x218] sm:$0xf]
    %v4699 = vld [vmem:[%s15 + $0x21c] sm:$0xf]
    %v4700 = vld [vmem:[%s15 + $0x220] sm:$0xf]
    %v4701 = vld [vmem:[%s15 + $0x224] sm:$0xf]
    %v4702 = vld [vmem:[%s15 + $0x228] sm:$0xf]
    %v4703 = vld [vmem:[%s15 + $0x22c] sm:$0xf]
    %v4704 = vld [vmem:[%s15 + $0x230] sm:$0xf]
    %v4705 = vld [vmem:[%s15 + $0x234] sm:$0xf]
    %v4706 = vld [vmem:[%s15 + $0x238] sm:$0xf]
    %v4707 = vld [vmem:[%s15 + $0x23c] sm:$0xf]
    %v4708 = vld [vmem:[%s15 + $0x240] sm:$0xf]
    %v4709 = vld [vmem:[%s15 + $0x244] sm:$0xf]
    %v4710 = vld [vmem:[%s15 + $0x248] sm:$0xf]
    %v4711 = vld [vmem:[%s15 + $0x24c] sm:$0xf]
    %v4712 = vld [vmem:[%s15 + $0x250] sm:$0xf]
    %v4713 = vld [vmem:[%s15 + $0x254] sm:$0xf]
    %v4714 = vld [vmem:[%s15 + $0x258] sm:$0xf]
    %v4715 = vld [vmem:[%s15 + $0x25c] sm:$0xf]
    %v4716 = vld [vmem:[%s15 + $0x260] sm:$0xf]
    %v4717 = vld [vmem:[%s15 + $0x264] sm:$0xf]
    %v4718 = vld [vmem:[%s15 + $0x268] sm:$0xf]
    %v4719 = vld [vmem:[%s15 + $0x26c] sm:$0xf]
    %v4720 = vld [vmem:[%s15 + $0x270] sm:$0xf]
    %v4721 = vld [vmem:[%s15 + $0x274] sm:$0xf]
    %v4722 = vld [vmem:[%s15 + $0x278] sm:$0xf]
    %v4723 = vld [vmem:[%s15 + $0x27c] sm:$0xf]
    %v4724 = vld [vmem:[%s15 + $0x280] sm:$0xf]
    %v4725 = vld [vmem:[%s15 + $0x284] sm:$0xf]
    %v4726 = vld [vmem:[%s15 + $0x288] sm:$0xf]
    %v4727 = vld [vmem:[%s15 + $0x28c] sm:$0xf]
    %v4728 = vld [vmem:[%s15 + $0x290] sm:$0xf]
    %v4729 = vld [vmem:[%s15 + $0x294] sm:$0xf]
    %v4730 = vld [vmem:[%s15 + $0x298] sm:$0xf]
    %v4731 = vld [vmem:[%s15 + $0x29c] sm:$0xf]
    %v4732 = vld [vmem:[%s15 + $0x2a0] sm:$0xf]
    %v4733 = vld [vmem:[%s15 + $0x2a4] sm:$0xf]
    %v4734 = vld [vmem:[%s15 + $0x2a8] sm:$0xf]
    %v4735 = vld [vmem:[%s15 + $0x2ac] sm:$0xf]
    %v4736 = vld [vmem:[%s15 + $0x2b0] sm:$0xf]
    %v4737 = vld [vmem:[%s15 + $0x2b4] sm:$0xf]
    %v4738 = vld [vmem:[%s15 + $0x2b8] sm:$0xf]
    %v4739 = vld [vmem:[%s15 + $0x2bc] sm:$0xf]
    %v4740 = vld [vmem:[%s15 + $0x2c0] sm:$0xf]
    %v4741 = vld [vmem:[%s15 + $0x2c4] sm:$0xf]
    %v4742 = vld [vmem:[%s15 + $0x2c8] sm:$0xf]
    %v4743 = vld [vmem:[%s15 + $0x2cc] sm:$0xf]
    %v4744 = vld [vmem:[%s15 + $0x2d0] sm:$0xf]
    %v4745 = vld [vmem:[%s15 + $0x2d4] sm:$0xf]
    %v4746 = vld [vmem:[%s15 + $0x2d8] sm:$0xf]
    %v4747 = vld [vmem:[%s15 + $0x2dc] sm:$0xf]
    %v4748 = vld [vmem:[%s15 + $0x2e0] sm:$0xf]
    %v4749 = vld [vmem:[%s15 + $0x2e4] sm:$0xf]
    %v4750 = vld [vmem:[%s15 + $0x2e8] sm:$0xf]
    %v4751 = vld [vmem:[%s15 + $0x2ec] sm:$0xf]
    %v4752 = vld [vmem:[%s15 + $0x2f0] sm:$0xf]
    %v4753 = vld [vmem:[%s15 + $0x2f4] sm:$0xf]
    %v4754 = vld [vmem:[%s15 + $0x2f8] sm:$0xf]
    %v4755 = vld [vmem:[%s15 + $0x2fc] sm:$0xf]
    %v4756 = vld [vmem:[%s15 + $0x300] sm:$0xf]
    %v4757 = vld [vmem:[%s15 + $0x304] sm:$0xf]
    %v4758 = vld [vmem:[%s15 + $0x308] sm:$0xf]
    %v4759 = vld [vmem:[%s15 + $0x30c] sm:$0xf]
    %v4760 = vld [vmem:[%s15 + $0x310] sm:$0xf]
    %v4761 = vld [vmem:[%s15 + $0x314] sm:$0xf]
    %v4762 = vld [vmem:[%s15 + $0x318] sm:$0xf]
    %v4763 = vld [vmem:[%s15 + $0x31c] sm:$0xf]
    %v4764 = vld [vmem:[%s15 + $0x320] sm:$0xf]
    %v4765 = vld [vmem:[%s15 + $0x324] sm:$0xf]
    %v4766 = vld [vmem:[%s15 + $0x328] sm:$0xf]
    %v4767 = vld [vmem:[%s15 + $0x32c] sm:$0xf]
    %v4768 = vld [vmem:[%s15 + $0x330] sm:$0xf]
    %v4769 = vld [vmem:[%s15 + $0x334] sm:$0xf]
    %v4770 = vld [vmem:[%s15 + $0x338] sm:$0xf]
    %v4771 = vld [vmem:[%s15 + $0x33c] sm:$0xf]
    %v4772 = vld [vmem:[%s15 + $0x340] sm:$0xf]
    %v4773 = vld [vmem:[%s15 + $0x344] sm:$0xf]
    %v4774 = vld [vmem:[%s15 + $0x348] sm:$0xf]
    %v4775 = vld [vmem:[%s15 + $0x34c] sm:$0xf]
    %v4776 = vld [vmem:[%s15 + $0x350] sm:$0xf]
    %v4777 = vld [vmem:[%s15 + $0x354] sm:$0xf]
    %v4778 = vld [vmem:[%s15 + $0x358] sm:$0xf]
    %v4779 = vld [vmem:[%s15 + $0x35c] sm:$0xf]
    %v4780 = vld [vmem:[%s15 + $0x360] sm:$0xf]
    %v4781 = vld [vmem:[%s15 + $0x364] sm:$0xf]
    %v4782 = vld [vmem:[%s15 + $0x368] sm:$0xf]
    %v4783 = vld [vmem:[%s15 + $0x36c] sm:$0xf]
    %v4784 = vld [vmem:[%s15 + $0x370] sm:$0xf]
    %v4785 = vld [vmem:[%s15 + $0x374] sm:$0xf]
    %v4786 = vld [vmem:[%s15 + $0x378] sm:$0xf]
    %v4787 = vld [vmem:[%s15 + $0x37c] sm:$0xf]
    %v4788 = vld [vmem:[%s15 + $0x380] sm:$0xf]
    %v4789 = vld [vmem:[%s15 + $0x384] sm:$0xf]
    %v4790 = vld [vmem:[%s15 + $0x388] sm:$0xf]
    %v4791 = vld [vmem:[%s15 + $0x38c] sm:$0xf]
    %v4792 = vld [vmem:[%s15 + $0x390] sm:$0xf]
    %v4793 = vld [vmem:[%s15 + $0x394] sm:$0xf]
    %v4794 = vld [vmem:[%s15 + $0x398] sm:$0xf]
    %v4795 = vld [vmem:[%s15 + $0x39c] sm:$0xf]
    %v4796 = vld [vmem:[%s15 + $0x3a0] sm:$0xf]
    %v4797 = vld [vmem:[%s15 + $0x3a4] sm:$0xf]
    %v4798 = vld [vmem:[%s15 + $0x3a8] sm:$0xf]
    %v4799 = vld [vmem:[%s15 + $0x3ac] sm:$0xf]
    %v4800 = vld [vmem:[%s15 + $0x3b0] sm:$0xf]
    %v4801 = vld [vmem:[%s15 + $0x3b4] sm:$0xf]
    %v4802 = vld [vmem:[%s15 + $0x3b8] sm:$0xf]
    %v4803 = vld [vmem:[%s15 + $0x3bc] sm:$0xf]
    %v4804 = vld [vmem:[%s15 + $0x3c0] sm:$0xf]
    %v4805 = vld [vmem:[%s15 + $0x3c4] sm:$0xf]
    %v4806 = vld [vmem:[%s15 + $0x3c8] sm:$0xf]
    %v4807 = vld [vmem:[%s15 + $0x3cc] sm:$0xf]
    %v4808 = vld [vmem:[%s15 + $0x3d0] sm:$0xf]
    %v4809 = vld [vmem:[%s15 + $0x3d4] sm:$0xf]
    %v4810 = vld [vmem:[%s15 + $0x3d8] sm:$0xf]
    %v4811 = vld [vmem:[%s15 + $0x3dc] sm:$0xf]
    %v4812 = vld [vmem:[%s15 + $0x3e0] sm:$0xf]
    %v4813 = vld [vmem:[%s15 + $0x3e4] sm:$0xf]
    %v4814 = vld [vmem:[%s15 + $0x3e8] sm:$0xf]
    %v4815 = vld [vmem:[%s15 + $0x3ec] sm:$0xf]
    %v4816 = vld [vmem:[%s15 + $0x3f0] sm:$0xf]
    %v4817 = vld [vmem:[%s15 + $0x3f4] sm:$0xf]
    %v4818 = vld [vmem:[%s15 + $0x3f8] sm:$0xf]
    %v4819 = vld [vmem:[%s15 + $0x3fc] sm:$0xf]
    %v4820 = vld [vmem:[%s15 + $0x400] sm:$0xf]
    %v4821 = vld [vmem:[%s15 + $0x404] sm:$0xf]
    %v4822 = vld [vmem:[%s15 + $0x408] sm:$0xf]
    %v4823 = vld [vmem:[%s15 + $0x40c] sm:$0xf]
    %v4824 = vld [vmem:[%s15 + $0x410] sm:$0xf]
    %v4825 = vld [vmem:[%s15 + $0x414] sm:$0xf]
    %v4826 = vld [vmem:[%s15 + $0x418] sm:$0xf]
    %v4827 = vld [vmem:[%s15 + $0x41c] sm:$0xf]
    %v4828 = vld [vmem:[%s15 + $0x420] sm:$0xf]
    %v4829 = vld [vmem:[%s15 + $0x424] sm:$0xf]
    %v4830 = vld [vmem:[%s15 + $0x428] sm:$0xf]
    %v4831 = vld [vmem:[%s15 + $0x42c] sm:$0xf]
    %v4832 = vld [vmem:[%s15 + $0x430] sm:$0xf]
    %v4833 = vld [vmem:[%s15 + $0x434] sm:$0xf]
    %v4834 = vld [vmem:[%s15 + $0x438] sm:$0xf]
    %v4835 = vld [vmem:[%s15 + $0x43c] sm:$0xf]
    %v4836 = vld [vmem:[%s15 + $0x440] sm:$0xf]
    %v4837 = vld [vmem:[%s15 + $0x444] sm:$0xf]
    %v4838 = vld [vmem:[%s15 + $0x448] sm:$0xf]
    %v4839 = vld [vmem:[%s15 + $0x44c] sm:$0xf]
    %v4840 = vld [vmem:[%s15 + $0x450] sm:$0xf]
    %v4841 = vld [vmem:[%s15 + $0x454] sm:$0xf]
    %v4842 = vld [vmem:[%s15 + $0x458] sm:$0xf]
    %v4843 = vld [vmem:[%s15 + $0x45c] sm:$0xf]
    %v4844 = vld [vmem:[%s15 + $0x460] sm:$0xf]
    %v4845 = vld [vmem:[%s15 + $0x464] sm:$0xf]
    %v4846 = vld [vmem:[%s15 + $0x468] sm:$0xf]
    %v4847 = vld [vmem:[%s15 + $0x46c] sm:$0xf]
    %v4848 = vld [vmem:[%s15 + $0x470] sm:$0xf]
    %v4849 = vld [vmem:[%s15 + $0x474] sm:$0xf]
    %v4850 = vld [vmem:[%s15 + $0x478] sm:$0xf]
    %v4851 = vld [vmem:[%s15 + $0x47c] sm:$0xf]
    %v4852 = vld [vmem:[%s15 + $0x480] sm:$0xf]
    %v4853 = vld [vmem:[%s15 + $0x484] sm:$0xf]
    %v4854 = vld [vmem:[%s15 + $0x488] sm:$0xf]
    %v4855 = vld [vmem:[%s15 + $0x48c] sm:$0xf]
    %v4856 = vld [vmem:[%s15 + $0x490] sm:$0xf]
    %v4857 = vld [vmem:[%s15 + $0x494] sm:$0xf]
    %v4858 = vld [vmem:[%s15 + $0x498] sm:$0xf]
    %v4859 = vld [vmem:[%s15 + $0x49c] sm:$0xf]
    %v4860 = vld [vmem:[%s15 + $0x4a0] sm:$0xf]
    %v4861 = vld [vmem:[%s15 + $0x4a4] sm:$0xf]
    %v4862 = vld [vmem:[%s15 + $0x4a8] sm:$0xf]
    %v4863 = vld [vmem:[%s15 + $0x4ac] sm:$0xf]
    %v4864 = vld [vmem:[%s15 + $0x4b0] sm:$0xf]
    %v4865 = vld [vmem:[%s15 + $0x4b4] sm:$0xf]
    %v4866 = vld [vmem:[%s15 + $0x4b8] sm:$0xf]
    %v4867 = vld [vmem:[%s15 + $0x4bc] sm:$0xf]
    %v4868 = vld [vmem:[%s15 + $0x4c0] sm:$0xf]
    %v4869 = vld [vmem:[%s15 + $0x4c4] sm:$0xf]
    %v4870 = vld [vmem:[%s15 + $0x4c8] sm:$0xf]
    %v4871 = vld [vmem:[%s15 + $0x4cc] sm:$0xf]
    %v4872 = vld [vmem:[%s15 + $0x4d0] sm:$0xf]
    %v4873 = vld [vmem:[%s15 + $0x4d4] sm:$0xf]
    %v4874 = vld [vmem:[%s15 + $0x4d8] sm:$0xf]
    %v4875 = vld [vmem:[%s15 + $0x4dc] sm:$0xf]
    %v4876 = vld [vmem:[%s15 + $0x4e0] sm:$0xf]
    %v4877 = vld [vmem:[%s15 + $0x4e4] sm:$0xf]
    %v4878 = vld [vmem:[%s15 + $0x4e8] sm:$0xf]
    %v4879 = vld [vmem:[%s15 + $0x4ec] sm:$0xf]
    %v4880 = vld [vmem:[%s15 + $0x4f0] sm:$0xf]
    %v4881 = vld [vmem:[%s15 + $0x4f4] sm:$0xf]
    %v4882 = vld [vmem:[%s15 + $0x4f8] sm:$0xf]
    %v4883 = vld [vmem:[%s15 + $0x4fc] sm:$0xf]
    %v4884 = vld [vmem:[%s15 + $0x500] sm:$0xf]
    %v4885 = vld [vmem:[%s15 + $0x504] sm:$0xf]
    %v4886 = vld [vmem:[%s15 + $0x508] sm:$0xf]
    %v4887 = vld [vmem:[%s15 + $0x50c] sm:$0xf]
    %v4888 = vld [vmem:[%s15 + $0x510] sm:$0xf]
    %v4889 = vld [vmem:[%s15 + $0x514] sm:$0xf]
    %v4890 = vld [vmem:[%s15 + $0x518] sm:$0xf]
    %v4891 = vld [vmem:[%s15 + $0x51c] sm:$0xf]
    %v4892 = vld [vmem:[%s15 + $0x520] sm:$0xf]
    %v4893 = vld [vmem:[%s15 + $0x524] sm:$0xf]
    %v4894 = vld [vmem:[%s15 + $0x528] sm:$0xf]
    %v4895 = vld [vmem:[%s15 + $0x52c] sm:$0xf]
    %v4896 = vld [vmem:[%s15 + $0x530] sm:$0xf]
    %v4897 = vld [vmem:[%s15 + $0x534] sm:$0xf]
    %v4898 = vld [vmem:[%s15 + $0x538] sm:$0xf]
    %v4899 = vld [vmem:[%s15 + $0x53c] sm:$0xf]
    %v4900 = vld [vmem:[%s15 + $0x540] sm:$0xf]
    %v4901 = vld [vmem:[%s15 + $0x544] sm:$0xf]
    %v4902 = vld [vmem:[%s15 + $0x548] sm:$0xf]
    %v4903 = vld [vmem:[%s15 + $0x54c] sm:$0xf]
    %v4904 = vld [vmem:[%s15 + $0x550] sm:$0xf]
    %v4905 = vld [vmem:[%s15 + $0x554] sm:$0xf]
    %v4906 = vld [vmem:[%s15 + $0x558] sm:$0xf]
    %v4907 = vld [vmem:[%s15 + $0x55c] sm:$0xf]
    %v4908 = vld [vmem:[%s15 + $0x560] sm:$0xf]
    %v4909 = vld [vmem:[%s15 + $0x564] sm:$0xf]
    %v4910 = vld [vmem:[%s15 + $0x568] sm:$0xf]
    %v4911 = vld [vmem:[%s15 + $0x56c] sm:$0xf]
    %v4912 = vld [vmem:[%s15 + $0x570] sm:$0xf]
    %v4913 = vld [vmem:[%s15 + $0x574] sm:$0xf]
    %v4914 = vld [vmem:[%s15 + $0x578] sm:$0xf]
    %v4915 = vld [vmem:[%s15 + $0x57c] sm:$0xf]
    %v4916 = vld [vmem:[%s15 + $0x580] sm:$0xf]
    %v4917 = vld [vmem:[%s15 + $0x584] sm:$0xf]
    %v4918 = vld [vmem:[%s15 + $0x588] sm:$0xf]
    %v4919 = vld [vmem:[%s15 + $0x58c] sm:$0xf]
    %v4920 = vld [vmem:[%s15 + $0x590] sm:$0xf]
    %v4921 = vld [vmem:[%s15 + $0x594] sm:$0xf]
    %v4922 = vld [vmem:[%s15 + $0x598] sm:$0xf]
    %v4923 = vld [vmem:[%s15 + $0x59c] sm:$0xf]
    %v4924 = vld [vmem:[%s15 + $0x5a0] sm:$0xf]
    %v4925 = vld [vmem:[%s15 + $0x5a4] sm:$0xf]
    %v4926 = vld [vmem:[%s15 + $0x5a8] sm:$0xf]
    %v4927 = vld [vmem:[%s15 + $0x5ac] sm:$0xf]
    %v4928 = vld [vmem:[%s15 + $0x5b0] sm:$0xf]
    %v4929 = vld [vmem:[%s15 + $0x5b4] sm:$0xf]
    %v4930 = vld [vmem:[%s15 + $0x5b8] sm:$0xf]
    %v4931 = vld [vmem:[%s15 + $0x5bc] sm:$0xf]
    %v4932 = vld [vmem:[%s15 + $0x5c0] sm:$0xf]
    %v4933 = vld [vmem:[%s15 + $0x5c4] sm:$0xf]
    %v4934 = vld [vmem:[%s15 + $0x5c8] sm:$0xf]
    %v4935 = vld [vmem:[%s15 + $0x5cc] sm:$0xf]
    %v4936 = vld [vmem:[%s15 + $0x5d0] sm:$0xf]
    %v4937 = vld [vmem:[%s15 + $0x5d4] sm:$0xf]
    %v4938 = vld [vmem:[%s15 + $0x5d8] sm:$0xf]
    %v4939 = vld [vmem:[%s15 + $0x5dc] sm:$0xf]
    %v4940 = vld [vmem:[%s15 + $0x5e0] sm:$0xf]
    %v4941 = vld [vmem:[%s15 + $0x5e4] sm:$0xf]
    %v4942 = vld [vmem:[%s15 + $0x5e8] sm:$0xf]
    %v4943 = vld [vmem:[%s15 + $0x5ec] sm:$0xf]
    %v4944 = vld [vmem:[%s15 + $0x5f0] sm:$0xf]
    %v4945 = vld [vmem:[%s15 + $0x5f4] sm:$0xf]
    %v4946 = vld [vmem:[%s15 + $0x5f8] sm:$0xf]
    %v4947 = vld [vmem:[%s15 + $0x5fc] sm:$0xf]
    %v4948 = vld [vmem:[%s15 + $0x600] sm:$0xf]
    %v4949 = vld [vmem:[%s15 + $0x604] sm:$0xf]
    %v4950 = vld [vmem:[%s15 + $0x608] sm:$0xf]
    %v4951 = vld [vmem:[%s15 + $0x60c] sm:$0xf]
    %v4952 = vld [vmem:[%s15 + $0x610] sm:$0xf]
    %v4953 = vld [vmem:[%s15 + $0x614] sm:$0xf]
    %v4954 = vld [vmem:[%s15 + $0x618] sm:$0xf]
    %v4955 = vld [vmem:[%s15 + $0x61c] sm:$0xf]
    %v4956 = vld [vmem:[%s15 + $0x620] sm:$0xf]
    %v4957 = vld [vmem:[%s15 + $0x624] sm:$0xf]
    %v4958 = vld [vmem:[%s15 + $0x628] sm:$0xf]
    %v4959 = vld [vmem:[%s15 + $0x62c] sm:$0xf]
    %v4960 = vld [vmem:[%s15 + $0x630] sm:$0xf]
    %v4961 = vld [vmem:[%s15 + $0x634] sm:$0xf]
    %v4962 = vld [vmem:[%s15 + $0x638] sm:$0xf]
    %v4963 = vld [vmem:[%s15 + $0x63c] sm:$0xf]
    %v4964 = vld [vmem:[%s15 + $0x640] sm:$0xf]
    %v4965 = vld [vmem:[%s15 + $0x644] sm:$0xf]
    %v4966 = vld [vmem:[%s15 + $0x648] sm:$0xf]
    %v4967 = vld [vmem:[%s15 + $0x64c] sm:$0xf]
    %v4968 = vld [vmem:[%s15 + $0x650] sm:$0xf]
    %v4969 = vld [vmem:[%s15 + $0x654] sm:$0xf]
    %v4970 = vld [vmem:[%s15 + $0x658] sm:$0xf]
    %v4971 = vld [vmem:[%s15 + $0x65c] sm:$0xf]
    %v4972 = vld [vmem:[%s15 + $0x660] sm:$0xf]
    %v4973 = vld [vmem:[%s15 + $0x664] sm:$0xf]
    %v4974 = vld [vmem:[%s15 + $0x668] sm:$0xf]
    %v4975 = vld [vmem:[%s15 + $0x66c] sm:$0xf]
    %v4976 = vld [vmem:[%s15 + $0x670] sm:$0xf]
    %v4977 = vld [vmem:[%s15 + $0x674] sm:$0xf]
    %v4978 = vld [vmem:[%s15 + $0x678] sm:$0xf]
    %v4979 = vld [vmem:[%s15 + $0x67c] sm:$0xf]
    %v4980 = vld [vmem:[%s15 + $0x680] sm:$0xf]
    %v4981 = vld [vmem:[%s15 + $0x684] sm:$0xf]
    %v4982 = vld [vmem:[%s15 + $0x688] sm:$0xf]
    %v4983 = vld [vmem:[%s15 + $0x68c] sm:$0xf]
    %v4984 = vld [vmem:[%s15 + $0x690] sm:$0xf]
    %v4985 = vld [vmem:[%s15 + $0x694] sm:$0xf]
    %v4986 = vld [vmem:[%s15 + $0x698] sm:$0xf]
    %v4987 = vld [vmem:[%s15 + $0x69c] sm:$0xf]
    %v4988 = vld [vmem:[%s15 + $0x6a0] sm:$0xf]
    %v4989 = vld [vmem:[%s15 + $0x6a4] sm:$0xf]
    %v4990 = vld [vmem:[%s15 + $0x6a8] sm:$0xf]
    %v4991 = vld [vmem:[%s15 + $0x6ac] sm:$0xf]
    %v4992 = vld [vmem:[%s15 + $0x6b0] sm:$0xf]
    %v4993 = vld [vmem:[%s15 + $0x6b4] sm:$0xf]
    %v4994 = vld [vmem:[%s15 + $0x6b8] sm:$0xf]
    %v4995 = vld [vmem:[%s15 + $0x6bc] sm:$0xf]
    %v4996 = vld [vmem:[%s15 + $0x6c0] sm:$0xf]
    %v4997 = vld [vmem:[%s15 + $0x6c4] sm:$0xf]
    %v4998 = vld [vmem:[%s15 + $0x6c8] sm:$0xf]
    %v4999 = vld [vmem:[%s15 + $0x6cc] sm:$0xf]
    %v5000 = vld [vmem:[%s15 + $0x6d0] sm:$0xf]
    %v5001 = vld [vmem:[%s15 + $0x6d4] sm:$0xf]
    %v5002 = vld [vmem:[%s15 + $0x6d8] sm:$0xf]
    %v5003 = vld [vmem:[%s15 + $0x6dc] sm:$0xf]
    %v5004 = vld [vmem:[%s15 + $0x6e0] sm:$0xf]
    %v5005 = vld [vmem:[%s15 + $0x6e4] sm:$0xf]
    %v5006 = vld [vmem:[%s15 + $0x6e8] sm:$0xf]
    %v5007 = vld [vmem:[%s15 + $0x6ec] sm:$0xf]
    %v5008 = vld [vmem:[%s15 + $0x6f0] sm:$0xf]
    %v5009 = vld [vmem:[%s15 + $0x6f4] sm:$0xf]
    %v5010 = vld [vmem:[%s15 + $0x6f8] sm:$0xf]
    %v5011 = vld [vmem:[%s15 + $0x6fc] sm:$0xf]
    %v5012 = vld [vmem:[%s15 + $0x700] sm:$0xf]
    %v5013 = vld [vmem:[%s15 + $0x704] sm:$0xf]
    %v5014 = vld [vmem:[%s15 + $0x708] sm:$0xf]
    %v5015 = vld [vmem:[%s15 + $0x70c] sm:$0xf]
    %v5016 = vld [vmem:[%s15 + $0x710] sm:$0xf]
    %v5017 = vld [vmem:[%s15 + $0x714] sm:$0xf]
    %v5018 = vld [vmem:[%s15 + $0x718] sm:$0xf]
    %v5019 = vld [vmem:[%s15 + $0x71c] sm:$0xf]
    %v5020 = vld [vmem:[%s15 + $0x720] sm:$0xf]
    %v5021 = vld [vmem:[%s15 + $0x724] sm:$0xf]
    %v5022 = vld [vmem:[%s15 + $0x728] sm:$0xf]
    %v5023 = vld [vmem:[%s15 + $0x72c] sm:$0xf]
    %v5024 = vld [vmem:[%s15 + $0x730] sm:$0xf]
    %v5025 = vld [vmem:[%s15 + $0x734] sm:$0xf]
    %v5026 = vld [vmem:[%s15 + $0x738] sm:$0xf]
    %v5027 = vld [vmem:[%s15 + $0x73c] sm:$0xf]
    %v5028 = vld [vmem:[%s15 + $0x740] sm:$0xf]
    %v5029 = vld [vmem:[%s15 + $0x744] sm:$0xf]
    %v5030 = vld [vmem:[%s15 + $0x748] sm:$0xf]
    %v5031 = vld [vmem:[%s15 + $0x74c] sm:$0xf]
    %v5032 = vld [vmem:[%s15 + $0x750] sm:$0xf]
    %v5033 = vld [vmem:[%s15 + $0x754] sm:$0xf]
    %v5034 = vld [vmem:[%s15 + $0x758] sm:$0xf]
    %v5035 = vld [vmem:[%s15 + $0x75c] sm:$0xf]
    %v5036 = vld [vmem:[%s15 + $0x760] sm:$0xf]
    %v5037 = vld [vmem:[%s15 + $0x764] sm:$0xf]
    %v5038 = vld [vmem:[%s15 + $0x768] sm:$0xf]
    %v5039 = vld [vmem:[%s15 + $0x76c] sm:$0xf]
    %v5040 = vld [vmem:[%s15 + $0x770] sm:$0xf]
    %v5041 = vld [vmem:[%s15 + $0x774] sm:$0xf]
    %v5042 = vld [vmem:[%s15 + $0x778] sm:$0xf]
    %v5043 = vld [vmem:[%s15 + $0x77c] sm:$0xf]
    %v5044 = vld [vmem:[%s15 + $0x780] sm:$0xf]
    %v5045 = vld [vmem:[%s15 + $0x784] sm:$0xf]
    %v5046 = vld [vmem:[%s15 + $0x788] sm:$0xf]
    %v5047 = vld [vmem:[%s15 + $0x78c] sm:$0xf]
    %v5048 = vld [vmem:[%s15 + $0x790] sm:$0xf]
    %v5049 = vld [vmem:[%s15 + $0x794] sm:$0xf]
    %v5050 = vld [vmem:[%s15 + $0x798] sm:$0xf]
    %v5051 = vld [vmem:[%s15 + $0x79c] sm:$0xf]
    %v5052 = vld [vmem:[%s15 + $0x7a0] sm:$0xf]
    %v5053 = vld [vmem:[%s15 + $0x7a4] sm:$0xf]
    %v5054 = vld [vmem:[%s15 + $0x7a8] sm:$0xf]
    %v5055 = vld [vmem:[%s15 + $0x7ac] sm:$0xf]
    %v5056 = vld [vmem:[%s15 + $0x7b0] sm:$0xf]
    %v5057 = vld [vmem:[%s15 + $0x7b4] sm:$0xf]
    %v5058 = vld [vmem:[%s15 + $0x7b8] sm:$0xf]
    %v5059 = vld [vmem:[%s15 + $0x7bc] sm:$0xf]
    %v5060 = vld [vmem:[%s15 + $0x7c0] sm:$0xf]
    %v5061 = vld [vmem:[%s15 + $0x7c4] sm:$0xf]
    %v5062 = vld [vmem:[%s15 + $0x7c8] sm:$0xf]
    %v5063 = vld [vmem:[%s15 + $0x7cc] sm:$0xf]
    %v5064 = vld [vmem:[%s15 + $0x7d0] sm:$0xf]
    %v5065 = vld [vmem:[%s15 + $0x7d4] sm:$0xf]
    %v5066 = vld [vmem:[%s15 + $0x7d8] sm:$0xf]
    %v5067 = vld [vmem:[%s15 + $0x7dc] sm:$0xf]
    %v5068 = vld [vmem:[%s15 + $0x7e0] sm:$0xf]
    %v5069 = vld [vmem:[%s15 + $0x7e4] sm:$0xf]
    %v5070 = vld [vmem:[%s15 + $0x7e8] sm:$0xf]
    %v5071 = vld [vmem:[%s15 + $0x7ec] sm:$0xf]
    %v5072 = vld [vmem:[%s15 + $0x7f0] sm:$0xf]
    %v5073 = vld [vmem:[%s15 + $0x7f4] sm:$0xf]
    %v5074 = vld [vmem:[%s15 + $0x7f8] sm:$0xf]
    %v5075 = vld [vmem:[%s15 + $0x7fc] sm:$0xf]
    %v5076 = vld [vmem:[%s17] sm:$0xf]
    %v5078 = vsel %vm219, %v5076, 0
    %5080 = vmatpush.bf16.msra.mxu0 0
    %5081 = vmatpush.bf16.msra.mxu0 0
    %5082 = vmatpush.bf16.msra.mxu0 0
    %5083 = vmatpush.bf16.msra.mxu0 0
    %5084 = vmatpush.bf16.msra.mxu0 0
    %5085 = vmatpush.bf16.msra.mxu0 0
    %5086 = vmatpush.bf16.msra.mxu0 0
    %5087 = vmatpush.bf16.msra.mxu0 %v5078
    %5088 = vmatmul.bf16.gmra.mxu0 %v4394
    %v5089 = vpop.f32.mrf.mxu0
    %v5090 = vadd.f32 0.0, %v5089
    %v5091 = vpop.f32.mrf.mxu0
    %5092 = vdwg.mxu0
    %v5093 = vperm.slane %v5090, 0
    %v5110 = vunpack.c.l.b16 %v4548
    %v5111 = vunpack.c.h.b16 %v4548
    %v5112 = vunpack.c.l.b16 %v4549
    %v5113 = vunpack.c.h.b16 %v4549
    %v5114 = vunpack.c.l.b16 %v4550
    %v5115 = vunpack.c.h.b16 %v4550
    %v5116 = vunpack.c.l.b16 %v4551
    %v5117 = vunpack.c.h.b16 %v4551
    %v5118 = vunpack.c.l.b16 %v4552
    %v5119 = vunpack.c.h.b16 %v4552
    %v5120 = vunpack.c.l.b16 %v4553
    %v5121 = vunpack.c.h.b16 %v4553
    %v5122 = vunpack.c.l.b16 %v4554
    %v5123 = vunpack.c.h.b16 %v4554
    %v5124 = vunpack.c.l.b16 %v4555
    %v5125 = vunpack.c.h.b16 %v4555
    %v5126 = vunpack.c.l.b16 %v4556
    %v5127 = vunpack.c.h.b16 %v4556
    %v5128 = vunpack.c.l.b16 %v4557
    %v5129 = vunpack.c.h.b16 %v4557
    %v5130 = vunpack.c.l.b16 %v4558
    %v5131 = vunpack.c.h.b16 %v4558
    %v5132 = vunpack.c.l.b16 %v4559
    %v5133 = vunpack.c.h.b16 %v4559
    %v5134 = vunpack.c.l.b16 %v4560
    %v5135 = vunpack.c.h.b16 %v4560
    %v5136 = vunpack.c.l.b16 %v4561
    %v5137 = vunpack.c.h.b16 %v4561
    %v5138 = vunpack.c.l.b16 %v4562
    %v5139 = vunpack.c.h.b16 %v4562
    %v5140 = vunpack.c.l.b16 %v4563
    %v5141 = vunpack.c.h.b16 %v4563
    %v5142 = vpack.c.b16 %v5110, %v5110
    %v5143 = vpack.c.b16 %v5111, %v5111
    %v5144 = vpack.c.b16 %v5112, %v5112
    %v5145 = vpack.c.b16 %v5113, %v5113
    %v5146 = vpack.c.b16 %v5114, %v5114
    %v5147 = vpack.c.b16 %v5115, %v5115
    %v5148 = vpack.c.b16 %v5116, %v5116
    %v5149 = vpack.c.b16 %v5117, %v5117
    %v5150 = vpack.c.b16 %v5118, %v5118
    %v5151 = vpack.c.b16 %v5119, %v5119
    %v5152 = vpack.c.b16 %v5120, %v5120
    %v5153 = vpack.c.b16 %v5121, %v5121
    %v5154 = vpack.c.b16 %v5122, %v5122
    %v5155 = vpack.c.b16 %v5123, %v5123
    %v5156 = vpack.c.b16 %v5124, %v5124
    %v5157 = vpack.c.b16 %v5125, %v5125
    %v5158 = vpack.c.b16 %v5126, %v5126
    %v5159 = vpack.c.b16 %v5127, %v5127
    %v5160 = vpack.c.b16 %v5128, %v5128
    %v5161 = vpack.c.b16 %v5129, %v5129
    %v5162 = vpack.c.b16 %v5130, %v5130
    %v5163 = vpack.c.b16 %v5131, %v5131
    %v5164 = vpack.c.b16 %v5132, %v5132
    %v5165 = vpack.c.b16 %v5133, %v5133
    %v5166 = vpack.c.b16 %v5134, %v5134
    %v5167 = vpack.c.b16 %v5135, %v5135
    %v5168 = vpack.c.b16 %v5136, %v5136
    %v5169 = vpack.c.b16 %v5137, %v5137
    %v5170 = vpack.c.b16 %v5138, %v5138
    %v5171 = vpack.c.b16 %v5139, %v5139
    %v5172 = vpack.c.b16 %v5140, %v5140
    %v5173 = vpack.c.b16 %v5141, %v5141
    %v5718 = vunpack.c.l.b16 %v4564
    %v5719 = vunpack.c.l.b16 %v4565
    %v5720 = vunpack.c.l.b16 %v4566
    %v5721 = vunpack.c.l.b16 %v4567
    %v5722 = vunpack.c.l.b16 %v4568
    %v5723 = vunpack.c.l.b16 %v4569
    %v5724 = vunpack.c.l.b16 %v4570
    %v5725 = vunpack.c.l.b16 %v4571
    %v5726 = vunpack.c.l.b16 %v4572
    %v5727 = vunpack.c.l.b16 %v4573
    %v5728 = vunpack.c.l.b16 %v4574
    %v5729 = vunpack.c.l.b16 %v4575
    %v5730 = vunpack.c.l.b16 %v4576
    %v5731 = vunpack.c.l.b16 %v4577
    %v5732 = vunpack.c.l.b16 %v4578
    %v5733 = vunpack.c.l.b16 %v4579
    %v5734 = vunpack.c.l.b16 %v4580
    %v5735 = vunpack.c.l.b16 %v4581
    %v5736 = vunpack.c.l.b16 %v4582
    %v5737 = vunpack.c.l.b16 %v4583
    %v5738 = vunpack.c.l.b16 %v4584
    %v5739 = vunpack.c.l.b16 %v4585
    %v5740 = vunpack.c.l.b16 %v4586
    %v5741 = vunpack.c.l.b16 %v4587
    %v5742 = vunpack.c.l.b16 %v4588
    %v5743 = vunpack.c.l.b16 %v4589
    %v5744 = vunpack.c.l.b16 %v4590
    %v5745 = vunpack.c.l.b16 %v4591
    %v5746 = vunpack.c.l.b16 %v4592
    %v5747 = vunpack.c.l.b16 %v4593
    %v5748 = vunpack.c.l.b16 %v4594
    %v5749 = vunpack.c.l.b16 %v4595
    %v5750 = vunpack.c.l.b16 %v4596
    %v5751 = vunpack.c.l.b16 %v4597
    %v5752 = vunpack.c.l.b16 %v4598
    %v5753 = vunpack.c.l.b16 %v4599
    %v5754 = vunpack.c.l.b16 %v4600
    %v5755 = vunpack.c.l.b16 %v4601
    %v5756 = vunpack.c.l.b16 %v4602
    %v5757 = vunpack.c.l.b16 %v4603
    %v5758 = vunpack.c.l.b16 %v4604
    %v5759 = vunpack.c.l.b16 %v4605
    %v5760 = vunpack.c.l.b16 %v4606
    %v5761 = vunpack.c.l.b16 %v4607
    %v5762 = vunpack.c.l.b16 %v4608
    %v5763 = vunpack.c.l.b16 %v4609
    %v5764 = vunpack.c.l.b16 %v4610
    %v5765 = vunpack.c.l.b16 %v4611
    %v5766 = vunpack.c.l.b16 %v4612
    %v5767 = vunpack.c.l.b16 %v4613
    %v5768 = vunpack.c.l.b16 %v4614
    %v5769 = vunpack.c.l.b16 %v4615
    %v5770 = vunpack.c.l.b16 %v4616
    %v5771 = vunpack.c.l.b16 %v4617
    %v5772 = vunpack.c.l.b16 %v4618
    %v5773 = vunpack.c.l.b16 %v4619
    %v5774 = vunpack.c.l.b16 %v4620
    %v5775 = vunpack.c.l.b16 %v4621
    %v5776 = vunpack.c.l.b16 %v4622
    %v5777 = vunpack.c.l.b16 %v4623
    %v5778 = vunpack.c.l.b16 %v4624
    %v5779 = vunpack.c.l.b16 %v4625
    %v5780 = vunpack.c.l.b16 %v4626
    %v5781 = vunpack.c.l.b16 %v4627
    %v5782 = vunpack.c.l.b16 %v4628
    %v5783 = vunpack.c.l.b16 %v4629
    %v5784 = vunpack.c.l.b16 %v4630
    %v5785 = vunpack.c.l.b16 %v4631
    %v5786 = vunpack.c.l.b16 %v4632
    %v5787 = vunpack.c.l.b16 %v4633
    %v5788 = vunpack.c.l.b16 %v4634
    %v5789 = vunpack.c.l.b16 %v4635
    %v5790 = vunpack.c.l.b16 %v4636
    %v5791 = vunpack.c.l.b16 %v4637
    %v5792 = vunpack.c.l.b16 %v4638
    %v5793 = vunpack.c.l.b16 %v4639
    %v5794 = vunpack.c.l.b16 %v4640
    %v5795 = vunpack.c.l.b16 %v4641
    %v5796 = vunpack.c.l.b16 %v4642
    %v5797 = vunpack.c.l.b16 %v4643
    %v5798 = vunpack.c.l.b16 %v4644
    %v5799 = vunpack.c.l.b16 %v4645
    %v5800 = vunpack.c.l.b16 %v4646
    %v5801 = vunpack.c.l.b16 %v4647
    %v5802 = vunpack.c.l.b16 %v4648
    %v5803 = vunpack.c.l.b16 %v4649
    %v5804 = vunpack.c.l.b16 %v4650
    %v5805 = vunpack.c.l.b16 %v4651
    %v5806 = vunpack.c.l.b16 %v4652
    %v5807 = vunpack.c.l.b16 %v4653
    %v5808 = vunpack.c.l.b16 %v4654
    %v5809 = vunpack.c.l.b16 %v4655
    %v5810 = vunpack.c.l.b16 %v4656
    %v5811 = vunpack.c.l.b16 %v4657
    %v5812 = vunpack.c.l.b16 %v4658
    %v5813 = vunpack.c.l.b16 %v4659
    %v5814 = vunpack.c.l.b16 %v4660
    %v5815 = vunpack.c.l.b16 %v4661
    %v5816 = vunpack.c.l.b16 %v4662
    %v5817 = vunpack.c.l.b16 %v4663
    %v5818 = vunpack.c.l.b16 %v4664
    %v5819 = vunpack.c.l.b16 %v4665
    %v5820 = vunpack.c.l.b16 %v4666
    %v5821 = vunpack.c.l.b16 %v4667
    %v5822 = vunpack.c.l.b16 %v4668
    %v5823 = vunpack.c.l.b16 %v4669
    %v5824 = vunpack.c.l.b16 %v4670
    %v5825 = vunpack.c.l.b16 %v4671
    %v5826 = vunpack.c.l.b16 %v4672
    %v5827 = vunpack.c.l.b16 %v4673
    %v5828 = vunpack.c.l.b16 %v4674
    %v5829 = vunpack.c.l.b16 %v4675
    %v5830 = vunpack.c.l.b16 %v4676
    %v5831 = vunpack.c.l.b16 %v4677
    %v5832 = vunpack.c.l.b16 %v4678
    %v5833 = vunpack.c.l.b16 %v4679
    %v5834 = vunpack.c.l.b16 %v4680
    %v5835 = vunpack.c.l.b16 %v4681
    %v5836 = vunpack.c.l.b16 %v4682
    %v5837 = vunpack.c.l.b16 %v4683
    %v5838 = vunpack.c.l.b16 %v4684
    %v5839 = vunpack.c.l.b16 %v4685
    %v5840 = vunpack.c.l.b16 %v4686
    %v5841 = vunpack.c.l.b16 %v4687
    %v5842 = vunpack.c.l.b16 %v4688
    %v5843 = vunpack.c.l.b16 %v4689
    %v5844 = vunpack.c.l.b16 %v4690
    %v5845 = vunpack.c.l.b16 %v4691
    %v5846 = vunpack.c.l.b16 %v4692
    %v5847 = vunpack.c.l.b16 %v4693
    %v5848 = vunpack.c.l.b16 %v4694
    %v5849 = vunpack.c.l.b16 %v4695
    %v5850 = vunpack.c.l.b16 %v4696
    %v5851 = vunpack.c.l.b16 %v4697
    %v5852 = vunpack.c.l.b16 %v4698
    %v5853 = vunpack.c.l.b16 %v4699
    %v5854 = vunpack.c.l.b16 %v4700
    %v5855 = vunpack.c.l.b16 %v4701
    %v5856 = vunpack.c.l.b16 %v4702
    %v5857 = vunpack.c.l.b16 %v4703
    %v5858 = vunpack.c.l.b16 %v4704
    %v5859 = vunpack.c.l.b16 %v4705
    %v5860 = vunpack.c.l.b16 %v4706
    %v5861 = vunpack.c.l.b16 %v4707
    %v5862 = vunpack.c.l.b16 %v4708
    %v5863 = vunpack.c.l.b16 %v4709
    %v5864 = vunpack.c.l.b16 %v4710
    %v5865 = vunpack.c.l.b16 %v4711
    %v5866 = vunpack.c.l.b16 %v4712
    %v5867 = vunpack.c.l.b16 %v4713
    %v5868 = vunpack.c.l.b16 %v4714
    %v5869 = vunpack.c.l.b16 %v4715
    %v5870 = vunpack.c.l.b16 %v4716
    %v5871 = vunpack.c.l.b16 %v4717
    %v5872 = vunpack.c.l.b16 %v4718
    %v5873 = vunpack.c.l.b16 %v4719
    %v5874 = vunpack.c.l.b16 %v4720
    %v5875 = vunpack.c.l.b16 %v4721
    %v5876 = vunpack.c.l.b16 %v4722
    %v5877 = vunpack.c.l.b16 %v4723
    %v5878 = vunpack.c.l.b16 %v4724
    %v5879 = vunpack.c.l.b16 %v4725
    %v5880 = vunpack.c.l.b16 %v4726
    %v5881 = vunpack.c.l.b16 %v4727
    %v5882 = vunpack.c.l.b16 %v4728
    %v5883 = vunpack.c.l.b16 %v4729
    %v5884 = vunpack.c.l.b16 %v4730
    %v5885 = vunpack.c.l.b16 %v4731
    %v5886 = vunpack.c.l.b16 %v4732
    %v5887 = vunpack.c.l.b16 %v4733
    %v5888 = vunpack.c.l.b16 %v4734
    %v5889 = vunpack.c.l.b16 %v4735
    %v5890 = vunpack.c.l.b16 %v4736
    %v5891 = vunpack.c.l.b16 %v4737
    %v5892 = vunpack.c.l.b16 %v4738
    %v5893 = vunpack.c.l.b16 %v4739
    %v5894 = vunpack.c.l.b16 %v4740
    %v5895 = vunpack.c.l.b16 %v4741
    %v5896 = vunpack.c.l.b16 %v4742
    %v5897 = vunpack.c.l.b16 %v4743
    %v5898 = vunpack.c.l.b16 %v4744
    %v5899 = vunpack.c.l.b16 %v4745
    %v5900 = vunpack.c.l.b16 %v4746
    %v5901 = vunpack.c.l.b16 %v4747
    %v5902 = vunpack.c.l.b16 %v4748
    %v5903 = vunpack.c.l.b16 %v4749
    %v5904 = vunpack.c.l.b16 %v4750
    %v5905 = vunpack.c.l.b16 %v4751
    %v5906 = vunpack.c.l.b16 %v4752
    %v5907 = vunpack.c.l.b16 %v4753
    %v5908 = vunpack.c.l.b16 %v4754
    %v5909 = vunpack.c.l.b16 %v4755
    %v5910 = vunpack.c.l.b16 %v4756
    %v5911 = vunpack.c.l.b16 %v4757
    %v5912 = vunpack.c.l.b16 %v4758
    %v5913 = vunpack.c.l.b16 %v4759
    %v5914 = vunpack.c.l.b16 %v4760
    %v5915 = vunpack.c.l.b16 %v4761
    %v5916 = vunpack.c.l.b16 %v4762
    %v5917 = vunpack.c.l.b16 %v4763
    %v5918 = vunpack.c.l.b16 %v4764
    %v5919 = vunpack.c.l.b16 %v4765
    %v5920 = vunpack.c.l.b16 %v4766
    %v5921 = vunpack.c.l.b16 %v4767
    %v5922 = vunpack.c.l.b16 %v4768
    %v5923 = vunpack.c.l.b16 %v4769
    %v5924 = vunpack.c.l.b16 %v4770
    %v5925 = vunpack.c.l.b16 %v4771
    %v5926 = vunpack.c.l.b16 %v4772
    %v5927 = vunpack.c.l.b16 %v4773
    %v5928 = vunpack.c.l.b16 %v4774
    %v5929 = vunpack.c.l.b16 %v4775
    %v5930 = vunpack.c.l.b16 %v4776
    %v5931 = vunpack.c.l.b16 %v4777
    %v5932 = vunpack.c.l.b16 %v4778
    %v5933 = vunpack.c.l.b16 %v4779
    %v5934 = vunpack.c.l.b16 %v4780
    %v5935 = vunpack.c.l.b16 %v4781
    %v5936 = vunpack.c.l.b16 %v4782
    %v5937 = vunpack.c.l.b16 %v4783
    %v5938 = vunpack.c.l.b16 %v4784
    %v5939 = vunpack.c.l.b16 %v4785
    %v5940 = vunpack.c.l.b16 %v4786
    %v5941 = vunpack.c.l.b16 %v4787
    %v5942 = vunpack.c.l.b16 %v4788
    %v5943 = vunpack.c.l.b16 %v4789
    %v5944 = vunpack.c.l.b16 %v4790
    %v5945 = vunpack.c.l.b16 %v4791
    %v5946 = vunpack.c.l.b16 %v4792
    %v5947 = vunpack.c.l.b16 %v4793
    %v5948 = vunpack.c.l.b16 %v4794
    %v5949 = vunpack.c.l.b16 %v4795
    %v5950 = vunpack.c.l.b16 %v4796
    %v5951 = vunpack.c.l.b16 %v4797
    %v5952 = vunpack.c.l.b16 %v4798
    %v5953 = vunpack.c.l.b16 %v4799
    %v5954 = vunpack.c.l.b16 %v4800
    %v5955 = vunpack.c.l.b16 %v4801
    %v5956 = vunpack.c.l.b16 %v4802
    %v5957 = vunpack.c.l.b16 %v4803
    %v5958 = vunpack.c.l.b16 %v4804
    %v5959 = vunpack.c.l.b16 %v4805
    %v5960 = vunpack.c.l.b16 %v4806
    %v5961 = vunpack.c.l.b16 %v4807
    %v5962 = vunpack.c.l.b16 %v4808
    %v5963 = vunpack.c.l.b16 %v4809
    %v5964 = vunpack.c.l.b16 %v4810
    %v5965 = vunpack.c.l.b16 %v4811
    %v5966 = vunpack.c.l.b16 %v4812
    %v5967 = vunpack.c.l.b16 %v4813
    %v5968 = vunpack.c.l.b16 %v4814
    %v5969 = vunpack.c.l.b16 %v4815
    %v5970 = vunpack.c.l.b16 %v4816
    %v5971 = vunpack.c.l.b16 %v4817
    %v5972 = vunpack.c.l.b16 %v4818
    %v5973 = vunpack.c.l.b16 %v4819
    %v5974 = vunpack.c.l.b16 %v4820
    %v5975 = vunpack.c.l.b16 %v4821
    %v5976 = vunpack.c.l.b16 %v4822
    %v5977 = vunpack.c.l.b16 %v4823
    %v5978 = vunpack.c.l.b16 %v4824
    %v5979 = vunpack.c.l.b16 %v4825
    %v5980 = vunpack.c.l.b16 %v4826
    %v5981 = vunpack.c.l.b16 %v4827
    %v5982 = vunpack.c.l.b16 %v4828
    %v5983 = vunpack.c.l.b16 %v4829
    %v5984 = vunpack.c.l.b16 %v4830
    %v5985 = vunpack.c.l.b16 %v4831
    %v5986 = vunpack.c.l.b16 %v4832
    %v5987 = vunpack.c.l.b16 %v4833
    %v5988 = vunpack.c.l.b16 %v4834
    %v5989 = vunpack.c.l.b16 %v4835
    %v5990 = vunpack.c.l.b16 %v4836
    %v5991 = vunpack.c.l.b16 %v4837
    %v5992 = vunpack.c.l.b16 %v4838
    %v5993 = vunpack.c.l.b16 %v4839
    %v5994 = vunpack.c.l.b16 %v4840
    %v5995 = vunpack.c.l.b16 %v4841
    %v5996 = vunpack.c.l.b16 %v4842
    %v5997 = vunpack.c.l.b16 %v4843
    %v5998 = vunpack.c.l.b16 %v4844
    %v5999 = vunpack.c.l.b16 %v4845
    %v6000 = vunpack.c.l.b16 %v4846
    %v6001 = vunpack.c.l.b16 %v4847
    %v6002 = vunpack.c.l.b16 %v4848
    %v6003 = vunpack.c.l.b16 %v4849
    %v6004 = vunpack.c.l.b16 %v4850
    %v6005 = vunpack.c.l.b16 %v4851
    %v6006 = vunpack.c.l.b16 %v4852
    %v6007 = vunpack.c.l.b16 %v4853
    %v6008 = vunpack.c.l.b16 %v4854
    %v6009 = vunpack.c.l.b16 %v4855
    %v6010 = vunpack.c.l.b16 %v4856
    %v6011 = vunpack.c.l.b16 %v4857
    %v6012 = vunpack.c.l.b16 %v4858
    %v6013 = vunpack.c.l.b16 %v4859
    %v6014 = vunpack.c.l.b16 %v4860
    %v6015 = vunpack.c.l.b16 %v4861
    %v6016 = vunpack.c.l.b16 %v4862
    %v6017 = vunpack.c.l.b16 %v4863
    %v6018 = vunpack.c.l.b16 %v4864
    %v6019 = vunpack.c.l.b16 %v4865
    %v6020 = vunpack.c.l.b16 %v4866
    %v6021 = vunpack.c.l.b16 %v4867
    %v6022 = vunpack.c.l.b16 %v4868
    %v6023 = vunpack.c.l.b16 %v4869
    %v6024 = vunpack.c.l.b16 %v4870
    %v6025 = vunpack.c.l.b16 %v4871
    %v6026 = vunpack.c.l.b16 %v4872
    %v6027 = vunpack.c.l.b16 %v4873
    %v6028 = vunpack.c.l.b16 %v4874
    %v6029 = vunpack.c.l.b16 %v4875
    %v6030 = vunpack.c.l.b16 %v4876
    %v6031 = vunpack.c.l.b16 %v4877
    %v6032 = vunpack.c.l.b16 %v4878
    %v6033 = vunpack.c.l.b16 %v4879
    %v6034 = vunpack.c.l.b16 %v4880
    %v6035 = vunpack.c.l.b16 %v4881
    %v6036 = vunpack.c.l.b16 %v4882
    %v6037 = vunpack.c.l.b16 %v4883
    %v6038 = vunpack.c.l.b16 %v4884
    %v6039 = vunpack.c.l.b16 %v4885
    %v6040 = vunpack.c.l.b16 %v4886
    %v6041 = vunpack.c.l.b16 %v4887
    %v6042 = vunpack.c.l.b16 %v4888
    %v6043 = vunpack.c.l.b16 %v4889
    %v6044 = vunpack.c.l.b16 %v4890
    %v6045 = vunpack.c.l.b16 %v4891
    %v6046 = vunpack.c.l.b16 %v4892
    %v6047 = vunpack.c.l.b16 %v4893
    %v6048 = vunpack.c.l.b16 %v4894
    %v6049 = vunpack.c.l.b16 %v4895
    %v6050 = vunpack.c.l.b16 %v4896
    %v6051 = vunpack.c.l.b16 %v4897
    %v6052 = vunpack.c.l.b16 %v4898
    %v6053 = vunpack.c.l.b16 %v4899
    %v6054 = vunpack.c.l.b16 %v4900
    %v6055 = vunpack.c.l.b16 %v4901
    %v6056 = vunpack.c.l.b16 %v4902
    %v6057 = vunpack.c.l.b16 %v4903
    %v6058 = vunpack.c.l.b16 %v4904
    %v6059 = vunpack.c.l.b16 %v4905
    %v6060 = vunpack.c.l.b16 %v4906
    %v6061 = vunpack.c.l.b16 %v4907
    %v6062 = vunpack.c.l.b16 %v4908
    %v6063 = vunpack.c.l.b16 %v4909
    %v6064 = vunpack.c.l.b16 %v4910
    %v6065 = vunpack.c.l.b16 %v4911
    %v6066 = vunpack.c.l.b16 %v4912
    %v6067 = vunpack.c.l.b16 %v4913
    %v6068 = vunpack.c.l.b16 %v4914
    %v6069 = vunpack.c.l.b16 %v4915
    %v6070 = vunpack.c.l.b16 %v4916
    %v6071 = vunpack.c.l.b16 %v4917
    %v6072 = vunpack.c.l.b16 %v4918
    %v6073 = vunpack.c.l.b16 %v4919
    %v6074 = vunpack.c.l.b16 %v4920
    %v6075 = vunpack.c.l.b16 %v4921
    %v6076 = vunpack.c.l.b16 %v4922
    %v6077 = vunpack.c.l.b16 %v4923
    %v6078 = vunpack.c.l.b16 %v4924
    %v6079 = vunpack.c.l.b16 %v4925
    %v6080 = vunpack.c.l.b16 %v4926
    %v6081 = vunpack.c.l.b16 %v4927
    %v6082 = vunpack.c.l.b16 %v4928
    %v6083 = vunpack.c.l.b16 %v4929
    %v6084 = vunpack.c.l.b16 %v4930
    %v6085 = vunpack.c.l.b16 %v4931
    %v6086 = vunpack.c.l.b16 %v4932
    %v6087 = vunpack.c.l.b16 %v4933
    %v6088 = vunpack.c.l.b16 %v4934
    %v6089 = vunpack.c.l.b16 %v4935
    %v6090 = vunpack.c.l.b16 %v4936
    %v6091 = vunpack.c.l.b16 %v4937
    %v6092 = vunpack.c.l.b16 %v4938
    %v6093 = vunpack.c.l.b16 %v4939
    %v6094 = vunpack.c.l.b16 %v4940
    %v6095 = vunpack.c.l.b16 %v4941
    %v6096 = vunpack.c.l.b16 %v4942
    %v6097 = vunpack.c.l.b16 %v4943
    %v6098 = vunpack.c.l.b16 %v4944
    %v6099 = vunpack.c.l.b16 %v4945
    %v6100 = vunpack.c.l.b16 %v4946
    %v6101 = vunpack.c.l.b16 %v4947
    %v6102 = vunpack.c.l.b16 %v4948
    %v6103 = vunpack.c.l.b16 %v4949
    %v6104 = vunpack.c.l.b16 %v4950
    %v6105 = vunpack.c.l.b16 %v4951
    %v6106 = vunpack.c.l.b16 %v4952
    %v6107 = vunpack.c.l.b16 %v4953
    %v6108 = vunpack.c.l.b16 %v4954
    %v6109 = vunpack.c.l.b16 %v4955
    %v6110 = vunpack.c.l.b16 %v4956
    %v6111 = vunpack.c.l.b16 %v4957
    %v6112 = vunpack.c.l.b16 %v4958
    %v6113 = vunpack.c.l.b16 %v4959
    %v6114 = vunpack.c.l.b16 %v4960
    %v6115 = vunpack.c.l.b16 %v4961
    %v6116 = vunpack.c.l.b16 %v4962
    %v6117 = vunpack.c.l.b16 %v4963
    %v6118 = vunpack.c.l.b16 %v4964
    %v6119 = vunpack.c.l.b16 %v4965
    %v6120 = vunpack.c.l.b16 %v4966
    %v6121 = vunpack.c.l.b16 %v4967
    %v6122 = vunpack.c.l.b16 %v4968
    %v6123 = vunpack.c.l.b16 %v4969
    %v6124 = vunpack.c.l.b16 %v4970
    %v6125 = vunpack.c.l.b16 %v4971
    %v6126 = vunpack.c.l.b16 %v4972
    %v6127 = vunpack.c.l.b16 %v4973
    %v6128 = vunpack.c.l.b16 %v4974
    %v6129 = vunpack.c.l.b16 %v4975
    %v6130 = vunpack.c.l.b16 %v4976
    %v6131 = vunpack.c.l.b16 %v4977
    %v6132 = vunpack.c.l.b16 %v4978
    %v6133 = vunpack.c.l.b16 %v4979
    %v6134 = vunpack.c.l.b16 %v4980
    %v6135 = vunpack.c.l.b16 %v4981
    %v6136 = vunpack.c.l.b16 %v4982
    %v6137 = vunpack.c.l.b16 %v4983
    %v6138 = vunpack.c.l.b16 %v4984
    %v6139 = vunpack.c.l.b16 %v4985
    %v6140 = vunpack.c.l.b16 %v4986
    %v6141 = vunpack.c.l.b16 %v4987
    %v6142 = vunpack.c.l.b16 %v4988
    %v6143 = vunpack.c.l.b16 %v4989
    %v6144 = vunpack.c.l.b16 %v4990
    %v6145 = vunpack.c.l.b16 %v4991
    %v6146 = vunpack.c.l.b16 %v4992
    %v6147 = vunpack.c.l.b16 %v4993
    %v6148 = vunpack.c.l.b16 %v4994
    %v6149 = vunpack.c.l.b16 %v4995
    %v6150 = vunpack.c.l.b16 %v4996
    %v6151 = vunpack.c.l.b16 %v4997
    %v6152 = vunpack.c.l.b16 %v4998
    %v6153 = vunpack.c.l.b16 %v4999
    %v6154 = vunpack.c.l.b16 %v5000
    %v6155 = vunpack.c.l.b16 %v5001
    %v6156 = vunpack.c.l.b16 %v5002
    %v6157 = vunpack.c.l.b16 %v5003
    %v6158 = vunpack.c.l.b16 %v5004
    %v6159 = vunpack.c.l.b16 %v5005
    %v6160 = vunpack.c.l.b16 %v5006
    %v6161 = vunpack.c.l.b16 %v5007
    %v6162 = vunpack.c.l.b16 %v5008
    %v6163 = vunpack.c.l.b16 %v5009
    %v6164 = vunpack.c.l.b16 %v5010
    %v6165 = vunpack.c.l.b16 %v5011
    %v6166 = vunpack.c.l.b16 %v5012
    %v6167 = vunpack.c.l.b16 %v5013
    %v6168 = vunpack.c.l.b16 %v5014
    %v6169 = vunpack.c.l.b16 %v5015
    %v6170 = vunpack.c.l.b16 %v5016
    %v6171 = vunpack.c.l.b16 %v5017
    %v6172 = vunpack.c.l.b16 %v5018
    %v6173 = vunpack.c.l.b16 %v5019
    %v6174 = vunpack.c.l.b16 %v5020
    %v6175 = vunpack.c.l.b16 %v5021
    %v6176 = vunpack.c.l.b16 %v5022
    %v6177 = vunpack.c.l.b16 %v5023
    %v6178 = vunpack.c.l.b16 %v5024
    %v6179 = vunpack.c.l.b16 %v5025
    %v6180 = vunpack.c.l.b16 %v5026
    %v6181 = vunpack.c.l.b16 %v5027
    %v6182 = vunpack.c.l.b16 %v5028
    %v6183 = vunpack.c.l.b16 %v5029
    %v6184 = vunpack.c.l.b16 %v5030
    %v6185 = vunpack.c.l.b16 %v5031
    %v6186 = vunpack.c.l.b16 %v5032
    %v6187 = vunpack.c.l.b16 %v5033
    %v6188 = vunpack.c.l.b16 %v5034
    %v6189 = vunpack.c.l.b16 %v5035
    %v6190 = vunpack.c.l.b16 %v5036
    %v6191 = vunpack.c.l.b16 %v5037
    %v6192 = vunpack.c.l.b16 %v5038
    %v6193 = vunpack.c.l.b16 %v5039
    %v6194 = vunpack.c.l.b16 %v5040
    %v6195 = vunpack.c.l.b16 %v5041
    %v6196 = vunpack.c.l.b16 %v5042
    %v6197 = vunpack.c.l.b16 %v5043
    %v6198 = vunpack.c.l.b16 %v5044
    %v6199 = vunpack.c.l.b16 %v5045
    %v6200 = vunpack.c.l.b16 %v5046
    %v6201 = vunpack.c.l.b16 %v5047
    %v6202 = vunpack.c.l.b16 %v5048
    %v6203 = vunpack.c.l.b16 %v5049
    %v6204 = vunpack.c.l.b16 %v5050
    %v6205 = vunpack.c.l.b16 %v5051
    %v6206 = vunpack.c.l.b16 %v5052
    %v6207 = vunpack.c.l.b16 %v5053
    %v6208 = vunpack.c.l.b16 %v5054
    %v6209 = vunpack.c.l.b16 %v5055
    %v6210 = vunpack.c.l.b16 %v5056
    %v6211 = vunpack.c.l.b16 %v5057
    %v6212 = vunpack.c.l.b16 %v5058
    %v6213 = vunpack.c.l.b16 %v5059
    %v6214 = vunpack.c.l.b16 %v5060
    %v6215 = vunpack.c.l.b16 %v5061
    %v6216 = vunpack.c.l.b16 %v5062
    %v6217 = vunpack.c.l.b16 %v5063
    %v6218 = vunpack.c.l.b16 %v5064
    %v6219 = vunpack.c.l.b16 %v5065
    %v6220 = vunpack.c.l.b16 %v5066
    %v6221 = vunpack.c.l.b16 %v5067
    %v6222 = vunpack.c.l.b16 %v5068
    %v6223 = vunpack.c.l.b16 %v5069
    %v6224 = vunpack.c.l.b16 %v5070
    %v6225 = vunpack.c.l.b16 %v5071
    %v6226 = vunpack.c.l.b16 %v5072
    %v6227 = vunpack.c.l.b16 %v5073
    %v6228 = vunpack.c.l.b16 %v5074
    %v6229 = vunpack.c.l.b16 %v5075
    %v6230 = vpack.c.b16 %v5719, %v5718
    %v6231 = vpack.c.b16 %v5721, %v5720
    %v6232 = vpack.c.b16 %v5723, %v5722
    %v6233 = vpack.c.b16 %v5725, %v5724
    %v6234 = vpack.c.b16 %v5727, %v5726
    %v6235 = vpack.c.b16 %v5729, %v5728
    %v6236 = vpack.c.b16 %v5731, %v5730
    %v6237 = vpack.c.b16 %v5733, %v5732
    %v6238 = vpack.c.b16 %v5735, %v5734
    %v6239 = vpack.c.b16 %v5737, %v5736
    %v6240 = vpack.c.b16 %v5739, %v5738
    %v6241 = vpack.c.b16 %v5741, %v5740
    %v6242 = vpack.c.b16 %v5743, %v5742
    %v6243 = vpack.c.b16 %v5745, %v5744
    %v6244 = vpack.c.b16 %v5747, %v5746
    %v6245 = vpack.c.b16 %v5749, %v5748
    %v6246 = vpack.c.b16 %v5751, %v5750
    %v6247 = vpack.c.b16 %v5753, %v5752
    %v6248 = vpack.c.b16 %v5755, %v5754
    %v6249 = vpack.c.b16 %v5757, %v5756
    %v6250 = vpack.c.b16 %v5759, %v5758
    %v6251 = vpack.c.b16 %v5761, %v5760
    %v6252 = vpack.c.b16 %v5763, %v5762
    %v6253 = vpack.c.b16 %v5765, %v5764
    %v6254 = vpack.c.b16 %v5767, %v5766
    %v6255 = vpack.c.b16 %v5769, %v5768
    %v6256 = vpack.c.b16 %v5771, %v5770
    %v6257 = vpack.c.b16 %v5773, %v5772
    %v6258 = vpack.c.b16 %v5775, %v5774
    %v6259 = vpack.c.b16 %v5777, %v5776
    %v6260 = vpack.c.b16 %v5779, %v5778
    %v6261 = vpack.c.b16 %v5781, %v5780
    %v6262 = vpack.c.b16 %v5783, %v5782
    %v6263 = vpack.c.b16 %v5785, %v5784
    %v6264 = vpack.c.b16 %v5787, %v5786
    %v6265 = vpack.c.b16 %v5789, %v5788
    %v6266 = vpack.c.b16 %v5791, %v5790
    %v6267 = vpack.c.b16 %v5793, %v5792
    %v6268 = vpack.c.b16 %v5795, %v5794
    %v6269 = vpack.c.b16 %v5797, %v5796
    %v6270 = vpack.c.b16 %v5799, %v5798
    %v6271 = vpack.c.b16 %v5801, %v5800
    %v6272 = vpack.c.b16 %v5803, %v5802
    %v6273 = vpack.c.b16 %v5805, %v5804
    %v6274 = vpack.c.b16 %v5807, %v5806
    %v6275 = vpack.c.b16 %v5809, %v5808
    %v6276 = vpack.c.b16 %v5811, %v5810
    %v6277 = vpack.c.b16 %v5813, %v5812
    %v6278 = vpack.c.b16 %v5815, %v5814
    %v6279 = vpack.c.b16 %v5817, %v5816
    %v6280 = vpack.c.b16 %v5819, %v5818
    %v6281 = vpack.c.b16 %v5821, %v5820
    %v6282 = vpack.c.b16 %v5823, %v5822
    %v6283 = vpack.c.b16 %v5825, %v5824
    %v6284 = vpack.c.b16 %v5827, %v5826
    %v6285 = vpack.c.b16 %v5829, %v5828
    %v6286 = vpack.c.b16 %v5831, %v5830
    %v6287 = vpack.c.b16 %v5833, %v5832
    %v6288 = vpack.c.b16 %v5835, %v5834
    %v6289 = vpack.c.b16 %v5837, %v5836
    %v6290 = vpack.c.b16 %v5839, %v5838
    %v6291 = vpack.c.b16 %v5841, %v5840
    %v6292 = vpack.c.b16 %v5843, %v5842
    %v6293 = vpack.c.b16 %v5845, %v5844
    %v6294 = vpack.c.b16 %v5847, %v5846
    %v6295 = vpack.c.b16 %v5849, %v5848
    %v6296 = vpack.c.b16 %v5851, %v5850
    %v6297 = vpack.c.b16 %v5853, %v5852
    %v6298 = vpack.c.b16 %v5855, %v5854
    %v6299 = vpack.c.b16 %v5857, %v5856
    %v6300 = vpack.c.b16 %v5859, %v5858
    %v6301 = vpack.c.b16 %v5861, %v5860
    %v6302 = vpack.c.b16 %v5863, %v5862
    %v6303 = vpack.c.b16 %v5865, %v5864
    %v6304 = vpack.c.b16 %v5867, %v5866
    %v6305 = vpack.c.b16 %v5869, %v5868
    %v6306 = vpack.c.b16 %v5871, %v5870
    %v6307 = vpack.c.b16 %v5873, %v5872
    %v6308 = vpack.c.b16 %v5875, %v5874
    %v6309 = vpack.c.b16 %v5877, %v5876
    %v6310 = vpack.c.b16 %v5879, %v5878
    %v6311 = vpack.c.b16 %v5881, %v5880
    %v6312 = vpack.c.b16 %v5883, %v5882
    %v6313 = vpack.c.b16 %v5885, %v5884
    %v6314 = vpack.c.b16 %v5887, %v5886
    %v6315 = vpack.c.b16 %v5889, %v5888
    %v6316 = vpack.c.b16 %v5891, %v5890
    %v6317 = vpack.c.b16 %v5893, %v5892
    %v6318 = vpack.c.b16 %v5895, %v5894
    %v6319 = vpack.c.b16 %v5897, %v5896
    %v6320 = vpack.c.b16 %v5899, %v5898
    %v6321 = vpack.c.b16 %v5901, %v5900
    %v6322 = vpack.c.b16 %v5903, %v5902
    %v6323 = vpack.c.b16 %v5905, %v5904
    %v6324 = vpack.c.b16 %v5907, %v5906
    %v6325 = vpack.c.b16 %v5909, %v5908
    %v6326 = vpack.c.b16 %v5911, %v5910
    %v6327 = vpack.c.b16 %v5913, %v5912
    %v6328 = vpack.c.b16 %v5915, %v5914
    %v6329 = vpack.c.b16 %v5917, %v5916
    %v6330 = vpack.c.b16 %v5919, %v5918
    %v6331 = vpack.c.b16 %v5921, %v5920
    %v6332 = vpack.c.b16 %v5923, %v5922
    %v6333 = vpack.c.b16 %v5925, %v5924
    %v6334 = vpack.c.b16 %v5927, %v5926
    %v6335 = vpack.c.b16 %v5929, %v5928
    %v6336 = vpack.c.b16 %v5931, %v5930
    %v6337 = vpack.c.b16 %v5933, %v5932
    %v6338 = vpack.c.b16 %v5935, %v5934
    %v6339 = vpack.c.b16 %v5937, %v5936
    %v6340 = vpack.c.b16 %v5939, %v5938
    %v6341 = vpack.c.b16 %v5941, %v5940
    %v6342 = vpack.c.b16 %v5943, %v5942
    %v6343 = vpack.c.b16 %v5945, %v5944
    %v6344 = vpack.c.b16 %v5947, %v5946
    %v6345 = vpack.c.b16 %v5949, %v5948
    %v6346 = vpack.c.b16 %v5951, %v5950
    %v6347 = vpack.c.b16 %v5953, %v5952
    %v6348 = vpack.c.b16 %v5955, %v5954
    %v6349 = vpack.c.b16 %v5957, %v5956
    %v6350 = vpack.c.b16 %v5959, %v5958
    %v6351 = vpack.c.b16 %v5961, %v5960
    %v6352 = vpack.c.b16 %v5963, %v5962
    %v6353 = vpack.c.b16 %v5965, %v5964
    %v6354 = vpack.c.b16 %v5967, %v5966
    %v6355 = vpack.c.b16 %v5969, %v5968
    %v6356 = vpack.c.b16 %v5971, %v5970
    %v6357 = vpack.c.b16 %v5973, %v5972
    %v6358 = vpack.c.b16 %v5975, %v5974
    %v6359 = vpack.c.b16 %v5977, %v5976
    %v6360 = vpack.c.b16 %v5979, %v5978
    %v6361 = vpack.c.b16 %v5981, %v5980
    %v6362 = vpack.c.b16 %v5983, %v5982
    %v6363 = vpack.c.b16 %v5985, %v5984
    %v6364 = vpack.c.b16 %v5987, %v5986
    %v6365 = vpack.c.b16 %v5989, %v5988
    %v6366 = vpack.c.b16 %v5991, %v5990
    %v6367 = vpack.c.b16 %v5993, %v5992
    %v6368 = vpack.c.b16 %v5995, %v5994
    %v6369 = vpack.c.b16 %v5997, %v5996
    %v6370 = vpack.c.b16 %v5999, %v5998
    %v6371 = vpack.c.b16 %v6001, %v6000
    %v6372 = vpack.c.b16 %v6003, %v6002
    %v6373 = vpack.c.b16 %v6005, %v6004
    %v6374 = vpack.c.b16 %v6007, %v6006
    %v6375 = vpack.c.b16 %v6009, %v6008
    %v6376 = vpack.c.b16 %v6011, %v6010
    %v6377 = vpack.c.b16 %v6013, %v6012
    %v6378 = vpack.c.b16 %v6015, %v6014
    %v6379 = vpack.c.b16 %v6017, %v6016
    %v6380 = vpack.c.b16 %v6019, %v6018
    %v6381 = vpack.c.b16 %v6021, %v6020
    %v6382 = vpack.c.b16 %v6023, %v6022
    %v6383 = vpack.c.b16 %v6025, %v6024
    %v6384 = vpack.c.b16 %v6027, %v6026
    %v6385 = vpack.c.b16 %v6029, %v6028
    %v6386 = vpack.c.b16 %v6031, %v6030
    %v6387 = vpack.c.b16 %v6033, %v6032
    %v6388 = vpack.c.b16 %v6035, %v6034
    %v6389 = vpack.c.b16 %v6037, %v6036
    %v6390 = vpack.c.b16 %v6039, %v6038
    %v6391 = vpack.c.b16 %v6041, %v6040
    %v6392 = vpack.c.b16 %v6043, %v6042
    %v6393 = vpack.c.b16 %v6045, %v6044
    %v6394 = vpack.c.b16 %v6047, %v6046
    %v6395 = vpack.c.b16 %v6049, %v6048
    %v6396 = vpack.c.b16 %v6051, %v6050
    %v6397 = vpack.c.b16 %v6053, %v6052
    %v6398 = vpack.c.b16 %v6055, %v6054
    %v6399 = vpack.c.b16 %v6057, %v6056
    %v6400 = vpack.c.b16 %v6059, %v6058
    %v6401 = vpack.c.b16 %v6061, %v6060
    %v6402 = vpack.c.b16 %v6063, %v6062
    %v6403 = vpack.c.b16 %v6065, %v6064
    %v6404 = vpack.c.b16 %v6067, %v6066
    %v6405 = vpack.c.b16 %v6069, %v6068
    %v6406 = vpack.c.b16 %v6071, %v6070
    %v6407 = vpack.c.b16 %v6073, %v6072
    %v6408 = vpack.c.b16 %v6075, %v6074
    %v6409 = vpack.c.b16 %v6077, %v6076
    %v6410 = vpack.c.b16 %v6079, %v6078
    %v6411 = vpack.c.b16 %v6081, %v6080
    %v6412 = vpack.c.b16 %v6083, %v6082
    %v6413 = vpack.c.b16 %v6085, %v6084
    %v6414 = vpack.c.b16 %v6087, %v6086
    %v6415 = vpack.c.b16 %v6089, %v6088
    %v6416 = vpack.c.b16 %v6091, %v6090
    %v6417 = vpack.c.b16 %v6093, %v6092
    %v6418 = vpack.c.b16 %v6095, %v6094
    %v6419 = vpack.c.b16 %v6097, %v6096
    %v6420 = vpack.c.b16 %v6099, %v6098
    %v6421 = vpack.c.b16 %v6101, %v6100
    %v6422 = vpack.c.b16 %v6103, %v6102
    %v6423 = vpack.c.b16 %v6105, %v6104
    %v6424 = vpack.c.b16 %v6107, %v6106
    %v6425 = vpack.c.b16 %v6109, %v6108
    %v6426 = vpack.c.b16 %v6111, %v6110
    %v6427 = vpack.c.b16 %v6113, %v6112
    %v6428 = vpack.c.b16 %v6115, %v6114
    %v6429 = vpack.c.b16 %v6117, %v6116
    %v6430 = vpack.c.b16 %v6119, %v6118
    %v6431 = vpack.c.b16 %v6121, %v6120
    %v6432 = vpack.c.b16 %v6123, %v6122
    %v6433 = vpack.c.b16 %v6125, %v6124
    %v6434 = vpack.c.b16 %v6127, %v6126
    %v6435 = vpack.c.b16 %v6129, %v6128
    %v6436 = vpack.c.b16 %v6131, %v6130
    %v6437 = vpack.c.b16 %v6133, %v6132
    %v6438 = vpack.c.b16 %v6135, %v6134
    %v6439 = vpack.c.b16 %v6137, %v6136
    %v6440 = vpack.c.b16 %v6139, %v6138
    %v6441 = vpack.c.b16 %v6141, %v6140
    %v6442 = vpack.c.b16 %v6143, %v6142
    %v6443 = vpack.c.b16 %v6145, %v6144
    %v6444 = vpack.c.b16 %v6147, %v6146
    %v6445 = vpack.c.b16 %v6149, %v6148
    %v6446 = vpack.c.b16 %v6151, %v6150
    %v6447 = vpack.c.b16 %v6153, %v6152
    %v6448 = vpack.c.b16 %v6155, %v6154
    %v6449 = vpack.c.b16 %v6157, %v6156
    %v6450 = vpack.c.b16 %v6159, %v6158
    %v6451 = vpack.c.b16 %v6161, %v6160
    %v6452 = vpack.c.b16 %v6163, %v6162
    %v6453 = vpack.c.b16 %v6165, %v6164
    %v6454 = vpack.c.b16 %v6167, %v6166
    %v6455 = vpack.c.b16 %v6169, %v6168
    %v6456 = vpack.c.b16 %v6171, %v6170
    %v6457 = vpack.c.b16 %v6173, %v6172
    %v6458 = vpack.c.b16 %v6175, %v6174
    %v6459 = vpack.c.b16 %v6177, %v6176
    %v6460 = vpack.c.b16 %v6179, %v6178
    %v6461 = vpack.c.b16 %v6181, %v6180
    %v6462 = vpack.c.b16 %v6183, %v6182
    %v6463 = vpack.c.b16 %v6185, %v6184
    %v6464 = vpack.c.b16 %v6187, %v6186
    %v6465 = vpack.c.b16 %v6189, %v6188
    %v6466 = vpack.c.b16 %v6191, %v6190
    %v6467 = vpack.c.b16 %v6193, %v6192
    %v6468 = vpack.c.b16 %v6195, %v6194
    %v6469 = vpack.c.b16 %v6197, %v6196
    %v6470 = vpack.c.b16 %v6199, %v6198
    %v6471 = vpack.c.b16 %v6201, %v6200
    %v6472 = vpack.c.b16 %v6203, %v6202
    %v6473 = vpack.c.b16 %v6205, %v6204
    %v6474 = vpack.c.b16 %v6207, %v6206
    %v6475 = vpack.c.b16 %v6209, %v6208
    %v6476 = vpack.c.b16 %v6211, %v6210
    %v6477 = vpack.c.b16 %v6213, %v6212
    %v6478 = vpack.c.b16 %v6215, %v6214
    %v6479 = vpack.c.b16 %v6217, %v6216
    %v6480 = vpack.c.b16 %v6219, %v6218
    %v6481 = vpack.c.b16 %v6221, %v6220
    %v6482 = vpack.c.b16 %v6223, %v6222
    %v6483 = vpack.c.b16 %v6225, %v6224
    %v6484 = vpack.c.b16 %v6227, %v6226
    %v6485 = vpack.c.b16 %v6229, %v6228
    %6742 = vmatpush.bf16.msra.mxu0 %v6237
    %6743 = vmatpush.bf16.msra.mxu0 %v6236
    %6744 = vmatpush.bf16.msra.mxu0 %v6235
    %6745 = vmatpush.bf16.msra.mxu0 %v6234
    %6746 = vmatpush.bf16.msra.mxu0 %v6233
    %6747 = vmatpush.bf16.msra.mxu0 %v6232
    %6748 = vmatpush.bf16.msra.mxu0 %v6231
    %6749 = vmatpush.bf16.msra.mxu0 %v6230
    %6750 = vmatmul.bf16.gmra.mxu0 %v5142
    %v6751 = vpop.f32.mrf.mxu0
    %v6752 = vadd.f32 %v5093, %v6751
    %v6753 = vpop.f32.mrf.mxu0
    %6754 = vdwg.mxu0
    %6755 = vmatpush.bf16.msra.mxu0 %v6245
    %6756 = vmatpush.bf16.msra.mxu0 %v6244
    %6757 = vmatpush.bf16.msra.mxu0 %v6243
    %6758 = vmatpush.bf16.msra.mxu0 %v6242
    %6759 = vmatpush.bf16.msra.mxu0 %v6241
    %6760 = vmatpush.bf16.msra.mxu0 %v6240
    %6761 = vmatpush.bf16.msra.mxu0 %v6239
    %6762 = vmatpush.bf16.msra.mxu0 %v6238
    %6763 = vmatmul.bf16.gmra.mxu0 %v5143
    %v6764 = vpop.f32.mrf.mxu0
    %v6765 = vadd.f32 %v6752, %v6764
    %v6766 = vpop.f32.mrf.mxu0
    %6767 = vdwg.mxu0
    %6768 = vmatpush.bf16.msra.mxu0 %v6253
    %6769 = vmatpush.bf16.msra.mxu0 %v6252
    %6770 = vmatpush.bf16.msra.mxu0 %v6251
    %6771 = vmatpush.bf16.msra.mxu0 %v6250
    %6772 = vmatpush.bf16.msra.mxu0 %v6249
    %6773 = vmatpush.bf16.msra.mxu0 %v6248
    %6774 = vmatpush.bf16.msra.mxu0 %v6247
    %6775 = vmatpush.bf16.msra.mxu0 %v6246
    %6776 = vmatmul.bf16.gmra.mxu0 %v5144
    %v6777 = vpop.f32.mrf.mxu0
    %v6778 = vadd.f32 %v6765, %v6777
    %v6779 = vpop.f32.mrf.mxu0
    %6780 = vdwg.mxu0
    %6781 = vmatpush.bf16.msra.mxu0 %v6261
    %6782 = vmatpush.bf16.msra.mxu0 %v6260
    %6783 = vmatpush.bf16.msra.mxu0 %v6259
    %6784 = vmatpush.bf16.msra.mxu0 %v6258
    %6785 = vmatpush.bf16.msra.mxu0 %v6257
    %6786 = vmatpush.bf16.msra.mxu0 %v6256
    %6787 = vmatpush.bf16.msra.mxu0 %v6255
    %6788 = vmatpush.bf16.msra.mxu0 %v6254
    %6789 = vmatmul.bf16.gmra.mxu0 %v5145
    %v6790 = vpop.f32.mrf.mxu0
    %v6791 = vadd.f32 %v6778, %v6790
    %v6792 = vpop.f32.mrf.mxu0
    %6793 = vdwg.mxu0
    %6794 = vmatpush.bf16.msra.mxu0 %v6269
    %6795 = vmatpush.bf16.msra.mxu0 %v6268
    %6796 = vmatpush.bf16.msra.mxu0 %v6267
    %6797 = vmatpush.bf16.msra.mxu0 %v6266
    %6798 = vmatpush.bf16.msra.mxu0 %v6265
    %6799 = vmatpush.bf16.msra.mxu0 %v6264
    %6800 = vmatpush.bf16.msra.mxu0 %v6263
    %6801 = vmatpush.bf16.msra.mxu0 %v6262
    %6802 = vmatmul.bf16.gmra.mxu0 %v5146
    %v6803 = vpop.f32.mrf.mxu0
    %v6804 = vadd.f32 %v6791, %v6803
    %v6805 = vpop.f32.mrf.mxu0
    %6806 = vdwg.mxu0
    %6807 = vmatpush.bf16.msra.mxu0 %v6277
    %6808 = vmatpush.bf16.msra.mxu0 %v6276
    %6809 = vmatpush.bf16.msra.mxu0 %v6275
    %6810 = vmatpush.bf16.msra.mxu0 %v6274
    %6811 = vmatpush.bf16.msra.mxu0 %v6273
    %6812 = vmatpush.bf16.msra.mxu0 %v6272
    %6813 = vmatpush.bf16.msra.mxu0 %v6271
    %6814 = vmatpush.bf16.msra.mxu0 %v6270
    %6815 = vmatmul.bf16.gmra.mxu0 %v5147
    %v6816 = vpop.f32.mrf.mxu0
    %v6817 = vadd.f32 %v6804, %v6816
    %v6818 = vpop.f32.mrf.mxu0
    %6819 = vdwg.mxu0
    %6820 = vmatpush.bf16.msra.mxu0 %v6285
    %6821 = vmatpush.bf16.msra.mxu0 %v6284
    %6822 = vmatpush.bf16.msra.mxu0 %v6283
    %6823 = vmatpush.bf16.msra.mxu0 %v6282
    %6824 = vmatpush.bf16.msra.mxu0 %v6281
    %6825 = vmatpush.bf16.msra.mxu0 %v6280
    %6826 = vmatpush.bf16.msra.mxu0 %v6279
    %6827 = vmatpush.bf16.msra.mxu0 %v6278
    %6828 = vmatmul.bf16.gmra.mxu0 %v5148
    %v6829 = vpop.f32.mrf.mxu0
    %v6830 = vadd.f32 %v6817, %v6829
    %v6831 = vpop.f32.mrf.mxu0
    %6832 = vdwg.mxu0
    %6833 = vmatpush.bf16.msra.mxu0 %v6293
    %6834 = vmatpush.bf16.msra.mxu0 %v6292
    %6835 = vmatpush.bf16.msra.mxu0 %v6291
    %6836 = vmatpush.bf16.msra.mxu0 %v6290
    %6837 = vmatpush.bf16.msra.mxu0 %v6289
    %6838 = vmatpush.bf16.msra.mxu0 %v6288
    %6839 = vmatpush.bf16.msra.mxu0 %v6287
    %6840 = vmatpush.bf16.msra.mxu0 %v6286
    %6841 = vmatmul.bf16.gmra.mxu0 %v5149
    %v6842 = vpop.f32.mrf.mxu0
    %v6843 = vadd.f32 %v6830, %v6842
    %v6844 = vpop.f32.mrf.mxu0
    %6845 = vdwg.mxu0
    %6846 = vmatpush.bf16.msra.mxu0 %v6301
    %6847 = vmatpush.bf16.msra.mxu0 %v6300
    %6848 = vmatpush.bf16.msra.mxu0 %v6299
    %6849 = vmatpush.bf16.msra.mxu0 %v6298
    %6850 = vmatpush.bf16.msra.mxu0 %v6297
    %6851 = vmatpush.bf16.msra.mxu0 %v6296
    %6852 = vmatpush.bf16.msra.mxu0 %v6295
    %6853 = vmatpush.bf16.msra.mxu0 %v6294
    %6854 = vmatmul.bf16.gmra.mxu0 %v5150
    %v6855 = vpop.f32.mrf.mxu0
    %v6856 = vadd.f32 %v6843, %v6855
    %v6857 = vpop.f32.mrf.mxu0
    %6858 = vdwg.mxu0
    %6859 = vmatpush.bf16.msra.mxu0 %v6309
    %6860 = vmatpush.bf16.msra.mxu0 %v6308
    %6861 = vmatpush.bf16.msra.mxu0 %v6307
    %6862 = vmatpush.bf16.msra.mxu0 %v6306
    %6863 = vmatpush.bf16.msra.mxu0 %v6305
    %6864 = vmatpush.bf16.msra.mxu0 %v6304
    %6865 = vmatpush.bf16.msra.mxu0 %v6303
    %6866 = vmatpush.bf16.msra.mxu0 %v6302
    %6867 = vmatmul.bf16.gmra.mxu0 %v5151
    %v6868 = vpop.f32.mrf.mxu0
    %v6869 = vadd.f32 %v6856, %v6868
    %v6870 = vpop.f32.mrf.mxu0
    %6871 = vdwg.mxu0
    %6872 = vmatpush.bf16.msra.mxu0 %v6317
    %6873 = vmatpush.bf16.msra.mxu0 %v6316
    %6874 = vmatpush.bf16.msra.mxu0 %v6315
    %6875 = vmatpush.bf16.msra.mxu0 %v6314
    %6876 = vmatpush.bf16.msra.mxu0 %v6313
    %6877 = vmatpush.bf16.msra.mxu0 %v6312
    %6878 = vmatpush.bf16.msra.mxu0 %v6311
    %6879 = vmatpush.bf16.msra.mxu0 %v6310
    %6880 = vmatmul.bf16.gmra.mxu0 %v5152
    %v6881 = vpop.f32.mrf.mxu0
    %v6882 = vadd.f32 %v6869, %v6881
    %v6883 = vpop.f32.mrf.mxu0
    %6884 = vdwg.mxu0
    %6885 = vmatpush.bf16.msra.mxu0 %v6325
    %6886 = vmatpush.bf16.msra.mxu0 %v6324
    %6887 = vmatpush.bf16.msra.mxu0 %v6323
    %6888 = vmatpush.bf16.msra.mxu0 %v6322
    %6889 = vmatpush.bf16.msra.mxu0 %v6321
    %6890 = vmatpush.bf16.msra.mxu0 %v6320
    %6891 = vmatpush.bf16.msra.mxu0 %v6319
    %6892 = vmatpush.bf16.msra.mxu0 %v6318
    %6893 = vmatmul.bf16.gmra.mxu0 %v5153
    %v6894 = vpop.f32.mrf.mxu0
    %v6895 = vadd.f32 %v6882, %v6894
    %v6896 = vpop.f32.mrf.mxu0
    %6897 = vdwg.mxu0
    %6898 = vmatpush.bf16.msra.mxu0 %v6333
    %6899 = vmatpush.bf16.msra.mxu0 %v6332
    %6900 = vmatpush.bf16.msra.mxu0 %v6331
    %6901 = vmatpush.bf16.msra.mxu0 %v6330
    %6902 = vmatpush.bf16.msra.mxu0 %v6329
    %6903 = vmatpush.bf16.msra.mxu0 %v6328
    %6904 = vmatpush.bf16.msra.mxu0 %v6327
    %6905 = vmatpush.bf16.msra.mxu0 %v6326
    %6906 = vmatmul.bf16.gmra.mxu0 %v5154
    %v6907 = vpop.f32.mrf.mxu0
    %v6908 = vadd.f32 %v6895, %v6907
    %v6909 = vpop.f32.mrf.mxu0
    %6910 = vdwg.mxu0
    %6911 = vmatpush.bf16.msra.mxu0 %v6341
    %6912 = vmatpush.bf16.msra.mxu0 %v6340
    %6913 = vmatpush.bf16.msra.mxu0 %v6339
    %6914 = vmatpush.bf16.msra.mxu0 %v6338
    %6915 = vmatpush.bf16.msra.mxu0 %v6337
    %6916 = vmatpush.bf16.msra.mxu0 %v6336
    %6917 = vmatpush.bf16.msra.mxu0 %v6335
    %6918 = vmatpush.bf16.msra.mxu0 %v6334
    %6919 = vmatmul.bf16.gmra.mxu0 %v5155
    %v6920 = vpop.f32.mrf.mxu0
    %v6921 = vadd.f32 %v6908, %v6920
    %v6922 = vpop.f32.mrf.mxu0
    %6923 = vdwg.mxu0
    %6924 = vmatpush.bf16.msra.mxu0 %v6349
    %6925 = vmatpush.bf16.msra.mxu0 %v6348
    %6926 = vmatpush.bf16.msra.mxu0 %v6347
    %6927 = vmatpush.bf16.msra.mxu0 %v6346
    %6928 = vmatpush.bf16.msra.mxu0 %v6345
    %6929 = vmatpush.bf16.msra.mxu0 %v6344
    %6930 = vmatpush.bf16.msra.mxu0 %v6343
    %6931 = vmatpush.bf16.msra.mxu0 %v6342
    %6932 = vmatmul.bf16.gmra.mxu0 %v5156
    %v6933 = vpop.f32.mrf.mxu0
    %v6934 = vadd.f32 %v6921, %v6933
    %v6935 = vpop.f32.mrf.mxu0
    %6936 = vdwg.mxu0
    %6937 = vmatpush.bf16.msra.mxu0 %v6357
    %6938 = vmatpush.bf16.msra.mxu0 %v6356
    %6939 = vmatpush.bf16.msra.mxu0 %v6355
    %6940 = vmatpush.bf16.msra.mxu0 %v6354
    %6941 = vmatpush.bf16.msra.mxu0 %v6353
    %6942 = vmatpush.bf16.msra.mxu0 %v6352
    %6943 = vmatpush.bf16.msra.mxu0 %v6351
    %6944 = vmatpush.bf16.msra.mxu0 %v6350
    %6945 = vmatmul.bf16.gmra.mxu0 %v5157
    %v6946 = vpop.f32.mrf.mxu0
    %v6947 = vadd.f32 %v6934, %v6946
    %v6948 = vpop.f32.mrf.mxu0
    %6949 = vdwg.mxu0
    %6950 = vmatpush.bf16.msra.mxu0 %v6365
    %6951 = vmatpush.bf16.msra.mxu0 %v6364
    %6952 = vmatpush.bf16.msra.mxu0 %v6363
    %6953 = vmatpush.bf16.msra.mxu0 %v6362
    %6954 = vmatpush.bf16.msra.mxu0 %v6361
    %6955 = vmatpush.bf16.msra.mxu0 %v6360
    %6956 = vmatpush.bf16.msra.mxu0 %v6359
    %6957 = vmatpush.bf16.msra.mxu0 %v6358
    %6958 = vmatmul.bf16.gmra.mxu0 %v5158
    %v6959 = vpop.f32.mrf.mxu0
    %v6960 = vadd.f32 %v6947, %v6959
    %v6961 = vpop.f32.mrf.mxu0
    %6962 = vdwg.mxu0
    %6963 = vmatpush.bf16.msra.mxu0 %v6373
    %6964 = vmatpush.bf16.msra.mxu0 %v6372
    %6965 = vmatpush.bf16.msra.mxu0 %v6371
    %6966 = vmatpush.bf16.msra.mxu0 %v6370
    %6967 = vmatpush.bf16.msra.mxu0 %v6369
    %6968 = vmatpush.bf16.msra.mxu0 %v6368
    %6969 = vmatpush.bf16.msra.mxu0 %v6367
    %6970 = vmatpush.bf16.msra.mxu0 %v6366
    %6971 = vmatmul.bf16.gmra.mxu0 %v5159
    %v6972 = vpop.f32.mrf.mxu0
    %v6973 = vadd.f32 %v6960, %v6972
    %v6974 = vpop.f32.mrf.mxu0
    %6975 = vdwg.mxu0
    %6976 = vmatpush.bf16.msra.mxu0 %v6381
    %6977 = vmatpush.bf16.msra.mxu0 %v6380
    %6978 = vmatpush.bf16.msra.mxu0 %v6379
    %6979 = vmatpush.bf16.msra.mxu0 %v6378
    %6980 = vmatpush.bf16.msra.mxu0 %v6377
    %6981 = vmatpush.bf16.msra.mxu0 %v6376
    %6982 = vmatpush.bf16.msra.mxu0 %v6375
    %6983 = vmatpush.bf16.msra.mxu0 %v6374
    %6984 = vmatmul.bf16.gmra.mxu0 %v5160
    %v6985 = vpop.f32.mrf.mxu0
    %v6986 = vadd.f32 %v6973, %v6985
    %v6987 = vpop.f32.mrf.mxu0
    %6988 = vdwg.mxu0
    %6989 = vmatpush.bf16.msra.mxu0 %v6389
    %6990 = vmatpush.bf16.msra.mxu0 %v6388
    %6991 = vmatpush.bf16.msra.mxu0 %v6387
    %6992 = vmatpush.bf16.msra.mxu0 %v6386
    %6993 = vmatpush.bf16.msra.mxu0 %v6385
    %6994 = vmatpush.bf16.msra.mxu0 %v6384
    %6995 = vmatpush.bf16.msra.mxu0 %v6383
    %6996 = vmatpush.bf16.msra.mxu0 %v6382
    %6997 = vmatmul.bf16.gmra.mxu0 %v5161
    %v6998 = vpop.f32.mrf.mxu0
    %v6999 = vadd.f32 %v6986, %v6998
    %v7000 = vpop.f32.mrf.mxu0
    %7001 = vdwg.mxu0
    %7002 = vmatpush.bf16.msra.mxu0 %v6397
    %7003 = vmatpush.bf16.msra.mxu0 %v6396
    %7004 = vmatpush.bf16.msra.mxu0 %v6395
    %7005 = vmatpush.bf16.msra.mxu0 %v6394
    %7006 = vmatpush.bf16.msra.mxu0 %v6393
    %7007 = vmatpush.bf16.msra.mxu0 %v6392
    %7008 = vmatpush.bf16.msra.mxu0 %v6391
    %7009 = vmatpush.bf16.msra.mxu0 %v6390
    %7010 = vmatmul.bf16.gmra.mxu0 %v5162
    %v7011 = vpop.f32.mrf.mxu0
    %v7012 = vadd.f32 %v6999, %v7011
    %v7013 = vpop.f32.mrf.mxu0
    %7014 = vdwg.mxu0
    %7015 = vmatpush.bf16.msra.mxu0 %v6405
    %7016 = vmatpush.bf16.msra.mxu0 %v6404
    %7017 = vmatpush.bf16.msra.mxu0 %v6403
    %7018 = vmatpush.bf16.msra.mxu0 %v6402
    %7019 = vmatpush.bf16.msra.mxu0 %v6401
    %7020 = vmatpush.bf16.msra.mxu0 %v6400
    %7021 = vmatpush.bf16.msra.mxu0 %v6399
    %7022 = vmatpush.bf16.msra.mxu0 %v6398
    %7023 = vmatmul.bf16.gmra.mxu0 %v5163
    %v7024 = vpop.f32.mrf.mxu0
    %v7025 = vadd.f32 %v7012, %v7024
    %v7026 = vpop.f32.mrf.mxu0
    %7027 = vdwg.mxu0
    %7028 = vmatpush.bf16.msra.mxu0 %v6413
    %7029 = vmatpush.bf16.msra.mxu0 %v6412
    %7030 = vmatpush.bf16.msra.mxu0 %v6411
    %7031 = vmatpush.bf16.msra.mxu0 %v6410
    %7032 = vmatpush.bf16.msra.mxu0 %v6409
    %7033 = vmatpush.bf16.msra.mxu0 %v6408
    %7034 = vmatpush.bf16.msra.mxu0 %v6407
    %7035 = vmatpush.bf16.msra.mxu0 %v6406
    %7036 = vmatmul.bf16.gmra.mxu0 %v5164
    %v7037 = vpop.f32.mrf.mxu0
    %v7038 = vadd.f32 %v7025, %v7037
    %v7039 = vpop.f32.mrf.mxu0
    %7040 = vdwg.mxu0
    %7041 = vmatpush.bf16.msra.mxu0 %v6421
    %7042 = vmatpush.bf16.msra.mxu0 %v6420
    %7043 = vmatpush.bf16.msra.mxu0 %v6419
    %7044 = vmatpush.bf16.msra.mxu0 %v6418
    %7045 = vmatpush.bf16.msra.mxu0 %v6417
    %7046 = vmatpush.bf16.msra.mxu0 %v6416
    %7047 = vmatpush.bf16.msra.mxu0 %v6415
    %7048 = vmatpush.bf16.msra.mxu0 %v6414
    %7049 = vmatmul.bf16.gmra.mxu0 %v5165
    %v7050 = vpop.f32.mrf.mxu0
    %v7051 = vadd.f32 %v7038, %v7050
    %v7052 = vpop.f32.mrf.mxu0
    %7053 = vdwg.mxu0
    %7054 = vmatpush.bf16.msra.mxu0 %v6429
    %7055 = vmatpush.bf16.msra.mxu0 %v6428
    %7056 = vmatpush.bf16.msra.mxu0 %v6427
    %7057 = vmatpush.bf16.msra.mxu0 %v6426
    %7058 = vmatpush.bf16.msra.mxu0 %v6425
    %7059 = vmatpush.bf16.msra.mxu0 %v6424
    %7060 = vmatpush.bf16.msra.mxu0 %v6423
    %7061 = vmatpush.bf16.msra.mxu0 %v6422
    %7062 = vmatmul.bf16.gmra.mxu0 %v5166
    %v7063 = vpop.f32.mrf.mxu0
    %v7064 = vadd.f32 %v7051, %v7063
    %v7065 = vpop.f32.mrf.mxu0
    %7066 = vdwg.mxu0
    %7067 = vmatpush.bf16.msra.mxu0 %v6437
    %7068 = vmatpush.bf16.msra.mxu0 %v6436
    %7069 = vmatpush.bf16.msra.mxu0 %v6435
    %7070 = vmatpush.bf16.msra.mxu0 %v6434
    %7071 = vmatpush.bf16.msra.mxu0 %v6433
    %7072 = vmatpush.bf16.msra.mxu0 %v6432
    %7073 = vmatpush.bf16.msra.mxu0 %v6431
    %7074 = vmatpush.bf16.msra.mxu0 %v6430
    %7075 = vmatmul.bf16.gmra.mxu0 %v5167
    %v7076 = vpop.f32.mrf.mxu0
    %v7077 = vadd.f32 %v7064, %v7076
    %v7078 = vpop.f32.mrf.mxu0
    %7079 = vdwg.mxu0
    %7080 = vmatpush.bf16.msra.mxu0 %v6445
    %7081 = vmatpush.bf16.msra.mxu0 %v6444
    %7082 = vmatpush.bf16.msra.mxu0 %v6443
    %7083 = vmatpush.bf16.msra.mxu0 %v6442
    %7084 = vmatpush.bf16.msra.mxu0 %v6441
    %7085 = vmatpush.bf16.msra.mxu0 %v6440
    %7086 = vmatpush.bf16.msra.mxu0 %v6439
    %7087 = vmatpush.bf16.msra.mxu0 %v6438
    %7088 = vmatmul.bf16.gmra.mxu0 %v5168
    %v7089 = vpop.f32.mrf.mxu0
    %v7090 = vadd.f32 %v7077, %v7089
    %v7091 = vpop.f32.mrf.mxu0
    %7092 = vdwg.mxu0
    %7093 = vmatpush.bf16.msra.mxu0 %v6453
    %7094 = vmatpush.bf16.msra.mxu0 %v6452
    %7095 = vmatpush.bf16.msra.mxu0 %v6451
    %7096 = vmatpush.bf16.msra.mxu0 %v6450
    %7097 = vmatpush.bf16.msra.mxu0 %v6449
    %7098 = vmatpush.bf16.msra.mxu0 %v6448
    %7099 = vmatpush.bf16.msra.mxu0 %v6447
    %7100 = vmatpush.bf16.msra.mxu0 %v6446
    %7101 = vmatmul.bf16.gmra.mxu0 %v5169
    %v7102 = vpop.f32.mrf.mxu0
    %v7103 = vadd.f32 %v7090, %v7102
    %v7104 = vpop.f32.mrf.mxu0
    %7105 = vdwg.mxu0
    %7106 = vmatpush.bf16.msra.mxu0 %v6461
    %7107 = vmatpush.bf16.msra.mxu0 %v6460
    %7108 = vmatpush.bf16.msra.mxu0 %v6459
    %7109 = vmatpush.bf16.msra.mxu0 %v6458
    %7110 = vmatpush.bf16.msra.mxu0 %v6457
    %7111 = vmatpush.bf16.msra.mxu0 %v6456
    %7112 = vmatpush.bf16.msra.mxu0 %v6455
    %7113 = vmatpush.bf16.msra.mxu0 %v6454
    %7114 = vmatmul.bf16.gmra.mxu0 %v5170
    %v7115 = vpop.f32.mrf.mxu0
    %v7116 = vadd.f32 %v7103, %v7115
    %v7117 = vpop.f32.mrf.mxu0
    %7118 = vdwg.mxu0
    %7119 = vmatpush.bf16.msra.mxu0 %v6469
    %7120 = vmatpush.bf16.msra.mxu0 %v6468
    %7121 = vmatpush.bf16.msra.mxu0 %v6467
    %7122 = vmatpush.bf16.msra.mxu0 %v6466
    %7123 = vmatpush.bf16.msra.mxu0 %v6465
    %7124 = vmatpush.bf16.msra.mxu0 %v6464
    %7125 = vmatpush.bf16.msra.mxu0 %v6463
    %7126 = vmatpush.bf16.msra.mxu0 %v6462
    %7127 = vmatmul.bf16.gmra.mxu0 %v5171
    %v7128 = vpop.f32.mrf.mxu0
    %v7129 = vadd.f32 %v7116, %v7128
    %v7130 = vpop.f32.mrf.mxu0
    %7131 = vdwg.mxu0
    %7132 = vmatpush.bf16.msra.mxu0 %v6477
    %7133 = vmatpush.bf16.msra.mxu0 %v6476
    %7134 = vmatpush.bf16.msra.mxu0 %v6475
    %7135 = vmatpush.bf16.msra.mxu0 %v6474
    %7136 = vmatpush.bf16.msra.mxu0 %v6473
    %7137 = vmatpush.bf16.msra.mxu0 %v6472
    %7138 = vmatpush.bf16.msra.mxu0 %v6471
    %7139 = vmatpush.bf16.msra.mxu0 %v6470
    %7140 = vmatmul.bf16.gmra.mxu0 %v5172
    %v7141 = vpop.f32.mrf.mxu0
    %v7142 = vadd.f32 %v7129, %v7141
    %v7143 = vpop.f32.mrf.mxu0
    %7144 = vdwg.mxu0
    %7145 = vmatpush.bf16.msra.mxu0 %v6485
    %7146 = vmatpush.bf16.msra.mxu0 %v6484
    %7147 = vmatpush.bf16.msra.mxu0 %v6483
    %7148 = vmatpush.bf16.msra.mxu0 %v6482
    %7149 = vmatpush.bf16.msra.mxu0 %v6481
    %7150 = vmatpush.bf16.msra.mxu0 %v6480
    %7151 = vmatpush.bf16.msra.mxu0 %v6479
    %7152 = vmatpush.bf16.msra.mxu0 %v6478
    %7153 = vmatmul.bf16.gmra.mxu0 %v5173
    %v7154 = vpop.f32.mrf.mxu0
    %v7155 = vadd.f32 %v7142, %v7154
    %v7156 = vpop.f32.mrf.mxu0
    %7157 = vdwg.mxu0
    %v7158 = vld [vmem:[#allocation5] sm:$0x1]
    %v7160 = vperm.slane %v7158, 0
    %v7162 = vadd.f32 %v7155, %v7160
    %v7163 = vpack.c.bf16 %v4546, %v4546
    %v7164 = vld [vmem:[%s21] sm:$0xf]
    %v7165 = vld [vmem:[%s21 + $0x4] sm:$0xf]
    %v7166 = vld [vmem:[%s21 + $0x8] sm:$0xf]
    %v7167 = vld [vmem:[%s21 + $0xc] sm:$0xf]
    %v7168 = vld [vmem:[#allocation7] sm:$0x1]
    %v7170 = vperm.slane %v7168, 0
    %v7176 = vunpack.c.l.b16 %v7164
    %v7177 = vunpack.c.l.b16 %v7165
    %v7178 = vunpack.c.l.b16 %v7166
    %v7179 = vunpack.c.l.b16 %v7167
    %v7180 = vpack.c.b16 %v7177, %v7176
    %v7181 = vpack.c.b16 %v7179, %v7178
    %v7185 = vsel %vm3007, %v7163, 0
    %7187 = vmatpush.bf16.msra.mxu0 0
    %7188 = vmatpush.bf16.msra.mxu0 0
    %7189 = vmatpush.bf16.msra.mxu0 0
    %7190 = vmatpush.bf16.msra.mxu0 0
    %7191 = vmatpush.bf16.msra.mxu0 0
    %7192 = vmatpush.bf16.msra.mxu0 0
    %7193 = vmatpush.bf16.msra.mxu0 %v7181
    %7194 = vmatpush.bf16.msra.mxu0 %v7180
    %7195 = vmatmul.bf16.gmra.mxu0 %v7185
    %v7196 = vpop.f32.mrf.mxu0
    %v7197 = vadd.f32 %v7170, %v7196
    %v7198 = vpop.f32.mrf.mxu0
    %7199 = vdwg.mxu0
    %v7200 = vpack.c.bf16 %v7197, %v7197
    %v7201 = vpack.c.bf16 %v7162, %v7162
    %v7202 = vld [vmem:[%s25] sm:$0xf]
    %v7203 = vld [vmem:[%s25 + $0x4] sm:$0xf]
    %v7204 = vld [vmem:[%s25 + $0x8] sm:$0xf]
    %v7205 = vld [vmem:[%s25 + $0xc] sm:$0xf]
    %v7206 = vld [vmem:[%s27] sm:$0x1]
    %v7208 = vperm.slane %v7206, 0
    %v7214 = vunpack.c.l.b16 %v7202
    %v7215 = vunpack.c.l.b16 %v7203
    %v7216 = vunpack.c.l.b16 %v7204
    %v7217 = vunpack.c.l.b16 %v7205
    %v7218 = vpack.c.b16 %v7215, %v7214
    %v7219 = vpack.c.b16 %v7217, %v7216
    %v7223 = vsel %vm3007, %v7201, 0
    %7225 = vmatpush.bf16.msra.mxu0 0
    %7226 = vmatpush.bf16.msra.mxu0 0
    %7227 = vmatpush.bf16.msra.mxu0 0
    %7228 = vmatpush.bf16.msra.mxu0 0
    %7229 = vmatpush.bf16.msra.mxu0 0
    %7230 = vmatpush.bf16.msra.mxu0 0
    %7231 = vmatpush.bf16.msra.mxu0 %v7219
    %7232 = vmatpush.bf16.msra.mxu0 %v7218
    %7233 = vmatmul.bf16.gmra.mxu0 %v7223
    %v7234 = vpop.f32.mrf.mxu0
    %v7235 = vadd.f32 %v7208, %v7234
    %v7236 = vpop.f32.mrf.mxu0
    %7237 = vdwg.mxu0
    %v7238 = vpack.c.bf16 %v7235, %v7235
    %v7239 = vld [vmem:[%s29] sm:$0xf]
    %v7240 = vld [vmem:[%s29 + $0x4] sm:$0xf]
    %v7241 = vld [vmem:[%s29 + $0x8] sm:$0xf]
    %v7242 = vld [vmem:[%s29 + $0xc] sm:$0xf]
    %v7243 = vld [vmem:[#allocation8] sm:$0x1]
    %7245 = vrot.lane.b32.xlu0 %v7200, 120
    %v7246 = vpop.permute.xlu0 %7245
    %7247 = vrot.lane.b32.xlu0 %v7200, 112
    %v7248 = vpop.permute.xlu0 %7247
    %7249 = vrot.lane.b32.xlu0 %v7200, 104
    %v7250 = vpop.permute.xlu0 %7249
    %7252 = vrot.lane.b32.xlu0 %v7238, 120
    %v7253 = vpop.permute.xlu0 %7252
    %7254 = vrot.lane.b32.xlu0 %v7238, 112
    %v7255 = vpop.permute.xlu0 %7254
    %7256 = vrot.lane.b32.xlu0 %v7238, 104
    %v7257 = vpop.permute.xlu0 %7256
    %v7259 = vsel %vm215, %v7200, 0
    %v7262 = vsel %vm215, %v7238, 0
    %7264 = vmatpush.bf16.xpose.msra.mxu0 0
    %7265 = vmatpush.bf16.xpose.msra.mxu0 0
    %7266 = vmatpush.bf16.xpose.msra.mxu0 0
    %7267 = vmatpush.bf16.xpose.msra.mxu0 0
    %7268 = vmatpush.bf16.xpose.msra.mxu0 0
    %7269 = vmatpush.bf16.xpose.msra.mxu0 0
    %7270 = vmatpush.bf16.xpose.msra.mxu0 0
    %7271 = vmatpush.bf16.xpose.msra.mxu0 %v7262
    %7272 = vmatmul.bf16.gmra.mxu0 %v7259
    %v7273 = vpop.f32.mrf.mxu0
    %v7274 = vadd.f32 0.0, %v7273
    %v7275 = vpop.f32.mrf.mxu0
    %7276 = vdwg.mxu0
    %v7278 = vsel %vm215, %v7246, 0
    %v7281 = vsel %vm215, %v7253, 0
    %7283 = vmatpush.bf16.xpose.msra.mxu0 0
    %7284 = vmatpush.bf16.xpose.msra.mxu0 0
    %7285 = vmatpush.bf16.xpose.msra.mxu0 0
    %7286 = vmatpush.bf16.xpose.msra.mxu0 0
    %7287 = vmatpush.bf16.xpose.msra.mxu0 0
    %7288 = vmatpush.bf16.xpose.msra.mxu0 0
    %7289 = vmatpush.bf16.xpose.msra.mxu0 0
    %7290 = vmatpush.bf16.xpose.msra.mxu0 %v7281
    %7291 = vmatmul.bf16.gmra.mxu0 %v7278
    %v7292 = vpop.f32.mrf.mxu0
    %v7293 = vadd.f32 0.0, %v7292
    %v7294 = vpop.f32.mrf.mxu0
    %7295 = vdwg.mxu0
    %v7297 = vsel %vm215, %v7248, 0
    %v7300 = vsel %vm215, %v7255, 0
    %7302 = vmatpush.bf16.xpose.msra.mxu0 0
    %7303 = vmatpush.bf16.xpose.msra.mxu0 0
    %7304 = vmatpush.bf16.xpose.msra.mxu0 0
    %7305 = vmatpush.bf16.xpose.msra.mxu0 0
    %7306 = vmatpush.bf16.xpose.msra.mxu0 0
    %7307 = vmatpush.bf16.xpose.msra.mxu0 0
    %7308 = vmatpush.bf16.xpose.msra.mxu0 0
    %7309 = vmatpush.bf16.xpose.msra.mxu0 %v7300
    %7310 = vmatmul.bf16.gmra.mxu0 %v7297
    %v7311 = vpop.f32.mrf.mxu0
    %v7312 = vadd.f32 0.0, %v7311
    %v7313 = vpop.f32.mrf.mxu0
    %7314 = vdwg.mxu0
    %v7316 = vsel %vm215, %v7250, 0
    %v7319 = vsel %vm215, %v7257, 0
    %7321 = vmatpush.bf16.xpose.msra.mxu0 0
    %7322 = vmatpush.bf16.xpose.msra.mxu0 0
    %7323 = vmatpush.bf16.xpose.msra.mxu0 0
    %7324 = vmatpush.bf16.xpose.msra.mxu0 0
    %7325 = vmatpush.bf16.xpose.msra.mxu0 0
    %7326 = vmatpush.bf16.xpose.msra.mxu0 0
    %7327 = vmatpush.bf16.xpose.msra.mxu0 0
    %7328 = vmatpush.bf16.xpose.msra.mxu0 %v7319
    %7329 = vmatmul.bf16.gmra.mxu0 %v7316
    %v7330 = vpop.f32.mrf.mxu0
    %v7331 = vadd.f32 0.0, %v7330
    %v7332 = vpop.f32.mrf.mxu0
    %7333 = vdwg.mxu0
    %v7334 = vmul.f32 %v7274, 0.35355338
    %v7335 = vmul.f32 %v7293, 0.35355338
    %v7336 = vmul.f32 %v7312, 0.35355338
    %v7337 = vmul.f32 %v7331, 0.35355338
    %v7338 = vsel %vm3162, %v7334, -inf
    %7339 = vmax.xlane.f32.xlu0 %v7338
    %v7340 = vpop.xlane.xlu0 %7339
    %v7341 = vsel %vm3162, %v7335, -inf
    %7342 = vmax.xlane.f32.xlu0 %v7341
    %v7343 = vpop.xlane.xlu0 %7342
    %v7344 = vsel %vm3162, %v7336, -inf
    %7345 = vmax.xlane.f32.xlu0 %v7344
    %v7346 = vpop.xlane.xlu0 %7345
    %v7347 = vsel %vm3162, %v7337, -inf
    %7348 = vmax.xlane.f32.xlu0 %v7347
    %v7349 = vpop.xlane.xlu0 %7348
    %v7350 = vsub.f32 %v7334, %v7340
    %v7351 = vsub.f32 %v7335, %v7343
    %v7352 = vsub.f32 %v7336, %v7346
    %v7353 = vsub.f32 %v7337, %v7349
    %v7354 = vmul.f32 %v7350, 1.442695
    %v7355 = vpow.pop %v7354
    %v7356 = vmul.f32 %v7351, 1.442695
    %v7357 = vpow.pop %v7356
    %v7358 = vmul.f32 %v7352, 1.442695
    %v7359 = vpow.pop %v7358
    %v7360 = vmul.f32 %v7353, 1.442695
    %v7361 = vpow.pop %v7360
    %v7362 = vsel %vm3162, %v7355, 0.0
    %7363 = vadd.xlane.f32.xlu0 %v7362
    %v7364 = vpop.xlane.xlu0 %7363
    %v7365 = vsel %vm3162, %v7357, 0.0
    %7366 = vadd.xlane.f32.xlu0 %v7365
    %v7367 = vpop.xlane.xlu0 %7366
    %v7368 = vsel %vm3162, %v7359, 0.0
    %7369 = vadd.xlane.f32.xlu0 %v7368
    %v7370 = vpop.xlane.xlu0 %7369
    %v7371 = vsel %vm3162, %v7361, 0.0
    %7372 = vadd.xlane.f32.xlu0 %v7371
    %v7373 = vpop.xlane.xlu0 %7372
    %v7374 = vrcp.pop %v7364
    %v7375 = vrcp.pop %v7367
    %v7376 = vrcp.pop %v7370
    %v7377 = vrcp.pop %v7373
    %v7378 = vmul.f32 %v7355, %v7374
    %v7379 = vmul.f32 %v7357, %v7375
    %v7380 = vmul.f32 %v7359, %v7376
    %v7381 = vmul.f32 %v7361, %v7377
    %v7382 = vpack.c.bf16 %v7378, %v7378
    %v7383 = vpack.c.bf16 %v7379, %v7379
    %v7384 = vpack.c.bf16 %v7380, %v7380
    %v7385 = vpack.c.bf16 %v7381, %v7381
    %v7386 = vunpack.c.l.b16 %v7238
    %v7387 = vpack.c.b16 %v7386, %v7386
    %7388 = vrot.lane.b32.xlu0 %v7387, 96
    %v7389 = vpop.permute.xlu0 %7388
    %v7391 = vsel %vm3162, %v7382, 0
    %v7394 = vsel %vm3218, %v7389, 0
    %7396 = vmatpush.bf16.msra.mxu0 0
    %7397 = vmatpush.bf16.msra.mxu0 0
    %7398 = vmatpush.bf16.msra.mxu0 0
    %7399 = vmatpush.bf16.msra.mxu0 0
    %7400 = vmatpush.bf16.msra.mxu0 0
    %7401 = vmatpush.bf16.msra.mxu0 0
    %7402 = vmatpush.bf16.msra.mxu0 0
    %7403 = vmatpush.bf16.msra.mxu0 %v7394
    %7404 = vmatmul.bf16.gmra.mxu0 %v7391
    %v7405 = vpop.f32.mrf.mxu0
    %v7406 = vadd.f32 0.0, %v7405
    %v7407 = vpop.f32.mrf.mxu0
    %7408 = vdwg.mxu0
    %v7409 = vunpack.c.l.b16 %v7253
    %v7410 = vpack.c.b16 %v7409, %v7409
    %7411 = vrot.lane.b32.xlu0 %v7410, 96
    %v7412 = vpop.permute.xlu0 %7411
    %v7414 = vsel %vm3162, %v7383, 0
    %v7417 = vsel %vm3218, %v7412, 0
    %7419 = vmatpush.bf16.msra.mxu0 0
    %7420 = vmatpush.bf16.msra.mxu0 0
    %7421 = vmatpush.bf16.msra.mxu0 0
    %7422 = vmatpush.bf16.msra.mxu0 0
    %7423 = vmatpush.bf16.msra.mxu0 0
    %7424 = vmatpush.bf16.msra.mxu0 0
    %7425 = vmatpush.bf16.msra.mxu0 0
    %7426 = vmatpush.bf16.msra.mxu0 %v7417
    %7427 = vmatmul.bf16.gmra.mxu0 %v7414
    %v7428 = vpop.f32.mrf.mxu0
    %v7429 = vadd.f32 0.0, %v7428
    %v7430 = vpop.f32.mrf.mxu0
    %7431 = vdwg.mxu0
    %v7432 = vunpack.c.l.b16 %v7255
    %v7433 = vpack.c.b16 %v7432, %v7432
    %7434 = vrot.lane.b32.xlu0 %v7433, 96
    %v7435 = vpop.permute.xlu0 %7434
    %v7437 = vsel %vm3162, %v7384, 0
    %v7440 = vsel %vm3218, %v7435, 0
    %7442 = vmatpush.bf16.msra.mxu0 0
    %7443 = vmatpush.bf16.msra.mxu0 0
    %7444 = vmatpush.bf16.msra.mxu0 0
    %7445 = vmatpush.bf16.msra.mxu0 0
    %7446 = vmatpush.bf16.msra.mxu0 0
    %7447 = vmatpush.bf16.msra.mxu0 0
    %7448 = vmatpush.bf16.msra.mxu0 0
    %7449 = vmatpush.bf16.msra.mxu0 %v7440
    %7450 = vmatmul.bf16.gmra.mxu0 %v7437
    %v7451 = vpop.f32.mrf.mxu0
    %v7452 = vadd.f32 0.0, %v7451
    %v7453 = vpop.f32.mrf.mxu0
    %7454 = vdwg.mxu0
    %v7455 = vunpack.c.l.b16 %v7257
    %v7456 = vpack.c.b16 %v7455, %v7455
    %7457 = vrot.lane.b32.xlu0 %v7456, 96
    %v7458 = vpop.permute.xlu0 %7457
    %v7460 = vsel %vm3162, %v7385, 0
    %v7463 = vsel %vm3218, %v7458, 0
    %7465 = vmatpush.bf16.msra.mxu0 0
    %7466 = vmatpush.bf16.msra.mxu0 0
    %7467 = vmatpush.bf16.msra.mxu0 0
    %7468 = vmatpush.bf16.msra.mxu0 0
    %7469 = vmatpush.bf16.msra.mxu0 0
    %7470 = vmatpush.bf16.msra.mxu0 0
    %7471 = vmatpush.bf16.msra.mxu0 0
    %7472 = vmatpush.bf16.msra.mxu0 %v7463
    %7473 = vmatmul.bf16.gmra.mxu0 %v7460
    %v7474 = vpop.f32.mrf.mxu0
    %v7475 = vadd.f32 0.0, %v7474
    %v7476 = vpop.f32.mrf.mxu0
    %7477 = vdwg.mxu0
    %7479 = vrot.lane.b32.xlu0 %v7429, 8
    %v7480 = vpop.permute.xlu0 %7479
    %7483 = vrot.lane.b32.xlu0 %v7452, 16
    %v7484 = vpop.permute.xlu0 %7483
    %7487 = vrot.lane.b32.xlu0 %v7475, 24
    %v7488 = vpop.permute.xlu0 %7487
    %v7490 = vsel %vm215, %v7406, %v7480
    %v7491 = vsel %vm3317, %v7490, %v7484
    %v7492 = vsel %vm3319, %v7491, %v7488
    %v7493 = vpack.c.bf16 %v7492, %v7492
    %v7495 = vperm.slane %v7243, 0
    %v7501 = vunpack.c.l.b16 %v7239
    %v7502 = vunpack.c.l.b16 %v7240
    %v7503 = vunpack.c.l.b16 %v7241
    %v7504 = vunpack.c.l.b16 %v7242
    %v7505 = vpack.c.b16 %v7502, %v7501
    %v7506 = vpack.c.b16 %v7504, %v7503
    %v7510 = vsel %vm3007, %v7493, 0
    %7512 = vmatpush.bf16.msra.mxu0 0
    %7513 = vmatpush.bf16.msra.mxu0 0
    %7514 = vmatpush.bf16.msra.mxu0 0
    %7515 = vmatpush.bf16.msra.mxu0 0
    %7516 = vmatpush.bf16.msra.mxu0 0
    %7517 = vmatpush.bf16.msra.mxu0 0
    %7518 = vmatpush.bf16.msra.mxu0 %v7506
    %7519 = vmatpush.bf16.msra.mxu0 %v7505
    %7520 = vmatmul.bf16.gmra.mxu0 %v7510
    %v7521 = vpop.f32.mrf.mxu0
    %v7522 = vadd.f32 %v7495, %v7521
    %v7523 = vpop.f32.mrf.mxu0
    %7524 = vdwg.mxu0
    %v7525 = vadd.f32 %v7522, %v179
    %v7526 = vsel %vm3007, %v7525, 0.0
    %s7527 = scalar_lea.vmem [#allocation10], 8
    %7528 = vst [vmem:[%s7527] sm:$0xff] %v7526
    %v7529 = vpack.c.bf16 %v7525, %v7525
    %v7530 = vld [vmem:[%s33] sm:$0xf]
    %v7531 = vld [vmem:[%s33 + $0x4] sm:$0xf]
    %v7532 = vld [vmem:[%s33 + $0x8] sm:$0xf]
    %v7533 = vld [vmem:[%s33 + $0xc] sm:$0xf]
    %v7534 = vld [vmem:[%s35] sm:$0x1]
    %v7536 = vperm.slane %v7534, 0
    %v7542 = vunpack.c.l.b16 %v7530
    %v7543 = vunpack.c.l.b16 %v7531
    %v7544 = vunpack.c.l.b16 %v7532
    %v7545 = vunpack.c.l.b16 %v7533
    %v7546 = vpack.c.b16 %v7543, %v7542
    %v7547 = vpack.c.b16 %v7545, %v7544
    %v7551 = vsel %vm3007, %v7529, 0
    %7553 = vmatpush.bf16.msra.mxu0 0
    %7554 = vmatpush.bf16.msra.mxu0 0
    %7555 = vmatpush.bf16.msra.mxu0 0
    %7556 = vmatpush.bf16.msra.mxu0 0
    %7557 = vmatpush.bf16.msra.mxu0 0
    %7558 = vmatpush.bf16.msra.mxu0 0
    %7559 = vmatpush.bf16.msra.mxu0 %v7547
    %7560 = vmatpush.bf16.msra.mxu0 %v7546
    %7561 = vmatmul.bf16.gmra.mxu0 %v7551
    %v7562 = vpop.f32.mrf.mxu0
    %v7563 = vadd.f32 %v7536, %v7562
    %v7564 = vpop.f32.mrf.mxu0
    %7565 = vdwg.mxu0
    %v7566 = vpack.c.bf16 %v7563, %v7563
    %v7567 = vld [vmem:[%s37] sm:$0xf]
    %v7568 = vld [vmem:[%s37 + $0x4] sm:$0xf]
    %v7569 = vld [vmem:[%s37 + $0x8] sm:$0xf]
    %v7570 = vld [vmem:[%s37 + $0xc] sm:$0xf]
    %v7571 = vld [vmem:[%s39] sm:$0x1]
    %7573 = vrot.lane.b32.xlu0 %v7566, 120
    %v7574 = vpop.permute.xlu0 %7573
    %7575 = vrot.lane.b32.xlu0 %v7566, 112
    %v7576 = vpop.permute.xlu0 %7575
    %7577 = vrot.lane.b32.xlu0 %v7566, 104
    %v7578 = vpop.permute.xlu0 %7577
    %v7579 = vunpack.c.l.b16 %v7566
    %v7580 = vpack.c.b16 %v7579, %v7579
    %7581 = vrot.lane.b32.xlu0 %v7580, 96
    %v7582 = vpop.permute.xlu0 %7581
    %v7584 = vsel %vm215, %v7566, 0
    %v7587 = vsel %vm215, %v7582, 0
    %7589 = vmatpush.bf16.xpose.msra.mxu0 0
    %7590 = vmatpush.bf16.xpose.msra.mxu0 0
    %7591 = vmatpush.bf16.xpose.msra.mxu0 0
    %7592 = vmatpush.bf16.xpose.msra.mxu0 0
    %7593 = vmatpush.bf16.xpose.msra.mxu0 0
    %7594 = vmatpush.bf16.xpose.msra.mxu0 0
    %7595 = vmatpush.bf16.xpose.msra.mxu0 0
    %7596 = vmatpush.bf16.xpose.msra.mxu0 %v7587
    %7597 = vmatmul.bf16.gmra.mxu0 %v7584
    %v7598 = vpop.f32.mrf.mxu0
    %v7599 = vadd.f32 0.0, %v7598
    %v7600 = vpop.f32.mrf.mxu0
    %7601 = vdwg.mxu0
    %v7602 = vunpack.c.l.b16 %v7574
    %v7603 = vpack.c.b16 %v7602, %v7602
    %7604 = vrot.lane.b32.xlu0 %v7603, 96
    %v7605 = vpop.permute.xlu0 %7604
    %v7607 = vsel %vm215, %v7574, 0
    %v7610 = vsel %vm215, %v7605, 0
    %7612 = vmatpush.bf16.xpose.msra.mxu0 0
    %7613 = vmatpush.bf16.xpose.msra.mxu0 0
    %7614 = vmatpush.bf16.xpose.msra.mxu0 0
    %7615 = vmatpush.bf16.xpose.msra.mxu0 0
    %7616 = vmatpush.bf16.xpose.msra.mxu0 0
    %7617 = vmatpush.bf16.xpose.msra.mxu0 0
    %7618 = vmatpush.bf16.xpose.msra.mxu0 0
    %7619 = vmatpush.bf16.xpose.msra.mxu0 %v7610
    %7620 = vmatmul.bf16.gmra.mxu0 %v7607
    %v7621 = vpop.f32.mrf.mxu0
    %v7622 = vadd.f32 0.0, %v7621
    %v7623 = vpop.f32.mrf.mxu0
    %7624 = vdwg.mxu0
    %v7625 = vunpack.c.l.b16 %v7576
    %v7626 = vpack.c.b16 %v7625, %v7625
    %7627 = vrot.lane.b32.xlu0 %v7626, 96
    %v7628 = vpop.permute.xlu0 %7627
    %v7630 = vsel %vm215, %v7576, 0
    %v7633 = vsel %vm215, %v7628, 0
    %7635 = vmatpush.bf16.xpose.msra.mxu0 0
    %7636 = vmatpush.bf16.xpose.msra.mxu0 0
    %7637 = vmatpush.bf16.xpose.msra.mxu0 0
    %7638 = vmatpush.bf16.xpose.msra.mxu0 0
    %7639 = vmatpush.bf16.xpose.msra.mxu0 0
    %7640 = vmatpush.bf16.xpose.msra.mxu0 0
    %7641 = vmatpush.bf16.xpose.msra.mxu0 0
    %7642 = vmatpush.bf16.xpose.msra.mxu0 %v7633
    %7643 = vmatmul.bf16.gmra.mxu0 %v7630
    %v7644 = vpop.f32.mrf.mxu0
    %v7645 = vadd.f32 0.0, %v7644
    %v7646 = vpop.f32.mrf.mxu0
    %7647 = vdwg.mxu0
    %v7648 = vunpack.c.l.b16 %v7578
    %v7649 = vpack.c.b16 %v7648, %v7648
    %7650 = vrot.lane.b32.xlu0 %v7649, 96
    %v7651 = vpop.permute.xlu0 %7650
    %v7653 = vsel %vm215, %v7578, 0
    %v7656 = vsel %vm215, %v7651, 0
    %7658 = vmatpush.bf16.xpose.msra.mxu0 0
    %7659 = vmatpush.bf16.xpose.msra.mxu0 0
    %7660 = vmatpush.bf16.xpose.msra.mxu0 0
    %7661 = vmatpush.bf16.xpose.msra.mxu0 0
    %7662 = vmatpush.bf16.xpose.msra.mxu0 0
    %7663 = vmatpush.bf16.xpose.msra.mxu0 0
    %7664 = vmatpush.bf16.xpose.msra.mxu0 0
    %7665 = vmatpush.bf16.xpose.msra.mxu0 %v7656
    %7666 = vmatmul.bf16.gmra.mxu0 %v7653
    %v7667 = vpop.f32.mrf.mxu0
    %v7668 = vadd.f32 0.0, %v7667
    %v7669 = vpop.f32.mrf.mxu0
    %7670 = vdwg.mxu0
    %v7671 = vmul.f32 %v7599, 0.35355338
    %v7672 = vmul.f32 %v7622, 0.35355338
    %v7673 = vmul.f32 %v7645, 0.35355338
    %v7674 = vmul.f32 %v7668, 0.35355338
    %v7675 = vsel %vm215, %v7671, -inf
    %7676 = vmax.xlane.f32.xlu0 %v7675
    %v7677 = vpop.xlane.xlu0 %7676
    %v7678 = vsel %vm215, %v7672, -inf
    %7679 = vmax.xlane.f32.xlu0 %v7678
    %v7680 = vpop.xlane.xlu0 %7679
    %v7681 = vsel %vm215, %v7673, -inf
    %7682 = vmax.xlane.f32.xlu0 %v7681
    %v7683 = vpop.xlane.xlu0 %7682
    %v7684 = vsel %vm215, %v7674, -inf
    %7685 = vmax.xlane.f32.xlu0 %v7684
    %v7686 = vpop.xlane.xlu0 %7685
    %v7687 = vsub.f32 %v7671, %v7677
    %v7688 = vsub.f32 %v7672, %v7680
    %v7689 = vsub.f32 %v7673, %v7683
    %v7690 = vsub.f32 %v7674, %v7686
    %v7691 = vmul.f32 %v7687, 1.442695
    %v7692 = vpow.pop %v7691
    %v7693 = vmul.f32 %v7688, 1.442695
    %v7694 = vpow.pop %v7693
    %v7695 = vmul.f32 %v7689, 1.442695
    %v7696 = vpow.pop %v7695
    %v7697 = vmul.f32 %v7690, 1.442695
    %v7698 = vpow.pop %v7697
    %v7699 = vsel %vm215, %v7692, 0.0
    %7700 = vadd.xlane.f32.xlu0 %v7699
    %v7701 = vpop.xlane.xlu0 %7700
    %v7702 = vsel %vm215, %v7694, 0.0
    %7703 = vadd.xlane.f32.xlu0 %v7702
    %v7704 = vpop.xlane.xlu0 %7703
    %v7705 = vsel %vm215, %v7696, 0.0
    %7706 = vadd.xlane.f32.xlu0 %v7705
    %v7707 = vpop.xlane.xlu0 %7706
    %v7708 = vsel %vm215, %v7698, 0.0
    %7709 = vadd.xlane.f32.xlu0 %v7708
    %v7710 = vpop.xlane.xlu0 %7709
    %v7711 = vrcp.pop %v7701
    %v7712 = vrcp.pop %v7704
    %v7713 = vrcp.pop %v7707
    %v7714 = vrcp.pop %v7710
    %v7715 = vmul.f32 %v7692, %v7711
    %v7716 = vmul.f32 %v7694, %v7712
    %v7717 = vmul.f32 %v7696, %v7713
    %v7718 = vmul.f32 %v7698, %v7714
    %v7719 = vpack.c.bf16 %v7715, %v7715
    %v7720 = vpack.c.bf16 %v7716, %v7716
    %v7721 = vpack.c.bf16 %v7717, %v7717
    %v7722 = vpack.c.bf16 %v7718, %v7718
    %7723 = vrot.lane.b32.xlu0 %v7580, 64
    %v7724 = vpop.permute.xlu0 %7723
    %v7726 = vsel %vm215, %v7719, 0
    %v7729 = vsel %vm219, %v7724, 0
    %7731 = vmatpush.bf16.msra.mxu0 0
    %7732 = vmatpush.bf16.msra.mxu0 0
    %7733 = vmatpush.bf16.msra.mxu0 0
    %7734 = vmatpush.bf16.msra.mxu0 0
    %7735 = vmatpush.bf16.msra.mxu0 0
    %7736 = vmatpush.bf16.msra.mxu0 0
    %7737 = vmatpush.bf16.msra.mxu0 0
    %7738 = vmatpush.bf16.msra.mxu0 %v7729
    %7739 = vmatmul.bf16.gmra.mxu0 %v7726
    %v7740 = vpop.f32.mrf.mxu0
    %v7741 = vadd.f32 0.0, %v7740
    %v7742 = vpop.f32.mrf.mxu0
    %7743 = vdwg.mxu0
    %7744 = vrot.lane.b32.xlu0 %v7603, 64
    %v7745 = vpop.permute.xlu0 %7744
    %v7747 = vsel %vm215, %v7720, 0
    %v7750 = vsel %vm219, %v7745, 0
    %7752 = vmatpush.bf16.msra.mxu0 0
    %7753 = vmatpush.bf16.msra.mxu0 0
    %7754 = vmatpush.bf16.msra.mxu0 0
    %7755 = vmatpush.bf16.msra.mxu0 0
    %7756 = vmatpush.bf16.msra.mxu0 0
    %7757 = vmatpush.bf16.msra.mxu0 0
    %7758 = vmatpush.bf16.msra.mxu0 0
    %7759 = vmatpush.bf16.msra.mxu0 %v7750
    %7760 = vmatmul.bf16.gmra.mxu0 %v7747
    %v7761 = vpop.f32.mrf.mxu0
    %v7762 = vadd.f32 0.0, %v7761
    %v7763 = vpop.f32.mrf.mxu0
    %7764 = vdwg.mxu0
    %7765 = vrot.lane.b32.xlu0 %v7626, 64
    %v7766 = vpop.permute.xlu0 %7765
    %v7768 = vsel %vm215, %v7721, 0
    %v7771 = vsel %vm219, %v7766, 0
    %7773 = vmatpush.bf16.msra.mxu0 0
    %7774 = vmatpush.bf16.msra.mxu0 0
    %7775 = vmatpush.bf16.msra.mxu0 0
    %7776 = vmatpush.bf16.msra.mxu0 0
    %7777 = vmatpush.bf16.msra.mxu0 0
    %7778 = vmatpush.bf16.msra.mxu0 0
    %7779 = vmatpush.bf16.msra.mxu0 0
    %7780 = vmatpush.bf16.msra.mxu0 %v7771
    %7781 = vmatmul.bf16.gmra.mxu0 %v7768
    %v7782 = vpop.f32.mrf.mxu0
    %v7783 = vadd.f32 0.0, %v7782
    %v7784 = vpop.f32.mrf.mxu0
    %7785 = vdwg.mxu0
    %7786 = vrot.lane.b32.xlu0 %v7649, 64
    %v7787 = vpop.permute.xlu0 %7786
    %v7789 = vsel %vm215, %v7722, 0
    %v7792 = vsel %vm219, %v7787, 0
    %7794 = vmatpush.bf16.msra.mxu0 0
    %7795 = vmatpush.bf16.msra.mxu0 0
    %7796 = vmatpush.bf16.msra.mxu0 0
    %7797 = vmatpush.bf16.msra.mxu0 0
    %7798 = vmatpush.bf16.msra.mxu0 0
    %7799 = vmatpush.bf16.msra.mxu0 0
    %7800 = vmatpush.bf16.msra.mxu0 0
    %7801 = vmatpush.bf16.msra.mxu0 %v7792
    %7802 = vmatmul.bf16.gmra.mxu0 %v7789
    %v7803 = vpop.f32.mrf.mxu0
    %v7804 = vadd.f32 0.0, %v7803
    %v7805 = vpop.f32.mrf.mxu0
    %7806 = vdwg.mxu0
    %7808 = vrot.lane.b32.xlu0 %v7762, 8
    %v7809 = vpop.permute.xlu0 %7808
    %7812 = vrot.lane.b32.xlu0 %v7783, 16
    %v7813 = vpop.permute.xlu0 %7812
    %7816 = vrot.lane.b32.xlu0 %v7804, 24
    %v7817 = vpop.permute.xlu0 %7816
    %v7819 = vsel %vm215, %v7741, %v7809
    %v7820 = vsel %vm3317, %v7819, %v7813
    %v7821 = vsel %vm3319, %v7820, %v7817
    %v7822 = vpack.c.bf16 %v7821, %v7821
    %v7824 = vperm.slane %v7571, 0
    %v7830 = vunpack.c.l.b16 %v7567
    %v7831 = vunpack.c.l.b16 %v7568
    %v7832 = vunpack.c.l.b16 %v7569
    %v7833 = vunpack.c.l.b16 %v7570
    %v7834 = vpack.c.b16 %v7831, %v7830
    %v7835 = vpack.c.b16 %v7833, %v7832
    %v7839 = vsel %vm3007, %v7822, 0
    %7841 = vmatpush.bf16.msra.mxu0 0
    %7842 = vmatpush.bf16.msra.mxu0 0
    %7843 = vmatpush.bf16.msra.mxu0 0
    %7844 = vmatpush.bf16.msra.mxu0 0
    %7845 = vmatpush.bf16.msra.mxu0 0
    %7846 = vmatpush.bf16.msra.mxu0 0
    %7847 = vmatpush.bf16.msra.mxu0 %v7835
    %7848 = vmatpush.bf16.msra.mxu0 %v7834
    %7849 = vmatmul.bf16.gmra.mxu0 %v7839
    %v7850 = vpop.f32.mrf.mxu0
    %v7851 = vadd.f32 %v7824, %v7850
    %v7852 = vpop.f32.mrf.mxu0
    %7853 = vdwg.mxu0
    %v7854 = vld [vmem:[%s41] sm:$0x3]
    %v7855 = vld [vmem:[%s43] sm:$0x3]
    %v7856 = vadd.f32 %v7525, %v7851
    %v7857 = vsel %vm3007, %v7856, 0.0
    %7858 = vadd.xlane.f32.xlu0 %v7857
    %v7859 = vpop.xlane.xlu0 %7858
    %v7860 = vmul.f32 %v7859, %v3693
    %v7861 = vsub.f32 %v7856, %v7860
    %v7862 = vmul.f32 %v7861, %v7861
    %v7863 = vsel %vm3007, %v7862, 0.0
    %7864 = vadd.xlane.f32.xlu0 %v7863
    %v7865 = vpop.xlane.xlu0 %7864
    %v7866 = vmul.f32 %v7865, %v3693
    %v7867 = vadd.f32 %v7866, 1e-05
    %v7868 = vrsqrt.pop %v7867
    %v7869 = vmul.f32 %v7868, %v7867
    %v7870 = vmul.f32 %v7869, %v7868
    %v7871 = vmul.f32 0.5, %v7870
    %v7872 = vsub.f32 1.5, %v7871
    %v7873 = vmul.f32 %v7868, %v7872
    %vm7874 = vweird.f32 %v7867
    %vm7875 = vweird.f32 %v7868
    %vm7876 = vmor %vm7874, %vm7875
    %v7877 = vsel %vm7876, %v7868, %v7873
    %v7878 = vmul.f32 %v7861, %v7877
    %v7879 = vperm.slane %v7854, 0
    %v7880 = vmul.f32 %v7878, %v7879
    %v7881 = vperm.slane %v7855, 0
    %v7882 = vadd.f32 %v7880, %v7881
    %v7883 = vpack.c.bf16 %v7882, %v7882
    %v7884 = vld [vmem:[%s45] sm:$0xf]
    %v7885 = vld [vmem:[%s45 + $0x4] sm:$0xf]
    %v7886 = vld [vmem:[%s45 + $0x8] sm:$0xf]
    %v7887 = vld [vmem:[%s45 + $0xc] sm:$0xf]
    %v7888 = vld [vmem:[%s47] sm:$0x1]
    %v7890 = vperm.slane %v7888, 0
    %v7896 = vunpack.c.l.b16 %v7884
    %v7897 = vunpack.c.l.b16 %v7885
    %v7898 = vunpack.c.l.b16 %v7886
    %v7899 = vunpack.c.l.b16 %v7887
    %v7900 = vpack.c.b16 %v7897, %v7896
    %v7901 = vpack.c.b16 %v7899, %v7898
    %v7905 = vsel %vm3007, %v7883, 0
    %7907 = vmatpush.bf16.msra.mxu0 0
    %7908 = vmatpush.bf16.msra.mxu0 0
    %7909 = vmatpush.bf16.msra.mxu0 0
    %7910 = vmatpush.bf16.msra.mxu0 0
    %7911 = vmatpush.bf16.msra.mxu0 0
    %7912 = vmatpush.bf16.msra.mxu0 0
    %7913 = vmatpush.bf16.msra.mxu0 %v7901
    %7914 = vmatpush.bf16.msra.mxu0 %v7900
    %7915 = vmatmul.bf16.gmra.mxu0 %v7905
    %v7916 = vpop.f32.mrf.mxu0
    %v7917 = vadd.f32 %v7890, %v7916
    %v7918 = vpop.f32.mrf.mxu0
    %7919 = vdwg.mxu0
    %v7920 = vmax.f32 %v7917, 0.0
    %v7921 = vpack.c.bf16 %v7920, %v7920
    %v7922 = vld [vmem:[%s49] sm:$0xf]
    %v7923 = vld [vmem:[%s49 + $0x4] sm:$0xf]
    %v7924 = vld [vmem:[%s49 + $0x8] sm:$0xf]
    %v7925 = vld [vmem:[%s49 + $0xc] sm:$0xf]
    %v7926 = vld [vmem:[%s49 + $0x10] sm:$0xf]
    %v7927 = vld [vmem:[%s49 + $0x14] sm:$0xf]
    %v7928 = vld [vmem:[%s49 + $0x18] sm:$0xf]
    %v7929 = vld [vmem:[%s49 + $0x1c] sm:$0xf]
    %v7930 = vld [vmem:[%s51] sm:$0x1]
    %v7932 = vperm.slane %v7930, 0
    %v7942 = vunpack.c.l.b16 %v7922
    %v7943 = vunpack.c.l.b16 %v7923
    %v7944 = vunpack.c.l.b16 %v7924
    %v7945 = vunpack.c.l.b16 %v7925
    %v7946 = vunpack.c.l.b16 %v7926
    %v7947 = vunpack.c.l.b16 %v7927
    %v7948 = vunpack.c.l.b16 %v7928
    %v7949 = vunpack.c.l.b16 %v7929
    %v7950 = vpack.c.b16 %v7943, %v7942
    %v7951 = vpack.c.b16 %v7945, %v7944
    %v7952 = vpack.c.b16 %v7947, %v7946
    %v7953 = vpack.c.b16 %v7949, %v7948
    %v7959 = vsel %vm3792, %v7921, 0
    %7961 = vmatpush.bf16.msra.mxu0 0
    %7962 = vmatpush.bf16.msra.mxu0 0
    %7963 = vmatpush.bf16.msra.mxu0 0
    %7964 = vmatpush.bf16.msra.mxu0 0
    %7965 = vmatpush.bf16.msra.mxu0 %v7953
    %7966 = vmatpush.bf16.msra.mxu0 %v7952
    %7967 = vmatpush.bf16.msra.mxu0 %v7951
    %7968 = vmatpush.bf16.msra.mxu0 %v7950
    %7969 = vmatmul.bf16.gmra.mxu0 %v7959
    %v7970 = vpop.f32.mrf.mxu0
    %v7971 = vadd.f32 %v7932, %v7970
    %v7972 = vpop.f32.mrf.mxu0
    %7973 = vdwg.mxu0
    %v7974 = vadd.f32 %v7882, %v7971
    %v7975 = vsel %vm3007, %v7974, 0.0
    %7976 = vadd.xlane.f32.xlu0 %v7975
    %v7977 = vpop.xlane.xlu0 %7976
    %v7978 = vmul.f32 %v7977, %v3693
    %v7979 = vsub.f32 %v7974, %v7978
    %v7980 = vmul.f32 %v7979, %v7979
    %v7981 = vsel %vm3007, %v7980, 0.0
    %7982 = vadd.xlane.f32.xlu0 %v7981
    %v7983 = vpop.xlane.xlu0 %7982
    %v7984 = vmul.f32 %v7983, %v3693
    %v7985 = vadd.f32 %v7984, 1e-05
    %v7986 = vrsqrt.pop %v7985
    %v7987 = vmul.f32 %v7986, %v7985
    %v7988 = vmul.f32 %v7987, %v7986
    %v7989 = vmul.f32 0.5, %v7988
    %v7990 = vsub.f32 1.5, %v7989
    %v7991 = vmul.f32 %v7986, %v7990
    %vm7992 = vweird.f32 %v7985
    %vm7993 = vweird.f32 %v7986
    %vm7994 = vmor %vm7992, %vm7993
    %v7995 = vsel %vm7994, %v7986, %v7991
    %v7996 = vmul.f32 %v7979, %v7995
    %v7997 = vperm.slane %v7854, 1
    %v7998 = vmul.f32 %v7996, %v7997
    %v7999 = vperm.slane %v7855, 1
    %v8000 = vadd.f32 %v7998, %v7999
    %v8001 = vpack.c.bf16 %v8000, %v8000
    %v8002 = vld [vmem:[%s3837] sm:$0xf]
    %v8003 = vld [vmem:[%s3837 + $0x4] sm:$0xf]
    %v8004 = vld [vmem:[%s3837 + $0x8] sm:$0xf]
    %v8005 = vld [vmem:[%s3837 + $0xc] sm:$0xf]
    %v8006 = vld [vmem:[%s3842] sm:$0x1]
    %v8008 = vperm.slane %v8006, 0
    %v8014 = vunpack.c.l.b16 %v8002
    %v8015 = vunpack.c.l.b16 %v8003
    %v8016 = vunpack.c.l.b16 %v8004
    %v8017 = vunpack.c.l.b16 %v8005
    %v8018 = vpack.c.b16 %v8015, %v8014
    %v8019 = vpack.c.b16 %v8017, %v8016
    %v8023 = vsel %vm3007, %v8001, 0
    %8025 = vmatpush.bf16.msra.mxu0 0
    %8026 = vmatpush.bf16.msra.mxu0 0
    %8027 = vmatpush.bf16.msra.mxu0 0
    %8028 = vmatpush.bf16.msra.mxu0 0
    %8029 = vmatpush.bf16.msra.mxu0 0
    %8030 = vmatpush.bf16.msra.mxu0 0
    %8031 = vmatpush.bf16.msra.mxu0 %v8019
    %8032 = vmatpush.bf16.msra.mxu0 %v8018
    %8033 = vmatmul.bf16.gmra.mxu0 %v8023
    %v8034 = vpop.f32.mrf.mxu0
    %v8035 = vadd.f32 %v8008, %v8034
    %v8036 = vpop.f32.mrf.mxu0
    %8037 = vdwg.mxu0
    %v8038 = vpack.c.bf16 %v8035, %v8035
    %v8039 = vld [vmem:[%s3876] sm:$0xf]
    %v8040 = vld [vmem:[%s3876 + $0x4] sm:$0xf]
    %v8041 = vld [vmem:[%s3876 + $0x8] sm:$0xf]
    %v8042 = vld [vmem:[%s3876 + $0xc] sm:$0xf]
    %v8043 = vld [vmem:[%s3881] sm:$0x1]
    %8045 = vrot.lane.b32.xlu0 %v8038, 120
    %v8046 = vpop.permute.xlu0 %8045
    %8047 = vrot.lane.b32.xlu0 %v8038, 112
    %v8048 = vpop.permute.xlu0 %8047
    %8049 = vrot.lane.b32.xlu0 %v8038, 104
    %v8050 = vpop.permute.xlu0 %8049
    %v8051 = vunpack.c.l.b16 %v8038
    %v8052 = vpack.c.b16 %v8051, %v8051
    %8053 = vrot.lane.b32.xlu0 %v8052, 96
    %v8054 = vpop.permute.xlu0 %8053
    %v8056 = vsel %vm215, %v8038, 0
    %v8059 = vsel %vm215, %v8054, 0
    %8061 = vmatpush.bf16.xpose.msra.mxu0 0
    %8062 = vmatpush.bf16.xpose.msra.mxu0 0
    %8063 = vmatpush.bf16.xpose.msra.mxu0 0
    %8064 = vmatpush.bf16.xpose.msra.mxu0 0
    %8065 = vmatpush.bf16.xpose.msra.mxu0 0
    %8066 = vmatpush.bf16.xpose.msra.mxu0 0
    %8067 = vmatpush.bf16.xpose.msra.mxu0 0
    %8068 = vmatpush.bf16.xpose.msra.mxu0 %v8059
    %8069 = vmatmul.bf16.gmra.mxu0 %v8056
    %v8070 = vpop.f32.mrf.mxu0
    %v8071 = vadd.f32 0.0, %v8070
    %v8072 = vpop.f32.mrf.mxu0
    %8073 = vdwg.mxu0
    %v8074 = vunpack.c.l.b16 %v8046
    %v8075 = vpack.c.b16 %v8074, %v8074
    %8076 = vrot.lane.b32.xlu0 %v8075, 96
    %v8077 = vpop.permute.xlu0 %8076
    %v8079 = vsel %vm215, %v8046, 0
    %v8082 = vsel %vm215, %v8077, 0
    %8084 = vmatpush.bf16.xpose.msra.mxu0 0
    %8085 = vmatpush.bf16.xpose.msra.mxu0 0
    %8086 = vmatpush.bf16.xpose.msra.mxu0 0
    %8087 = vmatpush.bf16.xpose.msra.mxu0 0
    %8088 = vmatpush.bf16.xpose.msra.mxu0 0
    %8089 = vmatpush.bf16.xpose.msra.mxu0 0
    %8090 = vmatpush.bf16.xpose.msra.mxu0 0
    %8091 = vmatpush.bf16.xpose.msra.mxu0 %v8082
    %8092 = vmatmul.bf16.gmra.mxu0 %v8079
    %v8093 = vpop.f32.mrf.mxu0
    %v8094 = vadd.f32 0.0, %v8093
    %v8095 = vpop.f32.mrf.mxu0
    %8096 = vdwg.mxu0
    %v8097 = vunpack.c.l.b16 %v8048
    %v8098 = vpack.c.b16 %v8097, %v8097
    %8099 = vrot.lane.b32.xlu0 %v8098, 96
    %v8100 = vpop.permute.xlu0 %8099
    %v8102 = vsel %vm215, %v8048, 0
    %v8105 = vsel %vm215, %v8100, 0
    %8107 = vmatpush.bf16.xpose.msra.mxu0 0
    %8108 = vmatpush.bf16.xpose.msra.mxu0 0
    %8109 = vmatpush.bf16.xpose.msra.mxu0 0
    %8110 = vmatpush.bf16.xpose.msra.mxu0 0
    %8111 = vmatpush.bf16.xpose.msra.mxu0 0
    %8112 = vmatpush.bf16.xpose.msra.mxu0 0
    %8113 = vmatpush.bf16.xpose.msra.mxu0 0
    %8114 = vmatpush.bf16.xpose.msra.mxu0 %v8105
    %8115 = vmatmul.bf16.gmra.mxu0 %v8102
    %v8116 = vpop.f32.mrf.mxu0
    %v8117 = vadd.f32 0.0, %v8116
    %v8118 = vpop.f32.mrf.mxu0
    %8119 = vdwg.mxu0
    %v8120 = vunpack.c.l.b16 %v8050
    %v8121 = vpack.c.b16 %v8120, %v8120
    %8122 = vrot.lane.b32.xlu0 %v8121, 96
    %v8123 = vpop.permute.xlu0 %8122
    %v8125 = vsel %vm215, %v8050, 0
    %v8128 = vsel %vm215, %v8123, 0
    %8130 = vmatpush.bf16.xpose.msra.mxu0 0
    %8131 = vmatpush.bf16.xpose.msra.mxu0 0
    %8132 = vmatpush.bf16.xpose.msra.mxu0 0
    %8133 = vmatpush.bf16.xpose.msra.mxu0 0
    %8134 = vmatpush.bf16.xpose.msra.mxu0 0
    %8135 = vmatpush.bf16.xpose.msra.mxu0 0
    %8136 = vmatpush.bf16.xpose.msra.mxu0 0
    %8137 = vmatpush.bf16.xpose.msra.mxu0 %v8128
    %8138 = vmatmul.bf16.gmra.mxu0 %v8125
    %v8139 = vpop.f32.mrf.mxu0
    %v8140 = vadd.f32 0.0, %v8139
    %v8141 = vpop.f32.mrf.mxu0
    %8142 = vdwg.mxu0
    %v8143 = vmul.f32 %v8071, 0.35355338
    %v8144 = vmul.f32 %v8094, 0.35355338
    %v8145 = vmul.f32 %v8117, 0.35355338
    %v8146 = vmul.f32 %v8140, 0.35355338
    %v8147 = vsel %vm215, %v8143, -inf
    %8148 = vmax.xlane.f32.xlu0 %v8147
    %v8149 = vpop.xlane.xlu0 %8148
    %v8150 = vsel %vm215, %v8144, -inf
    %8151 = vmax.xlane.f32.xlu0 %v8150
    %v8152 = vpop.xlane.xlu0 %8151
    %v8153 = vsel %vm215, %v8145, -inf
    %8154 = vmax.xlane.f32.xlu0 %v8153
    %v8155 = vpop.xlane.xlu0 %8154
    %v8156 = vsel %vm215, %v8146, -inf
    %8157 = vmax.xlane.f32.xlu0 %v8156
    %v8158 = vpop.xlane.xlu0 %8157
    %v8159 = vsub.f32 %v8143, %v8149
    %v8160 = vsub.f32 %v8144, %v8152
    %v8161 = vsub.f32 %v8145, %v8155
    %v8162 = vsub.f32 %v8146, %v8158
    %v8163 = vmul.f32 %v8159, 1.442695
    %v8164 = vpow.pop %v8163
    %v8165 = vmul.f32 %v8160, 1.442695
    %v8166 = vpow.pop %v8165
    %v8167 = vmul.f32 %v8161, 1.442695
    %v8168 = vpow.pop %v8167
    %v8169 = vmul.f32 %v8162, 1.442695
    %v8170 = vpow.pop %v8169
    %v8171 = vsel %vm215, %v8164, 0.0
    %8172 = vadd.xlane.f32.xlu0 %v8171
    %v8173 = vpop.xlane.xlu0 %8172
    %v8174 = vsel %vm215, %v8166, 0.0
    %8175 = vadd.xlane.f32.xlu0 %v8174
    %v8176 = vpop.xlane.xlu0 %8175
    %v8177 = vsel %vm215, %v8168, 0.0
    %8178 = vadd.xlane.f32.xlu0 %v8177
    %v8179 = vpop.xlane.xlu0 %8178
    %v8180 = vsel %vm215, %v8170, 0.0
    %8181 = vadd.xlane.f32.xlu0 %v8180
    %v8182 = vpop.xlane.xlu0 %8181
    %v8183 = vrcp.pop %v8173
    %v8184 = vrcp.pop %v8176
    %v8185 = vrcp.pop %v8179
    %v8186 = vrcp.pop %v8182
    %v8187 = vmul.f32 %v8164, %v8183
    %v8188 = vmul.f32 %v8166, %v8184
    %v8189 = vmul.f32 %v8168, %v8185
    %v8190 = vmul.f32 %v8170, %v8186
    %v8191 = vpack.c.bf16 %v8187, %v8187
    %v8192 = vpack.c.bf16 %v8188, %v8188
    %v8193 = vpack.c.bf16 %v8189, %v8189
    %v8194 = vpack.c.bf16 %v8190, %v8190
    %8195 = vrot.lane.b32.xlu0 %v8052, 64
    %v8196 = vpop.permute.xlu0 %8195
    %v8198 = vsel %vm215, %v8191, 0
    %v8201 = vsel %vm219, %v8196, 0
    %8203 = vmatpush.bf16.msra.mxu0 0
    %8204 = vmatpush.bf16.msra.mxu0 0
    %8205 = vmatpush.bf16.msra.mxu0 0
    %8206 = vmatpush.bf16.msra.mxu0 0
    %8207 = vmatpush.bf16.msra.mxu0 0
    %8208 = vmatpush.bf16.msra.mxu0 0
    %8209 = vmatpush.bf16.msra.mxu0 0
    %8210 = vmatpush.bf16.msra.mxu0 %v8201
    %8211 = vmatmul.bf16.gmra.mxu0 %v8198
    %v8212 = vpop.f32.mrf.mxu0
    %v8213 = vadd.f32 0.0, %v8212
    %v8214 = vpop.f32.mrf.mxu0
    %8215 = vdwg.mxu0
    %8216 = vrot.lane.b32.xlu0 %v8075, 64
    %v8217 = vpop.permute.xlu0 %8216
    %v8219 = vsel %vm215, %v8192, 0
    %v8222 = vsel %vm219, %v8217, 0
    %8224 = vmatpush.bf16.msra.mxu0 0
    %8225 = vmatpush.bf16.msra.mxu0 0
    %8226 = vmatpush.bf16.msra.mxu0 0
    %8227 = vmatpush.bf16.msra.mxu0 0
    %8228 = vmatpush.bf16.msra.mxu0 0
    %8229 = vmatpush.bf16.msra.mxu0 0
    %8230 = vmatpush.bf16.msra.mxu0 0
    %8231 = vmatpush.bf16.msra.mxu0 %v8222
    %8232 = vmatmul.bf16.gmra.mxu0 %v8219
    %v8233 = vpop.f32.mrf.mxu0
    %v8234 = vadd.f32 0.0, %v8233
    %v8235 = vpop.f32.mrf.mxu0
    %8236 = vdwg.mxu0
    %8237 = vrot.lane.b32.xlu0 %v8098, 64
    %v8238 = vpop.permute.xlu0 %8237
    %v8240 = vsel %vm215, %v8193, 0
    %v8243 = vsel %vm219, %v8238, 0
    %8245 = vmatpush.bf16.msra.mxu0 0
    %8246 = vmatpush.bf16.msra.mxu0 0
    %8247 = vmatpush.bf16.msra.mxu0 0
    %8248 = vmatpush.bf16.msra.mxu0 0
    %8249 = vmatpush.bf16.msra.mxu0 0
    %8250 = vmatpush.bf16.msra.mxu0 0
    %8251 = vmatpush.bf16.msra.mxu0 0
    %8252 = vmatpush.bf16.msra.mxu0 %v8243
    %8253 = vmatmul.bf16.gmra.mxu0 %v8240
    %v8254 = vpop.f32.mrf.mxu0
    %v8255 = vadd.f32 0.0, %v8254
    %v8256 = vpop.f32.mrf.mxu0
    %8257 = vdwg.mxu0
    %8258 = vrot.lane.b32.xlu0 %v8121, 64
    %v8259 = vpop.permute.xlu0 %8258
    %v8261 = vsel %vm215, %v8194, 0
    %v8264 = vsel %vm219, %v8259, 0
    %8266 = vmatpush.bf16.msra.mxu0 0
    %8267 = vmatpush.bf16.msra.mxu0 0
    %8268 = vmatpush.bf16.msra.mxu0 0
    %8269 = vmatpush.bf16.msra.mxu0 0
    %8270 = vmatpush.bf16.msra.mxu0 0
    %8271 = vmatpush.bf16.msra.mxu0 0
    %8272 = vmatpush.bf16.msra.mxu0 0
    %8273 = vmatpush.bf16.msra.mxu0 %v8264
    %8274 = vmatmul.bf16.gmra.mxu0 %v8261
    %v8275 = vpop.f32.mrf.mxu0
    %v8276 = vadd.f32 0.0, %v8275
    %v8277 = vpop.f32.mrf.mxu0
    %8278 = vdwg.mxu0
    %8280 = vrot.lane.b32.xlu0 %v8234, 8
    %v8281 = vpop.permute.xlu0 %8280
    %8284 = vrot.lane.b32.xlu0 %v8255, 16
    %v8285 = vpop.permute.xlu0 %8284
    %8288 = vrot.lane.b32.xlu0 %v8276, 24
    %v8289 = vpop.permute.xlu0 %8288
    %v8291 = vsel %vm215, %v8213, %v8281
    %v8292 = vsel %vm3317, %v8291, %v8285
    %v8293 = vsel %vm3319, %v8292, %v8289
    %v8294 = vpack.c.bf16 %v8293, %v8293
    %v8296 = vperm.slane %v8043, 0
    %v8302 = vunpack.c.l.b16 %v8039
    %v8303 = vunpack.c.l.b16 %v8040
    %v8304 = vunpack.c.l.b16 %v8041
    %v8305 = vunpack.c.l.b16 %v8042
    %v8306 = vpack.c.b16 %v8303, %v8302
    %v8307 = vpack.c.b16 %v8305, %v8304
    %v8311 = vsel %vm3007, %v8294, 0
    %8313 = vmatpush.bf16.msra.mxu0 0
    %8314 = vmatpush.bf16.msra.mxu0 0
    %8315 = vmatpush.bf16.msra.mxu0 0
    %8316 = vmatpush.bf16.msra.mxu0 0
    %8317 = vmatpush.bf16.msra.mxu0 0
    %8318 = vmatpush.bf16.msra.mxu0 0
    %8319 = vmatpush.bf16.msra.mxu0 %v8307
    %8320 = vmatpush.bf16.msra.mxu0 %v8306
    %8321 = vmatmul.bf16.gmra.mxu0 %v8311
    %v8322 = vpop.f32.mrf.mxu0
    %v8323 = vadd.f32 %v8296, %v8322
    %v8324 = vpop.f32.mrf.mxu0
    %8325 = vdwg.mxu0
    %v8326 = vld [vmem:[%s4165] sm:$0x3]
    %v8327 = vld [vmem:[%s4167] sm:$0x3]
    %v8328 = vadd.f32 %v8000, %v8323
    %v8329 = vsel %vm3007, %v8328, 0.0
    %8330 = vadd.xlane.f32.xlu0 %v8329
    %v8331 = vpop.xlane.xlu0 %8330
    %v8332 = vmul.f32 %v8331, %v3693
    %v8333 = vsub.f32 %v8328, %v8332
    %v8334 = vmul.f32 %v8333, %v8333
    %v8335 = vsel %vm3007, %v8334, 0.0
    %8336 = vadd.xlane.f32.xlu0 %v8335
    %v8337 = vpop.xlane.xlu0 %8336
    %v8338 = vmul.f32 %v8337, %v3693
    %v8339 = vadd.f32 %v8338, 1e-05
    %v8340 = vrsqrt.pop %v8339
    %v8341 = vmul.f32 %v8340, %v8339
    %v8342 = vmul.f32 %v8341, %v8340
    %v8343 = vmul.f32 0.5, %v8342
    %v8344 = vsub.f32 1.5, %v8343
    %v8345 = vmul.f32 %v8340, %v8344
    %vm8346 = vweird.f32 %v8339
    %vm8347 = vweird.f32 %v8340
    %vm8348 = vmor %vm8346, %vm8347
    %v8349 = vsel %vm8348, %v8340, %v8345
    %v8350 = vmul.f32 %v8333, %v8349
    %v8351 = vperm.slane %v8326, 0
    %v8352 = vmul.f32 %v8350, %v8351
    %v8353 = vperm.slane %v8327, 0
    %v8354 = vadd.f32 %v8352, %v8353
    %v8355 = vpack.c.bf16 %v8354, %v8354
    %v8356 = vld [vmem:[%s4197] sm:$0xf]
    %v8357 = vld [vmem:[%s4197 + $0x4] sm:$0xf]
    %v8358 = vld [vmem:[%s4197 + $0x8] sm:$0xf]
    %v8359 = vld [vmem:[%s4197 + $0xc] sm:$0xf]
    %v8360 = vld [vmem:[%s4202] sm:$0x1]
    %v8362 = vperm.slane %v8360, 0
    %v8368 = vunpack.c.l.b16 %v8356
    %v8369 = vunpack.c.l.b16 %v8357
    %v8370 = vunpack.c.l.b16 %v8358
    %v8371 = vunpack.c.l.b16 %v8359
    %v8372 = vpack.c.b16 %v8369, %v8368
    %v8373 = vpack.c.b16 %v8371, %v8370
    %v8377 = vsel %vm3007, %v8355, 0
    %8379 = vmatpush.bf16.msra.mxu0 0
    %8380 = vmatpush.bf16.msra.mxu0 0
    %8381 = vmatpush.bf16.msra.mxu0 0
    %8382 = vmatpush.bf16.msra.mxu0 0
    %8383 = vmatpush.bf16.msra.mxu0 0
    %8384 = vmatpush.bf16.msra.mxu0 0
    %8385 = vmatpush.bf16.msra.mxu0 %v8373
    %8386 = vmatpush.bf16.msra.mxu0 %v8372
    %8387 = vmatmul.bf16.gmra.mxu0 %v8377
    %v8388 = vpop.f32.mrf.mxu0
    %v8389 = vadd.f32 %v8362, %v8388
    %v8390 = vpop.f32.mrf.mxu0
    %8391 = vdwg.mxu0
    %v8392 = vmax.f32 %v8389, 0.0
    %v8393 = vpack.c.bf16 %v8392, %v8392
    %v8394 = vld [vmem:[%s4237] sm:$0xf]
    %v8395 = vld [vmem:[%s4237 + $0x4] sm:$0xf]
    %v8396 = vld [vmem:[%s4237 + $0x8] sm:$0xf]
    %v8397 = vld [vmem:[%s4237 + $0xc] sm:$0xf]
    %v8398 = vld [vmem:[%s4237 + $0x10] sm:$0xf]
    %v8399 = vld [vmem:[%s4237 + $0x14] sm:$0xf]
    %v8400 = vld [vmem:[%s4237 + $0x18] sm:$0xf]
    %v8401 = vld [vmem:[%s4237 + $0x1c] sm:$0xf]
    %v8402 = vld [vmem:[%s4246] sm:$0x1]
    %v8404 = vperm.slane %v8402, 0
    %v8414 = vunpack.c.l.b16 %v8394
    %v8415 = vunpack.c.l.b16 %v8395
    %v8416 = vunpack.c.l.b16 %v8396
    %v8417 = vunpack.c.l.b16 %v8397
    %v8418 = vunpack.c.l.b16 %v8398
    %v8419 = vunpack.c.l.b16 %v8399
    %v8420 = vunpack.c.l.b16 %v8400
    %v8421 = vunpack.c.l.b16 %v8401
    %v8422 = vpack.c.b16 %v8415, %v8414
    %v8423 = vpack.c.b16 %v8417, %v8416
    %v8424 = vpack.c.b16 %v8419, %v8418
    %v8425 = vpack.c.b16 %v8421, %v8420
    %v8431 = vsel %vm3792, %v8393, 0
    %8433 = vmatpush.bf16.msra.mxu0 0
    %8434 = vmatpush.bf16.msra.mxu0 0
    %8435 = vmatpush.bf16.msra.mxu0 0
    %8436 = vmatpush.bf16.msra.mxu0 0
    %8437 = vmatpush.bf16.msra.mxu0 %v8425
    %8438 = vmatpush.bf16.msra.mxu0 %v8424
    %8439 = vmatpush.bf16.msra.mxu0 %v8423
    %8440 = vmatpush.bf16.msra.mxu0 %v8422
    %8441 = vmatmul.bf16.gmra.mxu0 %v8431
    %v8442 = vpop.f32.mrf.mxu0
    %v8443 = vadd.f32 %v8404, %v8442
    %v8444 = vpop.f32.mrf.mxu0
    %8445 = vdwg.mxu0
    %v8446 = vadd.f32 %v8354, %v8443
    %v8447 = vsel %vm3007, %v8446, 0.0
    %8448 = vadd.xlane.f32.xlu0 %v8447
    %v8449 = vpop.xlane.xlu0 %8448
    %v8450 = vmul.f32 %v8449, %v3693
    %v8451 = vsub.f32 %v8446, %v8450
    %v8452 = vmul.f32 %v8451, %v8451
    %v8453 = vsel %vm3007, %v8452, 0.0
    %8454 = vadd.xlane.f32.xlu0 %v8453
    %v8455 = vpop.xlane.xlu0 %8454
    %v8456 = vmul.f32 %v8455, %v3693
    %v8457 = vadd.f32 %v8456, 1e-05
    %v8458 = vrsqrt.pop %v8457
    %v8459 = vmul.f32 %v8458, %v8457
    %v8460 = vmul.f32 %v8459, %v8458
    %v8461 = vmul.f32 0.5, %v8460
    %v8462 = vsub.f32 1.5, %v8461
    %v8463 = vmul.f32 %v8458, %v8462
    %vm8464 = vweird.f32 %v8457
    %vm8465 = vweird.f32 %v8458
    %vm8466 = vmor %vm8464, %vm8465
    %v8467 = vsel %vm8466, %v8458, %v8463
    %v8468 = vmul.f32 %v8451, %v8467
    %v8469 = vperm.slane %v8326, 1
    %v8470 = vmul.f32 %v8468, %v8469
    %v8471 = vperm.slane %v8327, 1
    %v8472 = vadd.f32 %v8470, %v8471
    %v8473 = vpack.c.bf16 %v8472, %v8472
    %v8474 = vld [vmem:[%s53] sm:$0xf]
    %v8475 = vld [vmem:[%s53 + $0x4] sm:$0xf]
    %v8476 = vld [vmem:[%s53 + $0x8] sm:$0xf]
    %v8477 = vld [vmem:[%s53 + $0xc] sm:$0xf]
    %v8478 = vld [vmem:[%s55] sm:$0x1]
    %v8480 = vperm.slane %v8478, 0
    %v8486 = vunpack.c.l.b16 %v8474
    %v8487 = vunpack.c.l.b16 %v8475
    %v8488 = vunpack.c.l.b16 %v8476
    %v8489 = vunpack.c.l.b16 %v8477
    %v8490 = vpack.c.b16 %v8487, %v8486
    %v8491 = vpack.c.b16 %v8489, %v8488
    %v8495 = vsel %vm3007, %v8473, 0
    %8497 = vmatpush.bf16.msra.mxu0 0
    %8498 = vmatpush.bf16.msra.mxu0 0
    %8499 = vmatpush.bf16.msra.mxu0 0
    %8500 = vmatpush.bf16.msra.mxu0 0
    %8501 = vmatpush.bf16.msra.mxu0 0
    %8502 = vmatpush.bf16.msra.mxu0 0
    %8503 = vmatpush.bf16.msra.mxu0 %v8491
    %8504 = vmatpush.bf16.msra.mxu0 %v8490
    %8505 = vmatmul.bf16.gmra.mxu0 %v8495
    %v8506 = vpop.f32.mrf.mxu0
    %v8507 = vadd.f32 %v8480, %v8506
    %v8508 = vpop.f32.mrf.mxu0
    %8509 = vdwg.mxu0
    %s8510 = scalar_lea.vmem [#allocation11], 8
    %8511 = vst [vmem:[%s8510] sm:$0xff] %v8507
    // Predicated region
    $region130: #{_lambda_.1} parent=1 // pred_check
      _
    $region131: #{_lambda_.1} parent=1 // pred_check_branch
      %8513 = sbr.rel (0) target = $region133
    $region132: #{_lambda_.1} parent=1 // pred_region
      %8515 = vsyncadd [#allocation4], 0
      %s8516 = sshll.u32 [#allocation10], 4
      %s8517 = int_to_ptr.vmem [resolvable:$true] %s8516
      %s8518 = sshll.u32 %s57, 4
      %s8519 = int_to_ptr.hbm [resolvable:$true] %s8518
      %8524 = dma.vmem_to_hbm [thread:$0]  %s8517, 256, %s8519, [#allocation4], 128, 128, 8
    $region133: #{_lambda_.1} parent=1 // pred_fallthru
      _
    // Predicated region
    $region134: #{_lambda_.1} parent=1 // pred_check
      _
    $region135: #{_lambda_.1} parent=1 // pred_check_branch
      %8526 = sbr.rel (0) target = $region137
    $region136: #{_lambda_.1} parent=1 // pred_region
      %8528 = vsyncadd [#allocation12], 0
      %s8529 = sshll.u32 [#allocation11], 4
      %s8530 = int_to_ptr.vmem [resolvable:$true] %s8529
      %s8531 = sshll.u32 %s59, 4
      %s8532 = int_to_ptr.hbm [resolvable:$true] %s8531
      %8537 = dma.vmem_to_hbm [thread:$0]  %s8530, 256, %s8532, [#allocation12], 128, 128, 8
    $region137: #{_lambda_.1} parent=1 // pred_fallthru
      _
    // Predicated region
    $region138: #{_lambda_.1} parent=1 // pred_check
      _
    $region139: #{_lambda_.1} parent=1 // pred_check_branch
      %8539 = sbr.rel (0) target = $region141
    $region140: #{_lambda_.1} parent=1 // pred_region
      %8541 = dma.done [#allocation4], 256
    $region141: #{_lambda_.1} parent=1 // pred_fallthru
      _
    // Predicated region
    $region142: #{_lambda_.1} parent=1 // pred_check
      _
    $region143: #{_lambda_.1} parent=1 // pred_check_branch
      %8543 = sbr.rel (0) target = $region145
    $region144: #{_lambda_.1} parent=1 // pred_region
      %8545 = dma.done [#allocation12], 256
    $region145: #{_lambda_.1} parent=1 // pred_fallthru
      _
    %8546 = vsyncpa [#allocation3], 1
    %8547 = vsyncpa [#allocation6], 1
    %8548 = vsyncpa [#allocation9], 1
    %8549 = vsyncpa [#allocation4], 1
    %8550 = vsyncpa [#allocation12], 1

</llo_original>
